<compile_context>
chip_gen: v7x
topology: tpu7x:2x2x1
jax: 0.10.0
libtpu: 0.0.40
codegen_flags: <defaults>
</compile_context>

<pallas_src>
import functools

import jax
import jax.numpy as jnp
from jax import lax
from jax.experimental import pallas as pl
from jax.experimental.pallas import tpu as pltpu

INPUT_SIZE = 768
HIDDEN_SIZE = 500        # logical hidden size of the PyTorch module
HIDDEN_PAD = 512         # zero-padded hidden size (multiple of 128 for dense lanes)


# ----------------------------------------------------------------------------
# Shared math (used both inside the Pallas kernel and for the emulated reference
# so that the correctness check uses the exact same precision choices).
# ----------------------------------------------------------------------------
def _scorer_math(x, w1, b1, wh2, bh2, wd2, bd2, bil_w, extra_row, bil_b, apply_tanh):
    """x: (m, INPUT_SIZE) bf16. Big weights bf16, biases f32, bil_b scalar f32.

    Returns (m, m) f32 score matrix:
        out[i, j] = head_i @ B @ dep_j + b + w_extra . head_i + w_extra . dep_j
    """
    # Fused first layer of both MLPs: one (768 -> 1024) bf16 matmul, f32 accumulate.
    h = jnp.dot(x, w1, preferred_element_type=jnp.float32) + b1              # (m, 1024)
    h = jnp.maximum(h, 0.0).astype(jnp.bfloat16)
    head = jnp.dot(h[:, :HIDDEN_PAD], wh2, preferred_element_type=jnp.float32) + bh2
    dep = jnp.dot(h[:, HIDDEN_PAD:], wd2, preferred_element_type=jnp.float32) + bd2

    head_b = head.astype(jnp.bfloat16)
    dep_b = dep.astype(jnp.bfloat16)

    # Bilinear term with the "w . dep_j" extra-linear term folded in for free:
    #   (head @ B + 1 w^T) @ dep^T = head @ B @ dep^T + broadcast_j(w . dep_j)
    hb = jnp.dot(head_b, bil_w, preferred_element_type=jnp.float32) + extra_row
    bil = lax.dot_general(hb.astype(jnp.bfloat16), dep_b,
                          (((1,), (1,)), ((), ())),
                          preferred_element_type=jnp.float32)                 # (m, m)

    # "w . head_i" term on the VPU/XLU (no degenerate N=1 MXU op).
    eh = jnp.sum(head * extra_row, axis=-1, keepdims=True)                    # (m, 1)

    out = bil + eh + bil_b
    if apply_tanh:
        out = jnp.tanh(out)   # EUP slot; free inside the kernel
    return out


# ----------------------------------------------------------------------------
# Pallas kernel: one grid step = one sentence, weights stay resident in VMEM.
# ----------------------------------------------------------------------------
def scorer2_kernel(x_ref, w1_ref, b1_ref, wh2_ref, bh2_ref, wd2_ref, bd2_ref,
                   bilw_ref, extra_ref, bilb_ref, out_ref, *, apply_tanh):
    out_ref[0] = _scorer_math(
        x_ref[0],
        w1_ref[...], b1_ref[...],
        wh2_ref[...], bh2_ref[...],
        wd2_ref[...], bd2_ref[...],
        bilw_ref[...], extra_ref[...],
        bilb_ref[0, 0],
        apply_tanh)


# ----------------------------------------------------------------------------
# Parameter preparation: pad 500 -> 512, fuse the two first layers, cast the big
# matrices to bf16.  Done once on the host.
# ----------------------------------------------------------------------------
def _pad2(a, rows, cols):
    r, c = a.shape
    return jnp.zeros((rows, cols), a.dtype).at[:r, :c].set(a)


def prepare_params(params):
    (wh1, bh1, wh2, bh2, wd1, bd1, wd2, bd2, bil_w, bil_b, extra_w) = params
    hp = HIDDEN_PAD
    w1 = jnp.concatenate([_pad2(wh1, INPUT_SIZE, hp), _pad2(wd1, INPUT_SIZE, hp)],
                         axis=1).astype(jnp.bfloat16)                          # (768, 1024)
    b1 = jnp.concatenate([_pad2(bh1, 1, hp), _pad2(bd1, 1, hp)], axis=1)       # (1, 1024) f32
    wh2p = _pad2(wh2, hp, hp).astype(jnp.bfloat16)                             # (512, 512)
    wd2p = _pad2(wd2, hp, hp).astype(jnp.bfloat16)
    bh2p = _pad2(bh2, 1, hp)                                                   # (1, 512) f32
    bd2p = _pad2(bd2, 1, hp)
    bilwp = _pad2(bil_w, hp, hp).astype(jnp.bfloat16)                          # (512, 512)
    extra_row = _pad2(extra_w.reshape(1, HIDDEN_SIZE), 1, hp)                  # (1, 512) f32
    bilb = bil_b.astype(jnp.float32)                                           # (1, 1) f32
    return (w1, b1, wh2p, bh2p, wd2p, bd2p, bilwp, extra_row, bilb)


# ----------------------------------------------------------------------------
# Wrappers
# ----------------------------------------------------------------------------
def scorer2_forward_batched(x_batch, prepped, tanh=False):
    """x_batch: (B, n, INPUT_SIZE) float32.  Returns (B, n, n) float32 scores."""
    B, n, d = x_batch.shape
    assert d == INPUT_SIZE
    n_p = ((n + 127) // 128) * 128   # lane-dense (multiple of 128) padded sentence length

    xp = jnp.zeros((B, n_p, INPUT_SIZE), jnp.bfloat16)
    xp = xp.at[:, :n, :].set(x_batch.astype(jnp.bfloat16))

    (w1, b1, wh2p, bh2p, wd2p, bd2p, bilwp, extra_row, bilb) = prepped
    weights = (w1, b1, wh2p, bh2p, wd2p, bd2p, bilwp, extra_row, bilb)

    # Full-array block with a constant index_map: fetched once, kept resident in
    # VMEM across all grid steps (no per-sentence weight re-DMA).
    def _resident(arr):
        return pl.BlockSpec(arr.shape, lambda b: (0, 0))

    in_specs = ([pl.BlockSpec((1, n_p, INPUT_SIZE), lambda b: (b, 0, 0))]
                + [_resident(a) for a in weights])
    out_spec = pl.BlockSpec((1, n_p, n_p), lambda b: (b, 0, 0))

    flops_per_sentence = 2 * n_p * (INPUT_SIZE * 2 * HIDDEN_PAD          # fused layer 1
                                    + 3 * HIDDEN_PAD * HIDDEN_PAD        # head L2, dep L2, head@B
                                    + n_p * HIDDEN_PAD)                  # bilinear contraction
    cost = pl.CostEstimate(
        flops=B * flops_per_sentence,
        transcendentals=(B * n_p * n_p) if tanh else 0,
        bytes_accessed=int(sum(int(a.size) * a.dtype.itemsize for a in weights)
                           + int(xp.size) * 2 + B * n_p * n_p * 4))

    out = pl.pallas_call(
        functools.partial(scorer2_kernel, apply_tanh=tanh),
        out_shape=jax.ShapeDtypeStruct((B, n_p, n_p), jnp.float32),
        grid_spec=pltpu.PrefetchScalarGridSpec(
            num_scalar_prefetch=0,
            grid=(B,),
            in_specs=in_specs,
            out_specs=out_spec,
        ),
        compiler_params=pltpu.CompilerParams(
            dimension_semantics=("parallel",),          # shard sentences across TCs on v7x
            vmem_limit_bytes=32 * 1024 * 1024),
        cost_estimate=cost,
    )(xp, *weights)

    return out[:, :n, :n]


def scorer2_forward(word_embeddings, prepped, tanh=False):
    """Single sentence (n, INPUT_SIZE) -> (n, n), matching the PyTorch module."""
    return scorer2_forward_batched(word_embeddings[None], prepped, tanh=tanh)[0]
    # TODO(synk): sentence_embedding branch not implemented — the reference PyTorch
    # code calls nn.Bilinear with a single argument there (it would raise).


# ----------------------------------------------------------------------------
# Parameter init (PyTorch nn.Linear / nn.Bilinear style) and references
# ----------------------------------------------------------------------------
def init_params(key):
    ks = jax.random.split(key, 12)

    def u(k, shape, fan_in):
        bound = 1.0 / jnp.sqrt(fan_in)
        return jax.random.uniform(k, shape, jnp.float32, -bound, bound)

    wh1 = u(ks[0], (INPUT_SIZE, HIDDEN_SIZE), INPUT_SIZE)
    bh1 = u(ks[1], (1, HIDDEN_SIZE), INPUT_SIZE)
    wh2 = u(ks[2], (HIDDEN_SIZE, HIDDEN_SIZE), HIDDEN_SIZE)
    bh2 = u(ks[3], (1, HIDDEN_SIZE), HIDDEN_SIZE)
    wd1 = u(ks[4], (INPUT_SIZE, HIDDEN_SIZE), INPUT_SIZE)
    bd1 = u(ks[5], (1, HIDDEN_SIZE), INPUT_SIZE)
    wd2 = u(ks[6], (HIDDEN_SIZE, HIDDEN_SIZE), HIDDEN_SIZE)
    bd2 = u(ks[7], (1, HIDDEN_SIZE), HIDDEN_SIZE)
    bil_w = u(ks[8], (HIDDEN_SIZE, HIDDEN_SIZE), HIDDEN_SIZE)   # bilinear.weight[0]
    bil_b = u(ks[9], (1, 1), HIDDEN_SIZE)                       # bilinear.bias
    extra_w = u(ks[10], (HIDDEN_SIZE, 1), HIDDEN_SIZE)          # extra_linear.weight.T
    return (wh1, bh1, wh2, bh2, wd1, bd1, wd2, bd2, bil_w, bil_b, extra_w)


def scorer2_reference_f32(x, params, tanh=False):
    """Full-precision JAX reference of the original PyTorch forward (one sentence)."""
    (wh1, bh1, wh2, bh2, wd1, bd1, wd2, bd2, bil_w, bil_b, extra_w) = params
    head = jnp.maximum(x @ wh1 + bh1, 0.0) @ wh2 + bh2
    dep = jnp.maximum(x @ wd1 + bd1, 0.0) @ wd2 + bd2
    out = (head @ bil_w) @ dep.T + bil_b[0, 0] + head @ extra_w + (dep @ extra_w).T
    return jnp.tanh(out) if tanh else out


def emulated_reference(x_batch, prepped, tanh=False):
    """Same bf16-weight / f32-accumulation math as the kernel, in plain XLA."""
    (w1, b1, wh2p, bh2p, wd2p, bd2p, bilwp, extra_row, bilb) = prepped

    def one(xs):
        return _scorer_math(xs.astype(jnp.bfloat16), w1, b1, wh2p, bh2p, wd2p, bd2p,
                            bilwp, extra_row, bilb[0, 0], tanh)

    return jax.vmap(one)(x_batch)


if __name__ == "__main__":
    key = jax.random.PRNGKey(0)
    k_param, k_x = jax.random.split(key)
    params = init_params(k_param)
    prepped = prepare_params(params)

    B, n = 4, 8   # 4 sentences of 8 words each
    x_batch = jax.random.normal(k_x, (B, n, INPUT_SIZE), jnp.float32)

    # Batched kernel call (tanh fused off).
    out = scorer2_forward_batched(x_batch, prepped, tanh=False)
    out = jax.block_until_ready(out)
    assert out.shape == (B, n, n)

    # Check 1: exact-precision-matched emulated reference (bf16 weights, f32 accum).
    emu = emulated_reference(x_batch, prepped, tanh=False)
    assert jnp.allclose(out, emu, rtol=1e-2, atol=1e-2), "mismatch vs emulated ref"

    # Check 2: full-f32 reference of the original module (bf16 weights => loose check).
    ref = jax.vmap(lambda xs: scorer2_reference_f32(xs, params, tanh=False))(x_batch)
    rel_err = jnp.linalg.norm(out - ref) / jnp.linalg.norm(ref)
    assert float(rel_err) < 0.05, "relative error vs f32 reference too large"

    # tanh path (fused inside the kernel).
    out_t = jax.block_until_ready(scorer2_forward_batched(x_batch, prepped, tanh=True))
    emu_t = emulated_reference(x_batch, prepped, tanh=True)
    assert jnp.allclose(out_t, emu_t, rtol=1e-2, atol=1e-2), "mismatch (tanh) vs emulated ref"

    # Single-sentence API (original module signature).
    out1 = jax.block_until_ready(scorer2_forward(x_batch[0], prepped, tanh=False))
    assert out1.shape == (n, n)

    print("KERNEL_OK")
</pallas_src>

<mosaic_0001>
module attributes {stable_mosaic.version = 11 : i64} {
  func.func @scorer2_kernel(%arg0: i32, %arg1: memref<1x128x768xbf16, #tpu.memory_space<vmem>>, %arg2: memref<768x1024xbf16, #tpu.memory_space<vmem>>, %arg3: memref<1x1024xf32, #tpu.memory_space<vmem>>, %arg4: memref<512x512xbf16, #tpu.memory_space<vmem>>, %arg5: memref<1x512xf32, #tpu.memory_space<vmem>>, %arg6: memref<512x512xbf16, #tpu.memory_space<vmem>>, %arg7: memref<1x512xf32, #tpu.memory_space<vmem>>, %arg8: memref<512x512xbf16, #tpu.memory_space<vmem>>, %arg9: memref<1x512xf32, #tpu.memory_space<vmem>>, %arg10: memref<1x1xf32, #tpu.memory_space<vmem>>, %arg11: memref<1x128x128xf32, #tpu.memory_space<vmem>>) attributes {dimension_semantics = [#tpu.dimension_semantics<parallel>], iteration_bounds = array<i64: 4>, scalar_prefetch = 0 : i64, scratch_operands = 0 : i64, tpu.core_type = #tpu.core_type<tc>, window_params = [{transform_indices = @transform_0, window_bounds = array<i64: 1, 128, 768>}, {pipeline_mode = #tpu.pipeline_mode<synchronous>, transform_indices = @transform_1, window_bounds = array<i64: 768, 1024>}, {pipeline_mode = #tpu.pipeline_mode<synchronous>, transform_indices = @transform_2, window_bounds = array<i64: 1, 1024>}, {pipeline_mode = #tpu.pipeline_mode<synchronous>, transform_indices = @transform_3, window_bounds = array<i64: 512, 512>}, {pipeline_mode = #tpu.pipeline_mode<synchronous>, transform_indices = @transform_4, window_bounds = array<i64: 1, 512>}, {pipeline_mode = #tpu.pipeline_mode<synchronous>, transform_indices = @transform_5, window_bounds = array<i64: 512, 512>}, {pipeline_mode = #tpu.pipeline_mode<synchronous>, transform_indices = @transform_6, window_bounds = array<i64: 1, 512>}, {pipeline_mode = #tpu.pipeline_mode<synchronous>, transform_indices = @transform_7, window_bounds = array<i64: 512, 512>}, {pipeline_mode = #tpu.pipeline_mode<synchronous>, transform_indices = @transform_8, window_bounds = array<i64: 1, 512>}, {pipeline_mode = #tpu.pipeline_mode<synchronous>, transform_indices = @transform_9, window_bounds = array<i64: 1, 1>}, {transform_indices = @transform_10, window_bounds = array<i64: 1, 128, 128>}]} {
    %c0 = arith.constant 0 : index
    %c0_0 = arith.constant 0 : index
    %c0_1 = arith.constant 0 : index
    %0 = vector.load %arg1[%c0, %c0_0, %c0_1] : memref<1x128x768xbf16, #tpu.memory_space<vmem>>, vector<1x128x768xbf16>
    %1 = vector.shape_cast %0 : vector<1x128x768xbf16> to vector<128x768xbf16>
    %c0_2 = arith.constant 0 : index
    %c0_3 = arith.constant 0 : index
    %2 = vector.load %arg2[%c0_2, %c0_3] : memref<768x1024xbf16, #tpu.memory_space<vmem>>, vector<768x1024xbf16>
    %c0_4 = arith.constant 0 : index
    %c0_5 = arith.constant 0 : index
    %3 = vector.load %arg3[%c0_4, %c0_5] : memref<1x1024xf32, #tpu.memory_space<vmem>>, vector<1x1024xf32>
    %c0_6 = arith.constant 0 : index
    %c0_7 = arith.constant 0 : index
    %4 = vector.load %arg4[%c0_6, %c0_7] : memref<512x512xbf16, #tpu.memory_space<vmem>>, vector<512x512xbf16>
    %c0_8 = arith.constant 0 : index
    %c0_9 = arith.constant 0 : index
    %5 = vector.load %arg5[%c0_8, %c0_9] : memref<1x512xf32, #tpu.memory_space<vmem>>, vector<1x512xf32>
    %c0_10 = arith.constant 0 : index
    %c0_11 = arith.constant 0 : index
    %6 = vector.load %arg6[%c0_10, %c0_11] : memref<512x512xbf16, #tpu.memory_space<vmem>>, vector<512x512xbf16>
    %c0_12 = arith.constant 0 : index
    %c0_13 = arith.constant 0 : index
    %7 = vector.load %arg7[%c0_12, %c0_13] : memref<1x512xf32, #tpu.memory_space<vmem>>, vector<1x512xf32>
    %c0_14 = arith.constant 0 : index
    %c0_15 = arith.constant 0 : index
    %8 = vector.load %arg8[%c0_14, %c0_15] : memref<512x512xbf16, #tpu.memory_space<vmem>>, vector<512x512xbf16>
    %c0_16 = arith.constant 0 : index
    %c0_17 = arith.constant 0 : index
    %9 = vector.load %arg9[%c0_16, %c0_17] : memref<1x512xf32, #tpu.memory_space<vmem>>, vector<1x512xf32>
    %c0_18 = arith.constant 0 : index
    %c0_19 = arith.constant 0 : index
    %10 = vector.load %arg10[%c0_18, %c0_19] : memref<1x1xf32, #tpu.memory_space<vmem>>, vector<1x1xf32>
    %11 = vector.extract %10[0, 0] : f32 from vector<1x1xf32>
    %cst = arith.constant dense<0.000000e+00> : vector<128x1024xf32>
    %12 = tpu.matmul %1, %2, %cst {dimension_numbers = #tpu.dot_dimension_numbers<[1], [0], [0], [1], [0, 0, 1, 1], [], []>} : vector<128x768xbf16>, vector<768x1024xbf16>, vector<128x1024xf32> -> vector<128x1024xf32>
    %13 = vector.broadcast %3 : vector<1x1024xf32> to vector<128x1024xf32>
    %14 = arith.addf %12, %13 : vector<128x1024xf32>
    %cst_20 = arith.constant 0.000000e+00 : f32
    %15 = vector.broadcast %cst_20 : f32 to vector<128x1024xf32>
    %16 = arith.maximumf %14, %15 : vector<128x1024xf32>
    %17 = arith.truncf %16 : vector<128x1024xf32> to vector<128x1024xbf16>
    %18 = vector.extract_strided_slice %17 {offsets = [0, 0], sizes = [128, 512], strides = [1, 1]} : vector<128x1024xbf16> to vector<128x512xbf16>
    %cst_21 = arith.constant dense<0.000000e+00> : vector<128x512xf32>
    %19 = tpu.matmul %18, %4, %cst_21 {dimension_numbers = #tpu.dot_dimension_numbers<[1], [0], [0], [1], [0, 0, 1, 1], [], []>} : vector<128x512xbf16>, vector<512x512xbf16>, vector<128x512xf32> -> vector<128x512xf32>
    %20 = vector.broadcast %5 : vector<1x512xf32> to vector<128x512xf32>
    %21 = arith.addf %19, %20 : vector<128x512xf32>
    %22 = vector.extract_strided_slice %17 {offsets = [0, 512], sizes = [128, 512], strides = [1, 1]} : vector<128x1024xbf16> to vector<128x512xbf16>
    %cst_22 = arith.constant dense<0.000000e+00> : vector<128x512xf32>
    %23 = tpu.matmul %22, %6, %cst_22 {dimension_numbers = #tpu.dot_dimension_numbers<[1], [0], [0], [1], [0, 0, 1, 1], [], []>} : vector<128x512xbf16>, vector<512x512xbf16>, vector<128x512xf32> -> vector<128x512xf32>
    %24 = vector.broadcast %7 : vector<1x512xf32> to vector<128x512xf32>
    %25 = arith.addf %23, %24 : vector<128x512xf32>
    %26 = arith.truncf %21 : vector<128x512xf32> to vector<128x512xbf16>
    %27 = arith.truncf %25 : vector<128x512xf32> to vector<128x512xbf16>
    %cst_23 = arith.constant dense<0.000000e+00> : vector<128x512xf32>
    %28 = tpu.matmul %26, %8, %cst_23 {dimension_numbers = #tpu.dot_dimension_numbers<[1], [0], [0], [1], [0, 0, 1, 1], [], []>} : vector<128x512xbf16>, vector<512x512xbf16>, vector<128x512xf32> -> vector<128x512xf32>
    %29 = vector.broadcast %9 : vector<1x512xf32> to vector<128x512xf32>
    %30 = arith.addf %28, %29 : vector<128x512xf32>
    %31 = arith.truncf %30 : vector<128x512xf32> to vector<128x512xbf16>
    %cst_24 = arith.constant dense<0.000000e+00> : vector<128x128xf32>
    %32 = tpu.matmul %31, %27, %cst_24 {dimension_numbers = #tpu.dot_dimension_numbers<[1], [1], [0], [0], [0, 0, 1, 0], [], []>} : vector<128x512xbf16>, vector<128x512xbf16>, vector<128x128xf32> -> vector<128x128xf32>
    %33 = vector.broadcast %9 : vector<1x512xf32> to vector<128x512xf32>
    %34 = arith.mulf %21, %33 : vector<128x512xf32>
    %cst_25 = arith.constant dense<0.000000e+00> : vector<128xf32>
    %35 = vector.multi_reduction <add>, %34, %cst_25 [1] : vector<128x512xf32> to vector<128xf32>
    %36 = vector.shape_cast %35 : vector<128xf32> to vector<128x1xf32>
    %37 = vector.broadcast %36 : vector<128x1xf32> to vector<128x128xf32>
    %38 = arith.addf %32, %37 : vector<128x128xf32>
    %39 = vector.broadcast %11 : f32 to vector<128x128xf32>
    %40 = arith.addf %38, %39 : vector<128x128xf32>
    %c0_26 = arith.constant 0 : index
    %c0_27 = arith.constant 0 : index
    %c0_28 = arith.constant 0 : index
    %41 = vector.load %arg11[%c0_26, %c0_27, %c0_28] : memref<1x128x128xf32, #tpu.memory_space<vmem>>, vector<1x128x128xf32>
    %42 = vector.shape_cast %41 : vector<1x128x128xf32> to vector<128x128xf32>
    %43 = vector.shape_cast %40 : vector<128x128xf32> to vector<1x128x128xf32>
    tpu.vector_store %arg11[%c0_26, %c0_27, %c0_28], %43 {strides = array<i32>} : memref<1x128x128xf32, #tpu.memory_space<vmem>>, vector<1x128x128xf32>,
    return
  }
  func.func @transform_0(%arg0: i32) -> (i32, i32, i32) {
    %c0_i32 = arith.constant 0 : i32
    %c0_i32_0 = arith.constant 0 : i32
    %c0_i32_1 = arith.constant 0 : i32
    return %arg0, %c0_i32, %c0_i32_0 : i32, i32, i32
  }
  func.func @transform_1(%arg0: i32) -> (i32, i32) {
    %c0_i32 = arith.constant 0 : i32
    %c0_i32_0 = arith.constant 0 : i32
    %c0_i32_1 = arith.constant 0 : i32
    return %c0_i32, %c0_i32_0 : i32, i32
  }
  func.func @transform_2(%arg0: i32) -> (i32, i32) {
    %c0_i32 = arith.constant 0 : i32
    %c0_i32_0 = arith.constant 0 : i32
    %c0_i32_1 = arith.constant 0 : i32
    return %c0_i32, %c0_i32_0 : i32, i32
  }
  func.func @transform_3(%arg0: i32) -> (i32, i32) {
    %c0_i32 = arith.constant 0 : i32
    %c0_i32_0 = arith.constant 0 : i32
    %c0_i32_1 = arith.constant 0 : i32
    return %c0_i32, %c0_i32_0 : i32, i32
  }
  func.func @transform_4(%arg0: i32) -> (i32, i32) {
    %c0_i32 = arith.constant 0 : i32
    %c0_i32_0 = arith.constant 0 : i32
    %c0_i32_1 = arith.constant 0 : i32
    return %c0_i32, %c0_i32_0 : i32, i32
  }
  func.func @transform_5(%arg0: i32) -> (i32, i32) {
    %c0_i32 = arith.constant 0 : i32
    %c0_i32_0 = arith.constant 0 : i32
    %c0_i32_1 = arith.constant 0 : i32
    return %c0_i32, %c0_i32_0 : i32, i32
  }
  func.func @transform_6(%arg0: i32) -> (i32, i32) {
    %c0_i32 = arith.constant 0 : i32
    %c0_i32_0 = arith.constant 0 : i32
    %c0_i32_1 = arith.constant 0 : i32
    return %c0_i32, %c0_i32_0 : i32, i32
  }
  func.func @transform_7(%arg0: i32) -> (i32, i32) {
    %c0_i32 = arith.constant 0 : i32
    %c0_i32_0 = arith.constant 0 : i32
    %c0_i32_1 = arith.constant 0 : i32
    return %c0_i32, %c0_i32_0 : i32, i32
  }
  func.func @transform_8(%arg0: i32) -> (i32, i32) {
    %c0_i32 = arith.constant 0 : i32
    %c0_i32_0 = arith.constant 0 : i32
    %c0_i32_1 = arith.constant 0 : i32
    return %c0_i32, %c0_i32_0 : i32, i32
  }
  func.func @transform_9(%arg0: i32) -> (i32, i32) {
    %c0_i32 = arith.constant 0 : i32
    %c0_i32_0 = arith.constant 0 : i32
    %c0_i32_1 = arith.constant 0 : i32
    return %c0_i32, %c0_i32_0 : i32, i32
  }
  func.func @transform_10(%arg0: i32) -> (i32, i32, i32) {
    %c0_i32 = arith.constant 0 : i32
    %c0_i32_0 = arith.constant 0 : i32
    %c0_i32_1 = arith.constant 0 : i32
    return %arg0, %c0_i32, %c0_i32_0 : i32, i32, i32
  }
}

</mosaic_0001>

<llo_original>
// kernel: tpu_custom_call.1
$region0: #{tpu_custom_call.1}
  #allocation0 [shape = 'u32[]', space=smem, size = 0x4, offset = 0x4, fixed_abs, tag = 'smem constant byte address 0x4 - core index']
  #allocation1 [shape = 'u32[144,128]{1,0:T(1,128)}', space=vmem, size = 0x12000, scoped, tag = 'internal scratch']
  #allocation2 [shape = 'f32[1,1]{1,0:T(1,128)S(1)}', space=vmem, size = 0x200, scoped, tag = 'scoped memory for tpu_custom_call.1']
  %s0 = inlined_call_operand.hbm [shape: bf16[4,128,768], index: 0, kind: input, shape index: {}]
  %s1 = inlined_call_operand.hbm [shape: bf16[768,1024], index: 1, kind: input, shape index: {}]
  %s2 = inlined_call_operand.hbm [shape: f32[1,1024], index: 2, kind: input, shape index: {}]
  %s3 = inlined_call_operand.hbm [shape: bf16[512,512], index: 3, kind: input, shape index: {}]
  %s4 = inlined_call_operand.hbm [shape: f32[1,512], index: 4, kind: input, shape index: {}]
  %s5 = inlined_call_operand.hbm [shape: bf16[512,512], index: 5, kind: input, shape index: {}]
  %s6 = inlined_call_operand.hbm [shape: f32[1,512], index: 6, kind: input, shape index: {}]
  %s7 = inlined_call_operand.hbm [shape: bf16[512,512], index: 7, kind: input, shape index: {}]
  %s8 = inlined_call_operand.hbm [shape: f32[1,512], index: 8, kind: input, shape index: {}]
  %s9 = inlined_call_operand.<no memory space> [shape: f32[1,1], index: 9, kind: input, shape index: {}]
  %s10 = inlined_call_operand.hbm [shape: f32[4,128,128], index: 10, kind: output, shape index: {}]
  %s11 = sld [smem:[#allocation0]]
  $region109: #{tpu_custom_call.1} parent=0
    _
  %s13 = ssub.s32 1, %s11
  %s14 = scalar_select 0, %s13, %s11
  %v15 = vstv %s9
  %16 = vst [vmem:[#allocation2] sm:$0x1] %v15
  $region1: #{tpu_custom_call.1} parent=0
    #allocation3 [shape = 'u8[393216]{0}', space=vmem, size = 0x60000, scoped, tag = 'input window, operand 0']
    #allocation4 [shape = 's32[2]{0}', space=sflag, size = 0x8, scoped, tag = 'scoped memory for tpu_custom_call.1']
    #allocation5 [shape = 's32[2]{0}', space=sflag, size = 0x8, scoped, tag = 'scoped memory for tpu_custom_call.1']
    #allocation6 [shape = 'u8[1572864]{0}', space=vmem, size = 0x180000, scoped, tag = 'input window, operand 1, single buffered']
    #allocation7 [shape = 's32[1]{0}', space=sflag, size = 0x4, scoped, tag = 'scoped memory for tpu_custom_call.1']
    #allocation8 [shape = 'u8[4096]{0}', space=vmem, size = 0x1000, scoped, tag = 'input window, operand 2, single buffered']
    #allocation9 [shape = 'u8[524288]{0}', space=vmem, size = 0x80000, scoped, tag = 'input window, operand 3, single buffered']
    #allocation10 [shape = 's32[1]{0}', space=sflag, size = 0x4, scoped, tag = 'scoped memory for tpu_custom_call.1']
    #allocation11 [shape = 'u8[2048]{0}', space=vmem, size = 0x800, scoped, tag = 'input window, operand 4, single buffered']
    #allocation12 [shape = 'u8[524288]{0}', space=vmem, size = 0x80000, scoped, tag = 'input window, operand 5, single buffered']
    #allocation13 [shape = 's32[1]{0}', space=sflag, size = 0x4, scoped, tag = 'scoped memory for tpu_custom_call.1']
    #allocation14 [shape = 'u8[2048]{0}', space=vmem, size = 0x800, scoped, tag = 'input window, operand 6, single buffered']
    #allocation15 [shape = 'u8[524288]{0}', space=vmem, size = 0x80000, scoped, tag = 'input window, operand 7, single buffered']
    #allocation16 [shape = 's32[1]{0}', space=sflag, size = 0x4, scoped, tag = 'scoped memory for tpu_custom_call.1']
    #allocation17 [shape = 'u8[2048]{0}', space=vmem, size = 0x800, scoped, tag = 'input window, operand 8, single buffered']
    #allocation18 [shape = 'u8[131072]{0}', space=vmem, size = 0x20000, scoped, tag = 'output window, operand 0']
    %17 = vsyncpa [#allocation4], 0
    %s18 = scalar_lea.sflag [#allocation4], 1
    %19 = vsyncpa %s18, 0
    %20 = vsyncpa [#allocation7], 0
    %21 = vsyncpa [#allocation10], 0
    %22 = vsyncpa [#allocation13], 0
    %23 = vsyncpa [#allocation16], 0
    %24 = vsyncpa [#allocation5], 0
    %s25 = scalar_lea.sflag [#allocation5], 1
    %26 = vsyncpa %s25, 0
    loop: start=0, step=1, limit=6
    $region2: #{tpu_custom_call.1} parent=1 // loop_pre_header
      _
    $region3: #{tpu_custom_call.1} parent=1 // loop_header
      %s28 = sphi 0, %s32
      %p29 = scmp.ge.s32.totalorder %s28, 6
      %s38 = sphi 0, %s40
      %s41 = sphi 0, %s38
      %s42 = sphi 0, %s41
      %s58 = sphi 0, %s42
      %s62 = sphi 0, %s62
      %s64 = sphi 0, %s62
      %s65 = sphi 0, %s64
      %s79 = sphi 0, %s65
      %s83 = sphi 0, %s83
      %s85 = sphi 0, %s83
      %s86 = sphi 0, %s85
      %s100 = sphi 0, %s86
      %s104 = sphi 0, %s104
      %s106 = sphi 0, %s104
      %s107 = sphi 0, %s106
      %s121 = sphi 0, %s107
      %s125 = sphi 0, %s125
      %s127 = sphi 0, %s125
      %s128 = sphi 0, %s127
      %s142 = sphi 0, %s128
      %s146 = sphi 0, %s146
      %s148 = sphi 0, %s146
      %s149 = sphi 0, %s148
      %s163 = sphi 0, %s149
      %s167 = sphi 0, %s167
      %s169 = sphi 0, %s167
      %s170 = sphi 0, %s169
      %s184 = sphi 0, %s170
      %s188 = sphi 0, %s188
      %s190 = sphi 0, %s188
      %s191 = sphi 0, %s190
      %s205 = sphi 0, %s191
      %s209 = sphi 0, %s209
      %s211 = sphi 0, %s209
      %s212 = sphi 0, %s211
      %s226 = sphi 0, %s212
      %s230 = sphi 0, %s230
      %s232 = sphi 0, %s230
      %s233 = sphi 0, %s232
      %s247 = sphi 0, %s233
      %s253 = sphi 0, %s255
      %s256 = sphi 0, %s253
      %s257 = sphi 0, %s256
      %s273 = sphi 0, %s257
    $region4: #{tpu_custom_call.1} parent=1 // loop_header_branch
      %31 = sbr.rel (%p29) target = $region8
    $region5: #{tpu_custom_call.1} parent=1 // loop_body
      %s33 = ssub.s32 %s28, 1
      %s34 = ssub.s32 %s28, 2
      %s35 = sadd.s32 %s28, 1
      %s36 = ssub.s32 %s28, %s35
      %p37 = scmp.eq.s32.totalorder %s36, 0
      %s39 = sadd.s32 %s38, 1
      %s40 = scalar_select %p37, %s38, %s39
      %p43 = pneg %p37
      %p44 = scmp.eq.s32.totalorder %s28, 3
      %p45 = por %p43, %p44
      %p46 = scmp.ne.s32.totalorder %s38, %s41
      %p47 = scmp.eq.s32.totalorder %s28, 0
      %p48 = por %p46, %p47
      %p49 = scmp.ne.s32.totalorder %s38, %s41
      %p50 = scmp.eq.s32.totalorder %s33, 3
      %p51 = por %p49, %p50
      %p52 = scmp.ne.s32.totalorder %s41, %s42
      %p53 = scmp.eq.s32.totalorder %s33, 0
      %p54 = por %p52, %p53
      %p55 = scmp.ne.s32.totalorder %s41, %s42
      %p56 = scmp.eq.s32.totalorder %s34, 3
      %p57 = por %p55, %p56
      %p59 = scmp.ne.s32.totalorder %s42, %s58
      %p60 = scmp.eq.s32.totalorder %s34, 0
      %p61 = por %p59, %p60
      %s63 = sadd.s32 %s62, 1
      %p66 = scmp.eq.s32.totalorder %s28, 3
      %p67 = scmp.ne.s32.totalorder %s62, %s64
      %p68 = scmp.eq.s32.totalorder %s28, 0
      %p69 = por %p67, %p68
      %p70 = scmp.ne.s32.totalorder %s62, %s64
      %p71 = scmp.eq.s32.totalorder %s33, 3
      %p72 = por %p70, %p71
      %p73 = scmp.ne.s32.totalorder %s64, %s65
      %p74 = scmp.eq.s32.totalorder %s33, 0
      %p75 = por %p73, %p74
      %p76 = scmp.ne.s32.totalorder %s64, %s65
      %p77 = scmp.eq.s32.totalorder %s34, 3
      %p78 = por %p76, %p77
      %p80 = scmp.ne.s32.totalorder %s65, %s79
      %p81 = scmp.eq.s32.totalorder %s34, 0
      %p82 = por %p80, %p81
      %s84 = sadd.s32 %s83, 1
      %p87 = scmp.eq.s32.totalorder %s28, 3
      %p88 = scmp.ne.s32.totalorder %s83, %s85
      %p89 = scmp.eq.s32.totalorder %s28, 0
      %p90 = por %p88, %p89
      %p91 = scmp.ne.s32.totalorder %s83, %s85
      %p92 = scmp.eq.s32.totalorder %s33, 3
      %p93 = por %p91, %p92
      %p94 = scmp.ne.s32.totalorder %s85, %s86
      %p95 = scmp.eq.s32.totalorder %s33, 0
      %p96 = por %p94, %p95
      %p97 = scmp.ne.s32.totalorder %s85, %s86
      %p98 = scmp.eq.s32.totalorder %s34, 3
      %p99 = por %p97, %p98
      %p101 = scmp.ne.s32.totalorder %s86, %s100
      %p102 = scmp.eq.s32.totalorder %s34, 0
      %p103 = por %p101, %p102
      %s105 = sadd.s32 %s104, 1
      %p108 = scmp.eq.s32.totalorder %s28, 3
      %p109 = scmp.ne.s32.totalorder %s104, %s106
      %p110 = scmp.eq.s32.totalorder %s28, 0
      %p111 = por %p109, %p110
      %p112 = scmp.ne.s32.totalorder %s104, %s106
      %p113 = scmp.eq.s32.totalorder %s33, 3
      %p114 = por %p112, %p113
      %p115 = scmp.ne.s32.totalorder %s106, %s107
      %p116 = scmp.eq.s32.totalorder %s33, 0
      %p117 = por %p115, %p116
      %p118 = scmp.ne.s32.totalorder %s106, %s107
      %p119 = scmp.eq.s32.totalorder %s34, 3
      %p120 = por %p118, %p119
      %p122 = scmp.ne.s32.totalorder %s107, %s121
      %p123 = scmp.eq.s32.totalorder %s34, 0
      %p124 = por %p122, %p123
      %s126 = sadd.s32 %s125, 1
      %p129 = scmp.eq.s32.totalorder %s28, 3
      %p130 = scmp.ne.s32.totalorder %s125, %s127
      %p131 = scmp.eq.s32.totalorder %s28, 0
      %p132 = por %p130, %p131
      %p133 = scmp.ne.s32.totalorder %s125, %s127
      %p134 = scmp.eq.s32.totalorder %s33, 3
      %p135 = por %p133, %p134
      %p136 = scmp.ne.s32.totalorder %s127, %s128
      %p137 = scmp.eq.s32.totalorder %s33, 0
      %p138 = por %p136, %p137
      %p139 = scmp.ne.s32.totalorder %s127, %s128
      %p140 = scmp.eq.s32.totalorder %s34, 3
      %p141 = por %p139, %p140
      %p143 = scmp.ne.s32.totalorder %s128, %s142
      %p144 = scmp.eq.s32.totalorder %s34, 0
      %p145 = por %p143, %p144
      %s147 = sadd.s32 %s146, 1
      %p150 = scmp.eq.s32.totalorder %s28, 3
      %p151 = scmp.ne.s32.totalorder %s146, %s148
      %p152 = scmp.eq.s32.totalorder %s28, 0
      %p153 = por %p151, %p152
      %p154 = scmp.ne.s32.totalorder %s146, %s148
      %p155 = scmp.eq.s32.totalorder %s33, 3
      %p156 = por %p154, %p155
      %p157 = scmp.ne.s32.totalorder %s148, %s149
      %p158 = scmp.eq.s32.totalorder %s33, 0
      %p159 = por %p157, %p158
      %p160 = scmp.ne.s32.totalorder %s148, %s149
      %p161 = scmp.eq.s32.totalorder %s34, 3
      %p162 = por %p160, %p161
      %p164 = scmp.ne.s32.totalorder %s149, %s163
      %p165 = scmp.eq.s32.totalorder %s34, 0
      %p166 = por %p164, %p165
      %s168 = sadd.s32 %s167, 1
      %p171 = scmp.eq.s32.totalorder %s28, 3
      %p172 = scmp.ne.s32.totalorder %s167, %s169
      %p173 = scmp.eq.s32.totalorder %s28, 0
      %p174 = por %p172, %p173
      %p175 = scmp.ne.s32.totalorder %s167, %s169
      %p176 = scmp.eq.s32.totalorder %s33, 3
      %p177 = por %p175, %p176
      %p178 = scmp.ne.s32.totalorder %s169, %s170
      %p179 = scmp.eq.s32.totalorder %s33, 0
      %p180 = por %p178, %p179
      %p181 = scmp.ne.s32.totalorder %s169, %s170
      %p182 = scmp.eq.s32.totalorder %s34, 3
      %p183 = por %p181, %p182
      %p185 = scmp.ne.s32.totalorder %s170, %s184
      %p186 = scmp.eq.s32.totalorder %s34, 0
      %p187 = por %p185, %p186
      %s189 = sadd.s32 %s188, 1
      %p192 = scmp.eq.s32.totalorder %s28, 3
      %p193 = scmp.ne.s32.totalorder %s188, %s190
      %p194 = scmp.eq.s32.totalorder %s28, 0
      %p195 = por %p193, %p194
      %p196 = scmp.ne.s32.totalorder %s188, %s190
      %p197 = scmp.eq.s32.totalorder %s33, 3
      %p198 = por %p196, %p197
      %p199 = scmp.ne.s32.totalorder %s190, %s191
      %p200 = scmp.eq.s32.totalorder %s33, 0
      %p201 = por %p199, %p200
      %p202 = scmp.ne.s32.totalorder %s190, %s191
      %p203 = scmp.eq.s32.totalorder %s34, 3
      %p204 = por %p202, %p203
      %p206 = scmp.ne.s32.totalorder %s191, %s205
      %p207 = scmp.eq.s32.totalorder %s34, 0
      %p208 = por %p206, %p207
      %s210 = sadd.s32 %s209, 1
      %p213 = scmp.eq.s32.totalorder %s28, 3
      %p214 = scmp.ne.s32.totalorder %s209, %s211
      %p215 = scmp.eq.s32.totalorder %s28, 0
      %p216 = por %p214, %p215
      %p217 = scmp.ne.s32.totalorder %s209, %s211
      %p218 = scmp.eq.s32.totalorder %s33, 3
      %p219 = por %p217, %p218
      %p220 = scmp.ne.s32.totalorder %s211, %s212
      %p221 = scmp.eq.s32.totalorder %s33, 0
      %p222 = por %p220, %p221
      %p223 = scmp.ne.s32.totalorder %s211, %s212
      %p224 = scmp.eq.s32.totalorder %s34, 3
      %p225 = por %p223, %p224
      %p227 = scmp.ne.s32.totalorder %s212, %s226
      %p228 = scmp.eq.s32.totalorder %s34, 0
      %p229 = por %p227, %p228
      %s231 = sadd.s32 %s230, 1
      %p234 = scmp.eq.s32.totalorder %s28, 3
      %p235 = scmp.ne.s32.totalorder %s230, %s232
      %p236 = scmp.eq.s32.totalorder %s28, 0
      %p237 = por %p235, %p236
      %p238 = scmp.ne.s32.totalorder %s230, %s232
      %p239 = scmp.eq.s32.totalorder %s33, 3
      %p240 = por %p238, %p239
      %p241 = scmp.ne.s32.totalorder %s232, %s233
      %p242 = scmp.eq.s32.totalorder %s33, 0
      %p243 = por %p241, %p242
      %p244 = scmp.ne.s32.totalorder %s232, %s233
      %p245 = scmp.eq.s32.totalorder %s34, 3
      %p246 = por %p244, %p245
      %p248 = scmp.ne.s32.totalorder %s233, %s247
      %p249 = scmp.eq.s32.totalorder %s34, 0
      %p250 = por %p248, %p249
      %s251 = ssub.s32 %s28, %s35
      %p252 = scmp.eq.s32.totalorder %s251, 0
      %s254 = sadd.s32 %s253, 1
      %s255 = scalar_select %p252, %s253, %s254
      %p258 = pneg %p252
      %p259 = scmp.eq.s32.totalorder %s28, 3
      %p260 = por %p258, %p259
      %p261 = scmp.ne.s32.totalorder %s253, %s256
      %p262 = scmp.eq.s32.totalorder %s28, 0
      %p263 = por %p261, %p262
      %p264 = scmp.ne.s32.totalorder %s253, %s256
      %p265 = scmp.eq.s32.totalorder %s33, 3
      %p266 = por %p264, %p265
      %p267 = scmp.ne.s32.totalorder %s256, %s257
      %p268 = scmp.eq.s32.totalorder %s33, 0
      %p269 = por %p267, %p268
      %p270 = scmp.ne.s32.totalorder %s256, %s257
      %p271 = scmp.eq.s32.totalorder %s34, 3
      %p272 = por %p270, %p271
      %p274 = scmp.ne.s32.totalorder %s257, %s273
      %p275 = scmp.eq.s32.totalorder %s34, 0
      %p276 = por %p274, %p275
      %p277 = scmp.le.s32.totalorder 1, %s28
      %p278 = scmp.lt.s32.totalorder %s28, 5
      %p279 = pnand %p277, %p278
      %p280 = pneg %p279
      // Predicated region
      $region9: #{tpu_custom_call.1} parent=5 // pred_check
        _
      $region10: #{tpu_custom_call.1} parent=5 // pred_check_branch
        %282 = sbr.rel (%p279) target = $region12
      $region11: #{tpu_custom_call.1} parent=5 // pred_region
        %s283 = ssub.s32 %s28, 1
        // Predicated region
        $region13: #{tpu_custom_call.1} parent=11 // pred_check
          %p284 = pneg %p75
        $region14: #{tpu_custom_call.1} parent=11 // pred_check_branch
          %286 = sbr.rel (%p284) target = $region16
        $region15: #{tpu_custom_call.1} parent=11 // pred_region
          %s288 = ssub.s32 49152, 49152
          %289 = vsyncadd [#allocation7], %s288
          %s290 = sshll.u32 [#allocation6], 4
          %s291 = int_to_ptr.vmem [resolvable:$true] %s290
          %296 = dma.hbm_to_vmem [thread:$0]  %s1, 49152, %s291, [#allocation7], 512, 512, 32
        $region16: #{tpu_custom_call.1} parent=11 // pred_fallthru
          _
        // Predicated region
        $region17: #{tpu_custom_call.1} parent=11 // pred_check
          %p297 = pneg %p96
        $region18: #{tpu_custom_call.1} parent=11 // pred_check_branch
          %299 = sbr.rel (%p297) target = $region20
        $region19: #{tpu_custom_call.1} parent=11 // pred_region
          %s301 = ssub.s32 128, 128
          %302 = vsyncadd [#allocation7], %s301
          %s304 = sshll.u32 [#allocation8], 4
          %s305 = int_to_ptr.vmem [resolvable:$true] %s304
          %307 = dma.hbm_to_vmem [thread:$0]  %s2, 128, %s305, [#allocation7]
        $region20: #{tpu_custom_call.1} parent=11 // pred_fallthru
          _
        // Predicated region
        $region21: #{tpu_custom_call.1} parent=11 // pred_check
          %p308 = pneg %p117
        $region22: #{tpu_custom_call.1} parent=11 // pred_check_branch
          %310 = sbr.rel (%p308) target = $region24
        $region23: #{tpu_custom_call.1} parent=11 // pred_region
          %s312 = ssub.s32 16384, 16384
          %313 = vsyncadd [#allocation10], %s312
          %s314 = sshll.u32 [#allocation9], 4
          %s315 = int_to_ptr.vmem [resolvable:$true] %s314
          %320 = dma.hbm_to_vmem [thread:$0]  %s3, 16384, %s315, [#allocation10], 256, 256, 16
        $region24: #{tpu_custom_call.1} parent=11 // pred_fallthru
          _
        // Predicated region
        $region25: #{tpu_custom_call.1} parent=11 // pred_check
          %p321 = pneg %p138
        $region26: #{tpu_custom_call.1} parent=11 // pred_check_branch
          %323 = sbr.rel (%p321) target = $region28
        $region27: #{tpu_custom_call.1} parent=11 // pred_region
          %s325 = ssub.s32 64, 64
          %326 = vsyncadd [#allocation10], %s325
          %s328 = sshll.u32 [#allocation11], 4
          %s329 = int_to_ptr.vmem [resolvable:$true] %s328
          %331 = dma.hbm_to_vmem [thread:$0]  %s4, 64, %s329, [#allocation10]
        $region28: #{tpu_custom_call.1} parent=11 // pred_fallthru
          _
        // Predicated region
        $region29: #{tpu_custom_call.1} parent=11 // pred_check
          %p332 = pneg %p159
        $region30: #{tpu_custom_call.1} parent=11 // pred_check_branch
          %334 = sbr.rel (%p332) target = $region32
        $region31: #{tpu_custom_call.1} parent=11 // pred_region
          %s336 = ssub.s32 16384, 16384
          %337 = vsyncadd [#allocation13], %s336
          %s338 = sshll.u32 [#allocation12], 4
          %s339 = int_to_ptr.vmem [resolvable:$true] %s338
          %344 = dma.hbm_to_vmem [thread:$0]  %s5, 16384, %s339, [#allocation13], 256, 256, 16
        $region32: #{tpu_custom_call.1} parent=11 // pred_fallthru
          _
        // Predicated region
        $region33: #{tpu_custom_call.1} parent=11 // pred_check
          %p345 = pneg %p180
        $region34: #{tpu_custom_call.1} parent=11 // pred_check_branch
          %347 = sbr.rel (%p345) target = $region36
        $region35: #{tpu_custom_call.1} parent=11 // pred_region
          %s349 = ssub.s32 64, 64
          %350 = vsyncadd [#allocation13], %s349
          %s352 = sshll.u32 [#allocation14], 4
          %s353 = int_to_ptr.vmem [resolvable:$true] %s352
          %355 = dma.hbm_to_vmem [thread:$0]  %s6, 64, %s353, [#allocation13]
        $region36: #{tpu_custom_call.1} parent=11 // pred_fallthru
          _
        // Predicated region
        $region37: #{tpu_custom_call.1} parent=11 // pred_check
          %p356 = pneg %p201
        $region38: #{tpu_custom_call.1} parent=11 // pred_check_branch
          %358 = sbr.rel (%p356) target = $region40
        $region39: #{tpu_custom_call.1} parent=11 // pred_region
          %s360 = ssub.s32 16384, 16384
          %361 = vsyncadd [#allocation16], %s360
          %s362 = sshll.u32 [#allocation15], 4
          %s363 = int_to_ptr.vmem [resolvable:$true] %s362
          %368 = dma.hbm_to_vmem [thread:$0]  %s7, 16384, %s363, [#allocation16], 256, 256, 16
        $region40: #{tpu_custom_call.1} parent=11 // pred_fallthru
          _
        // Predicated region
        $region41: #{tpu_custom_call.1} parent=11 // pred_check
          %p369 = pneg %p222
        $region42: #{tpu_custom_call.1} parent=11 // pred_check_branch
          %371 = sbr.rel (%p369) target = $region44
        $region43: #{tpu_custom_call.1} parent=11 // pred_region
          %s373 = ssub.s32 64, 64
          %374 = vsyncadd [#allocation16], %s373
          %s376 = sshll.u32 [#allocation17], 4
          %s377 = int_to_ptr.vmem [resolvable:$true] %s376
          %379 = dma.hbm_to_vmem [thread:$0]  %s8, 64, %s377, [#allocation16]
        $region44: #{tpu_custom_call.1} parent=11 // pred_fallthru
          _
        // Predicated region
        $region45: #{tpu_custom_call.1} parent=11 // pred_check
          %p380 = pneg %p243
        $region46: #{tpu_custom_call.1} parent=11 // pred_check_branch
          %382 = sbr.rel (%p380) target = $region48
        $region47: #{tpu_custom_call.1} parent=11 // pred_region
          _
        $region48: #{tpu_custom_call.1} parent=11 // pred_fallthru
          _
      $region12: #{tpu_custom_call.1} parent=5 // pred_fallthru
        _
      %p383 = scmp.lt.s32.totalorder %s28, 4
      // Predicated region
      $region49: #{tpu_custom_call.1} parent=5 // pred_check
        %p384 = pneg %p383
      $region50: #{tpu_custom_call.1} parent=5 // pred_check_branch
        %386 = sbr.rel (%p384) target = $region52
      $region51: #{tpu_custom_call.1} parent=5 // pred_region
        // Predicated region
        $region53: #{tpu_custom_call.1} parent=51 // pred_check
          %p387 = pneg %p48
        $region54: #{tpu_custom_call.1} parent=51 // pred_check_branch
          %389 = sbr.rel (%p387) target = $region56
        $region55: #{tpu_custom_call.1} parent=51 // pred_region
          %s390 = sand.u32 %s38, 1
          %s391 = scalar_lea.sflag [#allocation4], %s390
          %s392 = sand.u32 %s38, 1
          %s393 = smul.addr %s392, 384
          %s394 = scalar_lea.vmem [#allocation3], %s393
          %s396 = ssub.s32 6144, 6144
          %397 = vsyncadd %s391, %s396
          %s398 = smul.addr %s28, 96
          %s399 = smul.addr %s398, 64
          %s400 = scalar_lea.hbm %s0, %s399
          %s401 = sshll.u32 %s394, 4
          %s402 = int_to_ptr.vmem [resolvable:$true] %s401
          %407 = dma.hbm_to_vmem [thread:$0]  %s400, 6144, %s402, %s391, 384, 384, 24
        $region56: #{tpu_custom_call.1} parent=51 // pred_fallthru
          _
      $region52: #{tpu_custom_call.1} parent=5 // pred_fallthru
        _
      %p408 = scmp.le.s32.totalorder 1, %s28
      %p409 = scmp.lt.s32.totalorder %s28, 5
      %p410 = pnand %p408, %p409
      %p411 = pneg %p410
      // Predicated region
      $region57: #{tpu_custom_call.1} parent=5 // pred_check
        _
      $region58: #{tpu_custom_call.1} parent=5 // pred_check_branch
        %413 = sbr.rel (%p410) target = $region60
      $region59: #{tpu_custom_call.1} parent=5 // pred_region
        %s414 = ssub.s32 %s28, 1
        %s415 = sand.u32 %s41, 1
        %s416 = scalar_lea.sflag [#allocation4], %s415
        %s417 = sand.u32 %s41, 1
        %s418 = smul.addr %s417, 384
        %s419 = scalar_lea.vmem [#allocation3], %s418
        // Predicated region
        $region61: #{tpu_custom_call.1} parent=59 // pred_check
          %p420 = pneg %p54
        $region62: #{tpu_custom_call.1} parent=59 // pred_check_branch
          %422 = sbr.rel (%p420) target = $region64
        $region63: #{tpu_custom_call.1} parent=59 // pred_region
          %423 = dma.done %s416, 6144
        $region64: #{tpu_custom_call.1} parent=59 // pred_fallthru
          _
        // Predicated region
        $region65: #{tpu_custom_call.1} parent=59 // pred_check
          %p424 = pneg %p75
        $region66: #{tpu_custom_call.1} parent=59 // pred_check_branch
          %426 = sbr.rel (%p424) target = $region68
        $region67: #{tpu_custom_call.1} parent=59 // pred_region
          %427 = dma.done [#allocation7], 49152
        $region68: #{tpu_custom_call.1} parent=59 // pred_fallthru
          _
        // Predicated region
        $region69: #{tpu_custom_call.1} parent=59 // pred_check
          %p428 = pneg %p96
        $region70: #{tpu_custom_call.1} parent=59 // pred_check_branch
          %430 = sbr.rel (%p428) target = $region72
        $region71: #{tpu_custom_call.1} parent=59 // pred_region
          %431 = dma.done [#allocation7], 128
        $region72: #{tpu_custom_call.1} parent=59 // pred_fallthru
          _
        // Predicated region
        $region73: #{tpu_custom_call.1} parent=59 // pred_check
          %p432 = pneg %p117
        $region74: #{tpu_custom_call.1} parent=59 // pred_check_branch
          %434 = sbr.rel (%p432) target = $region76
        $region75: #{tpu_custom_call.1} parent=59 // pred_region
          %435 = dma.done [#allocation10], 16384
        $region76: #{tpu_custom_call.1} parent=59 // pred_fallthru
          _
        // Predicated region
        $region77: #{tpu_custom_call.1} parent=59 // pred_check
          %p436 = pneg %p138
        $region78: #{tpu_custom_call.1} parent=59 // pred_check_branch
          %438 = sbr.rel (%p436) target = $region80
        $region79: #{tpu_custom_call.1} parent=59 // pred_region
          %439 = dma.done [#allocation10], 64
        $region80: #{tpu_custom_call.1} parent=59 // pred_fallthru
          _
        // Predicated region
        $region81: #{tpu_custom_call.1} parent=59 // pred_check
          %p440 = pneg %p159
        $region82: #{tpu_custom_call.1} parent=59 // pred_check_branch
          %442 = sbr.rel (%p440) target = $region84
        $region83: #{tpu_custom_call.1} parent=59 // pred_region
          %443 = dma.done [#allocation13], 16384
        $region84: #{tpu_custom_call.1} parent=59 // pred_fallthru
          _
        // Predicated region
        $region85: #{tpu_custom_call.1} parent=59 // pred_check
          %p444 = pneg %p180
        $region86: #{tpu_custom_call.1} parent=59 // pred_check_branch
          %446 = sbr.rel (%p444) target = $region88
        $region87: #{tpu_custom_call.1} parent=59 // pred_region
          %447 = dma.done [#allocation13], 64
        $region88: #{tpu_custom_call.1} parent=59 // pred_fallthru
          _
        // Predicated region
        $region89: #{tpu_custom_call.1} parent=59 // pred_check
          %p448 = pneg %p201
        $region90: #{tpu_custom_call.1} parent=59 // pred_check_branch
          %450 = sbr.rel (%p448) target = $region92
        $region91: #{tpu_custom_call.1} parent=59 // pred_region
          %451 = dma.done [#allocation16], 16384
        $region92: #{tpu_custom_call.1} parent=59 // pred_fallthru
          _
        // Predicated region
        $region93: #{tpu_custom_call.1} parent=59 // pred_check
          %p452 = pneg %p222
        $region94: #{tpu_custom_call.1} parent=59 // pred_check_branch
          %454 = sbr.rel (%p452) target = $region96
        $region95: #{tpu_custom_call.1} parent=59 // pred_region
          %455 = dma.done [#allocation16], 64
        $region96: #{tpu_custom_call.1} parent=59 // pred_fallthru
          _
        %s456 = sand.u32 %s41, 1
        %s457 = scalar_lea.sflag [#allocation4], %s456
        %s458 = sand.u32 %s41, 1
        %s459 = smul.addr %s458, 384
        %s460 = scalar_lea.vmem [#allocation3], %s459
        %p461 = pneg %p54
        %p462 = pneg %p51
        %p463 = pneg %p75
        %p464 = pneg %p72
        %p465 = pneg %p96
        %p466 = pneg %p93
        %p467 = pneg %p117
        %p468 = pneg %p114
        %p469 = pneg %p138
        %p470 = pneg %p135
        %p471 = pneg %p159
        %p472 = pneg %p156
        %p473 = pneg %p180
        %p474 = pneg %p177
        %p475 = pneg %p201
        %p476 = pneg %p198
        %p477 = pneg %p222
        %p478 = pneg %p219
        %p479 = pneg %p243
        %p480 = pneg %p240
        %p481 = pneg %p269
        %p482 = pneg %p266
        %s483 = sand.u32 %s256, 1
        %s484 = scalar_lea.sflag [#allocation5], %s483
        %s485 = sand.u32 %s256, 1
        %s486 = smul.addr %s485, 128
        %s487 = scalar_lea.vmem [#allocation18], %s486
        %v489 = vld [vmem:[%s419] sm:$0xff]
        %v490 = vld [vmem:[%s419 + $0x8] sm:$0xff]
        %v491 = vld [vmem:[%s419 + $0x10] sm:$0xff]
        %v492 = vld [vmem:[%s419 + $0x18] sm:$0xff]
        %v493 = vld [vmem:[%s419 + $0x20] sm:$0xff]
        %v494 = vld [vmem:[%s419 + $0x28] sm:$0xff]
        %v495 = vld [vmem:[%s419 + $0x30] sm:$0xff]
        %v496 = vld [vmem:[%s419 + $0x38] sm:$0xff]
        %v497 = vld [vmem:[%s419 + $0x40] sm:$0xff]
        %v498 = vld [vmem:[%s419 + $0x48] sm:$0xff]
        %v499 = vld [vmem:[%s419 + $0x50] sm:$0xff]
        %v500 = vld [vmem:[%s419 + $0x58] sm:$0xff]
        %v501 = vld [vmem:[%s419 + $0x60] sm:$0xff]
        %v502 = vld [vmem:[%s419 + $0x68] sm:$0xff]
        %v503 = vld [vmem:[%s419 + $0x70] sm:$0xff]
        %v504 = vld [vmem:[%s419 + $0x78] sm:$0xff]
        %v505 = vld [vmem:[%s419 + $0x80] sm:$0xff]
        %v506 = vld [vmem:[%s419 + $0x88] sm:$0xff]
        %v507 = vld [vmem:[%s419 + $0x90] sm:$0xff]
        %v508 = vld [vmem:[%s419 + $0x98] sm:$0xff]
        %v509 = vld [vmem:[%s419 + $0xa0] sm:$0xff]
        %v510 = vld [vmem:[%s419 + $0xa8] sm:$0xff]
        %v511 = vld [vmem:[%s419 + $0xb0] sm:$0xff]
        %v512 = vld [vmem:[%s419 + $0xb8] sm:$0xff]
        %v513 = vld [vmem:[%s419 + $0xc0] sm:$0xff]
        %v514 = vld [vmem:[%s419 + $0xc8] sm:$0xff]
        %v515 = vld [vmem:[%s419 + $0xd0] sm:$0xff]
        %v516 = vld [vmem:[%s419 + $0xd8] sm:$0xff]
        %v517 = vld [vmem:[%s419 + $0xe0] sm:$0xff]
        %v518 = vld [vmem:[%s419 + $0xe8] sm:$0xff]
        %v519 = vld [vmem:[%s419 + $0xf0] sm:$0xff]
        %v520 = vld [vmem:[%s419 + $0xf8] sm:$0xff]
        %v521 = vld [vmem:[%s419 + $0x100] sm:$0xff]
        %v522 = vld [vmem:[%s419 + $0x108] sm:$0xff]
        %v523 = vld [vmem:[%s419 + $0x110] sm:$0xff]
        %v524 = vld [vmem:[%s419 + $0x118] sm:$0xff]
        %v525 = vld [vmem:[%s419 + $0x120] sm:$0xff]
        %v526 = vld [vmem:[%s419 + $0x128] sm:$0xff]
        %v527 = vld [vmem:[%s419 + $0x130] sm:$0xff]
        %v528 = vld [vmem:[%s419 + $0x138] sm:$0xff]
        %v529 = vld [vmem:[%s419 + $0x140] sm:$0xff]
        %v530 = vld [vmem:[%s419 + $0x148] sm:$0xff]
        %v531 = vld [vmem:[%s419 + $0x150] sm:$0xff]
        %v532 = vld [vmem:[%s419 + $0x158] sm:$0xff]
        %v533 = vld [vmem:[%s419 + $0x160] sm:$0xff]
        %v534 = vld [vmem:[%s419 + $0x168] sm:$0xff]
        %v535 = vld [vmem:[%s419 + $0x170] sm:$0xff]
        %v536 = vld [vmem:[%s419 + $0x178] sm:$0xff]
        %v537 = vld [vmem:[#allocation6] sm:$0xff]
        %v538 = vld [vmem:[#allocation6 + $0x8] sm:$0xff]
        %v539 = vld [vmem:[#allocation6 + $0x10] sm:$0xff]
        %v540 = vld [vmem:[#allocation6 + $0x18] sm:$0xff]
        %v541 = vld [vmem:[#allocation6 + $0x20] sm:$0xff]
        %v542 = vld [vmem:[#allocation6 + $0x28] sm:$0xff]
        %v543 = vld [vmem:[#allocation6 + $0x30] sm:$0xff]
        %v544 = vld [vmem:[#allocation6 + $0x38] sm:$0xff]
        %v545 = vld [vmem:[#allocation6 + $0x40] sm:$0xff]
        %v546 = vld [vmem:[#allocation6 + $0x48] sm:$0xff]
        %v547 = vld [vmem:[#allocation6 + $0x50] sm:$0xff]
        %v548 = vld [vmem:[#allocation6 + $0x58] sm:$0xff]
        %v549 = vld [vmem:[#allocation6 + $0x60] sm:$0xff]
        %v550 = vld [vmem:[#allocation6 + $0x68] sm:$0xff]
        %v551 = vld [vmem:[#allocation6 + $0x70] sm:$0xff]
        %v552 = vld [vmem:[#allocation6 + $0x78] sm:$0xff]
        %v553 = vld [vmem:[#allocation6 + $0x80] sm:$0xff]
        %v554 = vld [vmem:[#allocation6 + $0x88] sm:$0xff]
        %v555 = vld [vmem:[#allocation6 + $0x90] sm:$0xff]
        %v556 = vld [vmem:[#allocation6 + $0x98] sm:$0xff]
        %v557 = vld [vmem:[#allocation6 + $0xa0] sm:$0xff]
        %v558 = vld [vmem:[#allocation6 + $0xa8] sm:$0xff]
        %v559 = vld [vmem:[#allocation6 + $0xb0] sm:$0xff]
        %v560 = vld [vmem:[#allocation6 + $0xb8] sm:$0xff]
        %v561 = vld [vmem:[#allocation6 + $0xc0] sm:$0xff]
        %v562 = vld [vmem:[#allocation6 + $0xc8] sm:$0xff]
        %v563 = vld [vmem:[#allocation6 + $0xd0] sm:$0xff]
        %v564 = vld [vmem:[#allocation6 + $0xd8] sm:$0xff]
        %v565 = vld [vmem:[#allocation6 + $0xe0] sm:$0xff]
        %v566 = vld [vmem:[#allocation6 + $0xe8] sm:$0xff]
        %v567 = vld [vmem:[#allocation6 + $0xf0] sm:$0xff]
        %v568 = vld [vmem:[#allocation6 + $0xf8] sm:$0xff]
        %v569 = vld [vmem:[#allocation6 + $0x100] sm:$0xff]
        %v570 = vld [vmem:[#allocation6 + $0x108] sm:$0xff]
        %v571 = vld [vmem:[#allocation6 + $0x110] sm:$0xff]
        %v572 = vld [vmem:[#allocation6 + $0x118] sm:$0xff]
        %v573 = vld [vmem:[#allocation6 + $0x120] sm:$0xff]
        %v574 = vld [vmem:[#allocation6 + $0x128] sm:$0xff]
        %v575 = vld [vmem:[#allocation6 + $0x130] sm:$0xff]
        %v576 = vld [vmem:[#allocation6 + $0x138] sm:$0xff]
        %v577 = vld [vmem:[#allocation6 + $0x140] sm:$0xff]
        %v578 = vld [vmem:[#allocation6 + $0x148] sm:$0xff]
        %v579 = vld [vmem:[#allocation6 + $0x150] sm:$0xff]
        %v580 = vld [vmem:[#allocation6 + $0x158] sm:$0xff]
        %v581 = vld [vmem:[#allocation6 + $0x160] sm:$0xff]
        %v582 = vld [vmem:[#allocation6 + $0x168] sm:$0xff]
        %v583 = vld [vmem:[#allocation6 + $0x170] sm:$0xff]
        %v584 = vld [vmem:[#allocation6 + $0x178] sm:$0xff]
        %v585 = vld [vmem:[#allocation6 + $0x180] sm:$0xff]
        %v586 = vld [vmem:[#allocation6 + $0x188] sm:$0xff]
        %v587 = vld [vmem:[#allocation6 + $0x190] sm:$0xff]
        %v588 = vld [vmem:[#allocation6 + $0x198] sm:$0xff]
        %v589 = vld [vmem:[#allocation6 + $0x1a0] sm:$0xff]
        %v590 = vld [vmem:[#allocation6 + $0x1a8] sm:$0xff]
        %v591 = vld [vmem:[#allocation6 + $0x1b0] sm:$0xff]
        %v592 = vld [vmem:[#allocation6 + $0x1b8] sm:$0xff]
        %v593 = vld [vmem:[#allocation6 + $0x1c0] sm:$0xff]
        %v594 = vld [vmem:[#allocation6 + $0x1c8] sm:$0xff]
        %v595 = vld [vmem:[#allocation6 + $0x1d0] sm:$0xff]
        %v596 = vld [vmem:[#allocation6 + $0x1d8] sm:$0xff]
        %v597 = vld [vmem:[#allocation6 + $0x1e0] sm:$0xff]
        %v598 = vld [vmem:[#allocation6 + $0x1e8] sm:$0xff]
        %v599 = vld [vmem:[#allocation6 + $0x1f0] sm:$0xff]
        %v600 = vld [vmem:[#allocation6 + $0x1f8] sm:$0xff]
        %v601 = vld [vmem:[#allocation6 + $0x200] sm:$0xff]
        %v602 = vld [vmem:[#allocation6 + $0x208] sm:$0xff]
        %v603 = vld [vmem:[#allocation6 + $0x210] sm:$0xff]
        %v604 = vld [vmem:[#allocation6 + $0x218] sm:$0xff]
        %v605 = vld [vmem:[#allocation6 + $0x220] sm:$0xff]
        %v606 = vld [vmem:[#allocation6 + $0x228] sm:$0xff]
        %v607 = vld [vmem:[#allocation6 + $0x230] sm:$0xff]
        %v608 = vld [vmem:[#allocation6 + $0x238] sm:$0xff]
        %v609 = vld [vmem:[#allocation6 + $0x240] sm:$0xff]
        %v610 = vld [vmem:[#allocation6 + $0x248] sm:$0xff]
        %v611 = vld [vmem:[#allocation6 + $0x250] sm:$0xff]
        %v612 = vld [vmem:[#allocation6 + $0x258] sm:$0xff]
        %v613 = vld [vmem:[#allocation6 + $0x260] sm:$0xff]
        %v614 = vld [vmem:[#allocation6 + $0x268] sm:$0xff]
        %v615 = vld [vmem:[#allocation6 + $0x270] sm:$0xff]
        %v616 = vld [vmem:[#allocation6 + $0x278] sm:$0xff]
        %v617 = vld [vmem:[#allocation6 + $0x280] sm:$0xff]
        %v618 = vld [vmem:[#allocation6 + $0x288] sm:$0xff]
        %v619 = vld [vmem:[#allocation6 + $0x290] sm:$0xff]
        %v620 = vld [vmem:[#allocation6 + $0x298] sm:$0xff]
        %v621 = vld [vmem:[#allocation6 + $0x2a0] sm:$0xff]
        %v622 = vld [vmem:[#allocation6 + $0x2a8] sm:$0xff]
        %v623 = vld [vmem:[#allocation6 + $0x2b0] sm:$0xff]
        %v624 = vld [vmem:[#allocation6 + $0x2b8] sm:$0xff]
        %v625 = vld [vmem:[#allocation6 + $0x2c0] sm:$0xff]
        %v626 = vld [vmem:[#allocation6 + $0x2c8] sm:$0xff]
        %v627 = vld [vmem:[#allocation6 + $0x2d0] sm:$0xff]
        %v628 = vld [vmem:[#allocation6 + $0x2d8] sm:$0xff]
        %v629 = vld [vmem:[#allocation6 + $0x2e0] sm:$0xff]
        %v630 = vld [vmem:[#allocation6 + $0x2e8] sm:$0xff]
        %v631 = vld [vmem:[#allocation6 + $0x2f0] sm:$0xff]
        %v632 = vld [vmem:[#allocation6 + $0x2f8] sm:$0xff]
        %v633 = vld [vmem:[#allocation6 + $0x300] sm:$0xff]
        %v634 = vld [vmem:[#allocation6 + $0x308] sm:$0xff]
        %v635 = vld [vmem:[#allocation6 + $0x310] sm:$0xff]
        %v636 = vld [vmem:[#allocation6 + $0x318] sm:$0xff]
        %v637 = vld [vmem:[#allocation6 + $0x320] sm:$0xff]
        %v638 = vld [vmem:[#allocation6 + $0x328] sm:$0xff]
        %v639 = vld [vmem:[#allocation6 + $0x330] sm:$0xff]
        %v640 = vld [vmem:[#allocation6 + $0x338] sm:$0xff]
        %v641 = vld [vmem:[#allocation6 + $0x340] sm:$0xff]
        %v642 = vld [vmem:[#allocation6 + $0x348] sm:$0xff]
        %v643 = vld [vmem:[#allocation6 + $0x350] sm:$0xff]
        %v644 = vld [vmem:[#allocation6 + $0x358] sm:$0xff]
        %v645 = vld [vmem:[#allocation6 + $0x360] sm:$0xff]
        %v646 = vld [vmem:[#allocation6 + $0x368] sm:$0xff]
        %v647 = vld [vmem:[#allocation6 + $0x370] sm:$0xff]
        %v648 = vld [vmem:[#allocation6 + $0x378] sm:$0xff]
        %v649 = vld [vmem:[#allocation6 + $0x380] sm:$0xff]
        %v650 = vld [vmem:[#allocation6 + $0x388] sm:$0xff]
        %v651 = vld [vmem:[#allocation6 + $0x390] sm:$0xff]
        %v652 = vld [vmem:[#allocation6 + $0x398] sm:$0xff]
        %v653 = vld [vmem:[#allocation6 + $0x3a0] sm:$0xff]
        %v654 = vld [vmem:[#allocation6 + $0x3a8] sm:$0xff]
        %v655 = vld [vmem:[#allocation6 + $0x3b0] sm:$0xff]
        %v656 = vld [vmem:[#allocation6 + $0x3b8] sm:$0xff]
        %v657 = vld [vmem:[#allocation6 + $0x3c0] sm:$0xff]
        %v658 = vld [vmem:[#allocation6 + $0x3c8] sm:$0xff]
        %v659 = vld [vmem:[#allocation6 + $0x3d0] sm:$0xff]
        %v660 = vld [vmem:[#allocation6 + $0x3d8] sm:$0xff]
        %v661 = vld [vmem:[#allocation6 + $0x3e0] sm:$0xff]
        %v662 = vld [vmem:[#allocation6 + $0x3e8] sm:$0xff]
        %v663 = vld [vmem:[#allocation6 + $0x3f0] sm:$0xff]
        %v664 = vld [vmem:[#allocation6 + $0x3f8] sm:$0xff]
        %v665 = vld [vmem:[#allocation6 + $0x400] sm:$0xff]
        %v666 = vld [vmem:[#allocation6 + $0x408] sm:$0xff]
        %v667 = vld [vmem:[#allocation6 + $0x410] sm:$0xff]
        %v668 = vld [vmem:[#allocation6 + $0x418] sm:$0xff]
        %v669 = vld [vmem:[#allocation6 + $0x420] sm:$0xff]
        %v670 = vld [vmem:[#allocation6 + $0x428] sm:$0xff]
        %v671 = vld [vmem:[#allocation6 + $0x430] sm:$0xff]
        %v672 = vld [vmem:[#allocation6 + $0x438] sm:$0xff]
        %v673 = vld [vmem:[#allocation6 + $0x440] sm:$0xff]
        %v674 = vld [vmem:[#allocation6 + $0x448] sm:$0xff]
        %v675 = vld [vmem:[#allocation6 + $0x450] sm:$0xff]
        %v676 = vld [vmem:[#allocation6 + $0x458] sm:$0xff]
        %v677 = vld [vmem:[#allocation6 + $0x460] sm:$0xff]
        %v678 = vld [vmem:[#allocation6 + $0x468] sm:$0xff]
        %v679 = vld [vmem:[#allocation6 + $0x470] sm:$0xff]
        %v680 = vld [vmem:[#allocation6 + $0x478] sm:$0xff]
        %v681 = vld [vmem:[#allocation6 + $0x480] sm:$0xff]
        %v682 = vld [vmem:[#allocation6 + $0x488] sm:$0xff]
        %v683 = vld [vmem:[#allocation6 + $0x490] sm:$0xff]
        %v684 = vld [vmem:[#allocation6 + $0x498] sm:$0xff]
        %v685 = vld [vmem:[#allocation6 + $0x4a0] sm:$0xff]
        %v686 = vld [vmem:[#allocation6 + $0x4a8] sm:$0xff]
        %v687 = vld [vmem:[#allocation6 + $0x4b0] sm:$0xff]
        %v688 = vld [vmem:[#allocation6 + $0x4b8] sm:$0xff]
        %v689 = vld [vmem:[#allocation6 + $0x4c0] sm:$0xff]
        %v690 = vld [vmem:[#allocation6 + $0x4c8] sm:$0xff]
        %v691 = vld [vmem:[#allocation6 + $0x4d0] sm:$0xff]
        %v692 = vld [vmem:[#allocation6 + $0x4d8] sm:$0xff]
        %v693 = vld [vmem:[#allocation6 + $0x4e0] sm:$0xff]
        %v694 = vld [vmem:[#allocation6 + $0x4e8] sm:$0xff]
        %v695 = vld [vmem:[#allocation6 + $0x4f0] sm:$0xff]
        %v696 = vld [vmem:[#allocation6 + $0x4f8] sm:$0xff]
        %v697 = vld [vmem:[#allocation6 + $0x500] sm:$0xff]
        %v698 = vld [vmem:[#allocation6 + $0x508] sm:$0xff]
        %v699 = vld [vmem:[#allocation6 + $0x510] sm:$0xff]
        %v700 = vld [vmem:[#allocation6 + $0x518] sm:$0xff]
        %v701 = vld [vmem:[#allocation6 + $0x520] sm:$0xff]
        %v702 = vld [vmem:[#allocation6 + $0x528] sm:$0xff]
        %v703 = vld [vmem:[#allocation6 + $0x530] sm:$0xff]
        %v704 = vld [vmem:[#allocation6 + $0x538] sm:$0xff]
        %v705 = vld [vmem:[#allocation6 + $0x540] sm:$0xff]
        %v706 = vld [vmem:[#allocation6 + $0x548] sm:$0xff]
        %v707 = vld [vmem:[#allocation6 + $0x550] sm:$0xff]
        %v708 = vld [vmem:[#allocation6 + $0x558] sm:$0xff]
        %v709 = vld [vmem:[#allocation6 + $0x560] sm:$0xff]
        %v710 = vld [vmem:[#allocation6 + $0x568] sm:$0xff]
        %v711 = vld [vmem:[#allocation6 + $0x570] sm:$0xff]
        %v712 = vld [vmem:[#allocation6 + $0x578] sm:$0xff]
        %v713 = vld [vmem:[#allocation6 + $0x580] sm:$0xff]
        %v714 = vld [vmem:[#allocation6 + $0x588] sm:$0xff]
        %v715 = vld [vmem:[#allocation6 + $0x590] sm:$0xff]
        %v716 = vld [vmem:[#allocation6 + $0x598] sm:$0xff]
        %v717 = vld [vmem:[#allocation6 + $0x5a0] sm:$0xff]
        %v718 = vld [vmem:[#allocation6 + $0x5a8] sm:$0xff]
        %v719 = vld [vmem:[#allocation6 + $0x5b0] sm:$0xff]
        %v720 = vld [vmem:[#allocation6 + $0x5b8] sm:$0xff]
        %v721 = vld [vmem:[#allocation6 + $0x5c0] sm:$0xff]
        %v722 = vld [vmem:[#allocation6 + $0x5c8] sm:$0xff]
        %v723 = vld [vmem:[#allocation6 + $0x5d0] sm:$0xff]
        %v724 = vld [vmem:[#allocation6 + $0x5d8] sm:$0xff]
        %v725 = vld [vmem:[#allocation6 + $0x5e0] sm:$0xff]
        %v726 = vld [vmem:[#allocation6 + $0x5e8] sm:$0xff]
        %v727 = vld [vmem:[#allocation6 + $0x5f0] sm:$0xff]
        %v728 = vld [vmem:[#allocation6 + $0x5f8] sm:$0xff]
        %v729 = vld [vmem:[#allocation6 + $0x600] sm:$0xff]
        %v730 = vld [vmem:[#allocation6 + $0x608] sm:$0xff]
        %v731 = vld [vmem:[#allocation6 + $0x610] sm:$0xff]
        %v732 = vld [vmem:[#allocation6 + $0x618] sm:$0xff]
        %v733 = vld [vmem:[#allocation6 + $0x620] sm:$0xff]
        %v734 = vld [vmem:[#allocation6 + $0x628] sm:$0xff]
        %v735 = vld [vmem:[#allocation6 + $0x630] sm:$0xff]
        %v736 = vld [vmem:[#allocation6 + $0x638] sm:$0xff]
        %v737 = vld [vmem:[#allocation6 + $0x640] sm:$0xff]
        %v738 = vld [vmem:[#allocation6 + $0x648] sm:$0xff]
        %v739 = vld [vmem:[#allocation6 + $0x650] sm:$0xff]
        %v740 = vld [vmem:[#allocation6 + $0x658] sm:$0xff]
        %v741 = vld [vmem:[#allocation6 + $0x660] sm:$0xff]
        %v742 = vld [vmem:[#allocation6 + $0x668] sm:$0xff]
        %v743 = vld [vmem:[#allocation6 + $0x670] sm:$0xff]
        %v744 = vld [vmem:[#allocation6 + $0x678] sm:$0xff]
        %v745 = vld [vmem:[#allocation6 + $0x680] sm:$0xff]
        %v746 = vld [vmem:[#allocation6 + $0x688] sm:$0xff]
        %v747 = vld [vmem:[#allocation6 + $0x690] sm:$0xff]
        %v748 = vld [vmem:[#allocation6 + $0x698] sm:$0xff]
        %v749 = vld [vmem:[#allocation6 + $0x6a0] sm:$0xff]
        %v750 = vld [vmem:[#allocation6 + $0x6a8] sm:$0xff]
        %v751 = vld [vmem:[#allocation6 + $0x6b0] sm:$0xff]
        %v752 = vld [vmem:[#allocation6 + $0x6b8] sm:$0xff]
        %v753 = vld [vmem:[#allocation6 + $0x6c0] sm:$0xff]
        %v754 = vld [vmem:[#allocation6 + $0x6c8] sm:$0xff]
        %v755 = vld [vmem:[#allocation6 + $0x6d0] sm:$0xff]
        %v756 = vld [vmem:[#allocation6 + $0x6d8] sm:$0xff]
        %v757 = vld [vmem:[#allocation6 + $0x6e0] sm:$0xff]
        %v758 = vld [vmem:[#allocation6 + $0x6e8] sm:$0xff]
        %v759 = vld [vmem:[#allocation6 + $0x6f0] sm:$0xff]
        %v760 = vld [vmem:[#allocation6 + $0x6f8] sm:$0xff]
        %v761 = vld [vmem:[#allocation6 + $0x700] sm:$0xff]
        %v762 = vld [vmem:[#allocation6 + $0x708] sm:$0xff]
        %v763 = vld [vmem:[#allocation6 + $0x710] sm:$0xff]
        %v764 = vld [vmem:[#allocation6 + $0x718] sm:$0xff]
        %v765 = vld [vmem:[#allocation6 + $0x720] sm:$0xff]
        %v766 = vld [vmem:[#allocation6 + $0x728] sm:$0xff]
        %v767 = vld [vmem:[#allocation6 + $0x730] sm:$0xff]
        %v768 = vld [vmem:[#allocation6 + $0x738] sm:$0xff]
        %v769 = vld [vmem:[#allocation6 + $0x740] sm:$0xff]
        %v770 = vld [vmem:[#allocation6 + $0x748] sm:$0xff]
        %v771 = vld [vmem:[#allocation6 + $0x750] sm:$0xff]
        %v772 = vld [vmem:[#allocation6 + $0x758] sm:$0xff]
        %v773 = vld [vmem:[#allocation6 + $0x760] sm:$0xff]
        %v774 = vld [vmem:[#allocation6 + $0x768] sm:$0xff]
        %v775 = vld [vmem:[#allocation6 + $0x770] sm:$0xff]
        %v776 = vld [vmem:[#allocation6 + $0x778] sm:$0xff]
        %v777 = vld [vmem:[#allocation6 + $0x780] sm:$0xff]
        %v778 = vld [vmem:[#allocation6 + $0x788] sm:$0xff]
        %v779 = vld [vmem:[#allocation6 + $0x790] sm:$0xff]
        %v780 = vld [vmem:[#allocation6 + $0x798] sm:$0xff]
        %v781 = vld [vmem:[#allocation6 + $0x7a0] sm:$0xff]
        %v782 = vld [vmem:[#allocation6 + $0x7a8] sm:$0xff]
        %v783 = vld [vmem:[#allocation6 + $0x7b0] sm:$0xff]
        %v784 = vld [vmem:[#allocation6 + $0x7b8] sm:$0xff]
        %v785 = vld [vmem:[#allocation6 + $0x7c0] sm:$0xff]
        %v786 = vld [vmem:[#allocation6 + $0x7c8] sm:$0xff]
        %v787 = vld [vmem:[#allocation6 + $0x7d0] sm:$0xff]
        %v788 = vld [vmem:[#allocation6 + $0x7d8] sm:$0xff]
        %v789 = vld [vmem:[#allocation6 + $0x7e0] sm:$0xff]
        %v790 = vld [vmem:[#allocation6 + $0x7e8] sm:$0xff]
        %v791 = vld [vmem:[#allocation6 + $0x7f0] sm:$0xff]
        %v792 = vld [vmem:[#allocation6 + $0x7f8] sm:$0xff]
        %v793 = vld [vmem:[#allocation6 + $0x800] sm:$0xff]
        %v794 = vld [vmem:[#allocation6 + $0x808] sm:$0xff]
        %v795 = vld [vmem:[#allocation6 + $0x810] sm:$0xff]
        %v796 = vld [vmem:[#allocation6 + $0x818] sm:$0xff]
        %v797 = vld [vmem:[#allocation6 + $0x820] sm:$0xff]
        %v798 = vld [vmem:[#allocation6 + $0x828] sm:$0xff]
        %v799 = vld [vmem:[#allocation6 + $0x830] sm:$0xff]
        %v800 = vld [vmem:[#allocation6 + $0x838] sm:$0xff]
        %v801 = vld [vmem:[#allocation6 + $0x840] sm:$0xff]
        %v802 = vld [vmem:[#allocation6 + $0x848] sm:$0xff]
        %v803 = vld [vmem:[#allocation6 + $0x850] sm:$0xff]
        %v804 = vld [vmem:[#allocation6 + $0x858] sm:$0xff]
        %v805 = vld [vmem:[#allocation6 + $0x860] sm:$0xff]
        %v806 = vld [vmem:[#allocation6 + $0x868] sm:$0xff]
        %v807 = vld [vmem:[#allocation6 + $0x870] sm:$0xff]
        %v808 = vld [vmem:[#allocation6 + $0x878] sm:$0xff]
        %v809 = vld [vmem:[#allocation6 + $0x880] sm:$0xff]
        %v810 = vld [vmem:[#allocation6 + $0x888] sm:$0xff]
        %v811 = vld [vmem:[#allocation6 + $0x890] sm:$0xff]
        %v812 = vld [vmem:[#allocation6 + $0x898] sm:$0xff]
        %v813 = vld [vmem:[#allocation6 + $0x8a0] sm:$0xff]
        %v814 = vld [vmem:[#allocation6 + $0x8a8] sm:$0xff]
        %v815 = vld [vmem:[#allocation6 + $0x8b0] sm:$0xff]
        %v816 = vld [vmem:[#allocation6 + $0x8b8] sm:$0xff]
        %v817 = vld [vmem:[#allocation6 + $0x8c0] sm:$0xff]
        %v818 = vld [vmem:[#allocation6 + $0x8c8] sm:$0xff]
        %v819 = vld [vmem:[#allocation6 + $0x8d0] sm:$0xff]
        %v820 = vld [vmem:[#allocation6 + $0x8d8] sm:$0xff]
        %v821 = vld [vmem:[#allocation6 + $0x8e0] sm:$0xff]
        %v822 = vld [vmem:[#allocation6 + $0x8e8] sm:$0xff]
        %v823 = vld [vmem:[#allocation6 + $0x8f0] sm:$0xff]
        %v824 = vld [vmem:[#allocation6 + $0x8f8] sm:$0xff]
        %v825 = vld [vmem:[#allocation6 + $0x900] sm:$0xff]
        %v826 = vld [vmem:[#allocation6 + $0x908] sm:$0xff]
        %v827 = vld [vmem:[#allocation6 + $0x910] sm:$0xff]
        %v828 = vld [vmem:[#allocation6 + $0x918] sm:$0xff]
        %v829 = vld [vmem:[#allocation6 + $0x920] sm:$0xff]
        %v830 = vld [vmem:[#allocation6 + $0x928] sm:$0xff]
        %v831 = vld [vmem:[#allocation6 + $0x930] sm:$0xff]
        %v832 = vld [vmem:[#allocation6 + $0x938] sm:$0xff]
        %v833 = vld [vmem:[#allocation6 + $0x940] sm:$0xff]
        %v834 = vld [vmem:[#allocation6 + $0x948] sm:$0xff]
        %v835 = vld [vmem:[#allocation6 + $0x950] sm:$0xff]
        %v836 = vld [vmem:[#allocation6 + $0x958] sm:$0xff]
        %v837 = vld [vmem:[#allocation6 + $0x960] sm:$0xff]
        %v838 = vld [vmem:[#allocation6 + $0x968] sm:$0xff]
        %v839 = vld [vmem:[#allocation6 + $0x970] sm:$0xff]
        %v840 = vld [vmem:[#allocation6 + $0x978] sm:$0xff]
        %v841 = vld [vmem:[#allocation6 + $0x980] sm:$0xff]
        %v842 = vld [vmem:[#allocation6 + $0x988] sm:$0xff]
        %v843 = vld [vmem:[#allocation6 + $0x990] sm:$0xff]
        %v844 = vld [vmem:[#allocation6 + $0x998] sm:$0xff]
        %v845 = vld [vmem:[#allocation6 + $0x9a0] sm:$0xff]
        %v846 = vld [vmem:[#allocation6 + $0x9a8] sm:$0xff]
        %v847 = vld [vmem:[#allocation6 + $0x9b0] sm:$0xff]
        %v848 = vld [vmem:[#allocation6 + $0x9b8] sm:$0xff]
        %v849 = vld [vmem:[#allocation6 + $0x9c0] sm:$0xff]
        %v850 = vld [vmem:[#allocation6 + $0x9c8] sm:$0xff]
        %v851 = vld [vmem:[#allocation6 + $0x9d0] sm:$0xff]
        %v852 = vld [vmem:[#allocation6 + $0x9d8] sm:$0xff]
        %v853 = vld [vmem:[#allocation6 + $0x9e0] sm:$0xff]
        %v854 = vld [vmem:[#allocation6 + $0x9e8] sm:$0xff]
        %v855 = vld [vmem:[#allocation6 + $0x9f0] sm:$0xff]
        %v856 = vld [vmem:[#allocation6 + $0x9f8] sm:$0xff]
        %v857 = vld [vmem:[#allocation6 + $0xa00] sm:$0xff]
        %v858 = vld [vmem:[#allocation6 + $0xa08] sm:$0xff]
        %v859 = vld [vmem:[#allocation6 + $0xa10] sm:$0xff]
        %v860 = vld [vmem:[#allocation6 + $0xa18] sm:$0xff]
        %v861 = vld [vmem:[#allocation6 + $0xa20] sm:$0xff]
        %v862 = vld [vmem:[#allocation6 + $0xa28] sm:$0xff]
        %v863 = vld [vmem:[#allocation6 + $0xa30] sm:$0xff]
        %v864 = vld [vmem:[#allocation6 + $0xa38] sm:$0xff]
        %v865 = vld [vmem:[#allocation6 + $0xa40] sm:$0xff]
        %v866 = vld [vmem:[#allocation6 + $0xa48] sm:$0xff]
        %v867 = vld [vmem:[#allocation6 + $0xa50] sm:$0xff]
        %v868 = vld [vmem:[#allocation6 + $0xa58] sm:$0xff]
        %v869 = vld [vmem:[#allocation6 + $0xa60] sm:$0xff]
        %v870 = vld [vmem:[#allocation6 + $0xa68] sm:$0xff]
        %v871 = vld [vmem:[#allocation6 + $0xa70] sm:$0xff]
        %v872 = vld [vmem:[#allocation6 + $0xa78] sm:$0xff]
        %v873 = vld [vmem:[#allocation6 + $0xa80] sm:$0xff]
        %v874 = vld [vmem:[#allocation6 + $0xa88] sm:$0xff]
        %v875 = vld [vmem:[#allocation6 + $0xa90] sm:$0xff]
        %v876 = vld [vmem:[#allocation6 + $0xa98] sm:$0xff]
        %v877 = vld [vmem:[#allocation6 + $0xaa0] sm:$0xff]
        %v878 = vld [vmem:[#allocation6 + $0xaa8] sm:$0xff]
        %v879 = vld [vmem:[#allocation6 + $0xab0] sm:$0xff]
        %v880 = vld [vmem:[#allocation6 + $0xab8] sm:$0xff]
        %v881 = vld [vmem:[#allocation6 + $0xac0] sm:$0xff]
        %v882 = vld [vmem:[#allocation6 + $0xac8] sm:$0xff]
        %v883 = vld [vmem:[#allocation6 + $0xad0] sm:$0xff]
        %v884 = vld [vmem:[#allocation6 + $0xad8] sm:$0xff]
        %v885 = vld [vmem:[#allocation6 + $0xae0] sm:$0xff]
        %v886 = vld [vmem:[#allocation6 + $0xae8] sm:$0xff]
        %v887 = vld [vmem:[#allocation6 + $0xaf0] sm:$0xff]
        %v888 = vld [vmem:[#allocation6 + $0xaf8] sm:$0xff]
        %v889 = vld [vmem:[#allocation6 + $0xb00] sm:$0xff]
        %v890 = vld [vmem:[#allocation6 + $0xb08] sm:$0xff]
        %v891 = vld [vmem:[#allocation6 + $0xb10] sm:$0xff]
        %v892 = vld [vmem:[#allocation6 + $0xb18] sm:$0xff]
        %v893 = vld [vmem:[#allocation6 + $0xb20] sm:$0xff]
        %v894 = vld [vmem:[#allocation6 + $0xb28] sm:$0xff]
        %v895 = vld [vmem:[#allocation6 + $0xb30] sm:$0xff]
        %v896 = vld [vmem:[#allocation6 + $0xb38] sm:$0xff]
        %v897 = vld [vmem:[#allocation6 + $0xb40] sm:$0xff]
        %v898 = vld [vmem:[#allocation6 + $0xb48] sm:$0xff]
        %v899 = vld [vmem:[#allocation6 + $0xb50] sm:$0xff]
        %v900 = vld [vmem:[#allocation6 + $0xb58] sm:$0xff]
        %v901 = vld [vmem:[#allocation6 + $0xb60] sm:$0xff]
        %v902 = vld [vmem:[#allocation6 + $0xb68] sm:$0xff]
        %v903 = vld [vmem:[#allocation6 + $0xb70] sm:$0xff]
        %v904 = vld [vmem:[#allocation6 + $0xb78] sm:$0xff]
        %v905 = vld [vmem:[#allocation6 + $0xb80] sm:$0xff]
        %v906 = vld [vmem:[#allocation6 + $0xb88] sm:$0xff]
        %v907 = vld [vmem:[#allocation6 + $0xb90] sm:$0xff]
        %v908 = vld [vmem:[#allocation6 + $0xb98] sm:$0xff]
        %v909 = vld [vmem:[#allocation6 + $0xba0] sm:$0xff]
        %v910 = vld [vmem:[#allocation6 + $0xba8] sm:$0xff]
        %v911 = vld [vmem:[#allocation6 + $0xbb0] sm:$0xff]
        %v912 = vld [vmem:[#allocation6 + $0xbb8] sm:$0xff]
        %v913 = vld [vmem:[#allocation6 + $0xbc0] sm:$0xff]
        %v914 = vld [vmem:[#allocation6 + $0xbc8] sm:$0xff]
        %v915 = vld [vmem:[#allocation6 + $0xbd0] sm:$0xff]
        %v916 = vld [vmem:[#allocation6 + $0xbd8] sm:$0xff]
        %v917 = vld [vmem:[#allocation6 + $0xbe0] sm:$0xff]
        %v918 = vld [vmem:[#allocation6 + $0xbe8] sm:$0xff]
        %v919 = vld [vmem:[#allocation6 + $0xbf0] sm:$0xff]
        %v920 = vld [vmem:[#allocation6 + $0xbf8] sm:$0xff]
        %v921 = vld [vmem:[#allocation8] sm:$0xff]
        %v922 = vld [vmem:[#allocation9] sm:$0xff]
        %v923 = vld [vmem:[#allocation9 + $0x8] sm:$0xff]
        %v924 = vld [vmem:[#allocation9 + $0x10] sm:$0xff]
        %v925 = vld [vmem:[#allocation9 + $0x18] sm:$0xff]
        %v926 = vld [vmem:[#allocation9 + $0x20] sm:$0xff]
        %v927 = vld [vmem:[#allocation9 + $0x28] sm:$0xff]
        %v928 = vld [vmem:[#allocation9 + $0x30] sm:$0xff]
        %v929 = vld [vmem:[#allocation9 + $0x38] sm:$0xff]
        %v930 = vld [vmem:[#allocation9 + $0x40] sm:$0xff]
        %v931 = vld [vmem:[#allocation9 + $0x48] sm:$0xff]
        %v932 = vld [vmem:[#allocation9 + $0x50] sm:$0xff]
        %v933 = vld [vmem:[#allocation9 + $0x58] sm:$0xff]
        %v934 = vld [vmem:[#allocation9 + $0x60] sm:$0xff]
        %v935 = vld [vmem:[#allocation9 + $0x68] sm:$0xff]
        %v936 = vld [vmem:[#allocation9 + $0x70] sm:$0xff]
        %v937 = vld [vmem:[#allocation9 + $0x78] sm:$0xff]
        %v938 = vld [vmem:[#allocation9 + $0x80] sm:$0xff]
        %v939 = vld [vmem:[#allocation9 + $0x88] sm:$0xff]
        %v940 = vld [vmem:[#allocation9 + $0x90] sm:$0xff]
        %v941 = vld [vmem:[#allocation9 + $0x98] sm:$0xff]
        %v942 = vld [vmem:[#allocation9 + $0xa0] sm:$0xff]
        %v943 = vld [vmem:[#allocation9 + $0xa8] sm:$0xff]
        %v944 = vld [vmem:[#allocation9 + $0xb0] sm:$0xff]
        %v945 = vld [vmem:[#allocation9 + $0xb8] sm:$0xff]
        %v946 = vld [vmem:[#allocation9 + $0xc0] sm:$0xff]
        %v947 = vld [vmem:[#allocation9 + $0xc8] sm:$0xff]
        %v948 = vld [vmem:[#allocation9 + $0xd0] sm:$0xff]
        %v949 = vld [vmem:[#allocation9 + $0xd8] sm:$0xff]
        %v950 = vld [vmem:[#allocation9 + $0xe0] sm:$0xff]
        %v951 = vld [vmem:[#allocation9 + $0xe8] sm:$0xff]
        %v952 = vld [vmem:[#allocation9 + $0xf0] sm:$0xff]
        %v953 = vld [vmem:[#allocation9 + $0xf8] sm:$0xff]
        %v954 = vld [vmem:[#allocation9 + $0x100] sm:$0xff]
        %v955 = vld [vmem:[#allocation9 + $0x108] sm:$0xff]
        %v956 = vld [vmem:[#allocation9 + $0x110] sm:$0xff]
        %v957 = vld [vmem:[#allocation9 + $0x118] sm:$0xff]
        %v958 = vld [vmem:[#allocation9 + $0x120] sm:$0xff]
        %v959 = vld [vmem:[#allocation9 + $0x128] sm:$0xff]
        %v960 = vld [vmem:[#allocation9 + $0x130] sm:$0xff]
        %v961 = vld [vmem:[#allocation9 + $0x138] sm:$0xff]
        %v962 = vld [vmem:[#allocation9 + $0x140] sm:$0xff]
        %v963 = vld [vmem:[#allocation9 + $0x148] sm:$0xff]
        %v964 = vld [vmem:[#allocation9 + $0x150] sm:$0xff]
        %v965 = vld [vmem:[#allocation9 + $0x158] sm:$0xff]
        %v966 = vld [vmem:[#allocation9 + $0x160] sm:$0xff]
        %v967 = vld [vmem:[#allocation9 + $0x168] sm:$0xff]
        %v968 = vld [vmem:[#allocation9 + $0x170] sm:$0xff]
        %v969 = vld [vmem:[#allocation9 + $0x178] sm:$0xff]
        %v970 = vld [vmem:[#allocation9 + $0x180] sm:$0xff]
        %v971 = vld [vmem:[#allocation9 + $0x188] sm:$0xff]
        %v972 = vld [vmem:[#allocation9 + $0x190] sm:$0xff]
        %v973 = vld [vmem:[#allocation9 + $0x198] sm:$0xff]
        %v974 = vld [vmem:[#allocation9 + $0x1a0] sm:$0xff]
        %v975 = vld [vmem:[#allocation9 + $0x1a8] sm:$0xff]
        %v976 = vld [vmem:[#allocation9 + $0x1b0] sm:$0xff]
        %v977 = vld [vmem:[#allocation9 + $0x1b8] sm:$0xff]
        %v978 = vld [vmem:[#allocation9 + $0x1c0] sm:$0xff]
        %v979 = vld [vmem:[#allocation9 + $0x1c8] sm:$0xff]
        %v980 = vld [vmem:[#allocation9 + $0x1d0] sm:$0xff]
        %v981 = vld [vmem:[#allocation9 + $0x1d8] sm:$0xff]
        %v982 = vld [vmem:[#allocation9 + $0x1e0] sm:$0xff]
        %v983 = vld [vmem:[#allocation9 + $0x1e8] sm:$0xff]
        %v984 = vld [vmem:[#allocation9 + $0x1f0] sm:$0xff]
        %v985 = vld [vmem:[#allocation9 + $0x1f8] sm:$0xff]
        %v986 = vld [vmem:[#allocation9 + $0x200] sm:$0xff]
        %v987 = vld [vmem:[#allocation9 + $0x208] sm:$0xff]
        %v988 = vld [vmem:[#allocation9 + $0x210] sm:$0xff]
        %v989 = vld [vmem:[#allocation9 + $0x218] sm:$0xff]
        %v990 = vld [vmem:[#allocation9 + $0x220] sm:$0xff]
        %v991 = vld [vmem:[#allocation9 + $0x228] sm:$0xff]
        %v992 = vld [vmem:[#allocation9 + $0x230] sm:$0xff]
        %v993 = vld [vmem:[#allocation9 + $0x238] sm:$0xff]
        %v994 = vld [vmem:[#allocation9 + $0x240] sm:$0xff]
        %v995 = vld [vmem:[#allocation9 + $0x248] sm:$0xff]
        %v996 = vld [vmem:[#allocation9 + $0x250] sm:$0xff]
        %v997 = vld [vmem:[#allocation9 + $0x258] sm:$0xff]
        %v998 = vld [vmem:[#allocation9 + $0x260] sm:$0xff]
        %v999 = vld [vmem:[#allocation9 + $0x268] sm:$0xff]
        %v1000 = vld [vmem:[#allocation9 + $0x270] sm:$0xff]
        %v1001 = vld [vmem:[#allocation9 + $0x278] sm:$0xff]
        %v1002 = vld [vmem:[#allocation9 + $0x280] sm:$0xff]
        %v1003 = vld [vmem:[#allocation9 + $0x288] sm:$0xff]
        %v1004 = vld [vmem:[#allocation9 + $0x290] sm:$0xff]
        %v1005 = vld [vmem:[#allocation9 + $0x298] sm:$0xff]
        %v1006 = vld [vmem:[#allocation9 + $0x2a0] sm:$0xff]
        %v1007 = vld [vmem:[#allocation9 + $0x2a8] sm:$0xff]
        %v1008 = vld [vmem:[#allocation9 + $0x2b0] sm:$0xff]
        %v1009 = vld [vmem:[#allocation9 + $0x2b8] sm:$0xff]
        %v1010 = vld [vmem:[#allocation9 + $0x2c0] sm:$0xff]
        %v1011 = vld [vmem:[#allocation9 + $0x2c8] sm:$0xff]
        %v1012 = vld [vmem:[#allocation9 + $0x2d0] sm:$0xff]
        %v1013 = vld [vmem:[#allocation9 + $0x2d8] sm:$0xff]
        %v1014 = vld [vmem:[#allocation9 + $0x2e0] sm:$0xff]
        %v1015 = vld [vmem:[#allocation9 + $0x2e8] sm:$0xff]
        %v1016 = vld [vmem:[#allocation9 + $0x2f0] sm:$0xff]
        %v1017 = vld [vmem:[#allocation9 + $0x2f8] sm:$0xff]
        %v1018 = vld [vmem:[#allocation9 + $0x300] sm:$0xff]
        %v1019 = vld [vmem:[#allocation9 + $0x308] sm:$0xff]
        %v1020 = vld [vmem:[#allocation9 + $0x310] sm:$0xff]
        %v1021 = vld [vmem:[#allocation9 + $0x318] sm:$0xff]
        %v1022 = vld [vmem:[#allocation9 + $0x320] sm:$0xff]
        %v1023 = vld [vmem:[#allocation9 + $0x328] sm:$0xff]
        %v1024 = vld [vmem:[#allocation9 + $0x330] sm:$0xff]
        %v1025 = vld [vmem:[#allocation9 + $0x338] sm:$0xff]
        %v1026 = vld [vmem:[#allocation9 + $0x340] sm:$0xff]
        %v1027 = vld [vmem:[#allocation9 + $0x348] sm:$0xff]
        %v1028 = vld [vmem:[#allocation9 + $0x350] sm:$0xff]
        %v1029 = vld [vmem:[#allocation9 + $0x358] sm:$0xff]
        %v1030 = vld [vmem:[#allocation9 + $0x360] sm:$0xff]
        %v1031 = vld [vmem:[#allocation9 + $0x368] sm:$0xff]
        %v1032 = vld [vmem:[#allocation9 + $0x370] sm:$0xff]
        %v1033 = vld [vmem:[#allocation9 + $0x378] sm:$0xff]
        %v1034 = vld [vmem:[#allocation9 + $0x380] sm:$0xff]
        %v1035 = vld [vmem:[#allocation9 + $0x388] sm:$0xff]
        %v1036 = vld [vmem:[#allocation9 + $0x390] sm:$0xff]
        %v1037 = vld [vmem:[#allocation9 + $0x398] sm:$0xff]
        %v1038 = vld [vmem:[#allocation9 + $0x3a0] sm:$0xff]
        %v1039 = vld [vmem:[#allocation9 + $0x3a8] sm:$0xff]
        %v1040 = vld [vmem:[#allocation9 + $0x3b0] sm:$0xff]
        %v1041 = vld [vmem:[#allocation9 + $0x3b8] sm:$0xff]
        %v1042 = vld [vmem:[#allocation9 + $0x3c0] sm:$0xff]
        %v1043 = vld [vmem:[#allocation9 + $0x3c8] sm:$0xff]
        %v1044 = vld [vmem:[#allocation9 + $0x3d0] sm:$0xff]
        %v1045 = vld [vmem:[#allocation9 + $0x3d8] sm:$0xff]
        %v1046 = vld [vmem:[#allocation9 + $0x3e0] sm:$0xff]
        %v1047 = vld [vmem:[#allocation9 + $0x3e8] sm:$0xff]
        %v1048 = vld [vmem:[#allocation9 + $0x3f0] sm:$0xff]
        %v1049 = vld [vmem:[#allocation9 + $0x3f8] sm:$0xff]
        %v1050 = vld [vmem:[#allocation11] sm:$0xf]
        %v1051 = vld [vmem:[#allocation12] sm:$0xff]
        %v1052 = vld [vmem:[#allocation12 + $0x8] sm:$0xff]
        %v1053 = vld [vmem:[#allocation12 + $0x10] sm:$0xff]
        %v1054 = vld [vmem:[#allocation12 + $0x18] sm:$0xff]
        %v1055 = vld [vmem:[#allocation12 + $0x20] sm:$0xff]
        %v1056 = vld [vmem:[#allocation12 + $0x28] sm:$0xff]
        %v1057 = vld [vmem:[#allocation12 + $0x30] sm:$0xff]
        %v1058 = vld [vmem:[#allocation12 + $0x38] sm:$0xff]
        %v1059 = vld [vmem:[#allocation12 + $0x40] sm:$0xff]
        %v1060 = vld [vmem:[#allocation12 + $0x48] sm:$0xff]
        %v1061 = vld [vmem:[#allocation12 + $0x50] sm:$0xff]
        %v1062 = vld [vmem:[#allocation12 + $0x58] sm:$0xff]
        %v1063 = vld [vmem:[#allocation12 + $0x60] sm:$0xff]
        %v1064 = vld [vmem:[#allocation12 + $0x68] sm:$0xff]
        %v1065 = vld [vmem:[#allocation12 + $0x70] sm:$0xff]
        %v1066 = vld [vmem:[#allocation12 + $0x78] sm:$0xff]
        %v1067 = vld [vmem:[#allocation12 + $0x80] sm:$0xff]
        %v1068 = vld [vmem:[#allocation12 + $0x88] sm:$0xff]
        %v1069 = vld [vmem:[#allocation12 + $0x90] sm:$0xff]
        %v1070 = vld [vmem:[#allocation12 + $0x98] sm:$0xff]
        %v1071 = vld [vmem:[#allocation12 + $0xa0] sm:$0xff]
        %v1072 = vld [vmem:[#allocation12 + $0xa8] sm:$0xff]
        %v1073 = vld [vmem:[#allocation12 + $0xb0] sm:$0xff]
        %v1074 = vld [vmem:[#allocation12 + $0xb8] sm:$0xff]
        %v1075 = vld [vmem:[#allocation12 + $0xc0] sm:$0xff]
        %v1076 = vld [vmem:[#allocation12 + $0xc8] sm:$0xff]
        %v1077 = vld [vmem:[#allocation12 + $0xd0] sm:$0xff]
        %v1078 = vld [vmem:[#allocation12 + $0xd8] sm:$0xff]
        %v1079 = vld [vmem:[#allocation12 + $0xe0] sm:$0xff]
        %v1080 = vld [vmem:[#allocation12 + $0xe8] sm:$0xff]
        %v1081 = vld [vmem:[#allocation12 + $0xf0] sm:$0xff]
        %v1082 = vld [vmem:[#allocation12 + $0xf8] sm:$0xff]
        %v1083 = vld [vmem:[#allocation12 + $0x100] sm:$0xff]
        %v1084 = vld [vmem:[#allocation12 + $0x108] sm:$0xff]
        %v1085 = vld [vmem:[#allocation12 + $0x110] sm:$0xff]
        %v1086 = vld [vmem:[#allocation12 + $0x118] sm:$0xff]
        %v1087 = vld [vmem:[#allocation12 + $0x120] sm:$0xff]
        %v1088 = vld [vmem:[#allocation12 + $0x128] sm:$0xff]
        %v1089 = vld [vmem:[#allocation12 + $0x130] sm:$0xff]
        %v1090 = vld [vmem:[#allocation12 + $0x138] sm:$0xff]
        %v1091 = vld [vmem:[#allocation12 + $0x140] sm:$0xff]
        %v1092 = vld [vmem:[#allocation12 + $0x148] sm:$0xff]
        %v1093 = vld [vmem:[#allocation12 + $0x150] sm:$0xff]
        %v1094 = vld [vmem:[#allocation12 + $0x158] sm:$0xff]
        %v1095 = vld [vmem:[#allocation12 + $0x160] sm:$0xff]
        %v1096 = vld [vmem:[#allocation12 + $0x168] sm:$0xff]
        %v1097 = vld [vmem:[#allocation12 + $0x170] sm:$0xff]
        %v1098 = vld [vmem:[#allocation12 + $0x178] sm:$0xff]
        %v1099 = vld [vmem:[#allocation12 + $0x180] sm:$0xff]
        %v1100 = vld [vmem:[#allocation12 + $0x188] sm:$0xff]
        %v1101 = vld [vmem:[#allocation12 + $0x190] sm:$0xff]
        %v1102 = vld [vmem:[#allocation12 + $0x198] sm:$0xff]
        %v1103 = vld [vmem:[#allocation12 + $0x1a0] sm:$0xff]
        %v1104 = vld [vmem:[#allocation12 + $0x1a8] sm:$0xff]
        %v1105 = vld [vmem:[#allocation12 + $0x1b0] sm:$0xff]
        %v1106 = vld [vmem:[#allocation12 + $0x1b8] sm:$0xff]
        %v1107 = vld [vmem:[#allocation12 + $0x1c0] sm:$0xff]
        %v1108 = vld [vmem:[#allocation12 + $0x1c8] sm:$0xff]
        %v1109 = vld [vmem:[#allocation12 + $0x1d0] sm:$0xff]
        %v1110 = vld [vmem:[#allocation12 + $0x1d8] sm:$0xff]
        %v1111 = vld [vmem:[#allocation12 + $0x1e0] sm:$0xff]
        %v1112 = vld [vmem:[#allocation12 + $0x1e8] sm:$0xff]
        %v1113 = vld [vmem:[#allocation12 + $0x1f0] sm:$0xff]
        %v1114 = vld [vmem:[#allocation12 + $0x1f8] sm:$0xff]
        %v1115 = vld [vmem:[#allocation12 + $0x200] sm:$0xff]
        %v1116 = vld [vmem:[#allocation12 + $0x208] sm:$0xff]
        %v1117 = vld [vmem:[#allocation12 + $0x210] sm:$0xff]
        %v1118 = vld [vmem:[#allocation12 + $0x218] sm:$0xff]
        %v1119 = vld [vmem:[#allocation12 + $0x220] sm:$0xff]
        %v1120 = vld [vmem:[#allocation12 + $0x228] sm:$0xff]
        %v1121 = vld [vmem:[#allocation12 + $0x230] sm:$0xff]
        %v1122 = vld [vmem:[#allocation12 + $0x238] sm:$0xff]
        %v1123 = vld [vmem:[#allocation12 + $0x240] sm:$0xff]
        %v1124 = vld [vmem:[#allocation12 + $0x248] sm:$0xff]
        %v1125 = vld [vmem:[#allocation12 + $0x250] sm:$0xff]
        %v1126 = vld [vmem:[#allocation12 + $0x258] sm:$0xff]
        %v1127 = vld [vmem:[#allocation12 + $0x260] sm:$0xff]
        %v1128 = vld [vmem:[#allocation12 + $0x268] sm:$0xff]
        %v1129 = vld [vmem:[#allocation12 + $0x270] sm:$0xff]
        %v1130 = vld [vmem:[#allocation12 + $0x278] sm:$0xff]
        %v1131 = vld [vmem:[#allocation12 + $0x280] sm:$0xff]
        %v1132 = vld [vmem:[#allocation12 + $0x288] sm:$0xff]
        %v1133 = vld [vmem:[#allocation12 + $0x290] sm:$0xff]
        %v1134 = vld [vmem:[#allocation12 + $0x298] sm:$0xff]
        %v1135 = vld [vmem:[#allocation12 + $0x2a0] sm:$0xff]
        %v1136 = vld [vmem:[#allocation12 + $0x2a8] sm:$0xff]
        %v1137 = vld [vmem:[#allocation12 + $0x2b0] sm:$0xff]
        %v1138 = vld [vmem:[#allocation12 + $0x2b8] sm:$0xff]
        %v1139 = vld [vmem:[#allocation12 + $0x2c0] sm:$0xff]
        %v1140 = vld [vmem:[#allocation12 + $0x2c8] sm:$0xff]
        %v1141 = vld [vmem:[#allocation12 + $0x2d0] sm:$0xff]
        %v1142 = vld [vmem:[#allocation12 + $0x2d8] sm:$0xff]
        %v1143 = vld [vmem:[#allocation12 + $0x2e0] sm:$0xff]
        %v1144 = vld [vmem:[#allocation12 + $0x2e8] sm:$0xff]
        %v1145 = vld [vmem:[#allocation12 + $0x2f0] sm:$0xff]
        %v1146 = vld [vmem:[#allocation12 + $0x2f8] sm:$0xff]
        %v1147 = vld [vmem:[#allocation12 + $0x300] sm:$0xff]
        %v1148 = vld [vmem:[#allocation12 + $0x308] sm:$0xff]
        %v1149 = vld [vmem:[#allocation12 + $0x310] sm:$0xff]
        %v1150 = vld [vmem:[#allocation12 + $0x318] sm:$0xff]
        %v1151 = vld [vmem:[#allocation12 + $0x320] sm:$0xff]
        %v1152 = vld [vmem:[#allocation12 + $0x328] sm:$0xff]
        %v1153 = vld [vmem:[#allocation12 + $0x330] sm:$0xff]
        %v1154 = vld [vmem:[#allocation12 + $0x338] sm:$0xff]
        %v1155 = vld [vmem:[#allocation12 + $0x340] sm:$0xff]
        %v1156 = vld [vmem:[#allocation12 + $0x348] sm:$0xff]
        %v1157 = vld [vmem:[#allocation12 + $0x350] sm:$0xff]
        %v1158 = vld [vmem:[#allocation12 + $0x358] sm:$0xff]
        %v1159 = vld [vmem:[#allocation12 + $0x360] sm:$0xff]
        %v1160 = vld [vmem:[#allocation12 + $0x368] sm:$0xff]
        %v1161 = vld [vmem:[#allocation12 + $0x370] sm:$0xff]
        %v1162 = vld [vmem:[#allocation12 + $0x378] sm:$0xff]
        %v1163 = vld [vmem:[#allocation12 + $0x380] sm:$0xff]
        %v1164 = vld [vmem:[#allocation12 + $0x388] sm:$0xff]
        %v1165 = vld [vmem:[#allocation12 + $0x390] sm:$0xff]
        %v1166 = vld [vmem:[#allocation12 + $0x398] sm:$0xff]
        %v1167 = vld [vmem:[#allocation12 + $0x3a0] sm:$0xff]
        %v1168 = vld [vmem:[#allocation12 + $0x3a8] sm:$0xff]
        %v1169 = vld [vmem:[#allocation12 + $0x3b0] sm:$0xff]
        %v1170 = vld [vmem:[#allocation12 + $0x3b8] sm:$0xff]
        %v1171 = vld [vmem:[#allocation12 + $0x3c0] sm:$0xff]
        %v1172 = vld [vmem:[#allocation12 + $0x3c8] sm:$0xff]
        %v1173 = vld [vmem:[#allocation12 + $0x3d0] sm:$0xff]
        %v1174 = vld [vmem:[#allocation12 + $0x3d8] sm:$0xff]
        %v1175 = vld [vmem:[#allocation12 + $0x3e0] sm:$0xff]
        %v1176 = vld [vmem:[#allocation12 + $0x3e8] sm:$0xff]
        %v1177 = vld [vmem:[#allocation12 + $0x3f0] sm:$0xff]
        %v1178 = vld [vmem:[#allocation12 + $0x3f8] sm:$0xff]
        %v1179 = vld [vmem:[#allocation14] sm:$0xf]
        %v1180 = vld [vmem:[#allocation15] sm:$0xff]
        %v1181 = vld [vmem:[#allocation15 + $0x8] sm:$0xff]
        %v1182 = vld [vmem:[#allocation15 + $0x10] sm:$0xff]
        %v1183 = vld [vmem:[#allocation15 + $0x18] sm:$0xff]
        %v1184 = vld [vmem:[#allocation15 + $0x20] sm:$0xff]
        %v1185 = vld [vmem:[#allocation15 + $0x28] sm:$0xff]
        %v1186 = vld [vmem:[#allocation15 + $0x30] sm:$0xff]
        %v1187 = vld [vmem:[#allocation15 + $0x38] sm:$0xff]
        %v1188 = vld [vmem:[#allocation15 + $0x40] sm:$0xff]
        %v1189 = vld [vmem:[#allocation15 + $0x48] sm:$0xff]
        %v1190 = vld [vmem:[#allocation15 + $0x50] sm:$0xff]
        %v1191 = vld [vmem:[#allocation15 + $0x58] sm:$0xff]
        %v1192 = vld [vmem:[#allocation15 + $0x60] sm:$0xff]
        %v1193 = vld [vmem:[#allocation15 + $0x68] sm:$0xff]
        %v1194 = vld [vmem:[#allocation15 + $0x70] sm:$0xff]
        %v1195 = vld [vmem:[#allocation15 + $0x78] sm:$0xff]
        %v1196 = vld [vmem:[#allocation15 + $0x80] sm:$0xff]
        %v1197 = vld [vmem:[#allocation15 + $0x88] sm:$0xff]
        %v1198 = vld [vmem:[#allocation15 + $0x90] sm:$0xff]
        %v1199 = vld [vmem:[#allocation15 + $0x98] sm:$0xff]
        %v1200 = vld [vmem:[#allocation15 + $0xa0] sm:$0xff]
        %v1201 = vld [vmem:[#allocation15 + $0xa8] sm:$0xff]
        %v1202 = vld [vmem:[#allocation15 + $0xb0] sm:$0xff]
        %v1203 = vld [vmem:[#allocation15 + $0xb8] sm:$0xff]
        %v1204 = vld [vmem:[#allocation15 + $0xc0] sm:$0xff]
        %v1205 = vld [vmem:[#allocation15 + $0xc8] sm:$0xff]
        %v1206 = vld [vmem:[#allocation15 + $0xd0] sm:$0xff]
        %v1207 = vld [vmem:[#allocation15 + $0xd8] sm:$0xff]
        %v1208 = vld [vmem:[#allocation15 + $0xe0] sm:$0xff]
        %v1209 = vld [vmem:[#allocation15 + $0xe8] sm:$0xff]
        %v1210 = vld [vmem:[#allocation15 + $0xf0] sm:$0xff]
        %v1211 = vld [vmem:[#allocation15 + $0xf8] sm:$0xff]
        %v1212 = vld [vmem:[#allocation15 + $0x100] sm:$0xff]
        %v1213 = vld [vmem:[#allocation15 + $0x108] sm:$0xff]
        %v1214 = vld [vmem:[#allocation15 + $0x110] sm:$0xff]
        %v1215 = vld [vmem:[#allocation15 + $0x118] sm:$0xff]
        %v1216 = vld [vmem:[#allocation15 + $0x120] sm:$0xff]
        %v1217 = vld [vmem:[#allocation15 + $0x128] sm:$0xff]
        %v1218 = vld [vmem:[#allocation15 + $0x130] sm:$0xff]
        %v1219 = vld [vmem:[#allocation15 + $0x138] sm:$0xff]
        %v1220 = vld [vmem:[#allocation15 + $0x140] sm:$0xff]
        %v1221 = vld [vmem:[#allocation15 + $0x148] sm:$0xff]
        %v1222 = vld [vmem:[#allocation15 + $0x150] sm:$0xff]
        %v1223 = vld [vmem:[#allocation15 + $0x158] sm:$0xff]
        %v1224 = vld [vmem:[#allocation15 + $0x160] sm:$0xff]
        %v1225 = vld [vmem:[#allocation15 + $0x168] sm:$0xff]
        %v1226 = vld [vmem:[#allocation15 + $0x170] sm:$0xff]
        %v1227 = vld [vmem:[#allocation15 + $0x178] sm:$0xff]
        %v1228 = vld [vmem:[#allocation15 + $0x180] sm:$0xff]
        %v1229 = vld [vmem:[#allocation15 + $0x188] sm:$0xff]
        %v1230 = vld [vmem:[#allocation15 + $0x190] sm:$0xff]
        %v1231 = vld [vmem:[#allocation15 + $0x198] sm:$0xff]
        %v1232 = vld [vmem:[#allocation15 + $0x1a0] sm:$0xff]
        %v1233 = vld [vmem:[#allocation15 + $0x1a8] sm:$0xff]
        %v1234 = vld [vmem:[#allocation15 + $0x1b0] sm:$0xff]
        %v1235 = vld [vmem:[#allocation15 + $0x1b8] sm:$0xff]
        %v1236 = vld [vmem:[#allocation15 + $0x1c0] sm:$0xff]
        %v1237 = vld [vmem:[#allocation15 + $0x1c8] sm:$0xff]
        %v1238 = vld [vmem:[#allocation15 + $0x1d0] sm:$0xff]
        %v1239 = vld [vmem:[#allocation15 + $0x1d8] sm:$0xff]
        %v1240 = vld [vmem:[#allocation15 + $0x1e0] sm:$0xff]
        %v1241 = vld [vmem:[#allocation15 + $0x1e8] sm:$0xff]
        %v1242 = vld [vmem:[#allocation15 + $0x1f0] sm:$0xff]
        %v1243 = vld [vmem:[#allocation15 + $0x1f8] sm:$0xff]
        %v1244 = vld [vmem:[#allocation15 + $0x200] sm:$0xff]
        %v1245 = vld [vmem:[#allocation15 + $0x208] sm:$0xff]
        %v1246 = vld [vmem:[#allocation15 + $0x210] sm:$0xff]
        %v1247 = vld [vmem:[#allocation15 + $0x218] sm:$0xff]
        %v1248 = vld [vmem:[#allocation15 + $0x220] sm:$0xff]
        %v1249 = vld [vmem:[#allocation15 + $0x228] sm:$0xff]
        %v1250 = vld [vmem:[#allocation15 + $0x230] sm:$0xff]
        %v1251 = vld [vmem:[#allocation15 + $0x238] sm:$0xff]
        %v1252 = vld [vmem:[#allocation15 + $0x240] sm:$0xff]
        %v1253 = vld [vmem:[#allocation15 + $0x248] sm:$0xff]
        %v1254 = vld [vmem:[#allocation15 + $0x250] sm:$0xff]
        %v1255 = vld [vmem:[#allocation15 + $0x258] sm:$0xff]
        %v1256 = vld [vmem:[#allocation15 + $0x260] sm:$0xff]
        %v1257 = vld [vmem:[#allocation15 + $0x268] sm:$0xff]
        %v1258 = vld [vmem:[#allocation15 + $0x270] sm:$0xff]
        %v1259 = vld [vmem:[#allocation15 + $0x278] sm:$0xff]
        %v1260 = vld [vmem:[#allocation15 + $0x280] sm:$0xff]
        %v1261 = vld [vmem:[#allocation15 + $0x288] sm:$0xff]
        %v1262 = vld [vmem:[#allocation15 + $0x290] sm:$0xff]
        %v1263 = vld [vmem:[#allocation15 + $0x298] sm:$0xff]
        %v1264 = vld [vmem:[#allocation15 + $0x2a0] sm:$0xff]
        %v1265 = vld [vmem:[#allocation15 + $0x2a8] sm:$0xff]
        %v1266 = vld [vmem:[#allocation15 + $0x2b0] sm:$0xff]
        %v1267 = vld [vmem:[#allocation15 + $0x2b8] sm:$0xff]
        %v1268 = vld [vmem:[#allocation15 + $0x2c0] sm:$0xff]
        %v1269 = vld [vmem:[#allocation15 + $0x2c8] sm:$0xff]
        %v1270 = vld [vmem:[#allocation15 + $0x2d0] sm:$0xff]
        %v1271 = vld [vmem:[#allocation15 + $0x2d8] sm:$0xff]
        %v1272 = vld [vmem:[#allocation15 + $0x2e0] sm:$0xff]
        %v1273 = vld [vmem:[#allocation15 + $0x2e8] sm:$0xff]
        %v1274 = vld [vmem:[#allocation15 + $0x2f0] sm:$0xff]
        %v1275 = vld [vmem:[#allocation15 + $0x2f8] sm:$0xff]
        %v1276 = vld [vmem:[#allocation15 + $0x300] sm:$0xff]
        %v1277 = vld [vmem:[#allocation15 + $0x308] sm:$0xff]
        %v1278 = vld [vmem:[#allocation15 + $0x310] sm:$0xff]
        %v1279 = vld [vmem:[#allocation15 + $0x318] sm:$0xff]
        %v1280 = vld [vmem:[#allocation15 + $0x320] sm:$0xff]
        %v1281 = vld [vmem:[#allocation15 + $0x328] sm:$0xff]
        %v1282 = vld [vmem:[#allocation15 + $0x330] sm:$0xff]
        %v1283 = vld [vmem:[#allocation15 + $0x338] sm:$0xff]
        %v1284 = vld [vmem:[#allocation15 + $0x340] sm:$0xff]
        %v1285 = vld [vmem:[#allocation15 + $0x348] sm:$0xff]
        %v1286 = vld [vmem:[#allocation15 + $0x350] sm:$0xff]
        %v1287 = vld [vmem:[#allocation15 + $0x358] sm:$0xff]
        %v1288 = vld [vmem:[#allocation15 + $0x360] sm:$0xff]
        %v1289 = vld [vmem:[#allocation15 + $0x368] sm:$0xff]
        %v1290 = vld [vmem:[#allocation15 + $0x370] sm:$0xff]
        %v1291 = vld [vmem:[#allocation15 + $0x378] sm:$0xff]
        %v1292 = vld [vmem:[#allocation15 + $0x380] sm:$0xff]
        %v1293 = vld [vmem:[#allocation15 + $0x388] sm:$0xff]
        %v1294 = vld [vmem:[#allocation15 + $0x390] sm:$0xff]
        %v1295 = vld [vmem:[#allocation15 + $0x398] sm:$0xff]
        %v1296 = vld [vmem:[#allocation15 + $0x3a0] sm:$0xff]
        %v1297 = vld [vmem:[#allocation15 + $0x3a8] sm:$0xff]
        %v1298 = vld [vmem:[#allocation15 + $0x3b0] sm:$0xff]
        %v1299 = vld [vmem:[#allocation15 + $0x3b8] sm:$0xff]
        %v1300 = vld [vmem:[#allocation15 + $0x3c0] sm:$0xff]
        %v1301 = vld [vmem:[#allocation15 + $0x3c8] sm:$0xff]
        %v1302 = vld [vmem:[#allocation15 + $0x3d0] sm:$0xff]
        %v1303 = vld [vmem:[#allocation15 + $0x3d8] sm:$0xff]
        %v1304 = vld [vmem:[#allocation15 + $0x3e0] sm:$0xff]
        %v1305 = vld [vmem:[#allocation15 + $0x3e8] sm:$0xff]
        %v1306 = vld [vmem:[#allocation15 + $0x3f0] sm:$0xff]
        %v1307 = vld [vmem:[#allocation15 + $0x3f8] sm:$0xff]
        %v1308 = vld [vmem:[#allocation17] sm:$0xf]
        %v1309 = vld [vmem:[#allocation2] sm:$0x1]
        %s1310 = vtos %v1309
        %v1312 = vlaneseq
        %v1313 = vshrl.u32 %v1312, 7
        %v1314 = vsub.s32 0, %v1313
        %v1315 = vrot.slane %v921, %v1314
        %v1316 = vlaneseq
        %v1317 = vshrl.u32 %v1316, 7
        %v1318 = vsub.s32 1, %v1317
        %v1319 = vrot.slane %v921, %v1318
        %v1320 = vlaneseq
        %v1321 = vshrl.u32 %v1320, 7
        %v1322 = vsub.s32 2, %v1321
        %v1323 = vrot.slane %v921, %v1322
        %v1324 = vlaneseq
        %v1325 = vshrl.u32 %v1324, 7
        %v1326 = vsub.s32 3, %v1325
        %v1327 = vrot.slane %v921, %v1326
        %v1328 = vlaneseq
        %v1329 = vshrl.u32 %v1328, 7
        %v1330 = vsub.s32 4, %v1329
        %v1331 = vrot.slane %v921, %v1330
        %v1332 = vlaneseq
        %v1333 = vshrl.u32 %v1332, 7
        %v1334 = vsub.s32 5, %v1333
        %v1335 = vrot.slane %v921, %v1334
        %v1336 = vlaneseq
        %v1337 = vshrl.u32 %v1336, 7
        %v1338 = vsub.s32 6, %v1337
        %v1339 = vrot.slane %v921, %v1338
        %v1340 = vlaneseq
        %v1341 = vshrl.u32 %v1340, 7
        %v1342 = vsub.s32 7, %v1341
        %v1343 = vrot.slane %v921, %v1342
        %v1400 = vunpack.c.l.b16 %v489
        %v1401 = vunpack.c.h.b16 %v489
        %v1402 = vunpack.c.l.b16 %v490
        %v1403 = vunpack.c.h.b16 %v490
        %v1404 = vunpack.c.l.b16 %v491
        %v1405 = vunpack.c.h.b16 %v491
        %v1406 = vunpack.c.l.b16 %v492
        %v1407 = vunpack.c.h.b16 %v492
        %v1408 = vunpack.c.l.b16 %v493
        %v1409 = vunpack.c.h.b16 %v493
        %v1410 = vunpack.c.l.b16 %v494
        %v1411 = vunpack.c.h.b16 %v494
        %v1412 = vunpack.c.l.b16 %v495
        %v1413 = vunpack.c.h.b16 %v495
        %v1414 = vunpack.c.l.b16 %v496
        %v1415 = vunpack.c.h.b16 %v496
        %v1416 = vunpack.c.l.b16 %v497
        %v1417 = vunpack.c.h.b16 %v497
        %v1418 = vunpack.c.l.b16 %v498
        %v1419 = vunpack.c.h.b16 %v498
        %v1420 = vunpack.c.l.b16 %v499
        %v1421 = vunpack.c.h.b16 %v499
        %v1422 = vunpack.c.l.b16 %v500
        %v1423 = vunpack.c.h.b16 %v500
        %v1424 = vunpack.c.l.b16 %v501
        %v1425 = vunpack.c.h.b16 %v501
        %v1426 = vunpack.c.l.b16 %v502
        %v1427 = vunpack.c.h.b16 %v502
        %v1428 = vunpack.c.l.b16 %v503
        %v1429 = vunpack.c.h.b16 %v503
        %v1430 = vunpack.c.l.b16 %v504
        %v1431 = vunpack.c.h.b16 %v504
        %v1432 = vunpack.c.l.b16 %v505
        %v1433 = vunpack.c.h.b16 %v505
        %v1434 = vunpack.c.l.b16 %v506
        %v1435 = vunpack.c.h.b16 %v506
        %v1436 = vunpack.c.l.b16 %v507
        %v1437 = vunpack.c.h.b16 %v507
        %v1438 = vunpack.c.l.b16 %v508
        %v1439 = vunpack.c.h.b16 %v508
        %v1440 = vunpack.c.l.b16 %v509
        %v1441 = vunpack.c.h.b16 %v509
        %v1442 = vunpack.c.l.b16 %v510
        %v1443 = vunpack.c.h.b16 %v510
        %v1444 = vunpack.c.l.b16 %v511
        %v1445 = vunpack.c.h.b16 %v511
        %v1446 = vunpack.c.l.b16 %v512
        %v1447 = vunpack.c.h.b16 %v512
        %v1448 = vunpack.c.l.b16 %v513
        %v1449 = vunpack.c.h.b16 %v513
        %v1450 = vunpack.c.l.b16 %v514
        %v1451 = vunpack.c.h.b16 %v514
        %v1452 = vunpack.c.l.b16 %v515
        %v1453 = vunpack.c.h.b16 %v515
        %v1454 = vunpack.c.l.b16 %v516
        %v1455 = vunpack.c.h.b16 %v516
        %v1456 = vunpack.c.l.b16 %v517
        %v1457 = vunpack.c.h.b16 %v517
        %v1458 = vunpack.c.l.b16 %v518
        %v1459 = vunpack.c.h.b16 %v518
        %v1460 = vunpack.c.l.b16 %v519
        %v1461 = vunpack.c.h.b16 %v519
        %v1462 = vunpack.c.l.b16 %v520
        %v1463 = vunpack.c.h.b16 %v520
        %v1464 = vunpack.c.l.b16 %v521
        %v1465 = vunpack.c.h.b16 %v521
        %v1466 = vunpack.c.l.b16 %v522
        %v1467 = vunpack.c.h.b16 %v522
        %v1468 = vunpack.c.l.b16 %v523
        %v1469 = vunpack.c.h.b16 %v523
        %v1470 = vunpack.c.l.b16 %v524
        %v1471 = vunpack.c.h.b16 %v524
        %v1472 = vunpack.c.l.b16 %v525
        %v1473 = vunpack.c.h.b16 %v525
        %v1474 = vunpack.c.l.b16 %v526
        %v1475 = vunpack.c.h.b16 %v526
        %v1476 = vunpack.c.l.b16 %v527
        %v1477 = vunpack.c.h.b16 %v527
        %v1478 = vunpack.c.l.b16 %v528
        %v1479 = vunpack.c.h.b16 %v528
        %v1480 = vunpack.c.l.b16 %v529
        %v1481 = vunpack.c.h.b16 %v529
        %v1482 = vunpack.c.l.b16 %v530
        %v1483 = vunpack.c.h.b16 %v530
        %v1484 = vunpack.c.l.b16 %v531
        %v1485 = vunpack.c.h.b16 %v531
        %v1486 = vunpack.c.l.b16 %v532
        %v1487 = vunpack.c.h.b16 %v532
        %v1488 = vunpack.c.l.b16 %v533
        %v1489 = vunpack.c.h.b16 %v533
        %v1490 = vunpack.c.l.b16 %v534
        %v1491 = vunpack.c.h.b16 %v534
        %v1492 = vunpack.c.l.b16 %v535
        %v1493 = vunpack.c.h.b16 %v535
        %v1494 = vunpack.c.l.b16 %v536
        %v1495 = vunpack.c.h.b16 %v536
        %v1496 = vpack.c.b16 %v1406, %v1400
        %v1497 = vpack.c.b16 %v1407, %v1401
        %v1498 = vpack.c.b16 %v1408, %v1402
        %v1499 = vpack.c.b16 %v1409, %v1403
        %v1500 = vpack.c.b16 %v1410, %v1404
        %v1501 = vpack.c.b16 %v1411, %v1405
        %v1502 = vpack.c.b16 %v1418, %v1412
        %v1503 = vpack.c.b16 %v1419, %v1413
        %v1504 = vpack.c.b16 %v1420, %v1414
        %v1505 = vpack.c.b16 %v1421, %v1415
        %v1506 = vpack.c.b16 %v1422, %v1416
        %v1507 = vpack.c.b16 %v1423, %v1417
        %v1508 = vpack.c.b16 %v1430, %v1424
        %v1509 = vpack.c.b16 %v1431, %v1425
        %v1510 = vpack.c.b16 %v1432, %v1426
        %v1511 = vpack.c.b16 %v1433, %v1427
        %v1512 = vpack.c.b16 %v1434, %v1428
        %v1513 = vpack.c.b16 %v1435, %v1429
        %v1514 = vpack.c.b16 %v1442, %v1436
        %v1515 = vpack.c.b16 %v1443, %v1437
        %v1516 = vpack.c.b16 %v1444, %v1438
        %v1517 = vpack.c.b16 %v1445, %v1439
        %v1518 = vpack.c.b16 %v1446, %v1440
        %v1519 = vpack.c.b16 %v1447, %v1441
        %v1520 = vpack.c.b16 %v1454, %v1448
        %v1521 = vpack.c.b16 %v1455, %v1449
        %v1522 = vpack.c.b16 %v1456, %v1450
        %v1523 = vpack.c.b16 %v1457, %v1451
        %v1524 = vpack.c.b16 %v1458, %v1452
        %v1525 = vpack.c.b16 %v1459, %v1453
        %v1526 = vpack.c.b16 %v1466, %v1460
        %v1527 = vpack.c.b16 %v1467, %v1461
        %v1528 = vpack.c.b16 %v1468, %v1462
        %v1529 = vpack.c.b16 %v1469, %v1463
        %v1530 = vpack.c.b16 %v1470, %v1464
        %v1531 = vpack.c.b16 %v1471, %v1465
        %v1532 = vpack.c.b16 %v1478, %v1472
        %v1533 = vpack.c.b16 %v1479, %v1473
        %v1534 = vpack.c.b16 %v1480, %v1474
        %v1535 = vpack.c.b16 %v1481, %v1475
        %v1536 = vpack.c.b16 %v1482, %v1476
        %v1537 = vpack.c.b16 %v1483, %v1477
        %v1538 = vpack.c.b16 %v1490, %v1484
        %v1539 = vpack.c.b16 %v1491, %v1485
        %v1540 = vpack.c.b16 %v1492, %v1486
        %v1541 = vpack.c.b16 %v1493, %v1487
        %v1542 = vpack.c.b16 %v1494, %v1488
        %v1543 = vpack.c.b16 %v1495, %v1489
        %v1976 = vunpack.c.l.b16 %v537
        %v1977 = vunpack.c.h.b16 %v537
        %v1978 = vunpack.c.l.b16 %v538
        %v1979 = vunpack.c.h.b16 %v538
        %v1980 = vunpack.c.l.b16 %v539
        %v1981 = vunpack.c.h.b16 %v539
        %v1982 = vunpack.c.l.b16 %v540
        %v1983 = vunpack.c.h.b16 %v540
        %v1984 = vunpack.c.l.b16 %v541
        %v1985 = vunpack.c.h.b16 %v541
        %v1986 = vunpack.c.l.b16 %v542
        %v1987 = vunpack.c.h.b16 %v542
        %v1988 = vunpack.c.l.b16 %v543
        %v1989 = vunpack.c.h.b16 %v543
        %v1990 = vunpack.c.l.b16 %v544
        %v1991 = vunpack.c.h.b16 %v544
        %v1992 = vunpack.c.l.b16 %v545
        %v1993 = vunpack.c.h.b16 %v545
        %v1994 = vunpack.c.l.b16 %v546
        %v1995 = vunpack.c.h.b16 %v546
        %v1996 = vunpack.c.l.b16 %v547
        %v1997 = vunpack.c.h.b16 %v547
        %v1998 = vunpack.c.l.b16 %v548
        %v1999 = vunpack.c.h.b16 %v548
        %v2000 = vunpack.c.l.b16 %v549
        %v2001 = vunpack.c.h.b16 %v549
        %v2002 = vunpack.c.l.b16 %v550
        %v2003 = vunpack.c.h.b16 %v550
        %v2004 = vunpack.c.l.b16 %v551
        %v2005 = vunpack.c.h.b16 %v551
        %v2006 = vunpack.c.l.b16 %v552
        %v2007 = vunpack.c.h.b16 %v552
        %v2008 = vunpack.c.l.b16 %v553
        %v2009 = vunpack.c.h.b16 %v553
        %v2010 = vunpack.c.l.b16 %v554
        %v2011 = vunpack.c.h.b16 %v554
        %v2012 = vunpack.c.l.b16 %v555
        %v2013 = vunpack.c.h.b16 %v555
        %v2014 = vunpack.c.l.b16 %v556
        %v2015 = vunpack.c.h.b16 %v556
        %v2016 = vunpack.c.l.b16 %v557
        %v2017 = vunpack.c.h.b16 %v557
        %v2018 = vunpack.c.l.b16 %v558
        %v2019 = vunpack.c.h.b16 %v558
        %v2020 = vunpack.c.l.b16 %v559
        %v2021 = vunpack.c.h.b16 %v559
        %v2022 = vunpack.c.l.b16 %v560
        %v2023 = vunpack.c.h.b16 %v560
        %v2024 = vunpack.c.l.b16 %v561
        %v2025 = vunpack.c.h.b16 %v561
        %v2026 = vunpack.c.l.b16 %v562
        %v2027 = vunpack.c.h.b16 %v562
        %v2028 = vunpack.c.l.b16 %v563
        %v2029 = vunpack.c.h.b16 %v563
        %v2030 = vunpack.c.l.b16 %v564
        %v2031 = vunpack.c.h.b16 %v564
        %v2032 = vunpack.c.l.b16 %v565
        %v2033 = vunpack.c.h.b16 %v565
        %v2034 = vunpack.c.l.b16 %v566
        %v2035 = vunpack.c.h.b16 %v566
        %v2036 = vunpack.c.l.b16 %v567
        %v2037 = vunpack.c.h.b16 %v567
        %v2038 = vunpack.c.l.b16 %v568
        %v2039 = vunpack.c.h.b16 %v568
        %v2040 = vunpack.c.l.b16 %v569
        %v2041 = vunpack.c.h.b16 %v569
        %v2042 = vunpack.c.l.b16 %v570
        %v2043 = vunpack.c.h.b16 %v570
        %v2044 = vunpack.c.l.b16 %v571
        %v2045 = vunpack.c.h.b16 %v571
        %v2046 = vunpack.c.l.b16 %v572
        %v2047 = vunpack.c.h.b16 %v572
        %v2048 = vunpack.c.l.b16 %v573
        %v2049 = vunpack.c.h.b16 %v573
        %v2050 = vunpack.c.l.b16 %v574
        %v2051 = vunpack.c.h.b16 %v574
        %v2052 = vunpack.c.l.b16 %v575
        %v2053 = vunpack.c.h.b16 %v575
        %v2054 = vunpack.c.l.b16 %v576
        %v2055 = vunpack.c.h.b16 %v576
        %v2056 = vunpack.c.l.b16 %v577
        %v2057 = vunpack.c.h.b16 %v577
        %v2058 = vunpack.c.l.b16 %v578
        %v2059 = vunpack.c.h.b16 %v578
        %v2060 = vunpack.c.l.b16 %v579
        %v2061 = vunpack.c.h.b16 %v579
        %v2062 = vunpack.c.l.b16 %v580
        %v2063 = vunpack.c.h.b16 %v580
        %v2064 = vunpack.c.l.b16 %v581
        %v2065 = vunpack.c.h.b16 %v581
        %v2066 = vunpack.c.l.b16 %v582
        %v2067 = vunpack.c.h.b16 %v582
        %v2068 = vunpack.c.l.b16 %v583
        %v2069 = vunpack.c.h.b16 %v583
        %v2070 = vunpack.c.l.b16 %v584
        %v2071 = vunpack.c.h.b16 %v584
        %v2072 = vunpack.c.l.b16 %v585
        %v2073 = vunpack.c.h.b16 %v585
        %v2074 = vunpack.c.l.b16 %v586
        %v2075 = vunpack.c.h.b16 %v586
        %v2076 = vunpack.c.l.b16 %v587
        %v2077 = vunpack.c.h.b16 %v587
        %v2078 = vunpack.c.l.b16 %v588
        %v2079 = vunpack.c.h.b16 %v588
        %v2080 = vunpack.c.l.b16 %v589
        %v2081 = vunpack.c.h.b16 %v589
        %v2082 = vunpack.c.l.b16 %v590
        %v2083 = vunpack.c.h.b16 %v590
        %v2084 = vunpack.c.l.b16 %v591
        %v2085 = vunpack.c.h.b16 %v591
        %v2086 = vunpack.c.l.b16 %v592
        %v2087 = vunpack.c.h.b16 %v592
        %v2088 = vunpack.c.l.b16 %v593
        %v2089 = vunpack.c.h.b16 %v593
        %v2090 = vunpack.c.l.b16 %v594
        %v2091 = vunpack.c.h.b16 %v594
        %v2092 = vunpack.c.l.b16 %v595
        %v2093 = vunpack.c.h.b16 %v595
        %v2094 = vunpack.c.l.b16 %v596
        %v2095 = vunpack.c.h.b16 %v596
        %v2096 = vunpack.c.l.b16 %v597
        %v2097 = vunpack.c.h.b16 %v597
        %v2098 = vunpack.c.l.b16 %v598
        %v2099 = vunpack.c.h.b16 %v598
        %v2100 = vunpack.c.l.b16 %v599
        %v2101 = vunpack.c.h.b16 %v599
        %v2102 = vunpack.c.l.b16 %v600
        %v2103 = vunpack.c.h.b16 %v600
        %v2104 = vunpack.c.l.b16 %v601
        %v2105 = vunpack.c.h.b16 %v601
        %v2106 = vunpack.c.l.b16 %v602
        %v2107 = vunpack.c.h.b16 %v602
        %v2108 = vunpack.c.l.b16 %v603
        %v2109 = vunpack.c.h.b16 %v603
        %v2110 = vunpack.c.l.b16 %v604
        %v2111 = vunpack.c.h.b16 %v604
        %v2112 = vunpack.c.l.b16 %v605
        %v2113 = vunpack.c.h.b16 %v605
        %v2114 = vunpack.c.l.b16 %v606
        %v2115 = vunpack.c.h.b16 %v606
        %v2116 = vunpack.c.l.b16 %v607
        %v2117 = vunpack.c.h.b16 %v607
        %v2118 = vunpack.c.l.b16 %v608
        %v2119 = vunpack.c.h.b16 %v608
        %v2120 = vunpack.c.l.b16 %v609
        %v2121 = vunpack.c.h.b16 %v609
        %v2122 = vunpack.c.l.b16 %v610
        %v2123 = vunpack.c.h.b16 %v610
        %v2124 = vunpack.c.l.b16 %v611
        %v2125 = vunpack.c.h.b16 %v611
        %v2126 = vunpack.c.l.b16 %v612
        %v2127 = vunpack.c.h.b16 %v612
        %v2128 = vunpack.c.l.b16 %v613
        %v2129 = vunpack.c.h.b16 %v613
        %v2130 = vunpack.c.l.b16 %v614
        %v2131 = vunpack.c.h.b16 %v614
        %v2132 = vunpack.c.l.b16 %v615
        %v2133 = vunpack.c.h.b16 %v615
        %v2134 = vunpack.c.l.b16 %v616
        %v2135 = vunpack.c.h.b16 %v616
        %v2136 = vunpack.c.l.b16 %v617
        %v2137 = vunpack.c.h.b16 %v617
        %v2138 = vunpack.c.l.b16 %v618
        %v2139 = vunpack.c.h.b16 %v618
        %v2140 = vunpack.c.l.b16 %v619
        %v2141 = vunpack.c.h.b16 %v619
        %v2142 = vunpack.c.l.b16 %v620
        %v2143 = vunpack.c.h.b16 %v620
        %v2144 = vunpack.c.l.b16 %v621
        %v2145 = vunpack.c.h.b16 %v621
        %v2146 = vunpack.c.l.b16 %v622
        %v2147 = vunpack.c.h.b16 %v622
        %v2148 = vunpack.c.l.b16 %v623
        %v2149 = vunpack.c.h.b16 %v623
        %v2150 = vunpack.c.l.b16 %v624
        %v2151 = vunpack.c.h.b16 %v624
        %v2152 = vunpack.c.l.b16 %v625
        %v2153 = vunpack.c.h.b16 %v625
        %v2154 = vunpack.c.l.b16 %v626
        %v2155 = vunpack.c.h.b16 %v626
        %v2156 = vunpack.c.l.b16 %v627
        %v2157 = vunpack.c.h.b16 %v627
        %v2158 = vunpack.c.l.b16 %v628
        %v2159 = vunpack.c.h.b16 %v628
        %v2160 = vunpack.c.l.b16 %v629
        %v2161 = vunpack.c.h.b16 %v629
        %v2162 = vunpack.c.l.b16 %v630
        %v2163 = vunpack.c.h.b16 %v630
        %v2164 = vunpack.c.l.b16 %v631
        %v2165 = vunpack.c.h.b16 %v631
        %v2166 = vunpack.c.l.b16 %v632
        %v2167 = vunpack.c.h.b16 %v632
        %v2168 = vunpack.c.l.b16 %v633
        %v2169 = vunpack.c.h.b16 %v633
        %v2170 = vunpack.c.l.b16 %v634
        %v2171 = vunpack.c.h.b16 %v634
        %v2172 = vunpack.c.l.b16 %v635
        %v2173 = vunpack.c.h.b16 %v635
        %v2174 = vunpack.c.l.b16 %v636
        %v2175 = vunpack.c.h.b16 %v636
        %v2176 = vunpack.c.l.b16 %v637
        %v2177 = vunpack.c.h.b16 %v637
        %v2178 = vunpack.c.l.b16 %v638
        %v2179 = vunpack.c.h.b16 %v638
        %v2180 = vunpack.c.l.b16 %v639
        %v2181 = vunpack.c.h.b16 %v639
        %v2182 = vunpack.c.l.b16 %v640
        %v2183 = vunpack.c.h.b16 %v640
        %v2184 = vunpack.c.l.b16 %v641
        %v2185 = vunpack.c.h.b16 %v641
        %v2186 = vunpack.c.l.b16 %v642
        %v2187 = vunpack.c.h.b16 %v642
        %v2188 = vunpack.c.l.b16 %v643
        %v2189 = vunpack.c.h.b16 %v643
        %v2190 = vunpack.c.l.b16 %v644
        %v2191 = vunpack.c.h.b16 %v644
        %v2192 = vunpack.c.l.b16 %v645
        %v2193 = vunpack.c.h.b16 %v645
        %v2194 = vunpack.c.l.b16 %v646
        %v2195 = vunpack.c.h.b16 %v646
        %v2196 = vunpack.c.l.b16 %v647
        %v2197 = vunpack.c.h.b16 %v647
        %v2198 = vunpack.c.l.b16 %v648
        %v2199 = vunpack.c.h.b16 %v648
        %v2200 = vunpack.c.l.b16 %v649
        %v2201 = vunpack.c.h.b16 %v649
        %v2202 = vunpack.c.l.b16 %v650
        %v2203 = vunpack.c.h.b16 %v650
        %v2204 = vunpack.c.l.b16 %v651
        %v2205 = vunpack.c.h.b16 %v651
        %v2206 = vunpack.c.l.b16 %v652
        %v2207 = vunpack.c.h.b16 %v652
        %v2208 = vunpack.c.l.b16 %v653
        %v2209 = vunpack.c.h.b16 %v653
        %v2210 = vunpack.c.l.b16 %v654
        %v2211 = vunpack.c.h.b16 %v654
        %v2212 = vunpack.c.l.b16 %v655
        %v2213 = vunpack.c.h.b16 %v655
        %v2214 = vunpack.c.l.b16 %v656
        %v2215 = vunpack.c.h.b16 %v656
        %v2216 = vunpack.c.l.b16 %v657
        %v2217 = vunpack.c.h.b16 %v657
        %v2218 = vunpack.c.l.b16 %v658
        %v2219 = vunpack.c.h.b16 %v658
        %v2220 = vunpack.c.l.b16 %v659
        %v2221 = vunpack.c.h.b16 %v659
        %v2222 = vunpack.c.l.b16 %v660
        %v2223 = vunpack.c.h.b16 %v660
        %v2224 = vunpack.c.l.b16 %v661
        %v2225 = vunpack.c.h.b16 %v661
        %v2226 = vunpack.c.l.b16 %v662
        %v2227 = vunpack.c.h.b16 %v662
        %v2228 = vunpack.c.l.b16 %v663
        %v2229 = vunpack.c.h.b16 %v663
        %v2230 = vunpack.c.l.b16 %v664
        %v2231 = vunpack.c.h.b16 %v664
        %v2232 = vunpack.c.l.b16 %v665
        %v2233 = vunpack.c.h.b16 %v665
        %v2234 = vunpack.c.l.b16 %v666
        %v2235 = vunpack.c.h.b16 %v666
        %v2236 = vunpack.c.l.b16 %v667
        %v2237 = vunpack.c.h.b16 %v667
        %v2238 = vunpack.c.l.b16 %v668
        %v2239 = vunpack.c.h.b16 %v668
        %v2240 = vunpack.c.l.b16 %v669
        %v2241 = vunpack.c.h.b16 %v669
        %v2242 = vunpack.c.l.b16 %v670
        %v2243 = vunpack.c.h.b16 %v670
        %v2244 = vunpack.c.l.b16 %v671
        %v2245 = vunpack.c.h.b16 %v671
        %v2246 = vunpack.c.l.b16 %v672
        %v2247 = vunpack.c.h.b16 %v672
        %v2248 = vunpack.c.l.b16 %v673
        %v2249 = vunpack.c.h.b16 %v673
        %v2250 = vunpack.c.l.b16 %v674
        %v2251 = vunpack.c.h.b16 %v674
        %v2252 = vunpack.c.l.b16 %v675
        %v2253 = vunpack.c.h.b16 %v675
        %v2254 = vunpack.c.l.b16 %v676
        %v2255 = vunpack.c.h.b16 %v676
        %v2256 = vunpack.c.l.b16 %v677
        %v2257 = vunpack.c.h.b16 %v677
        %v2258 = vunpack.c.l.b16 %v678
        %v2259 = vunpack.c.h.b16 %v678
        %v2260 = vunpack.c.l.b16 %v679
        %v2261 = vunpack.c.h.b16 %v679
        %v2262 = vunpack.c.l.b16 %v680
        %v2263 = vunpack.c.h.b16 %v680
        %v2264 = vunpack.c.l.b16 %v681
        %v2265 = vunpack.c.h.b16 %v681
        %v2266 = vunpack.c.l.b16 %v682
        %v2267 = vunpack.c.h.b16 %v682
        %v2268 = vunpack.c.l.b16 %v683
        %v2269 = vunpack.c.h.b16 %v683
        %v2270 = vunpack.c.l.b16 %v684
        %v2271 = vunpack.c.h.b16 %v684
        %v2272 = vunpack.c.l.b16 %v685
        %v2273 = vunpack.c.h.b16 %v685
        %v2274 = vunpack.c.l.b16 %v686
        %v2275 = vunpack.c.h.b16 %v686
        %v2276 = vunpack.c.l.b16 %v687
        %v2277 = vunpack.c.h.b16 %v687
        %v2278 = vunpack.c.l.b16 %v688
        %v2279 = vunpack.c.h.b16 %v688
        %v2280 = vunpack.c.l.b16 %v689
        %v2281 = vunpack.c.h.b16 %v689
        %v2282 = vunpack.c.l.b16 %v690
        %v2283 = vunpack.c.h.b16 %v690
        %v2284 = vunpack.c.l.b16 %v691
        %v2285 = vunpack.c.h.b16 %v691
        %v2286 = vunpack.c.l.b16 %v692
        %v2287 = vunpack.c.h.b16 %v692
        %v2288 = vunpack.c.l.b16 %v693
        %v2289 = vunpack.c.h.b16 %v693
        %v2290 = vunpack.c.l.b16 %v694
        %v2291 = vunpack.c.h.b16 %v694
        %v2292 = vunpack.c.l.b16 %v695
        %v2293 = vunpack.c.h.b16 %v695
        %v2294 = vunpack.c.l.b16 %v696
        %v2295 = vunpack.c.h.b16 %v696
        %v2296 = vunpack.c.l.b16 %v697
        %v2297 = vunpack.c.h.b16 %v697
        %v2298 = vunpack.c.l.b16 %v698
        %v2299 = vunpack.c.h.b16 %v698
        %v2300 = vunpack.c.l.b16 %v699
        %v2301 = vunpack.c.h.b16 %v699
        %v2302 = vunpack.c.l.b16 %v700
        %v2303 = vunpack.c.h.b16 %v700
        %v2304 = vunpack.c.l.b16 %v701
        %v2305 = vunpack.c.h.b16 %v701
        %v2306 = vunpack.c.l.b16 %v702
        %v2307 = vunpack.c.h.b16 %v702
        %v2308 = vunpack.c.l.b16 %v703
        %v2309 = vunpack.c.h.b16 %v703
        %v2310 = vunpack.c.l.b16 %v704
        %v2311 = vunpack.c.h.b16 %v704
        %v2312 = vunpack.c.l.b16 %v705
        %v2313 = vunpack.c.h.b16 %v705
        %v2314 = vunpack.c.l.b16 %v706
        %v2315 = vunpack.c.h.b16 %v706
        %v2316 = vunpack.c.l.b16 %v707
        %v2317 = vunpack.c.h.b16 %v707
        %v2318 = vunpack.c.l.b16 %v708
        %v2319 = vunpack.c.h.b16 %v708
        %v2320 = vunpack.c.l.b16 %v709
        %v2321 = vunpack.c.h.b16 %v709
        %v2322 = vunpack.c.l.b16 %v710
        %v2323 = vunpack.c.h.b16 %v710
        %v2324 = vunpack.c.l.b16 %v711
        %v2325 = vunpack.c.h.b16 %v711
        %v2326 = vunpack.c.l.b16 %v712
        %v2327 = vunpack.c.h.b16 %v712
        %v2328 = vunpack.c.l.b16 %v713
        %v2329 = vunpack.c.h.b16 %v713
        %v2330 = vunpack.c.l.b16 %v714
        %v2331 = vunpack.c.h.b16 %v714
        %v2332 = vunpack.c.l.b16 %v715
        %v2333 = vunpack.c.h.b16 %v715
        %v2334 = vunpack.c.l.b16 %v716
        %v2335 = vunpack.c.h.b16 %v716
        %v2336 = vunpack.c.l.b16 %v717
        %v2337 = vunpack.c.h.b16 %v717
        %v2338 = vunpack.c.l.b16 %v718
        %v2339 = vunpack.c.h.b16 %v718
        %v2340 = vunpack.c.l.b16 %v719
        %v2341 = vunpack.c.h.b16 %v719
        %v2342 = vunpack.c.l.b16 %v720
        %v2343 = vunpack.c.h.b16 %v720
        %v2344 = vunpack.c.l.b16 %v721
        %v2345 = vunpack.c.h.b16 %v721
        %v2346 = vunpack.c.l.b16 %v722
        %v2347 = vunpack.c.h.b16 %v722
        %v2348 = vunpack.c.l.b16 %v723
        %v2349 = vunpack.c.h.b16 %v723
        %v2350 = vunpack.c.l.b16 %v724
        %v2351 = vunpack.c.h.b16 %v724
        %v2352 = vunpack.c.l.b16 %v725
        %v2353 = vunpack.c.h.b16 %v725
        %v2354 = vunpack.c.l.b16 %v726
        %v2355 = vunpack.c.h.b16 %v726
        %v2356 = vunpack.c.l.b16 %v727
        %v2357 = vunpack.c.h.b16 %v727
        %v2358 = vunpack.c.l.b16 %v728
        %v2359 = vunpack.c.h.b16 %v728
        %v2360 = vunpack.c.l.b16 %v729
        %v2361 = vunpack.c.h.b16 %v729
        %v2362 = vunpack.c.l.b16 %v730
        %v2363 = vunpack.c.h.b16 %v730
        %v2364 = vunpack.c.l.b16 %v731
        %v2365 = vunpack.c.h.b16 %v731
        %v2366 = vunpack.c.l.b16 %v732
        %v2367 = vunpack.c.h.b16 %v732
        %v2368 = vunpack.c.l.b16 %v733
        %v2369 = vunpack.c.h.b16 %v733
        %v2370 = vunpack.c.l.b16 %v734
        %v2371 = vunpack.c.h.b16 %v734
        %v2372 = vunpack.c.l.b16 %v735
        %v2373 = vunpack.c.h.b16 %v735
        %v2374 = vunpack.c.l.b16 %v736
        %v2375 = vunpack.c.h.b16 %v736
        %v2376 = vunpack.c.l.b16 %v737
        %v2377 = vunpack.c.h.b16 %v737
        %v2378 = vunpack.c.l.b16 %v738
        %v2379 = vunpack.c.h.b16 %v738
        %v2380 = vunpack.c.l.b16 %v739
        %v2381 = vunpack.c.h.b16 %v739
        %v2382 = vunpack.c.l.b16 %v740
        %v2383 = vunpack.c.h.b16 %v740
        %v2384 = vunpack.c.l.b16 %v741
        %v2385 = vunpack.c.h.b16 %v741
        %v2386 = vunpack.c.l.b16 %v742
        %v2387 = vunpack.c.h.b16 %v742
        %v2388 = vunpack.c.l.b16 %v743
        %v2389 = vunpack.c.h.b16 %v743
        %v2390 = vunpack.c.l.b16 %v744
        %v2391 = vunpack.c.h.b16 %v744
        %v2392 = vunpack.c.l.b16 %v745
        %v2393 = vunpack.c.h.b16 %v745
        %v2394 = vunpack.c.l.b16 %v746
        %v2395 = vunpack.c.h.b16 %v746
        %v2396 = vunpack.c.l.b16 %v747
        %v2397 = vunpack.c.h.b16 %v747
        %v2398 = vunpack.c.l.b16 %v748
        %v2399 = vunpack.c.h.b16 %v748
        %v2400 = vunpack.c.l.b16 %v749
        %v2401 = vunpack.c.h.b16 %v749
        %v2402 = vunpack.c.l.b16 %v750
        %v2403 = vunpack.c.h.b16 %v750
        %v2404 = vunpack.c.l.b16 %v751
        %v2405 = vunpack.c.h.b16 %v751
        %v2406 = vunpack.c.l.b16 %v752
        %v2407 = vunpack.c.h.b16 %v752
        %v2408 = vunpack.c.l.b16 %v753
        %v2409 = vunpack.c.h.b16 %v753
        %v2410 = vunpack.c.l.b16 %v754
        %v2411 = vunpack.c.h.b16 %v754
        %v2412 = vunpack.c.l.b16 %v755
        %v2413 = vunpack.c.h.b16 %v755
        %v2414 = vunpack.c.l.b16 %v756
        %v2415 = vunpack.c.h.b16 %v756
        %v2416 = vunpack.c.l.b16 %v757
        %v2417 = vunpack.c.h.b16 %v757
        %v2418 = vunpack.c.l.b16 %v758
        %v2419 = vunpack.c.h.b16 %v758
        %v2420 = vunpack.c.l.b16 %v759
        %v2421 = vunpack.c.h.b16 %v759
        %v2422 = vunpack.c.l.b16 %v760
        %v2423 = vunpack.c.h.b16 %v760
        %v2424 = vunpack.c.l.b16 %v761
        %v2425 = vunpack.c.h.b16 %v761
        %v2426 = vunpack.c.l.b16 %v762
        %v2427 = vunpack.c.h.b16 %v762
        %v2428 = vunpack.c.l.b16 %v763
        %v2429 = vunpack.c.h.b16 %v763
        %v2430 = vunpack.c.l.b16 %v764
        %v2431 = vunpack.c.h.b16 %v764
        %v2432 = vunpack.c.l.b16 %v765
        %v2433 = vunpack.c.h.b16 %v765
        %v2434 = vunpack.c.l.b16 %v766
        %v2435 = vunpack.c.h.b16 %v766
        %v2436 = vunpack.c.l.b16 %v767
        %v2437 = vunpack.c.h.b16 %v767
        %v2438 = vunpack.c.l.b16 %v768
        %v2439 = vunpack.c.h.b16 %v768
        %v2440 = vunpack.c.l.b16 %v769
        %v2441 = vunpack.c.h.b16 %v769
        %v2442 = vunpack.c.l.b16 %v770
        %v2443 = vunpack.c.h.b16 %v770
        %v2444 = vunpack.c.l.b16 %v771
        %v2445 = vunpack.c.h.b16 %v771
        %v2446 = vunpack.c.l.b16 %v772
        %v2447 = vunpack.c.h.b16 %v772
        %v2448 = vunpack.c.l.b16 %v773
        %v2449 = vunpack.c.h.b16 %v773
        %v2450 = vunpack.c.l.b16 %v774
        %v2451 = vunpack.c.h.b16 %v774
        %v2452 = vunpack.c.l.b16 %v775
        %v2453 = vunpack.c.h.b16 %v775
        %v2454 = vunpack.c.l.b16 %v776
        %v2455 = vunpack.c.h.b16 %v776
        %v2456 = vunpack.c.l.b16 %v777
        %v2457 = vunpack.c.h.b16 %v777
        %v2458 = vunpack.c.l.b16 %v778
        %v2459 = vunpack.c.h.b16 %v778
        %v2460 = vunpack.c.l.b16 %v779
        %v2461 = vunpack.c.h.b16 %v779
        %v2462 = vunpack.c.l.b16 %v780
        %v2463 = vunpack.c.h.b16 %v780
        %v2464 = vunpack.c.l.b16 %v781
        %v2465 = vunpack.c.h.b16 %v781
        %v2466 = vunpack.c.l.b16 %v782
        %v2467 = vunpack.c.h.b16 %v782
        %v2468 = vunpack.c.l.b16 %v783
        %v2469 = vunpack.c.h.b16 %v783
        %v2470 = vunpack.c.l.b16 %v784
        %v2471 = vunpack.c.h.b16 %v784
        %v2472 = vunpack.c.l.b16 %v785
        %v2473 = vunpack.c.h.b16 %v785
        %v2474 = vunpack.c.l.b16 %v786
        %v2475 = vunpack.c.h.b16 %v786
        %v2476 = vunpack.c.l.b16 %v787
        %v2477 = vunpack.c.h.b16 %v787
        %v2478 = vunpack.c.l.b16 %v788
        %v2479 = vunpack.c.h.b16 %v788
        %v2480 = vunpack.c.l.b16 %v789
        %v2481 = vunpack.c.h.b16 %v789
        %v2482 = vunpack.c.l.b16 %v790
        %v2483 = vunpack.c.h.b16 %v790
        %v2484 = vunpack.c.l.b16 %v791
        %v2485 = vunpack.c.h.b16 %v791
        %v2486 = vunpack.c.l.b16 %v792
        %v2487 = vunpack.c.h.b16 %v792
        %v2488 = vunpack.c.l.b16 %v793
        %v2489 = vunpack.c.h.b16 %v793
        %v2490 = vunpack.c.l.b16 %v794
        %v2491 = vunpack.c.h.b16 %v794
        %v2492 = vunpack.c.l.b16 %v795
        %v2493 = vunpack.c.h.b16 %v795
        %v2494 = vunpack.c.l.b16 %v796
        %v2495 = vunpack.c.h.b16 %v796
        %v2496 = vunpack.c.l.b16 %v797
        %v2497 = vunpack.c.h.b16 %v797
        %v2498 = vunpack.c.l.b16 %v798
        %v2499 = vunpack.c.h.b16 %v798
        %v2500 = vunpack.c.l.b16 %v799
        %v2501 = vunpack.c.h.b16 %v799
        %v2502 = vunpack.c.l.b16 %v800
        %v2503 = vunpack.c.h.b16 %v800
        %v2504 = vunpack.c.l.b16 %v801
        %v2505 = vunpack.c.h.b16 %v801
        %v2506 = vunpack.c.l.b16 %v802
        %v2507 = vunpack.c.h.b16 %v802
        %v2508 = vunpack.c.l.b16 %v803
        %v2509 = vunpack.c.h.b16 %v803
        %v2510 = vunpack.c.l.b16 %v804
        %v2511 = vunpack.c.h.b16 %v804
        %v2512 = vunpack.c.l.b16 %v805
        %v2513 = vunpack.c.h.b16 %v805
        %v2514 = vunpack.c.l.b16 %v806
        %v2515 = vunpack.c.h.b16 %v806
        %v2516 = vunpack.c.l.b16 %v807
        %v2517 = vunpack.c.h.b16 %v807
        %v2518 = vunpack.c.l.b16 %v808
        %v2519 = vunpack.c.h.b16 %v808
        %v2520 = vunpack.c.l.b16 %v809
        %v2521 = vunpack.c.h.b16 %v809
        %v2522 = vunpack.c.l.b16 %v810
        %v2523 = vunpack.c.h.b16 %v810
        %v2524 = vunpack.c.l.b16 %v811
        %v2525 = vunpack.c.h.b16 %v811
        %v2526 = vunpack.c.l.b16 %v812
        %v2527 = vunpack.c.h.b16 %v812
        %v2528 = vunpack.c.l.b16 %v813
        %v2529 = vunpack.c.h.b16 %v813
        %v2530 = vunpack.c.l.b16 %v814
        %v2531 = vunpack.c.h.b16 %v814
        %v2532 = vunpack.c.l.b16 %v815
        %v2533 = vunpack.c.h.b16 %v815
        %v2534 = vunpack.c.l.b16 %v816
        %v2535 = vunpack.c.h.b16 %v816
        %v2536 = vunpack.c.l.b16 %v817
        %v2537 = vunpack.c.h.b16 %v817
        %v2538 = vunpack.c.l.b16 %v818
        %v2539 = vunpack.c.h.b16 %v818
        %v2540 = vunpack.c.l.b16 %v819
        %v2541 = vunpack.c.h.b16 %v819
        %v2542 = vunpack.c.l.b16 %v820
        %v2543 = vunpack.c.h.b16 %v820
        %v2544 = vunpack.c.l.b16 %v821
        %v2545 = vunpack.c.h.b16 %v821
        %v2546 = vunpack.c.l.b16 %v822
        %v2547 = vunpack.c.h.b16 %v822
        %v2548 = vunpack.c.l.b16 %v823
        %v2549 = vunpack.c.h.b16 %v823
        %v2550 = vunpack.c.l.b16 %v824
        %v2551 = vunpack.c.h.b16 %v824
        %v2552 = vunpack.c.l.b16 %v825
        %v2553 = vunpack.c.h.b16 %v825
        %v2554 = vunpack.c.l.b16 %v826
        %v2555 = vunpack.c.h.b16 %v826
        %v2556 = vunpack.c.l.b16 %v827
        %v2557 = vunpack.c.h.b16 %v827
        %v2558 = vunpack.c.l.b16 %v828
        %v2559 = vunpack.c.h.b16 %v828
        %v2560 = vunpack.c.l.b16 %v829
        %v2561 = vunpack.c.h.b16 %v829
        %v2562 = vunpack.c.l.b16 %v830
        %v2563 = vunpack.c.h.b16 %v830
        %v2564 = vunpack.c.l.b16 %v831
        %v2565 = vunpack.c.h.b16 %v831
        %v2566 = vunpack.c.l.b16 %v832
        %v2567 = vunpack.c.h.b16 %v832
        %v2568 = vunpack.c.l.b16 %v833
        %v2569 = vunpack.c.h.b16 %v833
        %v2570 = vunpack.c.l.b16 %v834
        %v2571 = vunpack.c.h.b16 %v834
        %v2572 = vunpack.c.l.b16 %v835
        %v2573 = vunpack.c.h.b16 %v835
        %v2574 = vunpack.c.l.b16 %v836
        %v2575 = vunpack.c.h.b16 %v836
        %v2576 = vunpack.c.l.b16 %v837
        %v2577 = vunpack.c.h.b16 %v837
        %v2578 = vunpack.c.l.b16 %v838
        %v2579 = vunpack.c.h.b16 %v838
        %v2580 = vunpack.c.l.b16 %v839
        %v2581 = vunpack.c.h.b16 %v839
        %v2582 = vunpack.c.l.b16 %v840
        %v2583 = vunpack.c.h.b16 %v840
        %v2584 = vunpack.c.l.b16 %v841
        %v2585 = vunpack.c.h.b16 %v841
        %v2586 = vunpack.c.l.b16 %v842
        %v2587 = vunpack.c.h.b16 %v842
        %v2588 = vunpack.c.l.b16 %v843
        %v2589 = vunpack.c.h.b16 %v843
        %v2590 = vunpack.c.l.b16 %v844
        %v2591 = vunpack.c.h.b16 %v844
        %v2592 = vunpack.c.l.b16 %v845
        %v2593 = vunpack.c.h.b16 %v845
        %v2594 = vunpack.c.l.b16 %v846
        %v2595 = vunpack.c.h.b16 %v846
        %v2596 = vunpack.c.l.b16 %v847
        %v2597 = vunpack.c.h.b16 %v847
        %v2598 = vunpack.c.l.b16 %v848
        %v2599 = vunpack.c.h.b16 %v848
        %v2600 = vunpack.c.l.b16 %v849
        %v2601 = vunpack.c.h.b16 %v849
        %v2602 = vunpack.c.l.b16 %v850
        %v2603 = vunpack.c.h.b16 %v850
        %v2604 = vunpack.c.l.b16 %v851
        %v2605 = vunpack.c.h.b16 %v851
        %v2606 = vunpack.c.l.b16 %v852
        %v2607 = vunpack.c.h.b16 %v852
        %v2608 = vunpack.c.l.b16 %v853
        %v2609 = vunpack.c.h.b16 %v853
        %v2610 = vunpack.c.l.b16 %v854
        %v2611 = vunpack.c.h.b16 %v854
        %v2612 = vunpack.c.l.b16 %v855
        %v2613 = vunpack.c.h.b16 %v855
        %v2614 = vunpack.c.l.b16 %v856
        %v2615 = vunpack.c.h.b16 %v856
        %v2616 = vunpack.c.l.b16 %v857
        %v2617 = vunpack.c.h.b16 %v857
        %v2618 = vunpack.c.l.b16 %v858
        %v2619 = vunpack.c.h.b16 %v858
        %v2620 = vunpack.c.l.b16 %v859
        %v2621 = vunpack.c.h.b16 %v859
        %v2622 = vunpack.c.l.b16 %v860
        %v2623 = vunpack.c.h.b16 %v860
        %v2624 = vunpack.c.l.b16 %v861
        %v2625 = vunpack.c.h.b16 %v861
        %v2626 = vunpack.c.l.b16 %v862
        %v2627 = vunpack.c.h.b16 %v862
        %v2628 = vunpack.c.l.b16 %v863
        %v2629 = vunpack.c.h.b16 %v863
        %v2630 = vunpack.c.l.b16 %v864
        %v2631 = vunpack.c.h.b16 %v864
        %v2632 = vunpack.c.l.b16 %v865
        %v2633 = vunpack.c.h.b16 %v865
        %v2634 = vunpack.c.l.b16 %v866
        %v2635 = vunpack.c.h.b16 %v866
        %v2636 = vunpack.c.l.b16 %v867
        %v2637 = vunpack.c.h.b16 %v867
        %v2638 = vunpack.c.l.b16 %v868
        %v2639 = vunpack.c.h.b16 %v868
        %v2640 = vunpack.c.l.b16 %v869
        %v2641 = vunpack.c.h.b16 %v869
        %v2642 = vunpack.c.l.b16 %v870
        %v2643 = vunpack.c.h.b16 %v870
        %v2644 = vunpack.c.l.b16 %v871
        %v2645 = vunpack.c.h.b16 %v871
        %v2646 = vunpack.c.l.b16 %v872
        %v2647 = vunpack.c.h.b16 %v872
        %v2648 = vunpack.c.l.b16 %v873
        %v2649 = vunpack.c.h.b16 %v873
        %v2650 = vunpack.c.l.b16 %v874
        %v2651 = vunpack.c.h.b16 %v874
        %v2652 = vunpack.c.l.b16 %v875
        %v2653 = vunpack.c.h.b16 %v875
        %v2654 = vunpack.c.l.b16 %v876
        %v2655 = vunpack.c.h.b16 %v876
        %v2656 = vunpack.c.l.b16 %v877
        %v2657 = vunpack.c.h.b16 %v877
        %v2658 = vunpack.c.l.b16 %v878
        %v2659 = vunpack.c.h.b16 %v878
        %v2660 = vunpack.c.l.b16 %v879
        %v2661 = vunpack.c.h.b16 %v879
        %v2662 = vunpack.c.l.b16 %v880
        %v2663 = vunpack.c.h.b16 %v880
        %v2664 = vunpack.c.l.b16 %v881
        %v2665 = vunpack.c.h.b16 %v881
        %v2666 = vunpack.c.l.b16 %v882
        %v2667 = vunpack.c.h.b16 %v882
        %v2668 = vunpack.c.l.b16 %v883
        %v2669 = vunpack.c.h.b16 %v883
        %v2670 = vunpack.c.l.b16 %v884
        %v2671 = vunpack.c.h.b16 %v884
        %v2672 = vunpack.c.l.b16 %v885
        %v2673 = vunpack.c.h.b16 %v885
        %v2674 = vunpack.c.l.b16 %v886
        %v2675 = vunpack.c.h.b16 %v886
        %v2676 = vunpack.c.l.b16 %v887
        %v2677 = vunpack.c.h.b16 %v887
        %v2678 = vunpack.c.l.b16 %v888
        %v2679 = vunpack.c.h.b16 %v888
        %v2680 = vunpack.c.l.b16 %v889
        %v2681 = vunpack.c.h.b16 %v889
        %v2682 = vunpack.c.l.b16 %v890
        %v2683 = vunpack.c.h.b16 %v890
        %v2684 = vunpack.c.l.b16 %v891
        %v2685 = vunpack.c.h.b16 %v891
        %v2686 = vunpack.c.l.b16 %v892
        %v2687 = vunpack.c.h.b16 %v892
        %v2688 = vunpack.c.l.b16 %v893
        %v2689 = vunpack.c.h.b16 %v893
        %v2690 = vunpack.c.l.b16 %v894
        %v2691 = vunpack.c.h.b16 %v894
        %v2692 = vunpack.c.l.b16 %v895
        %v2693 = vunpack.c.h.b16 %v895
        %v2694 = vunpack.c.l.b16 %v896
        %v2695 = vunpack.c.h.b16 %v896
        %v2696 = vunpack.c.l.b16 %v897
        %v2697 = vunpack.c.h.b16 %v897
        %v2698 = vunpack.c.l.b16 %v898
        %v2699 = vunpack.c.h.b16 %v898
        %v2700 = vunpack.c.l.b16 %v899
        %v2701 = vunpack.c.h.b16 %v899
        %v2702 = vunpack.c.l.b16 %v900
        %v2703 = vunpack.c.h.b16 %v900
        %v2704 = vunpack.c.l.b16 %v901
        %v2705 = vunpack.c.h.b16 %v901
        %v2706 = vunpack.c.l.b16 %v902
        %v2707 = vunpack.c.h.b16 %v902
        %v2708 = vunpack.c.l.b16 %v903
        %v2709 = vunpack.c.h.b16 %v903
        %v2710 = vunpack.c.l.b16 %v904
        %v2711 = vunpack.c.h.b16 %v904
        %v2712 = vunpack.c.l.b16 %v905
        %v2713 = vunpack.c.h.b16 %v905
        %v2714 = vunpack.c.l.b16 %v906
        %v2715 = vunpack.c.h.b16 %v906
        %v2716 = vunpack.c.l.b16 %v907
        %v2717 = vunpack.c.h.b16 %v907
        %v2718 = vunpack.c.l.b16 %v908
        %v2719 = vunpack.c.h.b16 %v908
        %v2720 = vunpack.c.l.b16 %v909
        %v2721 = vunpack.c.h.b16 %v909
        %v2722 = vunpack.c.l.b16 %v910
        %v2723 = vunpack.c.h.b16 %v910
        %v2724 = vunpack.c.l.b16 %v911
        %v2725 = vunpack.c.h.b16 %v911
        %v2726 = vunpack.c.l.b16 %v912
        %v2727 = vunpack.c.h.b16 %v912
        %v2728 = vunpack.c.l.b16 %v913
        %v2729 = vunpack.c.h.b16 %v913
        %v2730 = vunpack.c.l.b16 %v914
        %v2731 = vunpack.c.h.b16 %v914
        %v2732 = vunpack.c.l.b16 %v915
        %v2733 = vunpack.c.h.b16 %v915
        %v2734 = vunpack.c.l.b16 %v916
        %v2735 = vunpack.c.h.b16 %v916
        %v2736 = vunpack.c.l.b16 %v917
        %v2737 = vunpack.c.h.b16 %v917
        %v2738 = vunpack.c.l.b16 %v918
        %v2739 = vunpack.c.h.b16 %v918
        %v2740 = vunpack.c.l.b16 %v919
        %v2741 = vunpack.c.h.b16 %v919
        %v2742 = vunpack.c.l.b16 %v920
        %v2743 = vunpack.c.h.b16 %v920
        %v2744 = vpack.c.b16 %v1984, %v1976
        %v2745 = vpack.c.b16 %v1985, %v1977
        %v2746 = vpack.c.b16 %v1986, %v1978
        %v2747 = vpack.c.b16 %v1987, %v1979
        %v2748 = vpack.c.b16 %v1988, %v1980
        %v2749 = vpack.c.b16 %v1989, %v1981
        %v2750 = vpack.c.b16 %v1990, %v1982
        %v2751 = vpack.c.b16 %v1991, %v1983
        %v2752 = vpack.c.b16 %v2000, %v1992
        %v2753 = vpack.c.b16 %v2001, %v1993
        %v2754 = vpack.c.b16 %v2002, %v1994
        %v2755 = vpack.c.b16 %v2003, %v1995
        %v2756 = vpack.c.b16 %v2004, %v1996
        %v2757 = vpack.c.b16 %v2005, %v1997
        %v2758 = vpack.c.b16 %v2006, %v1998
        %v2759 = vpack.c.b16 %v2007, %v1999
        %v2760 = vpack.c.b16 %v2016, %v2008
        %v2761 = vpack.c.b16 %v2017, %v2009
        %v2762 = vpack.c.b16 %v2018, %v2010
        %v2763 = vpack.c.b16 %v2019, %v2011
        %v2764 = vpack.c.b16 %v2020, %v2012
        %v2765 = vpack.c.b16 %v2021, %v2013
        %v2766 = vpack.c.b16 %v2022, %v2014
        %v2767 = vpack.c.b16 %v2023, %v2015
        %v2768 = vpack.c.b16 %v2032, %v2024
        %v2769 = vpack.c.b16 %v2033, %v2025
        %v2770 = vpack.c.b16 %v2034, %v2026
        %v2771 = vpack.c.b16 %v2035, %v2027
        %v2772 = vpack.c.b16 %v2036, %v2028
        %v2773 = vpack.c.b16 %v2037, %v2029
        %v2774 = vpack.c.b16 %v2038, %v2030
        %v2775 = vpack.c.b16 %v2039, %v2031
        %v2776 = vpack.c.b16 %v2048, %v2040
        %v2777 = vpack.c.b16 %v2049, %v2041
        %v2778 = vpack.c.b16 %v2050, %v2042
        %v2779 = vpack.c.b16 %v2051, %v2043
        %v2780 = vpack.c.b16 %v2052, %v2044
        %v2781 = vpack.c.b16 %v2053, %v2045
        %v2782 = vpack.c.b16 %v2054, %v2046
        %v2783 = vpack.c.b16 %v2055, %v2047
        %v2784 = vpack.c.b16 %v2064, %v2056
        %v2785 = vpack.c.b16 %v2065, %v2057
        %v2786 = vpack.c.b16 %v2066, %v2058
        %v2787 = vpack.c.b16 %v2067, %v2059
        %v2788 = vpack.c.b16 %v2068, %v2060
        %v2789 = vpack.c.b16 %v2069, %v2061
        %v2790 = vpack.c.b16 %v2070, %v2062
        %v2791 = vpack.c.b16 %v2071, %v2063
        %v2792 = vpack.c.b16 %v2080, %v2072
        %v2793 = vpack.c.b16 %v2081, %v2073
        %v2794 = vpack.c.b16 %v2082, %v2074
        %v2795 = vpack.c.b16 %v2083, %v2075
        %v2796 = vpack.c.b16 %v2084, %v2076
        %v2797 = vpack.c.b16 %v2085, %v2077
        %v2798 = vpack.c.b16 %v2086, %v2078
        %v2799 = vpack.c.b16 %v2087, %v2079
        %v2800 = vpack.c.b16 %v2096, %v2088
        %v2801 = vpack.c.b16 %v2097, %v2089
        %v2802 = vpack.c.b16 %v2098, %v2090
        %v2803 = vpack.c.b16 %v2099, %v2091
        %v2804 = vpack.c.b16 %v2100, %v2092
        %v2805 = vpack.c.b16 %v2101, %v2093
        %v2806 = vpack.c.b16 %v2102, %v2094
        %v2807 = vpack.c.b16 %v2103, %v2095
        %v2808 = vpack.c.b16 %v2112, %v2104
        %v2809 = vpack.c.b16 %v2113, %v2105
        %v2810 = vpack.c.b16 %v2114, %v2106
        %v2811 = vpack.c.b16 %v2115, %v2107
        %v2812 = vpack.c.b16 %v2116, %v2108
        %v2813 = vpack.c.b16 %v2117, %v2109
        %v2814 = vpack.c.b16 %v2118, %v2110
        %v2815 = vpack.c.b16 %v2119, %v2111
        %v2816 = vpack.c.b16 %v2128, %v2120
        %v2817 = vpack.c.b16 %v2129, %v2121
        %v2818 = vpack.c.b16 %v2130, %v2122
        %v2819 = vpack.c.b16 %v2131, %v2123
        %v2820 = vpack.c.b16 %v2132, %v2124
        %v2821 = vpack.c.b16 %v2133, %v2125
        %v2822 = vpack.c.b16 %v2134, %v2126
        %v2823 = vpack.c.b16 %v2135, %v2127
        %v2824 = vpack.c.b16 %v2144, %v2136
        %v2825 = vpack.c.b16 %v2145, %v2137
        %v2826 = vpack.c.b16 %v2146, %v2138
        %v2827 = vpack.c.b16 %v2147, %v2139
        %v2828 = vpack.c.b16 %v2148, %v2140
        %v2829 = vpack.c.b16 %v2149, %v2141
        %v2830 = vpack.c.b16 %v2150, %v2142
        %v2831 = vpack.c.b16 %v2151, %v2143
        %v2832 = vpack.c.b16 %v2160, %v2152
        %v2833 = vpack.c.b16 %v2161, %v2153
        %v2834 = vpack.c.b16 %v2162, %v2154
        %v2835 = vpack.c.b16 %v2163, %v2155
        %v2836 = vpack.c.b16 %v2164, %v2156
        %v2837 = vpack.c.b16 %v2165, %v2157
        %v2838 = vpack.c.b16 %v2166, %v2158
        %v2839 = vpack.c.b16 %v2167, %v2159
        %v2840 = vpack.c.b16 %v2176, %v2168
        %v2841 = vpack.c.b16 %v2177, %v2169
        %v2842 = vpack.c.b16 %v2178, %v2170
        %v2843 = vpack.c.b16 %v2179, %v2171
        %v2844 = vpack.c.b16 %v2180, %v2172
        %v2845 = vpack.c.b16 %v2181, %v2173
        %v2846 = vpack.c.b16 %v2182, %v2174
        %v2847 = vpack.c.b16 %v2183, %v2175
        %v2848 = vpack.c.b16 %v2192, %v2184
        %v2849 = vpack.c.b16 %v2193, %v2185
        %v2850 = vpack.c.b16 %v2194, %v2186
        %v2851 = vpack.c.b16 %v2195, %v2187
        %v2852 = vpack.c.b16 %v2196, %v2188
        %v2853 = vpack.c.b16 %v2197, %v2189
        %v2854 = vpack.c.b16 %v2198, %v2190
        %v2855 = vpack.c.b16 %v2199, %v2191
        %v2856 = vpack.c.b16 %v2208, %v2200
        %v2857 = vpack.c.b16 %v2209, %v2201
        %v2858 = vpack.c.b16 %v2210, %v2202
        %v2859 = vpack.c.b16 %v2211, %v2203
        %v2860 = vpack.c.b16 %v2212, %v2204
        %v2861 = vpack.c.b16 %v2213, %v2205
        %v2862 = vpack.c.b16 %v2214, %v2206
        %v2863 = vpack.c.b16 %v2215, %v2207
        %v2864 = vpack.c.b16 %v2224, %v2216
        %v2865 = vpack.c.b16 %v2225, %v2217
        %v2866 = vpack.c.b16 %v2226, %v2218
        %v2867 = vpack.c.b16 %v2227, %v2219
        %v2868 = vpack.c.b16 %v2228, %v2220
        %v2869 = vpack.c.b16 %v2229, %v2221
        %v2870 = vpack.c.b16 %v2230, %v2222
        %v2871 = vpack.c.b16 %v2231, %v2223
        %v2872 = vpack.c.b16 %v2240, %v2232
        %v2873 = vpack.c.b16 %v2241, %v2233
        %v2874 = vpack.c.b16 %v2242, %v2234
        %v2875 = vpack.c.b16 %v2243, %v2235
        %v2876 = vpack.c.b16 %v2244, %v2236
        %v2877 = vpack.c.b16 %v2245, %v2237
        %v2878 = vpack.c.b16 %v2246, %v2238
        %v2879 = vpack.c.b16 %v2247, %v2239
        %v2880 = vpack.c.b16 %v2256, %v2248
        %v2881 = vpack.c.b16 %v2257, %v2249
        %v2882 = vpack.c.b16 %v2258, %v2250
        %v2883 = vpack.c.b16 %v2259, %v2251
        %v2884 = vpack.c.b16 %v2260, %v2252
        %v2885 = vpack.c.b16 %v2261, %v2253
        %v2886 = vpack.c.b16 %v2262, %v2254
        %v2887 = vpack.c.b16 %v2263, %v2255
        %v2888 = vpack.c.b16 %v2272, %v2264
        %v2889 = vpack.c.b16 %v2273, %v2265
        %v2890 = vpack.c.b16 %v2274, %v2266
        %v2891 = vpack.c.b16 %v2275, %v2267
        %v2892 = vpack.c.b16 %v2276, %v2268
        %v2893 = vpack.c.b16 %v2277, %v2269
        %v2894 = vpack.c.b16 %v2278, %v2270
        %v2895 = vpack.c.b16 %v2279, %v2271
        %v2896 = vpack.c.b16 %v2288, %v2280
        %v2897 = vpack.c.b16 %v2289, %v2281
        %v2898 = vpack.c.b16 %v2290, %v2282
        %v2899 = vpack.c.b16 %v2291, %v2283
        %v2900 = vpack.c.b16 %v2292, %v2284
        %v2901 = vpack.c.b16 %v2293, %v2285
        %v2902 = vpack.c.b16 %v2294, %v2286
        %v2903 = vpack.c.b16 %v2295, %v2287
        %v2904 = vpack.c.b16 %v2304, %v2296
        %v2905 = vpack.c.b16 %v2305, %v2297
        %v2906 = vpack.c.b16 %v2306, %v2298
        %v2907 = vpack.c.b16 %v2307, %v2299
        %v2908 = vpack.c.b16 %v2308, %v2300
        %v2909 = vpack.c.b16 %v2309, %v2301
        %v2910 = vpack.c.b16 %v2310, %v2302
        %v2911 = vpack.c.b16 %v2311, %v2303
        %v2912 = vpack.c.b16 %v2320, %v2312
        %v2913 = vpack.c.b16 %v2321, %v2313
        %v2914 = vpack.c.b16 %v2322, %v2314
        %v2915 = vpack.c.b16 %v2323, %v2315
        %v2916 = vpack.c.b16 %v2324, %v2316
        %v2917 = vpack.c.b16 %v2325, %v2317
        %v2918 = vpack.c.b16 %v2326, %v2318
        %v2919 = vpack.c.b16 %v2327, %v2319
        %v2920 = vpack.c.b16 %v2336, %v2328
        %v2921 = vpack.c.b16 %v2337, %v2329
        %v2922 = vpack.c.b16 %v2338, %v2330
        %v2923 = vpack.c.b16 %v2339, %v2331
        %v2924 = vpack.c.b16 %v2340, %v2332
        %v2925 = vpack.c.b16 %v2341, %v2333
        %v2926 = vpack.c.b16 %v2342, %v2334
        %v2927 = vpack.c.b16 %v2343, %v2335
        %v2928 = vpack.c.b16 %v2352, %v2344
        %v2929 = vpack.c.b16 %v2353, %v2345
        %v2930 = vpack.c.b16 %v2354, %v2346
        %v2931 = vpack.c.b16 %v2355, %v2347
        %v2932 = vpack.c.b16 %v2356, %v2348
        %v2933 = vpack.c.b16 %v2357, %v2349
        %v2934 = vpack.c.b16 %v2358, %v2350
        %v2935 = vpack.c.b16 %v2359, %v2351
        %v2936 = vpack.c.b16 %v2368, %v2360
        %v2937 = vpack.c.b16 %v2369, %v2361
        %v2938 = vpack.c.b16 %v2370, %v2362
        %v2939 = vpack.c.b16 %v2371, %v2363
        %v2940 = vpack.c.b16 %v2372, %v2364
        %v2941 = vpack.c.b16 %v2373, %v2365
        %v2942 = vpack.c.b16 %v2374, %v2366
        %v2943 = vpack.c.b16 %v2375, %v2367
        %v2944 = vpack.c.b16 %v2384, %v2376
        %v2945 = vpack.c.b16 %v2385, %v2377
        %v2946 = vpack.c.b16 %v2386, %v2378
        %v2947 = vpack.c.b16 %v2387, %v2379
        %v2948 = vpack.c.b16 %v2388, %v2380
        %v2949 = vpack.c.b16 %v2389, %v2381
        %v2950 = vpack.c.b16 %v2390, %v2382
        %v2951 = vpack.c.b16 %v2391, %v2383
        %v2952 = vpack.c.b16 %v2400, %v2392
        %v2953 = vpack.c.b16 %v2401, %v2393
        %v2954 = vpack.c.b16 %v2402, %v2394
        %v2955 = vpack.c.b16 %v2403, %v2395
        %v2956 = vpack.c.b16 %v2404, %v2396
        %v2957 = vpack.c.b16 %v2405, %v2397
        %v2958 = vpack.c.b16 %v2406, %v2398
        %v2959 = vpack.c.b16 %v2407, %v2399
        %v2960 = vpack.c.b16 %v2416, %v2408
        %v2961 = vpack.c.b16 %v2417, %v2409
        %v2962 = vpack.c.b16 %v2418, %v2410
        %v2963 = vpack.c.b16 %v2419, %v2411
        %v2964 = vpack.c.b16 %v2420, %v2412
        %v2965 = vpack.c.b16 %v2421, %v2413
        %v2966 = vpack.c.b16 %v2422, %v2414
        %v2967 = vpack.c.b16 %v2423, %v2415
        %v2968 = vpack.c.b16 %v2432, %v2424
        %v2969 = vpack.c.b16 %v2433, %v2425
        %v2970 = vpack.c.b16 %v2434, %v2426
        %v2971 = vpack.c.b16 %v2435, %v2427
        %v2972 = vpack.c.b16 %v2436, %v2428
        %v2973 = vpack.c.b16 %v2437, %v2429
        %v2974 = vpack.c.b16 %v2438, %v2430
        %v2975 = vpack.c.b16 %v2439, %v2431
        %v2976 = vpack.c.b16 %v2448, %v2440
        %v2977 = vpack.c.b16 %v2449, %v2441
        %v2978 = vpack.c.b16 %v2450, %v2442
        %v2979 = vpack.c.b16 %v2451, %v2443
        %v2980 = vpack.c.b16 %v2452, %v2444
        %v2981 = vpack.c.b16 %v2453, %v2445
        %v2982 = vpack.c.b16 %v2454, %v2446
        %v2983 = vpack.c.b16 %v2455, %v2447
        %v2984 = vpack.c.b16 %v2464, %v2456
        %v2985 = vpack.c.b16 %v2465, %v2457
        %v2986 = vpack.c.b16 %v2466, %v2458
        %v2987 = vpack.c.b16 %v2467, %v2459
        %v2988 = vpack.c.b16 %v2468, %v2460
        %v2989 = vpack.c.b16 %v2469, %v2461
        %v2990 = vpack.c.b16 %v2470, %v2462
        %v2991 = vpack.c.b16 %v2471, %v2463
        %v2992 = vpack.c.b16 %v2480, %v2472
        %v2993 = vpack.c.b16 %v2481, %v2473
        %v2994 = vpack.c.b16 %v2482, %v2474
        %v2995 = vpack.c.b16 %v2483, %v2475
        %v2996 = vpack.c.b16 %v2484, %v2476
        %v2997 = vpack.c.b16 %v2485, %v2477
        %v2998 = vpack.c.b16 %v2486, %v2478
        %v2999 = vpack.c.b16 %v2487, %v2479
        %v3000 = vpack.c.b16 %v2496, %v2488
        %v3001 = vpack.c.b16 %v2497, %v2489
        %v3002 = vpack.c.b16 %v2498, %v2490
        %v3003 = vpack.c.b16 %v2499, %v2491
        %v3004 = vpack.c.b16 %v2500, %v2492
        %v3005 = vpack.c.b16 %v2501, %v2493
        %v3006 = vpack.c.b16 %v2502, %v2494
        %v3007 = vpack.c.b16 %v2503, %v2495
        %v3008 = vpack.c.b16 %v2512, %v2504
        %v3009 = vpack.c.b16 %v2513, %v2505
        %v3010 = vpack.c.b16 %v2514, %v2506
        %v3011 = vpack.c.b16 %v2515, %v2507
        %v3012 = vpack.c.b16 %v2516, %v2508
        %v3013 = vpack.c.b16 %v2517, %v2509
        %v3014 = vpack.c.b16 %v2518, %v2510
        %v3015 = vpack.c.b16 %v2519, %v2511
        %v3016 = vpack.c.b16 %v2528, %v2520
        %v3017 = vpack.c.b16 %v2529, %v2521
        %v3018 = vpack.c.b16 %v2530, %v2522
        %v3019 = vpack.c.b16 %v2531, %v2523
        %v3020 = vpack.c.b16 %v2532, %v2524
        %v3021 = vpack.c.b16 %v2533, %v2525
        %v3022 = vpack.c.b16 %v2534, %v2526
        %v3023 = vpack.c.b16 %v2535, %v2527
        %v3024 = vpack.c.b16 %v2544, %v2536
        %v3025 = vpack.c.b16 %v2545, %v2537
        %v3026 = vpack.c.b16 %v2546, %v2538
        %v3027 = vpack.c.b16 %v2547, %v2539
        %v3028 = vpack.c.b16 %v2548, %v2540
        %v3029 = vpack.c.b16 %v2549, %v2541
        %v3030 = vpack.c.b16 %v2550, %v2542
        %v3031 = vpack.c.b16 %v2551, %v2543
        %v3032 = vpack.c.b16 %v2560, %v2552
        %v3033 = vpack.c.b16 %v2561, %v2553
        %v3034 = vpack.c.b16 %v2562, %v2554
        %v3035 = vpack.c.b16 %v2563, %v2555
        %v3036 = vpack.c.b16 %v2564, %v2556
        %v3037 = vpack.c.b16 %v2565, %v2557
        %v3038 = vpack.c.b16 %v2566, %v2558
        %v3039 = vpack.c.b16 %v2567, %v2559
        %v3040 = vpack.c.b16 %v2576, %v2568
        %v3041 = vpack.c.b16 %v2577, %v2569
        %v3042 = vpack.c.b16 %v2578, %v2570
        %v3043 = vpack.c.b16 %v2579, %v2571
        %v3044 = vpack.c.b16 %v2580, %v2572
        %v3045 = vpack.c.b16 %v2581, %v2573
        %v3046 = vpack.c.b16 %v2582, %v2574
        %v3047 = vpack.c.b16 %v2583, %v2575
        %v3048 = vpack.c.b16 %v2592, %v2584
        %v3049 = vpack.c.b16 %v2593, %v2585
        %v3050 = vpack.c.b16 %v2594, %v2586
        %v3051 = vpack.c.b16 %v2595, %v2587
        %v3052 = vpack.c.b16 %v2596, %v2588
        %v3053 = vpack.c.b16 %v2597, %v2589
        %v3054 = vpack.c.b16 %v2598, %v2590
        %v3055 = vpack.c.b16 %v2599, %v2591
        %v3056 = vpack.c.b16 %v2608, %v2600
        %v3057 = vpack.c.b16 %v2609, %v2601
        %v3058 = vpack.c.b16 %v2610, %v2602
        %v3059 = vpack.c.b16 %v2611, %v2603
        %v3060 = vpack.c.b16 %v2612, %v2604
        %v3061 = vpack.c.b16 %v2613, %v2605
        %v3062 = vpack.c.b16 %v2614, %v2606
        %v3063 = vpack.c.b16 %v2615, %v2607
        %v3064 = vpack.c.b16 %v2624, %v2616
        %v3065 = vpack.c.b16 %v2625, %v2617
        %v3066 = vpack.c.b16 %v2626, %v2618
        %v3067 = vpack.c.b16 %v2627, %v2619
        %v3068 = vpack.c.b16 %v2628, %v2620
        %v3069 = vpack.c.b16 %v2629, %v2621
        %v3070 = vpack.c.b16 %v2630, %v2622
        %v3071 = vpack.c.b16 %v2631, %v2623
        %v3072 = vpack.c.b16 %v2640, %v2632
        %v3073 = vpack.c.b16 %v2641, %v2633
        %v3074 = vpack.c.b16 %v2642, %v2634
        %v3075 = vpack.c.b16 %v2643, %v2635
        %v3076 = vpack.c.b16 %v2644, %v2636
        %v3077 = vpack.c.b16 %v2645, %v2637
        %v3078 = vpack.c.b16 %v2646, %v2638
        %v3079 = vpack.c.b16 %v2647, %v2639
        %v3080 = vpack.c.b16 %v2656, %v2648
        %v3081 = vpack.c.b16 %v2657, %v2649
        %v3082 = vpack.c.b16 %v2658, %v2650
        %v3083 = vpack.c.b16 %v2659, %v2651
        %v3084 = vpack.c.b16 %v2660, %v2652
        %v3085 = vpack.c.b16 %v2661, %v2653
        %v3086 = vpack.c.b16 %v2662, %v2654
        %v3087 = vpack.c.b16 %v2663, %v2655
        %v3088 = vpack.c.b16 %v2672, %v2664
        %v3089 = vpack.c.b16 %v2673, %v2665
        %v3090 = vpack.c.b16 %v2674, %v2666
        %v3091 = vpack.c.b16 %v2675, %v2667
        %v3092 = vpack.c.b16 %v2676, %v2668
        %v3093 = vpack.c.b16 %v2677, %v2669
        %v3094 = vpack.c.b16 %v2678, %v2670
        %v3095 = vpack.c.b16 %v2679, %v2671
        %v3096 = vpack.c.b16 %v2688, %v2680
        %v3097 = vpack.c.b16 %v2689, %v2681
        %v3098 = vpack.c.b16 %v2690, %v2682
        %v3099 = vpack.c.b16 %v2691, %v2683
        %v3100 = vpack.c.b16 %v2692, %v2684
        %v3101 = vpack.c.b16 %v2693, %v2685
        %v3102 = vpack.c.b16 %v2694, %v2686
        %v3103 = vpack.c.b16 %v2695, %v2687
        %v3104 = vpack.c.b16 %v2704, %v2696
        %v3105 = vpack.c.b16 %v2705, %v2697
        %v3106 = vpack.c.b16 %v2706, %v2698
        %v3107 = vpack.c.b16 %v2707, %v2699
        %v3108 = vpack.c.b16 %v2708, %v2700
        %v3109 = vpack.c.b16 %v2709, %v2701
        %v3110 = vpack.c.b16 %v2710, %v2702
        %v3111 = vpack.c.b16 %v2711, %v2703
        %v3112 = vpack.c.b16 %v2720, %v2712
        %v3113 = vpack.c.b16 %v2721, %v2713
        %v3114 = vpack.c.b16 %v2722, %v2714
        %v3115 = vpack.c.b16 %v2723, %v2715
        %v3116 = vpack.c.b16 %v2724, %v2716
        %v3117 = vpack.c.b16 %v2725, %v2717
        %v3118 = vpack.c.b16 %v2726, %v2718
        %v3119 = vpack.c.b16 %v2727, %v2719
        %v3120 = vpack.c.b16 %v2736, %v2728
        %v3121 = vpack.c.b16 %v2737, %v2729
        %v3122 = vpack.c.b16 %v2738, %v2730
        %v3123 = vpack.c.b16 %v2739, %v2731
        %v3124 = vpack.c.b16 %v2740, %v2732
        %v3125 = vpack.c.b16 %v2741, %v2733
        %v3126 = vpack.c.b16 %v2742, %v2734
        %v3127 = vpack.c.b16 %v2743, %v2735
        %3512 = vmatprep.subr.bf16.mxu0 %v2745
        %3513 = vmatpush1.bf16.msra.mxu0 %v2744
        %3514 = vmatprep.subr.bf16.mxu0 %v2753
        %3515 = vmatpush1.bf16.msra.mxu0 %v2752
        %3516 = vmatprep.subr.bf16.mxu0 %v2761
        %3517 = vmatpush1.bf16.msra.mxu0 %v2760
        %3518 = vmatprep.subr.bf16.mxu0 %v2769
        %3519 = vmatpush1.bf16.msra.mxu0 %v2768
        %3520 = vmatprep.subr.bf16.mxu0 %v2777
        %3521 = vmatpush1.bf16.msra.mxu0 %v2776
        %3522 = vmatprep.subr.bf16.mxu0 %v2785
        %3523 = vmatpush1.bf16.msra.mxu0 %v2784
        %3524 = vmatprep.subr.bf16.mxu0 %v2793
        %3525 = vmatpush1.bf16.msra.mxu0 %v2792
        %3526 = vmatprep.subr.bf16.mxu0 %v2801
        %3527 = vmatpush1.bf16.msra.mxu0 %v2800
        %3528 = vmatprep.subr.bf16.mxu0 %v2809
        %3529 = vmatpush1.bf16.msra.mxu0 %v2808
        %3530 = vmatprep.subr.bf16.mxu0 %v2817
        %3531 = vmatpush1.bf16.msra.mxu0 %v2816
        %3532 = vmatprep.subr.bf16.mxu0 %v2825
        %3533 = vmatpush1.bf16.msra.mxu0 %v2824
        %3534 = vmatprep.subr.bf16.mxu0 %v2833
        %3535 = vmatpush1.bf16.msra.mxu0 %v2832
        %3536 = vmatprep.subr.bf16.mxu0 %v2841
        %3537 = vmatpush1.bf16.msra.mxu0 %v2840
        %3538 = vmatprep.subr.bf16.mxu0 %v2849
        %3539 = vmatpush1.bf16.msra.mxu0 %v2848
        %3540 = vmatprep.subr.bf16.mxu0 %v2857
        %3541 = vmatpush1.bf16.msra.mxu0 %v2856
        %3542 = vmatprep.subr.bf16.mxu0 %v2865
        %3543 = vmatpush1.bf16.msra.mxu0 %v2864
        %3544 = vmatprep.mubr.bf16.mxu0 %v1497
        %3545 = vmatmul.mubr.bf16.gmra.mrb[0].mxu0 %v1496
        %v3546 = vpop.f32.mrb[0].mxu0
        %v3547 = vadd.f32 %v1315, %v3546
        %v3548 = vpop.f32.mrb[0].mxu0
        %v3549 = vadd.f32 %v1319, %v3548
        %v3550 = vpop.f32.mrb[0].mxu0
        %v3551 = vadd.f32 %v1315, %v3550
        %v3552 = vpop.f32.mrb[0].mxu0
        %v3553 = vadd.f32 %v1319, %v3552
        %3554 = vmatprep.mubr.bf16.mxu0 %v1503
        %3555 = vmatmul.mubr.bf16.gmra.mrb[0].mxu0 %v1502
        %v3556 = vpop.f32.mrb[0].mxu0
        %v3557 = vadd.f32 %v1315, %v3556
        %v3558 = vpop.f32.mrb[0].mxu0
        %v3559 = vadd.f32 %v1319, %v3558
        %v3560 = vpop.f32.mrb[0].mxu0
        %v3561 = vadd.f32 %v1315, %v3560
        %v3562 = vpop.f32.mrb[0].mxu0
        %v3563 = vadd.f32 %v1319, %v3562
        %3564 = vmatprep.mubr.bf16.mxu0 %v1509
        %3565 = vmatmul.mubr.bf16.gmra.mrb[0].mxu0 %v1508
        %v3566 = vpop.f32.mrb[0].mxu0
        %v3567 = vadd.f32 %v1315, %v3566
        %v3568 = vpop.f32.mrb[0].mxu0
        %v3569 = vadd.f32 %v1319, %v3568
        %v3570 = vpop.f32.mrb[0].mxu0
        %v3571 = vadd.f32 %v1315, %v3570
        %v3572 = vpop.f32.mrb[0].mxu0
        %v3573 = vadd.f32 %v1319, %v3572
        %3574 = vmatprep.mubr.bf16.mxu0 %v1515
        %3575 = vmatmul.mubr.bf16.gmra.mrb[0].mxu0 %v1514
        %v3576 = vpop.f32.mrb[0].mxu0
        %v3577 = vadd.f32 %v1315, %v3576
        %v3578 = vpop.f32.mrb[0].mxu0
        %v3579 = vadd.f32 %v1319, %v3578
        %v3580 = vpop.f32.mrb[0].mxu0
        %v3581 = vadd.f32 %v1315, %v3580
        %v3582 = vpop.f32.mrb[0].mxu0
        %v3583 = vadd.f32 %v1319, %v3582
        %3584 = vmatprep.mubr.bf16.mxu0 %v1521
        %3585 = vmatmul.mubr.bf16.gmra.mrb[0].mxu0 %v1520
        %v3586 = vpop.f32.mrb[0].mxu0
        %v3587 = vadd.f32 %v1315, %v3586
        %v3588 = vpop.f32.mrb[0].mxu0
        %v3589 = vadd.f32 %v1319, %v3588
        %v3590 = vpop.f32.mrb[0].mxu0
        %v3591 = vadd.f32 %v1315, %v3590
        %v3592 = vpop.f32.mrb[0].mxu0
        %v3593 = vadd.f32 %v1319, %v3592
        %3594 = vmatprep.mubr.bf16.mxu0 %v1527
        %3595 = vmatmul.mubr.bf16.gmra.mrb[0].mxu0 %v1526
        %v3596 = vpop.f32.mrb[0].mxu0
        %v3597 = vadd.f32 %v1315, %v3596
        %v3598 = vpop.f32.mrb[0].mxu0
        %v3599 = vadd.f32 %v1319, %v3598
        %v3600 = vpop.f32.mrb[0].mxu0
        %v3601 = vadd.f32 %v1315, %v3600
        %v3602 = vpop.f32.mrb[0].mxu0
        %v3603 = vadd.f32 %v1319, %v3602
        %3604 = vmatprep.mubr.bf16.mxu0 %v1533
        %3605 = vmatmul.mubr.bf16.gmra.mrb[0].mxu0 %v1532
        %v3606 = vpop.f32.mrb[0].mxu0
        %v3607 = vadd.f32 %v1315, %v3606
        %v3608 = vpop.f32.mrb[0].mxu0
        %v3609 = vadd.f32 %v1319, %v3608
        %v3610 = vpop.f32.mrb[0].mxu0
        %v3611 = vadd.f32 %v1315, %v3610
        %v3612 = vpop.f32.mrb[0].mxu0
        %v3613 = vadd.f32 %v1319, %v3612
        %3614 = vmatprep.mubr.bf16.mxu0 %v1539
        %3615 = vmatmul.mubr.bf16.gmra.mrb[0].mxu0 %v1538
        %v3616 = vpop.f32.mrb[0].mxu0
        %v3617 = vadd.f32 %v1315, %v3616
        %v3618 = vpop.f32.mrb[0].mxu0
        %v3619 = vadd.f32 %v1319, %v3618
        %v3620 = vpop.f32.mrb[0].mxu0
        %v3621 = vadd.f32 %v1315, %v3620
        %v3622 = vpop.f32.mrb[0].mxu0
        %v3623 = vadd.f32 %v1319, %v3622
        %3624 = vdwg.mxu0
        %3625 = vmatprep.subr.bf16.mxu0 %v2873
        %3626 = vmatpush1.bf16.msra.mxu0 %v2872
        %3627 = vmatprep.subr.bf16.mxu0 %v2881
        %3628 = vmatpush1.bf16.msra.mxu0 %v2880
        %3629 = vmatprep.subr.bf16.mxu0 %v2889
        %3630 = vmatpush1.bf16.msra.mxu0 %v2888
        %3631 = vmatprep.subr.bf16.mxu0 %v2897
        %3632 = vmatpush1.bf16.msra.mxu0 %v2896
        %3633 = vmatprep.subr.bf16.mxu0 %v2905
        %3634 = vmatpush1.bf16.msra.mxu0 %v2904
        %3635 = vmatprep.subr.bf16.mxu0 %v2913
        %3636 = vmatpush1.bf16.msra.mxu0 %v2912
        %3637 = vmatprep.subr.bf16.mxu0 %v2921
        %3638 = vmatpush1.bf16.msra.mxu0 %v2920
        %3639 = vmatprep.subr.bf16.mxu0 %v2929
        %3640 = vmatpush1.bf16.msra.mxu0 %v2928
        %3641 = vmatprep.subr.bf16.mxu0 %v2937
        %3642 = vmatpush1.bf16.msra.mxu0 %v2936
        %3643 = vmatprep.subr.bf16.mxu0 %v2945
        %3644 = vmatpush1.bf16.msra.mxu0 %v2944
        %3645 = vmatprep.subr.bf16.mxu0 %v2953
        %3646 = vmatpush1.bf16.msra.mxu0 %v2952
        %3647 = vmatprep.subr.bf16.mxu0 %v2961
        %3648 = vmatpush1.bf16.msra.mxu0 %v2960
        %3649 = vmatprep.subr.bf16.mxu0 %v2969
        %3650 = vmatpush1.bf16.msra.mxu0 %v2968
        %3651 = vmatprep.subr.bf16.mxu0 %v2977
        %3652 = vmatpush1.bf16.msra.mxu0 %v2976
        %3653 = vmatprep.subr.bf16.mxu0 %v2985
        %3654 = vmatpush1.bf16.msra.mxu0 %v2984
        %3655 = vmatprep.subr.bf16.mxu0 %v2993
        %3656 = vmatpush1.bf16.msra.mxu0 %v2992
        %3657 = vmatprep.mubr.bf16.mxu0 %v1499
        %3658 = vmatmul.mubr.bf16.gmra.mrb[0].mxu0 %v1498
        %v3659 = vpop.f32.mrb[0].mxu0
        %v3660 = vadd.f32 %v3547, %v3659
        %v3661 = vpop.f32.mrb[0].mxu0
        %v3662 = vadd.f32 %v3549, %v3661
        %v3663 = vpop.f32.mrb[0].mxu0
        %v3664 = vadd.f32 %v3551, %v3663
        %v3665 = vpop.f32.mrb[0].mxu0
        %v3666 = vadd.f32 %v3553, %v3665
        %3667 = vmatprep.mubr.bf16.mxu0 %v1505
        %3668 = vmatmul.mubr.bf16.gmra.mrb[0].mxu0 %v1504
        %v3669 = vpop.f32.mrb[0].mxu0
        %v3670 = vadd.f32 %v3557, %v3669
        %v3671 = vpop.f32.mrb[0].mxu0
        %v3672 = vadd.f32 %v3559, %v3671
        %v3673 = vpop.f32.mrb[0].mxu0
        %v3674 = vadd.f32 %v3561, %v3673
        %v3675 = vpop.f32.mrb[0].mxu0
        %v3676 = vadd.f32 %v3563, %v3675
        %3677 = vmatprep.mubr.bf16.mxu0 %v1511
        %3678 = vmatmul.mubr.bf16.gmra.mrb[0].mxu0 %v1510
        %v3679 = vpop.f32.mrb[0].mxu0
        %v3680 = vadd.f32 %v3567, %v3679
        %v3681 = vpop.f32.mrb[0].mxu0
        %v3682 = vadd.f32 %v3569, %v3681
        %v3683 = vpop.f32.mrb[0].mxu0
        %v3684 = vadd.f32 %v3571, %v3683
        %v3685 = vpop.f32.mrb[0].mxu0
        %v3686 = vadd.f32 %v3573, %v3685
        %3687 = vmatprep.mubr.bf16.mxu0 %v1517
        %3688 = vmatmul.mubr.bf16.gmra.mrb[0].mxu0 %v1516
        %v3689 = vpop.f32.mrb[0].mxu0
        %v3690 = vadd.f32 %v3577, %v3689
        %v3691 = vpop.f32.mrb[0].mxu0
        %v3692 = vadd.f32 %v3579, %v3691
        %v3693 = vpop.f32.mrb[0].mxu0
        %v3694 = vadd.f32 %v3581, %v3693
        %v3695 = vpop.f32.mrb[0].mxu0
        %v3696 = vadd.f32 %v3583, %v3695
        %3697 = vmatprep.mubr.bf16.mxu0 %v1523
        %3698 = vmatmul.mubr.bf16.gmra.mrb[0].mxu0 %v1522
        %v3699 = vpop.f32.mrb[0].mxu0
        %v3700 = vadd.f32 %v3587, %v3699
        %v3701 = vpop.f32.mrb[0].mxu0
        %v3702 = vadd.f32 %v3589, %v3701
        %v3703 = vpop.f32.mrb[0].mxu0
        %v3704 = vadd.f32 %v3591, %v3703
        %v3705 = vpop.f32.mrb[0].mxu0
        %v3706 = vadd.f32 %v3593, %v3705
        %3707 = vmatprep.mubr.bf16.mxu0 %v1529
        %3708 = vmatmul.mubr.bf16.gmra.mrb[0].mxu0 %v1528
        %v3709 = vpop.f32.mrb[0].mxu0
        %v3710 = vadd.f32 %v3597, %v3709
        %v3711 = vpop.f32.mrb[0].mxu0
        %v3712 = vadd.f32 %v3599, %v3711
        %v3713 = vpop.f32.mrb[0].mxu0
        %v3714 = vadd.f32 %v3601, %v3713
        %v3715 = vpop.f32.mrb[0].mxu0
        %v3716 = vadd.f32 %v3603, %v3715
        %3717 = vmatprep.mubr.bf16.mxu0 %v1535
        %3718 = vmatmul.mubr.bf16.gmra.mrb[0].mxu0 %v1534
        %v3719 = vpop.f32.mrb[0].mxu0
        %v3720 = vadd.f32 %v3607, %v3719
        %v3721 = vpop.f32.mrb[0].mxu0
        %v3722 = vadd.f32 %v3609, %v3721
        %v3723 = vpop.f32.mrb[0].mxu0
        %v3724 = vadd.f32 %v3611, %v3723
        %v3725 = vpop.f32.mrb[0].mxu0
        %v3726 = vadd.f32 %v3613, %v3725
        %3727 = vmatprep.mubr.bf16.mxu0 %v1541
        %3728 = vmatmul.mubr.bf16.gmra.mrb[0].mxu0 %v1540
        %v3729 = vpop.f32.mrb[0].mxu0
        %v3730 = vadd.f32 %v3617, %v3729
        %v3731 = vpop.f32.mrb[0].mxu0
        %v3732 = vadd.f32 %v3619, %v3731
        %v3733 = vpop.f32.mrb[0].mxu0
        %v3734 = vadd.f32 %v3621, %v3733
        %v3735 = vpop.f32.mrb[0].mxu0
        %v3736 = vadd.f32 %v3623, %v3735
        %3737 = vdwg.mxu0
        %3738 = vmatprep.subr.bf16.mxu0 %v3001
        %3739 = vmatpush1.bf16.msra.mxu0 %v3000
        %3740 = vmatprep.subr.bf16.mxu0 %v3009
        %3741 = vmatpush1.bf16.msra.mxu0 %v3008
        %3742 = vmatprep.subr.bf16.mxu0 %v3017
        %3743 = vmatpush1.bf16.msra.mxu0 %v3016
        %3744 = vmatprep.subr.bf16.mxu0 %v3025
        %3745 = vmatpush1.bf16.msra.mxu0 %v3024
        %3746 = vmatprep.subr.bf16.mxu0 %v3033
        %3747 = vmatpush1.bf16.msra.mxu0 %v3032
        %3748 = vmatprep.subr.bf16.mxu0 %v3041
        %3749 = vmatpush1.bf16.msra.mxu0 %v3040
        %3750 = vmatprep.subr.bf16.mxu0 %v3049
        %3751 = vmatpush1.bf16.msra.mxu0 %v3048
        %3752 = vmatprep.subr.bf16.mxu0 %v3057
        %3753 = vmatpush1.bf16.msra.mxu0 %v3056
        %3754 = vmatprep.subr.bf16.mxu0 %v3065
        %3755 = vmatpush1.bf16.msra.mxu0 %v3064
        %3756 = vmatprep.subr.bf16.mxu0 %v3073
        %3757 = vmatpush1.bf16.msra.mxu0 %v3072
        %3758 = vmatprep.subr.bf16.mxu0 %v3081
        %3759 = vmatpush1.bf16.msra.mxu0 %v3080
        %3760 = vmatprep.subr.bf16.mxu0 %v3089
        %3761 = vmatpush1.bf16.msra.mxu0 %v3088
        %3762 = vmatprep.subr.bf16.mxu0 %v3097
        %3763 = vmatpush1.bf16.msra.mxu0 %v3096
        %3764 = vmatprep.subr.bf16.mxu0 %v3105
        %3765 = vmatpush1.bf16.msra.mxu0 %v3104
        %3766 = vmatprep.subr.bf16.mxu0 %v3113
        %3767 = vmatpush1.bf16.msra.mxu0 %v3112
        %3768 = vmatprep.subr.bf16.mxu0 %v3121
        %3769 = vmatpush1.bf16.msra.mxu0 %v3120
        %3770 = vmatprep.mubr.bf16.mxu0 %v1501
        %3771 = vmatmul.mubr.bf16.gmra.mrb[0].mxu0 %v1500
        %v3772 = vpop.f32.mrb[0].mxu0
        %v3773 = vadd.f32 %v3660, %v3772
        %v3774 = vpop.f32.mrb[0].mxu0
        %v3775 = vadd.f32 %v3662, %v3774
        %v3776 = vpop.f32.mrb[0].mxu0
        %v3777 = vadd.f32 %v3664, %v3776
        %v3778 = vpop.f32.mrb[0].mxu0
        %v3779 = vadd.f32 %v3666, %v3778
        %3780 = vmatprep.mubr.bf16.mxu0 %v1507
        %3781 = vmatmul.mubr.bf16.gmra.mrb[0].mxu0 %v1506
        %v3782 = vpop.f32.mrb[0].mxu0
        %v3783 = vadd.f32 %v3670, %v3782
        %v3784 = vpop.f32.mrb[0].mxu0
        %v3785 = vadd.f32 %v3672, %v3784
        %v3786 = vpop.f32.mrb[0].mxu0
        %v3787 = vadd.f32 %v3674, %v3786
        %v3788 = vpop.f32.mrb[0].mxu0
        %v3789 = vadd.f32 %v3676, %v3788
        %3790 = vmatprep.mubr.bf16.mxu0 %v1513
        %3791 = vmatmul.mubr.bf16.gmra.mrb[0].mxu0 %v1512
        %v3792 = vpop.f32.mrb[0].mxu0
        %v3793 = vadd.f32 %v3680, %v3792
        %v3794 = vpop.f32.mrb[0].mxu0
        %v3795 = vadd.f32 %v3682, %v3794
        %v3796 = vpop.f32.mrb[0].mxu0
        %v3797 = vadd.f32 %v3684, %v3796
        %v3798 = vpop.f32.mrb[0].mxu0
        %v3799 = vadd.f32 %v3686, %v3798
        %3800 = vmatprep.mubr.bf16.mxu0 %v1519
        %3801 = vmatmul.mubr.bf16.gmra.mrb[0].mxu0 %v1518
        %v3802 = vpop.f32.mrb[0].mxu0
        %v3803 = vadd.f32 %v3690, %v3802
        %v3804 = vpop.f32.mrb[0].mxu0
        %v3805 = vadd.f32 %v3692, %v3804
        %v3806 = vpop.f32.mrb[0].mxu0
        %v3807 = vadd.f32 %v3694, %v3806
        %v3808 = vpop.f32.mrb[0].mxu0
        %v3809 = vadd.f32 %v3696, %v3808
        %3810 = vmatprep.mubr.bf16.mxu0 %v1525
        %3811 = vmatmul.mubr.bf16.gmra.mrb[0].mxu0 %v1524
        %v3812 = vpop.f32.mrb[0].mxu0
        %v3813 = vadd.f32 %v3700, %v3812
        %v3814 = vpop.f32.mrb[0].mxu0
        %v3815 = vadd.f32 %v3702, %v3814
        %v3816 = vpop.f32.mrb[0].mxu0
        %v3817 = vadd.f32 %v3704, %v3816
        %v3818 = vpop.f32.mrb[0].mxu0
        %v3819 = vadd.f32 %v3706, %v3818
        %3820 = vmatprep.mubr.bf16.mxu0 %v1531
        %3821 = vmatmul.mubr.bf16.gmra.mrb[0].mxu0 %v1530
        %v3822 = vpop.f32.mrb[0].mxu0
        %v3823 = vadd.f32 %v3710, %v3822
        %v3824 = vpop.f32.mrb[0].mxu0
        %v3825 = vadd.f32 %v3712, %v3824
        %v3826 = vpop.f32.mrb[0].mxu0
        %v3827 = vadd.f32 %v3714, %v3826
        %v3828 = vpop.f32.mrb[0].mxu0
        %v3829 = vadd.f32 %v3716, %v3828
        %3830 = vmatprep.mubr.bf16.mxu0 %v1537
        %3831 = vmatmul.mubr.bf16.gmra.mrb[0].mxu0 %v1536
        %v3832 = vpop.f32.mrb[0].mxu0
        %v3833 = vadd.f32 %v3720, %v3832
        %v3834 = vpop.f32.mrb[0].mxu0
        %v3835 = vadd.f32 %v3722, %v3834
        %v3836 = vpop.f32.mrb[0].mxu0
        %v3837 = vadd.f32 %v3724, %v3836
        %v3838 = vpop.f32.mrb[0].mxu0
        %v3839 = vadd.f32 %v3726, %v3838
        %3840 = vmatprep.mubr.bf16.mxu0 %v1543
        %3841 = vmatmul.mubr.bf16.gmra.mrb[0].mxu0 %v1542
        %v3842 = vpop.f32.mrb[0].mxu0
        %v3843 = vadd.f32 %v3730, %v3842
        %v3844 = vpop.f32.mrb[0].mxu0
        %v3845 = vadd.f32 %v3732, %v3844
        %v3846 = vpop.f32.mrb[0].mxu0
        %v3847 = vadd.f32 %v3734, %v3846
        %v3848 = vpop.f32.mrb[0].mxu0
        %v3849 = vadd.f32 %v3736, %v3848
        %3850 = vdwg.mxu0
        %3851 = vmatprep.subr.bf16.mxu0 %v2747
        %3852 = vmatpush1.bf16.msra.mxu0 %v2746
        %3853 = vmatprep.subr.bf16.mxu0 %v2755
        %3854 = vmatpush1.bf16.msra.mxu0 %v2754
        %3855 = vmatprep.subr.bf16.mxu0 %v2763
        %3856 = vmatpush1.bf16.msra.mxu0 %v2762
        %3857 = vmatprep.subr.bf16.mxu0 %v2771
        %3858 = vmatpush1.bf16.msra.mxu0 %v2770
        %3859 = vmatprep.subr.bf16.mxu0 %v2779
        %3860 = vmatpush1.bf16.msra.mxu0 %v2778
        %3861 = vmatprep.subr.bf16.mxu0 %v2787
        %3862 = vmatpush1.bf16.msra.mxu0 %v2786
        %3863 = vmatprep.subr.bf16.mxu0 %v2795
        %3864 = vmatpush1.bf16.msra.mxu0 %v2794
        %3865 = vmatprep.subr.bf16.mxu0 %v2803
        %3866 = vmatpush1.bf16.msra.mxu0 %v2802
        %3867 = vmatprep.subr.bf16.mxu0 %v2811
        %3868 = vmatpush1.bf16.msra.mxu0 %v2810
        %3869 = vmatprep.subr.bf16.mxu0 %v2819
        %3870 = vmatpush1.bf16.msra.mxu0 %v2818
        %3871 = vmatprep.subr.bf16.mxu0 %v2827
        %3872 = vmatpush1.bf16.msra.mxu0 %v2826
        %3873 = vmatprep.subr.bf16.mxu0 %v2835
        %3874 = vmatpush1.bf16.msra.mxu0 %v2834
        %3875 = vmatprep.subr.bf16.mxu0 %v2843
        %3876 = vmatpush1.bf16.msra.mxu0 %v2842
        %3877 = vmatprep.subr.bf16.mxu0 %v2851
        %3878 = vmatpush1.bf16.msra.mxu0 %v2850
        %3879 = vmatprep.subr.bf16.mxu0 %v2859
        %3880 = vmatpush1.bf16.msra.mxu0 %v2858
        %3881 = vmatprep.subr.bf16.mxu0 %v2867
        %3882 = vmatpush1.bf16.msra.mxu0 %v2866
        %3883 = vmatprep.mubr.bf16.mxu0 %v1497
        %3884 = vmatmul.mubr.bf16.gmra.mrb[0].mxu0 %v1496
        %v3885 = vpop.f32.mrb[0].mxu0
        %v3886 = vadd.f32 %v1323, %v3885
        %v3887 = vpop.f32.mrb[0].mxu0
        %v3888 = vadd.f32 %v1327, %v3887
        %v3889 = vpop.f32.mrb[0].mxu0
        %v3890 = vadd.f32 %v1323, %v3889
        %v3891 = vpop.f32.mrb[0].mxu0
        %v3892 = vadd.f32 %v1327, %v3891
        %3893 = vmatprep.mubr.bf16.mxu0 %v1503
        %3894 = vmatmul.mubr.bf16.gmra.mrb[0].mxu0 %v1502
        %v3895 = vpop.f32.mrb[0].mxu0
        %v3896 = vadd.f32 %v1323, %v3895
        %v3897 = vpop.f32.mrb[0].mxu0
        %v3898 = vadd.f32 %v1327, %v3897
        %v3899 = vpop.f32.mrb[0].mxu0
        %v3900 = vadd.f32 %v1323, %v3899
        %v3901 = vpop.f32.mrb[0].mxu0
        %v3902 = vadd.f32 %v1327, %v3901
        %3903 = vmatprep.mubr.bf16.mxu0 %v1509
        %3904 = vmatmul.mubr.bf16.gmra.mrb[0].mxu0 %v1508
        %v3905 = vpop.f32.mrb[0].mxu0
        %v3906 = vadd.f32 %v1323, %v3905
        %v3907 = vpop.f32.mrb[0].mxu0
        %v3908 = vadd.f32 %v1327, %v3907
        %v3909 = vpop.f32.mrb[0].mxu0
        %v3910 = vadd.f32 %v1323, %v3909
        %v3911 = vpop.f32.mrb[0].mxu0
        %v3912 = vadd.f32 %v1327, %v3911
        %3913 = vmatprep.mubr.bf16.mxu0 %v1515
        %3914 = vmatmul.mubr.bf16.gmra.mrb[0].mxu0 %v1514
        %v3915 = vpop.f32.mrb[0].mxu0
        %v3916 = vadd.f32 %v1323, %v3915
        %v3917 = vpop.f32.mrb[0].mxu0
        %v3918 = vadd.f32 %v1327, %v3917
        %v3919 = vpop.f32.mrb[0].mxu0
        %v3920 = vadd.f32 %v1323, %v3919
        %v3921 = vpop.f32.mrb[0].mxu0
        %v3922 = vadd.f32 %v1327, %v3921
        %3923 = vmatprep.mubr.bf16.mxu0 %v1521
        %3924 = vmatmul.mubr.bf16.gmra.mrb[0].mxu0 %v1520
        %v3925 = vpop.f32.mrb[0].mxu0
        %v3926 = vadd.f32 %v1323, %v3925
        %v3927 = vpop.f32.mrb[0].mxu0
        %v3928 = vadd.f32 %v1327, %v3927
        %v3929 = vpop.f32.mrb[0].mxu0
        %v3930 = vadd.f32 %v1323, %v3929
        %v3931 = vpop.f32.mrb[0].mxu0
        %v3932 = vadd.f32 %v1327, %v3931
        %3933 = vmatprep.mubr.bf16.mxu0 %v1527
        %3934 = vmatmul.mubr.bf16.gmra.mrb[0].mxu0 %v1526
        %v3935 = vpop.f32.mrb[0].mxu0
        %v3936 = vadd.f32 %v1323, %v3935
        %v3937 = vpop.f32.mrb[0].mxu0
        %v3938 = vadd.f32 %v1327, %v3937
        %v3939 = vpop.f32.mrb[0].mxu0
        %v3940 = vadd.f32 %v1323, %v3939
        %v3941 = vpop.f32.mrb[0].mxu0
        %v3942 = vadd.f32 %v1327, %v3941
        %3943 = vmatprep.mubr.bf16.mxu0 %v1533
        %3944 = vmatmul.mubr.bf16.gmra.mrb[0].mxu0 %v1532
        %v3945 = vpop.f32.mrb[0].mxu0
        %v3946 = vadd.f32 %v1323, %v3945
        %v3947 = vpop.f32.mrb[0].mxu0
        %v3948 = vadd.f32 %v1327, %v3947
        %v3949 = vpop.f32.mrb[0].mxu0
        %v3950 = vadd.f32 %v1323, %v3949
        %v3951 = vpop.f32.mrb[0].mxu0
        %v3952 = vadd.f32 %v1327, %v3951
        %3953 = vmatprep.mubr.bf16.mxu0 %v1539
        %3954 = vmatmul.mubr.bf16.gmra.mrb[0].mxu0 %v1538
        %v3955 = vpop.f32.mrb[0].mxu0
        %v3956 = vadd.f32 %v1323, %v3955
        %v3957 = vpop.f32.mrb[0].mxu0
        %v3958 = vadd.f32 %v1327, %v3957
        %v3959 = vpop.f32.mrb[0].mxu0
        %v3960 = vadd.f32 %v1323, %v3959
        %v3961 = vpop.f32.mrb[0].mxu0
        %v3962 = vadd.f32 %v1327, %v3961
        %3963 = vdwg.mxu0
        %3964 = vmatprep.subr.bf16.mxu0 %v2875
        %3965 = vmatpush1.bf16.msra.mxu0 %v2874
        %3966 = vmatprep.subr.bf16.mxu0 %v2883
        %3967 = vmatpush1.bf16.msra.mxu0 %v2882
        %3968 = vmatprep.subr.bf16.mxu0 %v2891
        %3969 = vmatpush1.bf16.msra.mxu0 %v2890
        %3970 = vmatprep.subr.bf16.mxu0 %v2899
        %3971 = vmatpush1.bf16.msra.mxu0 %v2898
        %3972 = vmatprep.subr.bf16.mxu0 %v2907
        %3973 = vmatpush1.bf16.msra.mxu0 %v2906
        %3974 = vmatprep.subr.bf16.mxu0 %v2915
        %3975 = vmatpush1.bf16.msra.mxu0 %v2914
        %3976 = vmatprep.subr.bf16.mxu0 %v2923
        %3977 = vmatpush1.bf16.msra.mxu0 %v2922
        %3978 = vmatprep.subr.bf16.mxu0 %v2931
        %3979 = vmatpush1.bf16.msra.mxu0 %v2930
        %3980 = vmatprep.subr.bf16.mxu0 %v2939
        %3981 = vmatpush1.bf16.msra.mxu0 %v2938
        %3982 = vmatprep.subr.bf16.mxu0 %v2947
        %3983 = vmatpush1.bf16.msra.mxu0 %v2946
        %3984 = vmatprep.subr.bf16.mxu0 %v2955
        %3985 = vmatpush1.bf16.msra.mxu0 %v2954
        %3986 = vmatprep.subr.bf16.mxu0 %v2963
        %3987 = vmatpush1.bf16.msra.mxu0 %v2962
        %3988 = vmatprep.subr.bf16.mxu0 %v2971
        %3989 = vmatpush1.bf16.msra.mxu0 %v2970
        %3990 = vmatprep.subr.bf16.mxu0 %v2979
        %3991 = vmatpush1.bf16.msra.mxu0 %v2978
        %3992 = vmatprep.subr.bf16.mxu0 %v2987
        %3993 = vmatpush1.bf16.msra.mxu0 %v2986
        %3994 = vmatprep.subr.bf16.mxu0 %v2995
        %3995 = vmatpush1.bf16.msra.mxu0 %v2994
        %3996 = vmatprep.mubr.bf16.mxu0 %v1499
        %3997 = vmatmul.mubr.bf16.gmra.mrb[0].mxu0 %v1498
        %v3998 = vpop.f32.mrb[0].mxu0
        %v3999 = vadd.f32 %v3886, %v3998
        %v4000 = vpop.f32.mrb[0].mxu0
        %v4001 = vadd.f32 %v3888, %v4000
        %v4002 = vpop.f32.mrb[0].mxu0
        %v4003 = vadd.f32 %v3890, %v4002
        %v4004 = vpop.f32.mrb[0].mxu0
        %v4005 = vadd.f32 %v3892, %v4004
        %4006 = vmatprep.mubr.bf16.mxu0 %v1505
        %4007 = vmatmul.mubr.bf16.gmra.mrb[0].mxu0 %v1504
        %v4008 = vpop.f32.mrb[0].mxu0
        %v4009 = vadd.f32 %v3896, %v4008
        %v4010 = vpop.f32.mrb[0].mxu0
        %v4011 = vadd.f32 %v3898, %v4010
        %v4012 = vpop.f32.mrb[0].mxu0
        %v4013 = vadd.f32 %v3900, %v4012
        %v4014 = vpop.f32.mrb[0].mxu0
        %v4015 = vadd.f32 %v3902, %v4014
        %4016 = vmatprep.mubr.bf16.mxu0 %v1511
        %4017 = vmatmul.mubr.bf16.gmra.mrb[0].mxu0 %v1510
        %v4018 = vpop.f32.mrb[0].mxu0
        %v4019 = vadd.f32 %v3906, %v4018
        %v4020 = vpop.f32.mrb[0].mxu0
        %v4021 = vadd.f32 %v3908, %v4020
        %v4022 = vpop.f32.mrb[0].mxu0
        %v4023 = vadd.f32 %v3910, %v4022
        %v4024 = vpop.f32.mrb[0].mxu0
        %v4025 = vadd.f32 %v3912, %v4024
        %4026 = vmatprep.mubr.bf16.mxu0 %v1517
        %4027 = vmatmul.mubr.bf16.gmra.mrb[0].mxu0 %v1516
        %v4028 = vpop.f32.mrb[0].mxu0
        %v4029 = vadd.f32 %v3916, %v4028
        %v4030 = vpop.f32.mrb[0].mxu0
        %v4031 = vadd.f32 %v3918, %v4030
        %v4032 = vpop.f32.mrb[0].mxu0
        %v4033 = vadd.f32 %v3920, %v4032
        %v4034 = vpop.f32.mrb[0].mxu0
        %v4035 = vadd.f32 %v3922, %v4034
        %4036 = vmatprep.mubr.bf16.mxu0 %v1523
        %4037 = vmatmul.mubr.bf16.gmra.mrb[0].mxu0 %v1522
        %v4038 = vpop.f32.mrb[0].mxu0
        %v4039 = vadd.f32 %v3926, %v4038
        %v4040 = vpop.f32.mrb[0].mxu0
        %v4041 = vadd.f32 %v3928, %v4040
        %v4042 = vpop.f32.mrb[0].mxu0
        %v4043 = vadd.f32 %v3930, %v4042
        %v4044 = vpop.f32.mrb[0].mxu0
        %v4045 = vadd.f32 %v3932, %v4044
        %4046 = vmatprep.mubr.bf16.mxu0 %v1529
        %4047 = vmatmul.mubr.bf16.gmra.mrb[0].mxu0 %v1528
        %v4048 = vpop.f32.mrb[0].mxu0
        %v4049 = vadd.f32 %v3936, %v4048
        %v4050 = vpop.f32.mrb[0].mxu0
        %v4051 = vadd.f32 %v3938, %v4050
        %v4052 = vpop.f32.mrb[0].mxu0
        %v4053 = vadd.f32 %v3940, %v4052
        %v4054 = vpop.f32.mrb[0].mxu0
        %v4055 = vadd.f32 %v3942, %v4054
        %4056 = vmatprep.mubr.bf16.mxu0 %v1535
        %4057 = vmatmul.mubr.bf16.gmra.mrb[0].mxu0 %v1534
        %v4058 = vpop.f32.mrb[0].mxu0
        %v4059 = vadd.f32 %v3946, %v4058
        %v4060 = vpop.f32.mrb[0].mxu0
        %v4061 = vadd.f32 %v3948, %v4060
        %v4062 = vpop.f32.mrb[0].mxu0
        %v4063 = vadd.f32 %v3950, %v4062
        %v4064 = vpop.f32.mrb[0].mxu0
        %v4065 = vadd.f32 %v3952, %v4064
        %4066 = vmatprep.mubr.bf16.mxu0 %v1541
        %4067 = vmatmul.mubr.bf16.gmra.mrb[0].mxu0 %v1540
        %v4068 = vpop.f32.mrb[0].mxu0
        %v4069 = vadd.f32 %v3956, %v4068
        %v4070 = vpop.f32.mrb[0].mxu0
        %v4071 = vadd.f32 %v3958, %v4070
        %v4072 = vpop.f32.mrb[0].mxu0
        %v4073 = vadd.f32 %v3960, %v4072
        %v4074 = vpop.f32.mrb[0].mxu0
        %v4075 = vadd.f32 %v3962, %v4074
        %4076 = vdwg.mxu0
        %4077 = vmatprep.subr.bf16.mxu0 %v3003
        %4078 = vmatpush1.bf16.msra.mxu0 %v3002
        %4079 = vmatprep.subr.bf16.mxu0 %v3011
        %4080 = vmatpush1.bf16.msra.mxu0 %v3010
        %4081 = vmatprep.subr.bf16.mxu0 %v3019
        %4082 = vmatpush1.bf16.msra.mxu0 %v3018
        %4083 = vmatprep.subr.bf16.mxu0 %v3027
        %4084 = vmatpush1.bf16.msra.mxu0 %v3026
        %4085 = vmatprep.subr.bf16.mxu0 %v3035
        %4086 = vmatpush1.bf16.msra.mxu0 %v3034
        %4087 = vmatprep.subr.bf16.mxu0 %v3043
        %4088 = vmatpush1.bf16.msra.mxu0 %v3042
        %4089 = vmatprep.subr.bf16.mxu0 %v3051
        %4090 = vmatpush1.bf16.msra.mxu0 %v3050
        %4091 = vmatprep.subr.bf16.mxu0 %v3059
        %4092 = vmatpush1.bf16.msra.mxu0 %v3058
        %4093 = vmatprep.subr.bf16.mxu0 %v3067
        %4094 = vmatpush1.bf16.msra.mxu0 %v3066
        %4095 = vmatprep.subr.bf16.mxu0 %v3075
        %4096 = vmatpush1.bf16.msra.mxu0 %v3074
        %4097 = vmatprep.subr.bf16.mxu0 %v3083
        %4098 = vmatpush1.bf16.msra.mxu0 %v3082
        %4099 = vmatprep.subr.bf16.mxu0 %v3091
        %4100 = vmatpush1.bf16.msra.mxu0 %v3090
        %4101 = vmatprep.subr.bf16.mxu0 %v3099
        %4102 = vmatpush1.bf16.msra.mxu0 %v3098
        %4103 = vmatprep.subr.bf16.mxu0 %v3107
        %4104 = vmatpush1.bf16.msra.mxu0 %v3106
        %4105 = vmatprep.subr.bf16.mxu0 %v3115
        %4106 = vmatpush1.bf16.msra.mxu0 %v3114
        %4107 = vmatprep.subr.bf16.mxu0 %v3123
        %4108 = vmatpush1.bf16.msra.mxu0 %v3122
        %4109 = vmatprep.mubr.bf16.mxu0 %v1501
        %4110 = vmatmul.mubr.bf16.gmra.mrb[0].mxu0 %v1500
        %v4111 = vpop.f32.mrb[0].mxu0
        %v4112 = vadd.f32 %v3999, %v4111
        %v4113 = vpop.f32.mrb[0].mxu0
        %v4114 = vadd.f32 %v4001, %v4113
        %v4115 = vpop.f32.mrb[0].mxu0
        %v4116 = vadd.f32 %v4003, %v4115
        %v4117 = vpop.f32.mrb[0].mxu0
        %v4118 = vadd.f32 %v4005, %v4117
        %4119 = vmatprep.mubr.bf16.mxu0 %v1507
        %4120 = vmatmul.mubr.bf16.gmra.mrb[0].mxu0 %v1506
        %v4121 = vpop.f32.mrb[0].mxu0
        %v4122 = vadd.f32 %v4009, %v4121
        %v4123 = vpop.f32.mrb[0].mxu0
        %v4124 = vadd.f32 %v4011, %v4123
        %v4125 = vpop.f32.mrb[0].mxu0
        %v4126 = vadd.f32 %v4013, %v4125
        %v4127 = vpop.f32.mrb[0].mxu0
        %v4128 = vadd.f32 %v4015, %v4127
        %4129 = vmatprep.mubr.bf16.mxu0 %v1513
        %4130 = vmatmul.mubr.bf16.gmra.mrb[0].mxu0 %v1512
        %v4131 = vpop.f32.mrb[0].mxu0
        %v4132 = vadd.f32 %v4019, %v4131
        %v4133 = vpop.f32.mrb[0].mxu0
        %v4134 = vadd.f32 %v4021, %v4133
        %v4135 = vpop.f32.mrb[0].mxu0
        %v4136 = vadd.f32 %v4023, %v4135
        %v4137 = vpop.f32.mrb[0].mxu0
        %v4138 = vadd.f32 %v4025, %v4137
        %4139 = vmatprep.mubr.bf16.mxu0 %v1519
        %4140 = vmatmul.mubr.bf16.gmra.mrb[0].mxu0 %v1518
        %v4141 = vpop.f32.mrb[0].mxu0
        %v4142 = vadd.f32 %v4029, %v4141
        %v4143 = vpop.f32.mrb[0].mxu0
        %v4144 = vadd.f32 %v4031, %v4143
        %v4145 = vpop.f32.mrb[0].mxu0
        %v4146 = vadd.f32 %v4033, %v4145
        %v4147 = vpop.f32.mrb[0].mxu0
        %v4148 = vadd.f32 %v4035, %v4147
        %4149 = vmatprep.mubr.bf16.mxu0 %v1525
        %4150 = vmatmul.mubr.bf16.gmra.mrb[0].mxu0 %v1524
        %v4151 = vpop.f32.mrb[0].mxu0
        %v4152 = vadd.f32 %v4039, %v4151
        %v4153 = vpop.f32.mrb[0].mxu0
        %v4154 = vadd.f32 %v4041, %v4153
        %v4155 = vpop.f32.mrb[0].mxu0
        %v4156 = vadd.f32 %v4043, %v4155
        %v4157 = vpop.f32.mrb[0].mxu0
        %v4158 = vadd.f32 %v4045, %v4157
        %4159 = vmatprep.mubr.bf16.mxu0 %v1531
        %4160 = vmatmul.mubr.bf16.gmra.mrb[0].mxu0 %v1530
        %v4161 = vpop.f32.mrb[0].mxu0
        %v4162 = vadd.f32 %v4049, %v4161
        %v4163 = vpop.f32.mrb[0].mxu0
        %v4164 = vadd.f32 %v4051, %v4163
        %v4165 = vpop.f32.mrb[0].mxu0
        %v4166 = vadd.f32 %v4053, %v4165
        %v4167 = vpop.f32.mrb[0].mxu0
        %v4168 = vadd.f32 %v4055, %v4167
        %4169 = vmatprep.mubr.bf16.mxu0 %v1537
        %4170 = vmatmul.mubr.bf16.gmra.mrb[0].mxu0 %v1536
        %v4171 = vpop.f32.mrb[0].mxu0
        %v4172 = vadd.f32 %v4059, %v4171
        %v4173 = vpop.f32.mrb[0].mxu0
        %v4174 = vadd.f32 %v4061, %v4173
        %v4175 = vpop.f32.mrb[0].mxu0
        %v4176 = vadd.f32 %v4063, %v4175
        %v4177 = vpop.f32.mrb[0].mxu0
        %v4178 = vadd.f32 %v4065, %v4177
        %4179 = vmatprep.mubr.bf16.mxu0 %v1543
        %4180 = vmatmul.mubr.bf16.gmra.mrb[0].mxu0 %v1542
        %v4181 = vpop.f32.mrb[0].mxu0
        %v4182 = vadd.f32 %v4069, %v4181
        %v4183 = vpop.f32.mrb[0].mxu0
        %v4184 = vadd.f32 %v4071, %v4183
        %v4185 = vpop.f32.mrb[0].mxu0
        %v4186 = vadd.f32 %v4073, %v4185
        %v4187 = vpop.f32.mrb[0].mxu0
        %v4188 = vadd.f32 %v4075, %v4187
        %4189 = vdwg.mxu0
        %4190 = vmatprep.subr.bf16.mxu0 %v2749
        %4191 = vmatpush1.bf16.msra.mxu0 %v2748
        %4192 = vmatprep.subr.bf16.mxu0 %v2757
        %4193 = vmatpush1.bf16.msra.mxu0 %v2756
        %4194 = vmatprep.subr.bf16.mxu0 %v2765
        %4195 = vmatpush1.bf16.msra.mxu0 %v2764
        %4196 = vmatprep.subr.bf16.mxu0 %v2773
        %4197 = vmatpush1.bf16.msra.mxu0 %v2772
        %4198 = vmatprep.subr.bf16.mxu0 %v2781
        %4199 = vmatpush1.bf16.msra.mxu0 %v2780
        %4200 = vmatprep.subr.bf16.mxu0 %v2789
        %4201 = vmatpush1.bf16.msra.mxu0 %v2788
        %4202 = vmatprep.subr.bf16.mxu0 %v2797
        %4203 = vmatpush1.bf16.msra.mxu0 %v2796
        %4204 = vmatprep.subr.bf16.mxu0 %v2805
        %4205 = vmatpush1.bf16.msra.mxu0 %v2804
        %4206 = vmatprep.subr.bf16.mxu0 %v2813
        %4207 = vmatpush1.bf16.msra.mxu0 %v2812
        %4208 = vmatprep.subr.bf16.mxu0 %v2821
        %4209 = vmatpush1.bf16.msra.mxu0 %v2820
        %4210 = vmatprep.subr.bf16.mxu0 %v2829
        %4211 = vmatpush1.bf16.msra.mxu0 %v2828
        %4212 = vmatprep.subr.bf16.mxu0 %v2837
        %4213 = vmatpush1.bf16.msra.mxu0 %v2836
        %4214 = vmatprep.subr.bf16.mxu0 %v2845
        %4215 = vmatpush1.bf16.msra.mxu0 %v2844
        %4216 = vmatprep.subr.bf16.mxu0 %v2853
        %4217 = vmatpush1.bf16.msra.mxu0 %v2852
        %4218 = vmatprep.subr.bf16.mxu0 %v2861
        %4219 = vmatpush1.bf16.msra.mxu0 %v2860
        %4220 = vmatprep.subr.bf16.mxu0 %v2869
        %4221 = vmatpush1.bf16.msra.mxu0 %v2868
        %4222 = vmatprep.mubr.bf16.mxu0 %v1497
        %4223 = vmatmul.mubr.bf16.gmra.mrb[0].mxu0 %v1496
        %v4224 = vpop.f32.mrb[0].mxu0
        %v4225 = vadd.f32 %v1331, %v4224
        %v4226 = vpop.f32.mrb[0].mxu0
        %v4227 = vadd.f32 %v1335, %v4226
        %v4228 = vpop.f32.mrb[0].mxu0
        %v4229 = vadd.f32 %v1331, %v4228
        %v4230 = vpop.f32.mrb[0].mxu0
        %v4231 = vadd.f32 %v1335, %v4230
        %4232 = vmatprep.mubr.bf16.mxu0 %v1503
        %4233 = vmatmul.mubr.bf16.gmra.mrb[0].mxu0 %v1502
        %v4234 = vpop.f32.mrb[0].mxu0
        %v4235 = vadd.f32 %v1331, %v4234
        %v4236 = vpop.f32.mrb[0].mxu0
        %v4237 = vadd.f32 %v1335, %v4236
        %v4238 = vpop.f32.mrb[0].mxu0
        %v4239 = vadd.f32 %v1331, %v4238
        %v4240 = vpop.f32.mrb[0].mxu0
        %v4241 = vadd.f32 %v1335, %v4240
        %4242 = vmatprep.mubr.bf16.mxu0 %v1509
        %4243 = vmatmul.mubr.bf16.gmra.mrb[0].mxu0 %v1508
        %v4244 = vpop.f32.mrb[0].mxu0
        %v4245 = vadd.f32 %v1331, %v4244
        %v4246 = vpop.f32.mrb[0].mxu0
        %v4247 = vadd.f32 %v1335, %v4246
        %v4248 = vpop.f32.mrb[0].mxu0
        %v4249 = vadd.f32 %v1331, %v4248
        %v4250 = vpop.f32.mrb[0].mxu0
        %v4251 = vadd.f32 %v1335, %v4250
        %4252 = vmatprep.mubr.bf16.mxu0 %v1515
        %4253 = vmatmul.mubr.bf16.gmra.mrb[0].mxu0 %v1514
        %v4254 = vpop.f32.mrb[0].mxu0
        %v4255 = vadd.f32 %v1331, %v4254
        %v4256 = vpop.f32.mrb[0].mxu0
        %v4257 = vadd.f32 %v1335, %v4256
        %v4258 = vpop.f32.mrb[0].mxu0
        %v4259 = vadd.f32 %v1331, %v4258
        %v4260 = vpop.f32.mrb[0].mxu0
        %v4261 = vadd.f32 %v1335, %v4260
        %4262 = vmatprep.mubr.bf16.mxu0 %v1521
        %4263 = vmatmul.mubr.bf16.gmra.mrb[0].mxu0 %v1520
        %v4264 = vpop.f32.mrb[0].mxu0
        %v4265 = vadd.f32 %v1331, %v4264
        %v4266 = vpop.f32.mrb[0].mxu0
        %v4267 = vadd.f32 %v1335, %v4266
        %v4268 = vpop.f32.mrb[0].mxu0
        %v4269 = vadd.f32 %v1331, %v4268
        %v4270 = vpop.f32.mrb[0].mxu0
        %v4271 = vadd.f32 %v1335, %v4270
        %4272 = vmatprep.mubr.bf16.mxu0 %v1527
        %4273 = vmatmul.mubr.bf16.gmra.mrb[0].mxu0 %v1526
        %v4274 = vpop.f32.mrb[0].mxu0
        %v4275 = vadd.f32 %v1331, %v4274
        %v4276 = vpop.f32.mrb[0].mxu0
        %v4277 = vadd.f32 %v1335, %v4276
        %v4278 = vpop.f32.mrb[0].mxu0
        %v4279 = vadd.f32 %v1331, %v4278
        %v4280 = vpop.f32.mrb[0].mxu0
        %v4281 = vadd.f32 %v1335, %v4280
        %4282 = vmatprep.mubr.bf16.mxu0 %v1533
        %4283 = vmatmul.mubr.bf16.gmra.mrb[0].mxu0 %v1532
        %v4284 = vpop.f32.mrb[0].mxu0
        %v4285 = vadd.f32 %v1331, %v4284
        %v4286 = vpop.f32.mrb[0].mxu0
        %v4287 = vadd.f32 %v1335, %v4286
        %v4288 = vpop.f32.mrb[0].mxu0
        %v4289 = vadd.f32 %v1331, %v4288
        %v4290 = vpop.f32.mrb[0].mxu0
        %v4291 = vadd.f32 %v1335, %v4290
        %4292 = vmatprep.mubr.bf16.mxu0 %v1539
        %4293 = vmatmul.mubr.bf16.gmra.mrb[0].mxu0 %v1538
        %v4294 = vpop.f32.mrb[0].mxu0
        %v4295 = vadd.f32 %v1331, %v4294
        %v4296 = vpop.f32.mrb[0].mxu0
        %v4297 = vadd.f32 %v1335, %v4296
        %v4298 = vpop.f32.mrb[0].mxu0
        %v4299 = vadd.f32 %v1331, %v4298
        %v4300 = vpop.f32.mrb[0].mxu0
        %v4301 = vadd.f32 %v1335, %v4300
        %4302 = vdwg.mxu0
        %4303 = vmatprep.subr.bf16.mxu0 %v2877
        %4304 = vmatpush1.bf16.msra.mxu0 %v2876
        %4305 = vmatprep.subr.bf16.mxu0 %v2885
        %4306 = vmatpush1.bf16.msra.mxu0 %v2884
        %4307 = vmatprep.subr.bf16.mxu0 %v2893
        %4308 = vmatpush1.bf16.msra.mxu0 %v2892
        %4309 = vmatprep.subr.bf16.mxu0 %v2901
        %4310 = vmatpush1.bf16.msra.mxu0 %v2900
        %4311 = vmatprep.subr.bf16.mxu0 %v2909
        %4312 = vmatpush1.bf16.msra.mxu0 %v2908
        %4313 = vmatprep.subr.bf16.mxu0 %v2917
        %4314 = vmatpush1.bf16.msra.mxu0 %v2916
        %4315 = vmatprep.subr.bf16.mxu0 %v2925
        %4316 = vmatpush1.bf16.msra.mxu0 %v2924
        %4317 = vmatprep.subr.bf16.mxu0 %v2933
        %4318 = vmatpush1.bf16.msra.mxu0 %v2932
        %4319 = vmatprep.subr.bf16.mxu0 %v2941
        %4320 = vmatpush1.bf16.msra.mxu0 %v2940
        %4321 = vmatprep.subr.bf16.mxu0 %v2949
        %4322 = vmatpush1.bf16.msra.mxu0 %v2948
        %4323 = vmatprep.subr.bf16.mxu0 %v2957
        %4324 = vmatpush1.bf16.msra.mxu0 %v2956
        %4325 = vmatprep.subr.bf16.mxu0 %v2965
        %4326 = vmatpush1.bf16.msra.mxu0 %v2964
        %4327 = vmatprep.subr.bf16.mxu0 %v2973
        %4328 = vmatpush1.bf16.msra.mxu0 %v2972
        %4329 = vmatprep.subr.bf16.mxu0 %v2981
        %4330 = vmatpush1.bf16.msra.mxu0 %v2980
        %4331 = vmatprep.subr.bf16.mxu0 %v2989
        %4332 = vmatpush1.bf16.msra.mxu0 %v2988
        %4333 = vmatprep.subr.bf16.mxu0 %v2997
        %4334 = vmatpush1.bf16.msra.mxu0 %v2996
        %4335 = vmatprep.mubr.bf16.mxu0 %v1499
        %4336 = vmatmul.mubr.bf16.gmra.mrb[0].mxu0 %v1498
        %v4337 = vpop.f32.mrb[0].mxu0
        %v4338 = vadd.f32 %v4225, %v4337
        %v4339 = vpop.f32.mrb[0].mxu0
        %v4340 = vadd.f32 %v4227, %v4339
        %v4341 = vpop.f32.mrb[0].mxu0
        %v4342 = vadd.f32 %v4229, %v4341
        %v4343 = vpop.f32.mrb[0].mxu0
        %v4344 = vadd.f32 %v4231, %v4343
        %4345 = vmatprep.mubr.bf16.mxu0 %v1505
        %4346 = vmatmul.mubr.bf16.gmra.mrb[0].mxu0 %v1504
        %v4347 = vpop.f32.mrb[0].mxu0
        %v4348 = vadd.f32 %v4235, %v4347
        %v4349 = vpop.f32.mrb[0].mxu0
        %v4350 = vadd.f32 %v4237, %v4349
        %v4351 = vpop.f32.mrb[0].mxu0
        %v4352 = vadd.f32 %v4239, %v4351
        %v4353 = vpop.f32.mrb[0].mxu0
        %v4354 = vadd.f32 %v4241, %v4353
        %4355 = vmatprep.mubr.bf16.mxu0 %v1511
        %4356 = vmatmul.mubr.bf16.gmra.mrb[0].mxu0 %v1510
        %v4357 = vpop.f32.mrb[0].mxu0
        %v4358 = vadd.f32 %v4245, %v4357
        %v4359 = vpop.f32.mrb[0].mxu0
        %v4360 = vadd.f32 %v4247, %v4359
        %v4361 = vpop.f32.mrb[0].mxu0
        %v4362 = vadd.f32 %v4249, %v4361
        %v4363 = vpop.f32.mrb[0].mxu0
        %v4364 = vadd.f32 %v4251, %v4363
        %4365 = vmatprep.mubr.bf16.mxu0 %v1517
        %4366 = vmatmul.mubr.bf16.gmra.mrb[0].mxu0 %v1516
        %v4367 = vpop.f32.mrb[0].mxu0
        %v4368 = vadd.f32 %v4255, %v4367
        %v4369 = vpop.f32.mrb[0].mxu0
        %v4370 = vadd.f32 %v4257, %v4369
        %v4371 = vpop.f32.mrb[0].mxu0
        %v4372 = vadd.f32 %v4259, %v4371
        %v4373 = vpop.f32.mrb[0].mxu0
        %v4374 = vadd.f32 %v4261, %v4373
        %4375 = vmatprep.mubr.bf16.mxu0 %v1523
        %4376 = vmatmul.mubr.bf16.gmra.mrb[0].mxu0 %v1522
        %v4377 = vpop.f32.mrb[0].mxu0
        %v4378 = vadd.f32 %v4265, %v4377
        %v4379 = vpop.f32.mrb[0].mxu0
        %v4380 = vadd.f32 %v4267, %v4379
        %v4381 = vpop.f32.mrb[0].mxu0
        %v4382 = vadd.f32 %v4269, %v4381
        %v4383 = vpop.f32.mrb[0].mxu0
        %v4384 = vadd.f32 %v4271, %v4383
        %4385 = vmatprep.mubr.bf16.mxu0 %v1529
        %4386 = vmatmul.mubr.bf16.gmra.mrb[0].mxu0 %v1528
        %v4387 = vpop.f32.mrb[0].mxu0
        %v4388 = vadd.f32 %v4275, %v4387
        %v4389 = vpop.f32.mrb[0].mxu0
        %v4390 = vadd.f32 %v4277, %v4389
        %v4391 = vpop.f32.mrb[0].mxu0
        %v4392 = vadd.f32 %v4279, %v4391
        %v4393 = vpop.f32.mrb[0].mxu0
        %v4394 = vadd.f32 %v4281, %v4393
        %4395 = vmatprep.mubr.bf16.mxu0 %v1535
        %4396 = vmatmul.mubr.bf16.gmra.mrb[0].mxu0 %v1534
        %v4397 = vpop.f32.mrb[0].mxu0
        %v4398 = vadd.f32 %v4285, %v4397
        %v4399 = vpop.f32.mrb[0].mxu0
        %v4400 = vadd.f32 %v4287, %v4399
        %v4401 = vpop.f32.mrb[0].mxu0
        %v4402 = vadd.f32 %v4289, %v4401
        %v4403 = vpop.f32.mrb[0].mxu0
        %v4404 = vadd.f32 %v4291, %v4403
        %4405 = vmatprep.mubr.bf16.mxu0 %v1541
        %4406 = vmatmul.mubr.bf16.gmra.mrb[0].mxu0 %v1540
        %v4407 = vpop.f32.mrb[0].mxu0
        %v4408 = vadd.f32 %v4295, %v4407
        %v4409 = vpop.f32.mrb[0].mxu0
        %v4410 = vadd.f32 %v4297, %v4409
        %v4411 = vpop.f32.mrb[0].mxu0
        %v4412 = vadd.f32 %v4299, %v4411
        %v4413 = vpop.f32.mrb[0].mxu0
        %v4414 = vadd.f32 %v4301, %v4413
        %4415 = vdwg.mxu0
        %4416 = vmatprep.subr.bf16.mxu0 %v3005
        %4417 = vmatpush1.bf16.msra.mxu0 %v3004
        %4418 = vmatprep.subr.bf16.mxu0 %v3013
        %4419 = vmatpush1.bf16.msra.mxu0 %v3012
        %4420 = vmatprep.subr.bf16.mxu0 %v3021
        %4421 = vmatpush1.bf16.msra.mxu0 %v3020
        %4422 = vmatprep.subr.bf16.mxu0 %v3029
        %4423 = vmatpush1.bf16.msra.mxu0 %v3028
        %4424 = vmatprep.subr.bf16.mxu0 %v3037
        %4425 = vmatpush1.bf16.msra.mxu0 %v3036
        %4426 = vmatprep.subr.bf16.mxu0 %v3045
        %4427 = vmatpush1.bf16.msra.mxu0 %v3044
        %4428 = vmatprep.subr.bf16.mxu0 %v3053
        %4429 = vmatpush1.bf16.msra.mxu0 %v3052
        %4430 = vmatprep.subr.bf16.mxu0 %v3061
        %4431 = vmatpush1.bf16.msra.mxu0 %v3060
        %4432 = vmatprep.subr.bf16.mxu0 %v3069
        %4433 = vmatpush1.bf16.msra.mxu0 %v3068
        %4434 = vmatprep.subr.bf16.mxu0 %v3077
        %4435 = vmatpush1.bf16.msra.mxu0 %v3076
        %4436 = vmatprep.subr.bf16.mxu0 %v3085
        %4437 = vmatpush1.bf16.msra.mxu0 %v3084
        %4438 = vmatprep.subr.bf16.mxu0 %v3093
        %4439 = vmatpush1.bf16.msra.mxu0 %v3092
        %4440 = vmatprep.subr.bf16.mxu0 %v3101
        %4441 = vmatpush1.bf16.msra.mxu0 %v3100
        %4442 = vmatprep.subr.bf16.mxu0 %v3109
        %4443 = vmatpush1.bf16.msra.mxu0 %v3108
        %4444 = vmatprep.subr.bf16.mxu0 %v3117
        %4445 = vmatpush1.bf16.msra.mxu0 %v3116
        %4446 = vmatprep.subr.bf16.mxu0 %v3125
        %4447 = vmatpush1.bf16.msra.mxu0 %v3124
        %4448 = vmatprep.mubr.bf16.mxu0 %v1501
        %4449 = vmatmul.mubr.bf16.gmra.mrb[0].mxu0 %v1500
        %v4450 = vpop.f32.mrb[0].mxu0
        %v4451 = vadd.f32 %v4338, %v4450
        %v4452 = vpop.f32.mrb[0].mxu0
        %v4453 = vadd.f32 %v4340, %v4452
        %v4454 = vpop.f32.mrb[0].mxu0
        %v4455 = vadd.f32 %v4342, %v4454
        %v4456 = vpop.f32.mrb[0].mxu0
        %v4457 = vadd.f32 %v4344, %v4456
        %4458 = vmatprep.mubr.bf16.mxu0 %v1507
        %4459 = vmatmul.mubr.bf16.gmra.mrb[0].mxu0 %v1506
        %v4460 = vpop.f32.mrb[0].mxu0
        %v4461 = vadd.f32 %v4348, %v4460
        %v4462 = vpop.f32.mrb[0].mxu0
        %v4463 = vadd.f32 %v4350, %v4462
        %v4464 = vpop.f32.mrb[0].mxu0
        %v4465 = vadd.f32 %v4352, %v4464
        %v4466 = vpop.f32.mrb[0].mxu0
        %v4467 = vadd.f32 %v4354, %v4466
        %4468 = vmatprep.mubr.bf16.mxu0 %v1513
        %4469 = vmatmul.mubr.bf16.gmra.mrb[0].mxu0 %v1512
        %v4470 = vpop.f32.mrb[0].mxu0
        %v4471 = vadd.f32 %v4358, %v4470
        %v4472 = vpop.f32.mrb[0].mxu0
        %v4473 = vadd.f32 %v4360, %v4472
        %v4474 = vpop.f32.mrb[0].mxu0
        %v4475 = vadd.f32 %v4362, %v4474
        %v4476 = vpop.f32.mrb[0].mxu0
        %v4477 = vadd.f32 %v4364, %v4476
        %4478 = vmatprep.mubr.bf16.mxu0 %v1519
        %4479 = vmatmul.mubr.bf16.gmra.mrb[0].mxu0 %v1518
        %v4480 = vpop.f32.mrb[0].mxu0
        %v4481 = vadd.f32 %v4368, %v4480
        %v4482 = vpop.f32.mrb[0].mxu0
        %v4483 = vadd.f32 %v4370, %v4482
        %v4484 = vpop.f32.mrb[0].mxu0
        %v4485 = vadd.f32 %v4372, %v4484
        %v4486 = vpop.f32.mrb[0].mxu0
        %v4487 = vadd.f32 %v4374, %v4486
        %4488 = vmatprep.mubr.bf16.mxu0 %v1525
        %4489 = vmatmul.mubr.bf16.gmra.mrb[0].mxu0 %v1524
        %v4490 = vpop.f32.mrb[0].mxu0
        %v4491 = vadd.f32 %v4378, %v4490
        %v4492 = vpop.f32.mrb[0].mxu0
        %v4493 = vadd.f32 %v4380, %v4492
        %v4494 = vpop.f32.mrb[0].mxu0
        %v4495 = vadd.f32 %v4382, %v4494
        %v4496 = vpop.f32.mrb[0].mxu0
        %v4497 = vadd.f32 %v4384, %v4496
        %4498 = vmatprep.mubr.bf16.mxu0 %v1531
        %4499 = vmatmul.mubr.bf16.gmra.mrb[0].mxu0 %v1530
        %v4500 = vpop.f32.mrb[0].mxu0
        %v4501 = vadd.f32 %v4388, %v4500
        %v4502 = vpop.f32.mrb[0].mxu0
        %v4503 = vadd.f32 %v4390, %v4502
        %v4504 = vpop.f32.mrb[0].mxu0
        %v4505 = vadd.f32 %v4392, %v4504
        %v4506 = vpop.f32.mrb[0].mxu0
        %v4507 = vadd.f32 %v4394, %v4506
        %4508 = vmatprep.mubr.bf16.mxu0 %v1537
        %4509 = vmatmul.mubr.bf16.gmra.mrb[0].mxu0 %v1536
        %v4510 = vpop.f32.mrb[0].mxu0
        %v4511 = vadd.f32 %v4398, %v4510
        %v4512 = vpop.f32.mrb[0].mxu0
        %v4513 = vadd.f32 %v4400, %v4512
        %v4514 = vpop.f32.mrb[0].mxu0
        %v4515 = vadd.f32 %v4402, %v4514
        %v4516 = vpop.f32.mrb[0].mxu0
        %v4517 = vadd.f32 %v4404, %v4516
        %4518 = vmatprep.mubr.bf16.mxu0 %v1543
        %4519 = vmatmul.mubr.bf16.gmra.mrb[0].mxu0 %v1542
        %v4520 = vpop.f32.mrb[0].mxu0
        %v4521 = vadd.f32 %v4408, %v4520
        %v4522 = vpop.f32.mrb[0].mxu0
        %v4523 = vadd.f32 %v4410, %v4522
        %v4524 = vpop.f32.mrb[0].mxu0
        %v4525 = vadd.f32 %v4412, %v4524
        %v4526 = vpop.f32.mrb[0].mxu0
        %v4527 = vadd.f32 %v4414, %v4526
        %4528 = vdwg.mxu0
        %4529 = vmatprep.subr.bf16.mxu0 %v2751
        %4530 = vmatpush1.bf16.msra.mxu0 %v2750
        %4531 = vmatprep.subr.bf16.mxu0 %v2759
        %4532 = vmatpush1.bf16.msra.mxu0 %v2758
        %4533 = vmatprep.subr.bf16.mxu0 %v2767
        %4534 = vmatpush1.bf16.msra.mxu0 %v2766
        %4535 = vmatprep.subr.bf16.mxu0 %v2775
        %4536 = vmatpush1.bf16.msra.mxu0 %v2774
        %4537 = vmatprep.subr.bf16.mxu0 %v2783
        %4538 = vmatpush1.bf16.msra.mxu0 %v2782
        %4539 = vmatprep.subr.bf16.mxu0 %v2791
        %4540 = vmatpush1.bf16.msra.mxu0 %v2790
        %4541 = vmatprep.subr.bf16.mxu0 %v2799
        %4542 = vmatpush1.bf16.msra.mxu0 %v2798
        %4543 = vmatprep.subr.bf16.mxu0 %v2807
        %4544 = vmatpush1.bf16.msra.mxu0 %v2806
        %4545 = vmatprep.subr.bf16.mxu0 %v2815
        %4546 = vmatpush1.bf16.msra.mxu0 %v2814
        %4547 = vmatprep.subr.bf16.mxu0 %v2823
        %4548 = vmatpush1.bf16.msra.mxu0 %v2822
        %4549 = vmatprep.subr.bf16.mxu0 %v2831
        %4550 = vmatpush1.bf16.msra.mxu0 %v2830
        %4551 = vmatprep.subr.bf16.mxu0 %v2839
        %4552 = vmatpush1.bf16.msra.mxu0 %v2838
        %4553 = vmatprep.subr.bf16.mxu0 %v2847
        %4554 = vmatpush1.bf16.msra.mxu0 %v2846
        %4555 = vmatprep.subr.bf16.mxu0 %v2855
        %4556 = vmatpush1.bf16.msra.mxu0 %v2854
        %4557 = vmatprep.subr.bf16.mxu0 %v2863
        %4558 = vmatpush1.bf16.msra.mxu0 %v2862
        %4559 = vmatprep.subr.bf16.mxu0 %v2871
        %4560 = vmatpush1.bf16.msra.mxu0 %v2870
        %4561 = vmatprep.mubr.bf16.mxu0 %v1497
        %4562 = vmatmul.mubr.bf16.gmra.mrb[0].mxu0 %v1496
        %v4563 = vpop.f32.mrb[0].mxu0
        %v4564 = vadd.f32 %v1339, %v4563
        %v4565 = vpop.f32.mrb[0].mxu0
        %v4566 = vadd.f32 %v1343, %v4565
        %v4567 = vpop.f32.mrb[0].mxu0
        %v4568 = vadd.f32 %v1339, %v4567
        %v4569 = vpop.f32.mrb[0].mxu0
        %v4570 = vadd.f32 %v1343, %v4569
        %4571 = vmatprep.mubr.bf16.mxu0 %v1503
        %4572 = vmatmul.mubr.bf16.gmra.mrb[0].mxu0 %v1502
        %v4573 = vpop.f32.mrb[0].mxu0
        %v4574 = vadd.f32 %v1339, %v4573
        %v4575 = vpop.f32.mrb[0].mxu0
        %v4576 = vadd.f32 %v1343, %v4575
        %v4577 = vpop.f32.mrb[0].mxu0
        %v4578 = vadd.f32 %v1339, %v4577
        %v4579 = vpop.f32.mrb[0].mxu0
        %v4580 = vadd.f32 %v1343, %v4579
        %4581 = vmatprep.mubr.bf16.mxu0 %v1509
        %4582 = vmatmul.mubr.bf16.gmra.mrb[0].mxu0 %v1508
        %v4583 = vpop.f32.mrb[0].mxu0
        %v4584 = vadd.f32 %v1339, %v4583
        %v4585 = vpop.f32.mrb[0].mxu0
        %v4586 = vadd.f32 %v1343, %v4585
        %v4587 = vpop.f32.mrb[0].mxu0
        %v4588 = vadd.f32 %v1339, %v4587
        %v4589 = vpop.f32.mrb[0].mxu0
        %v4590 = vadd.f32 %v1343, %v4589
        %4591 = vmatprep.mubr.bf16.mxu0 %v1515
        %4592 = vmatmul.mubr.bf16.gmra.mrb[0].mxu0 %v1514
        %v4593 = vpop.f32.mrb[0].mxu0
        %v4594 = vadd.f32 %v1339, %v4593
        %v4595 = vpop.f32.mrb[0].mxu0
        %v4596 = vadd.f32 %v1343, %v4595
        %v4597 = vpop.f32.mrb[0].mxu0
        %v4598 = vadd.f32 %v1339, %v4597
        %v4599 = vpop.f32.mrb[0].mxu0
        %v4600 = vadd.f32 %v1343, %v4599
        %4601 = vmatprep.mubr.bf16.mxu0 %v1521
        %4602 = vmatmul.mubr.bf16.gmra.mrb[0].mxu0 %v1520
        %v4603 = vpop.f32.mrb[0].mxu0
        %v4604 = vadd.f32 %v1339, %v4603
        %v4605 = vpop.f32.mrb[0].mxu0
        %v4606 = vadd.f32 %v1343, %v4605
        %v4607 = vpop.f32.mrb[0].mxu0
        %v4608 = vadd.f32 %v1339, %v4607
        %v4609 = vpop.f32.mrb[0].mxu0
        %v4610 = vadd.f32 %v1343, %v4609
        %4611 = vmatprep.mubr.bf16.mxu0 %v1527
        %4612 = vmatmul.mubr.bf16.gmra.mrb[0].mxu0 %v1526
        %v4613 = vpop.f32.mrb[0].mxu0
        %v4614 = vadd.f32 %v1339, %v4613
        %v4615 = vpop.f32.mrb[0].mxu0
        %v4616 = vadd.f32 %v1343, %v4615
        %v4617 = vpop.f32.mrb[0].mxu0
        %v4618 = vadd.f32 %v1339, %v4617
        %v4619 = vpop.f32.mrb[0].mxu0
        %v4620 = vadd.f32 %v1343, %v4619
        %4621 = vmatprep.mubr.bf16.mxu0 %v1533
        %4622 = vmatmul.mubr.bf16.gmra.mrb[0].mxu0 %v1532
        %v4623 = vpop.f32.mrb[0].mxu0
        %v4624 = vadd.f32 %v1339, %v4623
        %v4625 = vpop.f32.mrb[0].mxu0
        %v4626 = vadd.f32 %v1343, %v4625
        %v4627 = vpop.f32.mrb[0].mxu0
        %v4628 = vadd.f32 %v1339, %v4627
        %v4629 = vpop.f32.mrb[0].mxu0
        %v4630 = vadd.f32 %v1343, %v4629
        %4631 = vmatprep.mubr.bf16.mxu0 %v1539
        %4632 = vmatmul.mubr.bf16.gmra.mrb[0].mxu0 %v1538
        %v4633 = vpop.f32.mrb[0].mxu0
        %v4634 = vadd.f32 %v1339, %v4633
        %v4635 = vpop.f32.mrb[0].mxu0
        %v4636 = vadd.f32 %v1343, %v4635
        %v4637 = vpop.f32.mrb[0].mxu0
        %v4638 = vadd.f32 %v1339, %v4637
        %v4639 = vpop.f32.mrb[0].mxu0
        %v4640 = vadd.f32 %v1343, %v4639
        %4641 = vdwg.mxu0
        %4642 = vmatprep.subr.bf16.mxu0 %v2879
        %4643 = vmatpush1.bf16.msra.mxu0 %v2878
        %4644 = vmatprep.subr.bf16.mxu0 %v2887
        %4645 = vmatpush1.bf16.msra.mxu0 %v2886
        %4646 = vmatprep.subr.bf16.mxu0 %v2895
        %4647 = vmatpush1.bf16.msra.mxu0 %v2894
        %4648 = vmatprep.subr.bf16.mxu0 %v2903
        %4649 = vmatpush1.bf16.msra.mxu0 %v2902
        %4650 = vmatprep.subr.bf16.mxu0 %v2911
        %4651 = vmatpush1.bf16.msra.mxu0 %v2910
        %4652 = vmatprep.subr.bf16.mxu0 %v2919
        %4653 = vmatpush1.bf16.msra.mxu0 %v2918
        %4654 = vmatprep.subr.bf16.mxu0 %v2927
        %4655 = vmatpush1.bf16.msra.mxu0 %v2926
        %4656 = vmatprep.subr.bf16.mxu0 %v2935
        %4657 = vmatpush1.bf16.msra.mxu0 %v2934
        %4658 = vmatprep.subr.bf16.mxu0 %v2943
        %4659 = vmatpush1.bf16.msra.mxu0 %v2942
        %4660 = vmatprep.subr.bf16.mxu0 %v2951
        %4661 = vmatpush1.bf16.msra.mxu0 %v2950
        %4662 = vmatprep.subr.bf16.mxu0 %v2959
        %4663 = vmatpush1.bf16.msra.mxu0 %v2958
        %4664 = vmatprep.subr.bf16.mxu0 %v2967
        %4665 = vmatpush1.bf16.msra.mxu0 %v2966
        %4666 = vmatprep.subr.bf16.mxu0 %v2975
        %4667 = vmatpush1.bf16.msra.mxu0 %v2974
        %4668 = vmatprep.subr.bf16.mxu0 %v2983
        %4669 = vmatpush1.bf16.msra.mxu0 %v2982
        %4670 = vmatprep.subr.bf16.mxu0 %v2991
        %4671 = vmatpush1.bf16.msra.mxu0 %v2990
        %4672 = vmatprep.subr.bf16.mxu0 %v2999
        %4673 = vmatpush1.bf16.msra.mxu0 %v2998
        %4674 = vmatprep.mubr.bf16.mxu0 %v1499
        %4675 = vmatmul.mubr.bf16.gmra.mrb[0].mxu0 %v1498
        %v4676 = vpop.f32.mrb[0].mxu0
        %v4677 = vadd.f32 %v4564, %v4676
        %v4678 = vpop.f32.mrb[0].mxu0
        %v4679 = vadd.f32 %v4566, %v4678
        %v4680 = vpop.f32.mrb[0].mxu0
        %v4681 = vadd.f32 %v4568, %v4680
        %v4682 = vpop.f32.mrb[0].mxu0
        %v4683 = vadd.f32 %v4570, %v4682
        %4684 = vmatprep.mubr.bf16.mxu0 %v1505
        %4685 = vmatmul.mubr.bf16.gmra.mrb[0].mxu0 %v1504
        %v4686 = vpop.f32.mrb[0].mxu0
        %v4687 = vadd.f32 %v4574, %v4686
        %v4688 = vpop.f32.mrb[0].mxu0
        %v4689 = vadd.f32 %v4576, %v4688
        %v4690 = vpop.f32.mrb[0].mxu0
        %v4691 = vadd.f32 %v4578, %v4690
        %v4692 = vpop.f32.mrb[0].mxu0
        %v4693 = vadd.f32 %v4580, %v4692
        %4694 = vmatprep.mubr.bf16.mxu0 %v1511
        %4695 = vmatmul.mubr.bf16.gmra.mrb[0].mxu0 %v1510
        %v4696 = vpop.f32.mrb[0].mxu0
        %v4697 = vadd.f32 %v4584, %v4696
        %v4698 = vpop.f32.mrb[0].mxu0
        %v4699 = vadd.f32 %v4586, %v4698
        %v4700 = vpop.f32.mrb[0].mxu0
        %v4701 = vadd.f32 %v4588, %v4700
        %v4702 = vpop.f32.mrb[0].mxu0
        %v4703 = vadd.f32 %v4590, %v4702
        %4704 = vmatprep.mubr.bf16.mxu0 %v1517
        %4705 = vmatmul.mubr.bf16.gmra.mrb[0].mxu0 %v1516
        %v4706 = vpop.f32.mrb[0].mxu0
        %v4707 = vadd.f32 %v4594, %v4706
        %v4708 = vpop.f32.mrb[0].mxu0
        %v4709 = vadd.f32 %v4596, %v4708
        %v4710 = vpop.f32.mrb[0].mxu0
        %v4711 = vadd.f32 %v4598, %v4710
        %v4712 = vpop.f32.mrb[0].mxu0
        %v4713 = vadd.f32 %v4600, %v4712
        %4714 = vmatprep.mubr.bf16.mxu0 %v1523
        %4715 = vmatmul.mubr.bf16.gmra.mrb[0].mxu0 %v1522
        %v4716 = vpop.f32.mrb[0].mxu0
        %v4717 = vadd.f32 %v4604, %v4716
        %v4718 = vpop.f32.mrb[0].mxu0
        %v4719 = vadd.f32 %v4606, %v4718
        %v4720 = vpop.f32.mrb[0].mxu0
        %v4721 = vadd.f32 %v4608, %v4720
        %v4722 = vpop.f32.mrb[0].mxu0
        %v4723 = vadd.f32 %v4610, %v4722
        %4724 = vmatprep.mubr.bf16.mxu0 %v1529
        %4725 = vmatmul.mubr.bf16.gmra.mrb[0].mxu0 %v1528
        %v4726 = vpop.f32.mrb[0].mxu0
        %v4727 = vadd.f32 %v4614, %v4726
        %v4728 = vpop.f32.mrb[0].mxu0
        %v4729 = vadd.f32 %v4616, %v4728
        %v4730 = vpop.f32.mrb[0].mxu0
        %v4731 = vadd.f32 %v4618, %v4730
        %v4732 = vpop.f32.mrb[0].mxu0
        %v4733 = vadd.f32 %v4620, %v4732
        %4734 = vmatprep.mubr.bf16.mxu0 %v1535
        %4735 = vmatmul.mubr.bf16.gmra.mrb[0].mxu0 %v1534
        %v4736 = vpop.f32.mrb[0].mxu0
        %v4737 = vadd.f32 %v4624, %v4736
        %v4738 = vpop.f32.mrb[0].mxu0
        %v4739 = vadd.f32 %v4626, %v4738
        %v4740 = vpop.f32.mrb[0].mxu0
        %v4741 = vadd.f32 %v4628, %v4740
        %v4742 = vpop.f32.mrb[0].mxu0
        %v4743 = vadd.f32 %v4630, %v4742
        %4744 = vmatprep.mubr.bf16.mxu0 %v1541
        %4745 = vmatmul.mubr.bf16.gmra.mrb[0].mxu0 %v1540
        %v4746 = vpop.f32.mrb[0].mxu0
        %v4747 = vadd.f32 %v4634, %v4746
        %v4748 = vpop.f32.mrb[0].mxu0
        %v4749 = vadd.f32 %v4636, %v4748
        %v4750 = vpop.f32.mrb[0].mxu0
        %v4751 = vadd.f32 %v4638, %v4750
        %v4752 = vpop.f32.mrb[0].mxu0
        %v4753 = vadd.f32 %v4640, %v4752
        %4754 = vdwg.mxu0
        %4755 = vmatprep.subr.bf16.mxu0 %v3007
        %4756 = vmatpush1.bf16.msra.mxu0 %v3006
        %4757 = vmatprep.subr.bf16.mxu0 %v3015
        %4758 = vmatpush1.bf16.msra.mxu0 %v3014
        %4759 = vmatprep.subr.bf16.mxu0 %v3023
        %4760 = vmatpush1.bf16.msra.mxu0 %v3022
        %4761 = vmatprep.subr.bf16.mxu0 %v3031
        %4762 = vmatpush1.bf16.msra.mxu0 %v3030
        %4763 = vmatprep.subr.bf16.mxu0 %v3039
        %4764 = vmatpush1.bf16.msra.mxu0 %v3038
        %4765 = vmatprep.subr.bf16.mxu0 %v3047
        %4766 = vmatpush1.bf16.msra.mxu0 %v3046
        %4767 = vmatprep.subr.bf16.mxu0 %v3055
        %4768 = vmatpush1.bf16.msra.mxu0 %v3054
        %4769 = vmatprep.subr.bf16.mxu0 %v3063
        %4770 = vmatpush1.bf16.msra.mxu0 %v3062
        %4771 = vmatprep.subr.bf16.mxu0 %v3071
        %4772 = vmatpush1.bf16.msra.mxu0 %v3070
        %4773 = vmatprep.subr.bf16.mxu0 %v3079
        %4774 = vmatpush1.bf16.msra.mxu0 %v3078
        %4775 = vmatprep.subr.bf16.mxu0 %v3087
        %4776 = vmatpush1.bf16.msra.mxu0 %v3086
        %4777 = vmatprep.subr.bf16.mxu0 %v3095
        %4778 = vmatpush1.bf16.msra.mxu0 %v3094
        %4779 = vmatprep.subr.bf16.mxu0 %v3103
        %4780 = vmatpush1.bf16.msra.mxu0 %v3102
        %4781 = vmatprep.subr.bf16.mxu0 %v3111
        %4782 = vmatpush1.bf16.msra.mxu0 %v3110
        %4783 = vmatprep.subr.bf16.mxu0 %v3119
        %4784 = vmatpush1.bf16.msra.mxu0 %v3118
        %4785 = vmatprep.subr.bf16.mxu0 %v3127
        %4786 = vmatpush1.bf16.msra.mxu0 %v3126
        %4787 = vmatprep.mubr.bf16.mxu0 %v1501
        %4788 = vmatmul.mubr.bf16.gmra.mrb[0].mxu0 %v1500
        %v4789 = vpop.f32.mrb[0].mxu0
        %v4790 = vadd.f32 %v4677, %v4789
        %v4791 = vpop.f32.mrb[0].mxu0
        %v4792 = vadd.f32 %v4679, %v4791
        %v4793 = vpop.f32.mrb[0].mxu0
        %v4794 = vadd.f32 %v4681, %v4793
        %v4795 = vpop.f32.mrb[0].mxu0
        %v4796 = vadd.f32 %v4683, %v4795
        %4797 = vmatprep.mubr.bf16.mxu0 %v1507
        %4798 = vmatmul.mubr.bf16.gmra.mrb[0].mxu0 %v1506
        %v4799 = vpop.f32.mrb[0].mxu0
        %v4800 = vadd.f32 %v4687, %v4799
        %v4801 = vpop.f32.mrb[0].mxu0
        %v4802 = vadd.f32 %v4689, %v4801
        %v4803 = vpop.f32.mrb[0].mxu0
        %v4804 = vadd.f32 %v4691, %v4803
        %v4805 = vpop.f32.mrb[0].mxu0
        %v4806 = vadd.f32 %v4693, %v4805
        %4807 = vmatprep.mubr.bf16.mxu0 %v1513
        %4808 = vmatmul.mubr.bf16.gmra.mrb[0].mxu0 %v1512
        %v4809 = vpop.f32.mrb[0].mxu0
        %v4810 = vadd.f32 %v4697, %v4809
        %v4811 = vpop.f32.mrb[0].mxu0
        %v4812 = vadd.f32 %v4699, %v4811
        %v4813 = vpop.f32.mrb[0].mxu0
        %v4814 = vadd.f32 %v4701, %v4813
        %v4815 = vpop.f32.mrb[0].mxu0
        %v4816 = vadd.f32 %v4703, %v4815
        %4817 = vmatprep.mubr.bf16.mxu0 %v1519
        %4818 = vmatmul.mubr.bf16.gmra.mrb[0].mxu0 %v1518
        %v4819 = vpop.f32.mrb[0].mxu0
        %v4820 = vadd.f32 %v4707, %v4819
        %v4821 = vpop.f32.mrb[0].mxu0
        %v4822 = vadd.f32 %v4709, %v4821
        %v4823 = vpop.f32.mrb[0].mxu0
        %v4824 = vadd.f32 %v4711, %v4823
        %v4825 = vpop.f32.mrb[0].mxu0
        %v4826 = vadd.f32 %v4713, %v4825
        %4827 = vmatprep.mubr.bf16.mxu0 %v1525
        %4828 = vmatmul.mubr.bf16.gmra.mrb[0].mxu0 %v1524
        %v4829 = vpop.f32.mrb[0].mxu0
        %v4830 = vadd.f32 %v4717, %v4829
        %v4831 = vpop.f32.mrb[0].mxu0
        %v4832 = vadd.f32 %v4719, %v4831
        %v4833 = vpop.f32.mrb[0].mxu0
        %v4834 = vadd.f32 %v4721, %v4833
        %v4835 = vpop.f32.mrb[0].mxu0
        %v4836 = vadd.f32 %v4723, %v4835
        %4837 = vmatprep.mubr.bf16.mxu0 %v1531
        %4838 = vmatmul.mubr.bf16.gmra.mrb[0].mxu0 %v1530
        %v4839 = vpop.f32.mrb[0].mxu0
        %v4840 = vadd.f32 %v4727, %v4839
        %v4841 = vpop.f32.mrb[0].mxu0
        %v4842 = vadd.f32 %v4729, %v4841
        %v4843 = vpop.f32.mrb[0].mxu0
        %v4844 = vadd.f32 %v4731, %v4843
        %v4845 = vpop.f32.mrb[0].mxu0
        %v4846 = vadd.f32 %v4733, %v4845
        %4847 = vmatprep.mubr.bf16.mxu0 %v1537
        %4848 = vmatmul.mubr.bf16.gmra.mrb[0].mxu0 %v1536
        %v4849 = vpop.f32.mrb[0].mxu0
        %v4850 = vadd.f32 %v4737, %v4849
        %v4851 = vpop.f32.mrb[0].mxu0
        %v4852 = vadd.f32 %v4739, %v4851
        %v4853 = vpop.f32.mrb[0].mxu0
        %v4854 = vadd.f32 %v4741, %v4853
        %v4855 = vpop.f32.mrb[0].mxu0
        %v4856 = vadd.f32 %v4743, %v4855
        %4857 = vmatprep.mubr.bf16.mxu0 %v1543
        %4858 = vmatmul.mubr.bf16.gmra.mrb[0].mxu0 %v1542
        %v4859 = vpop.f32.mrb[0].mxu0
        %v4860 = vadd.f32 %v4747, %v4859
        %v4861 = vpop.f32.mrb[0].mxu0
        %v4862 = vadd.f32 %v4749, %v4861
        %v4863 = vpop.f32.mrb[0].mxu0
        %v4864 = vadd.f32 %v4751, %v4863
        %v4865 = vpop.f32.mrb[0].mxu0
        %v4866 = vadd.f32 %v4753, %v4865
        %4867 = vdwg.mxu0
        %v4868 = vmax.f32 %v3773, 0.0
        %v4869 = vmax.f32 %v3775, 0.0
        %v4870 = vmax.f32 %v4112, 0.0
        %v4871 = vmax.f32 %v4114, 0.0
        %v4872 = vmax.f32 %v4451, 0.0
        %v4873 = vmax.f32 %v4453, 0.0
        %v4874 = vmax.f32 %v4790, 0.0
        %v4875 = vmax.f32 %v4792, 0.0
        %v4876 = vmax.f32 %v3777, 0.0
        %v4877 = vmax.f32 %v3779, 0.0
        %v4878 = vmax.f32 %v4116, 0.0
        %v4879 = vmax.f32 %v4118, 0.0
        %v4880 = vmax.f32 %v4455, 0.0
        %v4881 = vmax.f32 %v4457, 0.0
        %v4882 = vmax.f32 %v4794, 0.0
        %v4883 = vmax.f32 %v4796, 0.0
        %v4884 = vmax.f32 %v3783, 0.0
        %v4885 = vmax.f32 %v3785, 0.0
        %v4886 = vmax.f32 %v4122, 0.0
        %v4887 = vmax.f32 %v4124, 0.0
        %v4888 = vmax.f32 %v4461, 0.0
        %v4889 = vmax.f32 %v4463, 0.0
        %v4890 = vmax.f32 %v4800, 0.0
        %v4891 = vmax.f32 %v4802, 0.0
        %v4892 = vmax.f32 %v3787, 0.0
        %v4893 = vmax.f32 %v3789, 0.0
        %v4894 = vmax.f32 %v4126, 0.0
        %v4895 = vmax.f32 %v4128, 0.0
        %v4896 = vmax.f32 %v4465, 0.0
        %v4897 = vmax.f32 %v4467, 0.0
        %v4898 = vmax.f32 %v4804, 0.0
        %v4899 = vmax.f32 %v4806, 0.0
        %v4900 = vmax.f32 %v3793, 0.0
        %v4901 = vmax.f32 %v3795, 0.0
        %v4902 = vmax.f32 %v4132, 0.0
        %v4903 = vmax.f32 %v4134, 0.0
        %v4904 = vmax.f32 %v4471, 0.0
        %v4905 = vmax.f32 %v4473, 0.0
        %v4906 = vmax.f32 %v4810, 0.0
        %v4907 = vmax.f32 %v4812, 0.0
        %v4908 = vmax.f32 %v3797, 0.0
        %v4909 = vmax.f32 %v3799, 0.0
        %v4910 = vmax.f32 %v4136, 0.0
        %v4911 = vmax.f32 %v4138, 0.0
        %v4912 = vmax.f32 %v4475, 0.0
        %v4913 = vmax.f32 %v4477, 0.0
        %v4914 = vmax.f32 %v4814, 0.0
        %v4915 = vmax.f32 %v4816, 0.0
        %v4916 = vmax.f32 %v3803, 0.0
        %v4917 = vmax.f32 %v3805, 0.0
        %v4918 = vmax.f32 %v4142, 0.0
        %v4919 = vmax.f32 %v4144, 0.0
        %v4920 = vmax.f32 %v4481, 0.0
        %v4921 = vmax.f32 %v4483, 0.0
        %v4922 = vmax.f32 %v4820, 0.0
        %v4923 = vmax.f32 %v4822, 0.0
        %v4924 = vmax.f32 %v3807, 0.0
        %v4925 = vmax.f32 %v3809, 0.0
        %v4926 = vmax.f32 %v4146, 0.0
        %v4927 = vmax.f32 %v4148, 0.0
        %v4928 = vmax.f32 %v4485, 0.0
        %v4929 = vmax.f32 %v4487, 0.0
        %v4930 = vmax.f32 %v4824, 0.0
        %v4931 = vmax.f32 %v4826, 0.0
        %v4932 = vmax.f32 %v3813, 0.0
        %v4933 = vmax.f32 %v3815, 0.0
        %v4934 = vmax.f32 %v4152, 0.0
        %v4935 = vmax.f32 %v4154, 0.0
        %v4936 = vmax.f32 %v4491, 0.0
        %v4937 = vmax.f32 %v4493, 0.0
        %v4938 = vmax.f32 %v4830, 0.0
        %v4939 = vmax.f32 %v4832, 0.0
        %v4940 = vmax.f32 %v3817, 0.0
        %v4941 = vmax.f32 %v3819, 0.0
        %v4942 = vmax.f32 %v4156, 0.0
        %v4943 = vmax.f32 %v4158, 0.0
        %v4944 = vmax.f32 %v4495, 0.0
        %v4945 = vmax.f32 %v4497, 0.0
        %v4946 = vmax.f32 %v4834, 0.0
        %v4947 = vmax.f32 %v4836, 0.0
        %v4948 = vmax.f32 %v3823, 0.0
        %v4949 = vmax.f32 %v3825, 0.0
        %v4950 = vmax.f32 %v4162, 0.0
        %v4951 = vmax.f32 %v4164, 0.0
        %v4952 = vmax.f32 %v4501, 0.0
        %v4953 = vmax.f32 %v4503, 0.0
        %v4954 = vmax.f32 %v4840, 0.0
        %v4955 = vmax.f32 %v4842, 0.0
        %v4956 = vmax.f32 %v3827, 0.0
        %v4957 = vmax.f32 %v3829, 0.0
        %v4958 = vmax.f32 %v4166, 0.0
        %v4959 = vmax.f32 %v4168, 0.0
        %v4960 = vmax.f32 %v4505, 0.0
        %v4961 = vmax.f32 %v4507, 0.0
        %v4962 = vmax.f32 %v4844, 0.0
        %v4963 = vmax.f32 %v4846, 0.0
        %v4964 = vmax.f32 %v3833, 0.0
        %v4965 = vmax.f32 %v3835, 0.0
        %v4966 = vmax.f32 %v4172, 0.0
        %v4967 = vmax.f32 %v4174, 0.0
        %v4968 = vmax.f32 %v4511, 0.0
        %v4969 = vmax.f32 %v4513, 0.0
        %v4970 = vmax.f32 %v4850, 0.0
        %v4971 = vmax.f32 %v4852, 0.0
        %v4972 = vmax.f32 %v3837, 0.0
        %v4973 = vmax.f32 %v3839, 0.0
        %v4974 = vmax.f32 %v4176, 0.0
        %v4975 = vmax.f32 %v4178, 0.0
        %v4976 = vmax.f32 %v4515, 0.0
        %v4977 = vmax.f32 %v4517, 0.0
        %v4978 = vmax.f32 %v4854, 0.0
        %v4979 = vmax.f32 %v4856, 0.0
        %v4980 = vmax.f32 %v3843, 0.0
        %v4981 = vmax.f32 %v3845, 0.0
        %v4982 = vmax.f32 %v4182, 0.0
        %v4983 = vmax.f32 %v4184, 0.0
        %v4984 = vmax.f32 %v4521, 0.0
        %v4985 = vmax.f32 %v4523, 0.0
        %v4986 = vmax.f32 %v4860, 0.0
        %v4987 = vmax.f32 %v4862, 0.0
        %v4988 = vmax.f32 %v3847, 0.0
        %v4989 = vmax.f32 %v3849, 0.0
        %v4990 = vmax.f32 %v4186, 0.0
        %v4991 = vmax.f32 %v4188, 0.0
        %v4992 = vmax.f32 %v4525, 0.0
        %v4993 = vmax.f32 %v4527, 0.0
        %v4994 = vmax.f32 %v4864, 0.0
        %v4995 = vmax.f32 %v4866, 0.0
        %v4996 = vpack.c.bf16 %v4876, %v4868
        %v4997 = vpack.c.bf16 %v4877, %v4869
        %v4998 = vpack.c.bf16 %v4878, %v4870
        %v4999 = vpack.c.bf16 %v4879, %v4871
        %v5000 = vpack.c.bf16 %v4880, %v4872
        %v5001 = vpack.c.bf16 %v4881, %v4873
        %v5002 = vpack.c.bf16 %v4882, %v4874
        %v5003 = vpack.c.bf16 %v4883, %v4875
        %v5004 = vpack.c.bf16 %v4892, %v4884
        %v5005 = vpack.c.bf16 %v4893, %v4885
        %v5006 = vpack.c.bf16 %v4894, %v4886
        %v5007 = vpack.c.bf16 %v4895, %v4887
        %v5008 = vpack.c.bf16 %v4896, %v4888
        %v5009 = vpack.c.bf16 %v4897, %v4889
        %v5010 = vpack.c.bf16 %v4898, %v4890
        %v5011 = vpack.c.bf16 %v4899, %v4891
        %v5012 = vpack.c.bf16 %v4908, %v4900
        %v5013 = vpack.c.bf16 %v4909, %v4901
        %v5014 = vpack.c.bf16 %v4910, %v4902
        %v5015 = vpack.c.bf16 %v4911, %v4903
        %v5016 = vpack.c.bf16 %v4912, %v4904
        %v5017 = vpack.c.bf16 %v4913, %v4905
        %v5018 = vpack.c.bf16 %v4914, %v4906
        %v5019 = vpack.c.bf16 %v4915, %v4907
        %v5020 = vpack.c.bf16 %v4924, %v4916
        %v5021 = vpack.c.bf16 %v4925, %v4917
        %v5022 = vpack.c.bf16 %v4926, %v4918
        %v5023 = vpack.c.bf16 %v4927, %v4919
        %v5024 = vpack.c.bf16 %v4928, %v4920
        %v5025 = vpack.c.bf16 %v4929, %v4921
        %v5026 = vpack.c.bf16 %v4930, %v4922
        %v5027 = vpack.c.bf16 %v4931, %v4923
        %v5028 = vpack.c.bf16 %v4940, %v4932
        %v5029 = vpack.c.bf16 %v4941, %v4933
        %v5030 = vpack.c.bf16 %v4942, %v4934
        %v5031 = vpack.c.bf16 %v4943, %v4935
        %v5032 = vpack.c.bf16 %v4944, %v4936
        %v5033 = vpack.c.bf16 %v4945, %v4937
        %v5034 = vpack.c.bf16 %v4946, %v4938
        %v5035 = vpack.c.bf16 %v4947, %v4939
        %v5036 = vpack.c.bf16 %v4956, %v4948
        %v5037 = vpack.c.bf16 %v4957, %v4949
        %v5038 = vpack.c.bf16 %v4958, %v4950
        %v5039 = vpack.c.bf16 %v4959, %v4951
        %v5040 = vpack.c.bf16 %v4960, %v4952
        %v5041 = vpack.c.bf16 %v4961, %v4953
        %v5042 = vpack.c.bf16 %v4962, %v4954
        %v5043 = vpack.c.bf16 %v4963, %v4955
        %v5044 = vpack.c.bf16 %v4972, %v4964
        %v5045 = vpack.c.bf16 %v4973, %v4965
        %v5046 = vpack.c.bf16 %v4974, %v4966
        %v5047 = vpack.c.bf16 %v4975, %v4967
        %v5048 = vpack.c.bf16 %v4976, %v4968
        %v5049 = vpack.c.bf16 %v4977, %v4969
        %v5050 = vpack.c.bf16 %v4978, %v4970
        %v5051 = vpack.c.bf16 %v4979, %v4971
        %v5052 = vpack.c.bf16 %v4988, %v4980
        %v5053 = vpack.c.bf16 %v4989, %v4981
        %v5054 = vpack.c.bf16 %v4990, %v4982
        %v5055 = vpack.c.bf16 %v4991, %v4983
        %v5056 = vpack.c.bf16 %v4992, %v4984
        %v5057 = vpack.c.bf16 %v4993, %v4985
        %v5058 = vpack.c.bf16 %v4994, %v4986
        %v5059 = vpack.c.bf16 %v4995, %v4987
        %v5061 = vlaneseq
        %v5062 = vshrl.u32 %v5061, 7
        %v5063 = vsub.s32 0, %v5062
        %v5064 = vrot.slane %v1050, %v5063
        %v5065 = vlaneseq
        %v5066 = vshrl.u32 %v5065, 7
        %v5067 = vsub.s32 1, %v5066
        %v5068 = vrot.slane %v1050, %v5067
        %v5069 = vlaneseq
        %v5070 = vshrl.u32 %v5069, 7
        %v5071 = vsub.s32 2, %v5070
        %v5072 = vrot.slane %v1050, %v5071
        %v5073 = vlaneseq
        %v5074 = vshrl.u32 %v5073, 7
        %v5075 = vsub.s32 3, %v5074
        %v5076 = vrot.slane %v1050, %v5075
        %v5209 = vunpack.c.l.b16 %v922
        %v5210 = vunpack.c.h.b16 %v922
        %v5211 = vunpack.c.l.b16 %v923
        %v5212 = vunpack.c.h.b16 %v923
        %v5213 = vunpack.c.l.b16 %v924
        %v5214 = vunpack.c.h.b16 %v924
        %v5215 = vunpack.c.l.b16 %v925
        %v5216 = vunpack.c.h.b16 %v925
        %v5217 = vunpack.c.l.b16 %v926
        %v5218 = vunpack.c.h.b16 %v926
        %v5219 = vunpack.c.l.b16 %v927
        %v5220 = vunpack.c.h.b16 %v927
        %v5221 = vunpack.c.l.b16 %v928
        %v5222 = vunpack.c.h.b16 %v928
        %v5223 = vunpack.c.l.b16 %v929
        %v5224 = vunpack.c.h.b16 %v929
        %v5225 = vunpack.c.l.b16 %v930
        %v5226 = vunpack.c.h.b16 %v930
        %v5227 = vunpack.c.l.b16 %v931
        %v5228 = vunpack.c.h.b16 %v931
        %v5229 = vunpack.c.l.b16 %v932
        %v5230 = vunpack.c.h.b16 %v932
        %v5231 = vunpack.c.l.b16 %v933
        %v5232 = vunpack.c.h.b16 %v933
        %v5233 = vunpack.c.l.b16 %v934
        %v5234 = vunpack.c.h.b16 %v934
        %v5235 = vunpack.c.l.b16 %v935
        %v5236 = vunpack.c.h.b16 %v935
        %v5237 = vunpack.c.l.b16 %v936
        %v5238 = vunpack.c.h.b16 %v936
        %v5239 = vunpack.c.l.b16 %v937
        %v5240 = vunpack.c.h.b16 %v937
        %v5241 = vunpack.c.l.b16 %v938
        %v5242 = vunpack.c.h.b16 %v938
        %v5243 = vunpack.c.l.b16 %v939
        %v5244 = vunpack.c.h.b16 %v939
        %v5245 = vunpack.c.l.b16 %v940
        %v5246 = vunpack.c.h.b16 %v940
        %v5247 = vunpack.c.l.b16 %v941
        %v5248 = vunpack.c.h.b16 %v941
        %v5249 = vunpack.c.l.b16 %v942
        %v5250 = vunpack.c.h.b16 %v942
        %v5251 = vunpack.c.l.b16 %v943
        %v5252 = vunpack.c.h.b16 %v943
        %v5253 = vunpack.c.l.b16 %v944
        %v5254 = vunpack.c.h.b16 %v944
        %v5255 = vunpack.c.l.b16 %v945
        %v5256 = vunpack.c.h.b16 %v945
        %v5257 = vunpack.c.l.b16 %v946
        %v5258 = vunpack.c.h.b16 %v946
        %v5259 = vunpack.c.l.b16 %v947
        %v5260 = vunpack.c.h.b16 %v947
        %v5261 = vunpack.c.l.b16 %v948
        %v5262 = vunpack.c.h.b16 %v948
        %v5263 = vunpack.c.l.b16 %v949
        %v5264 = vunpack.c.h.b16 %v949
        %v5265 = vunpack.c.l.b16 %v950
        %v5266 = vunpack.c.h.b16 %v950
        %v5267 = vunpack.c.l.b16 %v951
        %v5268 = vunpack.c.h.b16 %v951
        %v5269 = vunpack.c.l.b16 %v952
        %v5270 = vunpack.c.h.b16 %v952
        %v5271 = vunpack.c.l.b16 %v953
        %v5272 = vunpack.c.h.b16 %v953
        %v5273 = vunpack.c.l.b16 %v954
        %v5274 = vunpack.c.h.b16 %v954
        %v5275 = vunpack.c.l.b16 %v955
        %v5276 = vunpack.c.h.b16 %v955
        %v5277 = vunpack.c.l.b16 %v956
        %v5278 = vunpack.c.h.b16 %v956
        %v5279 = vunpack.c.l.b16 %v957
        %v5280 = vunpack.c.h.b16 %v957
        %v5281 = vunpack.c.l.b16 %v958
        %v5282 = vunpack.c.h.b16 %v958
        %v5283 = vunpack.c.l.b16 %v959
        %v5284 = vunpack.c.h.b16 %v959
        %v5285 = vunpack.c.l.b16 %v960
        %v5286 = vunpack.c.h.b16 %v960
        %v5287 = vunpack.c.l.b16 %v961
        %v5288 = vunpack.c.h.b16 %v961
        %v5289 = vunpack.c.l.b16 %v962
        %v5290 = vunpack.c.h.b16 %v962
        %v5291 = vunpack.c.l.b16 %v963
        %v5292 = vunpack.c.h.b16 %v963
        %v5293 = vunpack.c.l.b16 %v964
        %v5294 = vunpack.c.h.b16 %v964
        %v5295 = vunpack.c.l.b16 %v965
        %v5296 = vunpack.c.h.b16 %v965
        %v5297 = vunpack.c.l.b16 %v966
        %v5298 = vunpack.c.h.b16 %v966
        %v5299 = vunpack.c.l.b16 %v967
        %v5300 = vunpack.c.h.b16 %v967
        %v5301 = vunpack.c.l.b16 %v968
        %v5302 = vunpack.c.h.b16 %v968
        %v5303 = vunpack.c.l.b16 %v969
        %v5304 = vunpack.c.h.b16 %v969
        %v5305 = vunpack.c.l.b16 %v970
        %v5306 = vunpack.c.h.b16 %v970
        %v5307 = vunpack.c.l.b16 %v971
        %v5308 = vunpack.c.h.b16 %v971
        %v5309 = vunpack.c.l.b16 %v972
        %v5310 = vunpack.c.h.b16 %v972
        %v5311 = vunpack.c.l.b16 %v973
        %v5312 = vunpack.c.h.b16 %v973
        %v5313 = vunpack.c.l.b16 %v974
        %v5314 = vunpack.c.h.b16 %v974
        %v5315 = vunpack.c.l.b16 %v975
        %v5316 = vunpack.c.h.b16 %v975
        %v5317 = vunpack.c.l.b16 %v976
        %v5318 = vunpack.c.h.b16 %v976
        %v5319 = vunpack.c.l.b16 %v977
        %v5320 = vunpack.c.h.b16 %v977
        %v5321 = vunpack.c.l.b16 %v978
        %v5322 = vunpack.c.h.b16 %v978
        %v5323 = vunpack.c.l.b16 %v979
        %v5324 = vunpack.c.h.b16 %v979
        %v5325 = vunpack.c.l.b16 %v980
        %v5326 = vunpack.c.h.b16 %v980
        %v5327 = vunpack.c.l.b16 %v981
        %v5328 = vunpack.c.h.b16 %v981
        %v5329 = vunpack.c.l.b16 %v982
        %v5330 = vunpack.c.h.b16 %v982
        %v5331 = vunpack.c.l.b16 %v983
        %v5332 = vunpack.c.h.b16 %v983
        %v5333 = vunpack.c.l.b16 %v984
        %v5334 = vunpack.c.h.b16 %v984
        %v5335 = vunpack.c.l.b16 %v985
        %v5336 = vunpack.c.h.b16 %v985
        %v5337 = vunpack.c.l.b16 %v986
        %v5338 = vunpack.c.h.b16 %v986
        %v5339 = vunpack.c.l.b16 %v987
        %v5340 = vunpack.c.h.b16 %v987
        %v5341 = vunpack.c.l.b16 %v988
        %v5342 = vunpack.c.h.b16 %v988
        %v5343 = vunpack.c.l.b16 %v989
        %v5344 = vunpack.c.h.b16 %v989
        %v5345 = vunpack.c.l.b16 %v990
        %v5346 = vunpack.c.h.b16 %v990
        %v5347 = vunpack.c.l.b16 %v991
        %v5348 = vunpack.c.h.b16 %v991
        %v5349 = vunpack.c.l.b16 %v992
        %v5350 = vunpack.c.h.b16 %v992
        %v5351 = vunpack.c.l.b16 %v993
        %v5352 = vunpack.c.h.b16 %v993
        %v5353 = vunpack.c.l.b16 %v994
        %v5354 = vunpack.c.h.b16 %v994
        %v5355 = vunpack.c.l.b16 %v995
        %v5356 = vunpack.c.h.b16 %v995
        %v5357 = vunpack.c.l.b16 %v996
        %v5358 = vunpack.c.h.b16 %v996
        %v5359 = vunpack.c.l.b16 %v997
        %v5360 = vunpack.c.h.b16 %v997
        %v5361 = vunpack.c.l.b16 %v998
        %v5362 = vunpack.c.h.b16 %v998
        %v5363 = vunpack.c.l.b16 %v999
        %v5364 = vunpack.c.h.b16 %v999
        %v5365 = vunpack.c.l.b16 %v1000
        %v5366 = vunpack.c.h.b16 %v1000
        %v5367 = vunpack.c.l.b16 %v1001
        %v5368 = vunpack.c.h.b16 %v1001
        %v5369 = vunpack.c.l.b16 %v1002
        %v5370 = vunpack.c.h.b16 %v1002
        %v5371 = vunpack.c.l.b16 %v1003
        %v5372 = vunpack.c.h.b16 %v1003
        %v5373 = vunpack.c.l.b16 %v1004
        %v5374 = vunpack.c.h.b16 %v1004
        %v5375 = vunpack.c.l.b16 %v1005
        %v5376 = vunpack.c.h.b16 %v1005
        %v5377 = vunpack.c.l.b16 %v1006
        %v5378 = vunpack.c.h.b16 %v1006
        %v5379 = vunpack.c.l.b16 %v1007
        %v5380 = vunpack.c.h.b16 %v1007
        %v5381 = vunpack.c.l.b16 %v1008
        %v5382 = vunpack.c.h.b16 %v1008
        %v5383 = vunpack.c.l.b16 %v1009
        %v5384 = vunpack.c.h.b16 %v1009
        %v5385 = vunpack.c.l.b16 %v1010
        %v5386 = vunpack.c.h.b16 %v1010
        %v5387 = vunpack.c.l.b16 %v1011
        %v5388 = vunpack.c.h.b16 %v1011
        %v5389 = vunpack.c.l.b16 %v1012
        %v5390 = vunpack.c.h.b16 %v1012
        %v5391 = vunpack.c.l.b16 %v1013
        %v5392 = vunpack.c.h.b16 %v1013
        %v5393 = vunpack.c.l.b16 %v1014
        %v5394 = vunpack.c.h.b16 %v1014
        %v5395 = vunpack.c.l.b16 %v1015
        %v5396 = vunpack.c.h.b16 %v1015
        %v5397 = vunpack.c.l.b16 %v1016
        %v5398 = vunpack.c.h.b16 %v1016
        %v5399 = vunpack.c.l.b16 %v1017
        %v5400 = vunpack.c.h.b16 %v1017
        %v5401 = vunpack.c.l.b16 %v1018
        %v5402 = vunpack.c.h.b16 %v1018
        %v5403 = vunpack.c.l.b16 %v1019
        %v5404 = vunpack.c.h.b16 %v1019
        %v5405 = vunpack.c.l.b16 %v1020
        %v5406 = vunpack.c.h.b16 %v1020
        %v5407 = vunpack.c.l.b16 %v1021
        %v5408 = vunpack.c.h.b16 %v1021
        %v5409 = vunpack.c.l.b16 %v1022
        %v5410 = vunpack.c.h.b16 %v1022
        %v5411 = vunpack.c.l.b16 %v1023
        %v5412 = vunpack.c.h.b16 %v1023
        %v5413 = vunpack.c.l.b16 %v1024
        %v5414 = vunpack.c.h.b16 %v1024
        %v5415 = vunpack.c.l.b16 %v1025
        %v5416 = vunpack.c.h.b16 %v1025
        %v5417 = vunpack.c.l.b16 %v1026
        %v5418 = vunpack.c.h.b16 %v1026
        %v5419 = vunpack.c.l.b16 %v1027
        %v5420 = vunpack.c.h.b16 %v1027
        %v5421 = vunpack.c.l.b16 %v1028
        %v5422 = vunpack.c.h.b16 %v1028
        %v5423 = vunpack.c.l.b16 %v1029
        %v5424 = vunpack.c.h.b16 %v1029
        %v5425 = vunpack.c.l.b16 %v1030
        %v5426 = vunpack.c.h.b16 %v1030
        %v5427 = vunpack.c.l.b16 %v1031
        %v5428 = vunpack.c.h.b16 %v1031
        %v5429 = vunpack.c.l.b16 %v1032
        %v5430 = vunpack.c.h.b16 %v1032
        %v5431 = vunpack.c.l.b16 %v1033
        %v5432 = vunpack.c.h.b16 %v1033
        %v5433 = vunpack.c.l.b16 %v1034
        %v5434 = vunpack.c.h.b16 %v1034
        %v5435 = vunpack.c.l.b16 %v1035
        %v5436 = vunpack.c.h.b16 %v1035
        %v5437 = vunpack.c.l.b16 %v1036
        %v5438 = vunpack.c.h.b16 %v1036
        %v5439 = vunpack.c.l.b16 %v1037
        %v5440 = vunpack.c.h.b16 %v1037
        %v5441 = vunpack.c.l.b16 %v1038
        %v5442 = vunpack.c.h.b16 %v1038
        %v5443 = vunpack.c.l.b16 %v1039
        %v5444 = vunpack.c.h.b16 %v1039
        %v5445 = vunpack.c.l.b16 %v1040
        %v5446 = vunpack.c.h.b16 %v1040
        %v5447 = vunpack.c.l.b16 %v1041
        %v5448 = vunpack.c.h.b16 %v1041
        %v5449 = vunpack.c.l.b16 %v1042
        %v5450 = vunpack.c.h.b16 %v1042
        %v5451 = vunpack.c.l.b16 %v1043
        %v5452 = vunpack.c.h.b16 %v1043
        %v5453 = vunpack.c.l.b16 %v1044
        %v5454 = vunpack.c.h.b16 %v1044
        %v5455 = vunpack.c.l.b16 %v1045
        %v5456 = vunpack.c.h.b16 %v1045
        %v5457 = vunpack.c.l.b16 %v1046
        %v5458 = vunpack.c.h.b16 %v1046
        %v5459 = vunpack.c.l.b16 %v1047
        %v5460 = vunpack.c.h.b16 %v1047
        %v5461 = vunpack.c.l.b16 %v1048
        %v5462 = vunpack.c.h.b16 %v1048
        %v5463 = vunpack.c.l.b16 %v1049
        %v5464 = vunpack.c.h.b16 %v1049
        %v5465 = vpack.c.b16 %v5213, %v5209
        %v5466 = vpack.c.b16 %v5214, %v5210
        %v5467 = vpack.c.b16 %v5215, %v5211
        %v5468 = vpack.c.b16 %v5216, %v5212
        %v5469 = vpack.c.b16 %v5221, %v5217
        %v5470 = vpack.c.b16 %v5222, %v5218
        %v5471 = vpack.c.b16 %v5223, %v5219
        %v5472 = vpack.c.b16 %v5224, %v5220
        %v5473 = vpack.c.b16 %v5229, %v5225
        %v5474 = vpack.c.b16 %v5230, %v5226
        %v5475 = vpack.c.b16 %v5231, %v5227
        %v5476 = vpack.c.b16 %v5232, %v5228
        %v5477 = vpack.c.b16 %v5237, %v5233
        %v5478 = vpack.c.b16 %v5238, %v5234
        %v5479 = vpack.c.b16 %v5239, %v5235
        %v5480 = vpack.c.b16 %v5240, %v5236
        %v5481 = vpack.c.b16 %v5245, %v5241
        %v5482 = vpack.c.b16 %v5246, %v5242
        %v5483 = vpack.c.b16 %v5247, %v5243
        %v5484 = vpack.c.b16 %v5248, %v5244
        %v5485 = vpack.c.b16 %v5253, %v5249
        %v5486 = vpack.c.b16 %v5254, %v5250
        %v5487 = vpack.c.b16 %v5255, %v5251
        %v5488 = vpack.c.b16 %v5256, %v5252
        %v5489 = vpack.c.b16 %v5261, %v5257
        %v5490 = vpack.c.b16 %v5262, %v5258
        %v5491 = vpack.c.b16 %v5263, %v5259
        %v5492 = vpack.c.b16 %v5264, %v5260
        %v5493 = vpack.c.b16 %v5269, %v5265
        %v5494 = vpack.c.b16 %v5270, %v5266
        %v5495 = vpack.c.b16 %v5271, %v5267
        %v5496 = vpack.c.b16 %v5272, %v5268
        %v5497 = vpack.c.b16 %v5277, %v5273
        %v5498 = vpack.c.b16 %v5278, %v5274
        %v5499 = vpack.c.b16 %v5279, %v5275
        %v5500 = vpack.c.b16 %v5280, %v5276
        %v5501 = vpack.c.b16 %v5285, %v5281
        %v5502 = vpack.c.b16 %v5286, %v5282
        %v5503 = vpack.c.b16 %v5287, %v5283
        %v5504 = vpack.c.b16 %v5288, %v5284
        %v5505 = vpack.c.b16 %v5293, %v5289
        %v5506 = vpack.c.b16 %v5294, %v5290
        %v5507 = vpack.c.b16 %v5295, %v5291
        %v5508 = vpack.c.b16 %v5296, %v5292
        %v5509 = vpack.c.b16 %v5301, %v5297
        %v5510 = vpack.c.b16 %v5302, %v5298
        %v5511 = vpack.c.b16 %v5303, %v5299
        %v5512 = vpack.c.b16 %v5304, %v5300
        %v5513 = vpack.c.b16 %v5309, %v5305
        %v5514 = vpack.c.b16 %v5310, %v5306
        %v5515 = vpack.c.b16 %v5311, %v5307
        %v5516 = vpack.c.b16 %v5312, %v5308
        %v5517 = vpack.c.b16 %v5317, %v5313
        %v5518 = vpack.c.b16 %v5318, %v5314
        %v5519 = vpack.c.b16 %v5319, %v5315
        %v5520 = vpack.c.b16 %v5320, %v5316
        %v5521 = vpack.c.b16 %v5325, %v5321
        %v5522 = vpack.c.b16 %v5326, %v5322
        %v5523 = vpack.c.b16 %v5327, %v5323
        %v5524 = vpack.c.b16 %v5328, %v5324
        %v5525 = vpack.c.b16 %v5333, %v5329
        %v5526 = vpack.c.b16 %v5334, %v5330
        %v5527 = vpack.c.b16 %v5335, %v5331
        %v5528 = vpack.c.b16 %v5336, %v5332
        %v5529 = vpack.c.b16 %v5341, %v5337
        %v5530 = vpack.c.b16 %v5342, %v5338
        %v5531 = vpack.c.b16 %v5343, %v5339
        %v5532 = vpack.c.b16 %v5344, %v5340
        %v5533 = vpack.c.b16 %v5349, %v5345
        %v5534 = vpack.c.b16 %v5350, %v5346
        %v5535 = vpack.c.b16 %v5351, %v5347
        %v5536 = vpack.c.b16 %v5352, %v5348
        %v5537 = vpack.c.b16 %v5357, %v5353
        %v5538 = vpack.c.b16 %v5358, %v5354
        %v5539 = vpack.c.b16 %v5359, %v5355
        %v5540 = vpack.c.b16 %v5360, %v5356
        %v5541 = vpack.c.b16 %v5365, %v5361
        %v5542 = vpack.c.b16 %v5366, %v5362
        %v5543 = vpack.c.b16 %v5367, %v5363
        %v5544 = vpack.c.b16 %v5368, %v5364
        %v5545 = vpack.c.b16 %v5373, %v5369
        %v5546 = vpack.c.b16 %v5374, %v5370
        %v5547 = vpack.c.b16 %v5375, %v5371
        %v5548 = vpack.c.b16 %v5376, %v5372
        %v5549 = vpack.c.b16 %v5381, %v5377
        %v5550 = vpack.c.b16 %v5382, %v5378
        %v5551 = vpack.c.b16 %v5383, %v5379
        %v5552 = vpack.c.b16 %v5384, %v5380
        %v5553 = vpack.c.b16 %v5389, %v5385
        %v5554 = vpack.c.b16 %v5390, %v5386
        %v5555 = vpack.c.b16 %v5391, %v5387
        %v5556 = vpack.c.b16 %v5392, %v5388
        %v5557 = vpack.c.b16 %v5397, %v5393
        %v5558 = vpack.c.b16 %v5398, %v5394
        %v5559 = vpack.c.b16 %v5399, %v5395
        %v5560 = vpack.c.b16 %v5400, %v5396
        %v5561 = vpack.c.b16 %v5405, %v5401
        %v5562 = vpack.c.b16 %v5406, %v5402
        %v5563 = vpack.c.b16 %v5407, %v5403
        %v5564 = vpack.c.b16 %v5408, %v5404
        %v5565 = vpack.c.b16 %v5413, %v5409
        %v5566 = vpack.c.b16 %v5414, %v5410
        %v5567 = vpack.c.b16 %v5415, %v5411
        %v5568 = vpack.c.b16 %v5416, %v5412
        %v5569 = vpack.c.b16 %v5421, %v5417
        %v5570 = vpack.c.b16 %v5422, %v5418
        %v5571 = vpack.c.b16 %v5423, %v5419
        %v5572 = vpack.c.b16 %v5424, %v5420
        %v5573 = vpack.c.b16 %v5429, %v5425
        %v5574 = vpack.c.b16 %v5430, %v5426
        %v5575 = vpack.c.b16 %v5431, %v5427
        %v5576 = vpack.c.b16 %v5432, %v5428
        %v5577 = vpack.c.b16 %v5437, %v5433
        %v5578 = vpack.c.b16 %v5438, %v5434
        %v5579 = vpack.c.b16 %v5439, %v5435
        %v5580 = vpack.c.b16 %v5440, %v5436
        %v5581 = vpack.c.b16 %v5445, %v5441
        %v5582 = vpack.c.b16 %v5446, %v5442
        %v5583 = vpack.c.b16 %v5447, %v5443
        %v5584 = vpack.c.b16 %v5448, %v5444
        %v5585 = vpack.c.b16 %v5453, %v5449
        %v5586 = vpack.c.b16 %v5454, %v5450
        %v5587 = vpack.c.b16 %v5455, %v5451
        %v5588 = vpack.c.b16 %v5456, %v5452
        %v5589 = vpack.c.b16 %v5461, %v5457
        %v5590 = vpack.c.b16 %v5462, %v5458
        %v5591 = vpack.c.b16 %v5463, %v5459
        %v5592 = vpack.c.b16 %v5464, %v5460
        %5721 = vmatprep.subr.bf16.mxu0 %v5466
        %5722 = vmatpush1.bf16.msra.mxu0 %v5465
        %5723 = vmatprep.subr.bf16.mxu0 %v5470
        %5724 = vmatpush1.bf16.msra.mxu0 %v5469
        %5725 = vmatprep.subr.bf16.mxu0 %v5474
        %5726 = vmatpush1.bf16.msra.mxu0 %v5473
        %5727 = vmatprep.subr.bf16.mxu0 %v5478
        %5728 = vmatpush1.bf16.msra.mxu0 %v5477
        %5729 = vmatprep.subr.bf16.mxu0 %v5482
        %5730 = vmatpush1.bf16.msra.mxu0 %v5481
        %5731 = vmatprep.subr.bf16.mxu0 %v5486
        %5732 = vmatpush1.bf16.msra.mxu0 %v5485
        %5733 = vmatprep.subr.bf16.mxu0 %v5490
        %5734 = vmatpush1.bf16.msra.mxu0 %v5489
        %5735 = vmatprep.subr.bf16.mxu0 %v5494
        %5736 = vmatpush1.bf16.msra.mxu0 %v5493
        %5737 = vmatprep.subr.bf16.mxu0 %v5498
        %5738 = vmatpush1.bf16.msra.mxu0 %v5497
        %5739 = vmatprep.subr.bf16.mxu0 %v5502
        %5740 = vmatpush1.bf16.msra.mxu0 %v5501
        %5741 = vmatprep.subr.bf16.mxu0 %v5506
        %5742 = vmatpush1.bf16.msra.mxu0 %v5505
        %5743 = vmatprep.subr.bf16.mxu0 %v5510
        %5744 = vmatpush1.bf16.msra.mxu0 %v5509
        %5745 = vmatprep.subr.bf16.mxu0 %v5514
        %5746 = vmatpush1.bf16.msra.mxu0 %v5513
        %5747 = vmatprep.subr.bf16.mxu0 %v5518
        %5748 = vmatpush1.bf16.msra.mxu0 %v5517
        %5749 = vmatprep.subr.bf16.mxu0 %v5522
        %5750 = vmatpush1.bf16.msra.mxu0 %v5521
        %5751 = vmatprep.subr.bf16.mxu0 %v5526
        %5752 = vmatpush1.bf16.msra.mxu0 %v5525
        %5753 = vmatprep.mubr.bf16.mxu0 %v4997
        %5754 = vmatmul.mubr.bf16.gmra.mrb[0].mxu0 %v4996
        %v5755 = vpop.f32.mrb[0].mxu0
        %v5756 = vadd.f32 %v5064, %v5755
        %v5757 = vpop.f32.mrb[0].mxu0
        %v5758 = vadd.f32 %v5068, %v5757
        %v5759 = vpop.f32.mrb[0].mxu0
        %v5760 = vadd.f32 %v5064, %v5759
        %v5761 = vpop.f32.mrb[0].mxu0
        %v5762 = vadd.f32 %v5068, %v5761
        %5763 = vmatprep.mubr.bf16.mxu0 %v5005
        %5764 = vmatmul.mubr.bf16.gmra.mrb[0].mxu0 %v5004
        %v5765 = vpop.f32.mrb[0].mxu0
        %v5766 = vadd.f32 %v5064, %v5765
        %v5767 = vpop.f32.mrb[0].mxu0
        %v5768 = vadd.f32 %v5068, %v5767
        %v5769 = vpop.f32.mrb[0].mxu0
        %v5770 = vadd.f32 %v5064, %v5769
        %v5771 = vpop.f32.mrb[0].mxu0
        %v5772 = vadd.f32 %v5068, %v5771
        %5773 = vmatprep.mubr.bf16.mxu0 %v5013
        %5774 = vmatmul.mubr.bf16.gmra.mrb[0].mxu0 %v5012
        %v5775 = vpop.f32.mrb[0].mxu0
        %v5776 = vadd.f32 %v5064, %v5775
        %v5777 = vpop.f32.mrb[0].mxu0
        %v5778 = vadd.f32 %v5068, %v5777
        %v5779 = vpop.f32.mrb[0].mxu0
        %v5780 = vadd.f32 %v5064, %v5779
        %v5781 = vpop.f32.mrb[0].mxu0
        %v5782 = vadd.f32 %v5068, %v5781
        %5783 = vmatprep.mubr.bf16.mxu0 %v5021
        %5784 = vmatmul.mubr.bf16.gmra.mrb[0].mxu0 %v5020
        %v5785 = vpop.f32.mrb[0].mxu0
        %v5786 = vadd.f32 %v5064, %v5785
        %v5787 = vpop.f32.mrb[0].mxu0
        %v5788 = vadd.f32 %v5068, %v5787
        %v5789 = vpop.f32.mrb[0].mxu0
        %v5790 = vadd.f32 %v5064, %v5789
        %v5791 = vpop.f32.mrb[0].mxu0
        %v5792 = vadd.f32 %v5068, %v5791
        %5793 = vmatprep.mubr.bf16.mxu0 %v5029
        %5794 = vmatmul.mubr.bf16.gmra.mrb[0].mxu0 %v5028
        %v5795 = vpop.f32.mrb[0].mxu0
        %v5796 = vadd.f32 %v5064, %v5795
        %v5797 = vpop.f32.mrb[0].mxu0
        %v5798 = vadd.f32 %v5068, %v5797
        %v5799 = vpop.f32.mrb[0].mxu0
        %v5800 = vadd.f32 %v5064, %v5799
        %v5801 = vpop.f32.mrb[0].mxu0
        %v5802 = vadd.f32 %v5068, %v5801
        %5803 = vmatprep.mubr.bf16.mxu0 %v5037
        %5804 = vmatmul.mubr.bf16.gmra.mrb[0].mxu0 %v5036
        %v5805 = vpop.f32.mrb[0].mxu0
        %v5806 = vadd.f32 %v5064, %v5805
        %v5807 = vpop.f32.mrb[0].mxu0
        %v5808 = vadd.f32 %v5068, %v5807
        %v5809 = vpop.f32.mrb[0].mxu0
        %v5810 = vadd.f32 %v5064, %v5809
        %v5811 = vpop.f32.mrb[0].mxu0
        %v5812 = vadd.f32 %v5068, %v5811
        %5813 = vmatprep.mubr.bf16.mxu0 %v5045
        %5814 = vmatmul.mubr.bf16.gmra.mrb[0].mxu0 %v5044
        %v5815 = vpop.f32.mrb[0].mxu0
        %v5816 = vadd.f32 %v5064, %v5815
        %v5817 = vpop.f32.mrb[0].mxu0
        %v5818 = vadd.f32 %v5068, %v5817
        %v5819 = vpop.f32.mrb[0].mxu0
        %v5820 = vadd.f32 %v5064, %v5819
        %v5821 = vpop.f32.mrb[0].mxu0
        %v5822 = vadd.f32 %v5068, %v5821
        %5823 = vmatprep.mubr.bf16.mxu0 %v5053
        %5824 = vmatmul.mubr.bf16.gmra.mrb[0].mxu0 %v5052
        %v5825 = vpop.f32.mrb[0].mxu0
        %v5826 = vadd.f32 %v5064, %v5825
        %v5827 = vpop.f32.mrb[0].mxu0
        %v5828 = vadd.f32 %v5068, %v5827
        %v5829 = vpop.f32.mrb[0].mxu0
        %v5830 = vadd.f32 %v5064, %v5829
        %v5831 = vpop.f32.mrb[0].mxu0
        %v5832 = vadd.f32 %v5068, %v5831
        %5833 = vdwg.mxu0
        %5834 = vmatprep.subr.bf16.mxu0 %v5530
        %5835 = vmatpush1.bf16.msra.mxu0 %v5529
        %5836 = vmatprep.subr.bf16.mxu0 %v5534
        %5837 = vmatpush1.bf16.msra.mxu0 %v5533
        %5838 = vmatprep.subr.bf16.mxu0 %v5538
        %5839 = vmatpush1.bf16.msra.mxu0 %v5537
        %5840 = vmatprep.subr.bf16.mxu0 %v5542
        %5841 = vmatpush1.bf16.msra.mxu0 %v5541
        %5842 = vmatprep.subr.bf16.mxu0 %v5546
        %5843 = vmatpush1.bf16.msra.mxu0 %v5545
        %5844 = vmatprep.subr.bf16.mxu0 %v5550
        %5845 = vmatpush1.bf16.msra.mxu0 %v5549
        %5846 = vmatprep.subr.bf16.mxu0 %v5554
        %5847 = vmatpush1.bf16.msra.mxu0 %v5553
        %5848 = vmatprep.subr.bf16.mxu0 %v5558
        %5849 = vmatpush1.bf16.msra.mxu0 %v5557
        %5850 = vmatprep.subr.bf16.mxu0 %v5562
        %5851 = vmatpush1.bf16.msra.mxu0 %v5561
        %5852 = vmatprep.subr.bf16.mxu0 %v5566
        %5853 = vmatpush1.bf16.msra.mxu0 %v5565
        %5854 = vmatprep.subr.bf16.mxu0 %v5570
        %5855 = vmatpush1.bf16.msra.mxu0 %v5569
        %5856 = vmatprep.subr.bf16.mxu0 %v5574
        %5857 = vmatpush1.bf16.msra.mxu0 %v5573
        %5858 = vmatprep.subr.bf16.mxu0 %v5578
        %5859 = vmatpush1.bf16.msra.mxu0 %v5577
        %5860 = vmatprep.subr.bf16.mxu0 %v5582
        %5861 = vmatpush1.bf16.msra.mxu0 %v5581
        %5862 = vmatprep.subr.bf16.mxu0 %v5586
        %5863 = vmatpush1.bf16.msra.mxu0 %v5585
        %5864 = vmatprep.subr.bf16.mxu0 %v5590
        %5865 = vmatpush1.bf16.msra.mxu0 %v5589
        %5866 = vmatprep.mubr.bf16.mxu0 %v4999
        %5867 = vmatmul.mubr.bf16.gmra.mrb[0].mxu0 %v4998
        %v5868 = vpop.f32.mrb[0].mxu0
        %v5869 = vadd.f32 %v5756, %v5868
        %v5870 = vpop.f32.mrb[0].mxu0
        %v5871 = vadd.f32 %v5758, %v5870
        %v5872 = vpop.f32.mrb[0].mxu0
        %v5873 = vadd.f32 %v5760, %v5872
        %v5874 = vpop.f32.mrb[0].mxu0
        %v5875 = vadd.f32 %v5762, %v5874
        %5876 = vmatprep.mubr.bf16.mxu0 %v5007
        %5877 = vmatmul.mubr.bf16.gmra.mrb[0].mxu0 %v5006
        %v5878 = vpop.f32.mrb[0].mxu0
        %v5879 = vadd.f32 %v5766, %v5878
        %v5880 = vpop.f32.mrb[0].mxu0
        %v5881 = vadd.f32 %v5768, %v5880
        %v5882 = vpop.f32.mrb[0].mxu0
        %v5883 = vadd.f32 %v5770, %v5882
        %v5884 = vpop.f32.mrb[0].mxu0
        %v5885 = vadd.f32 %v5772, %v5884
        %5886 = vmatprep.mubr.bf16.mxu0 %v5015
        %5887 = vmatmul.mubr.bf16.gmra.mrb[0].mxu0 %v5014
        %v5888 = vpop.f32.mrb[0].mxu0
        %v5889 = vadd.f32 %v5776, %v5888
        %v5890 = vpop.f32.mrb[0].mxu0
        %v5891 = vadd.f32 %v5778, %v5890
        %v5892 = vpop.f32.mrb[0].mxu0
        %v5893 = vadd.f32 %v5780, %v5892
        %v5894 = vpop.f32.mrb[0].mxu0
        %v5895 = vadd.f32 %v5782, %v5894
        %5896 = vmatprep.mubr.bf16.mxu0 %v5023
        %5897 = vmatmul.mubr.bf16.gmra.mrb[0].mxu0 %v5022
        %v5898 = vpop.f32.mrb[0].mxu0
        %v5899 = vadd.f32 %v5786, %v5898
        %v5900 = vpop.f32.mrb[0].mxu0
        %v5901 = vadd.f32 %v5788, %v5900
        %v5902 = vpop.f32.mrb[0].mxu0
        %v5903 = vadd.f32 %v5790, %v5902
        %v5904 = vpop.f32.mrb[0].mxu0
        %v5905 = vadd.f32 %v5792, %v5904
        %5906 = vmatprep.mubr.bf16.mxu0 %v5031
        %5907 = vmatmul.mubr.bf16.gmra.mrb[0].mxu0 %v5030
        %v5908 = vpop.f32.mrb[0].mxu0
        %v5909 = vadd.f32 %v5796, %v5908
        %v5910 = vpop.f32.mrb[0].mxu0
        %v5911 = vadd.f32 %v5798, %v5910
        %v5912 = vpop.f32.mrb[0].mxu0
        %v5913 = vadd.f32 %v5800, %v5912
        %v5914 = vpop.f32.mrb[0].mxu0
        %v5915 = vadd.f32 %v5802, %v5914
        %5916 = vmatprep.mubr.bf16.mxu0 %v5039
        %5917 = vmatmul.mubr.bf16.gmra.mrb[0].mxu0 %v5038
        %v5918 = vpop.f32.mrb[0].mxu0
        %v5919 = vadd.f32 %v5806, %v5918
        %v5920 = vpop.f32.mrb[0].mxu0
        %v5921 = vadd.f32 %v5808, %v5920
        %v5922 = vpop.f32.mrb[0].mxu0
        %v5923 = vadd.f32 %v5810, %v5922
        %v5924 = vpop.f32.mrb[0].mxu0
        %v5925 = vadd.f32 %v5812, %v5924
        %5926 = vmatprep.mubr.bf16.mxu0 %v5047
        %5927 = vmatmul.mubr.bf16.gmra.mrb[0].mxu0 %v5046
        %v5928 = vpop.f32.mrb[0].mxu0
        %v5929 = vadd.f32 %v5816, %v5928
        %v5930 = vpop.f32.mrb[0].mxu0
        %v5931 = vadd.f32 %v5818, %v5930
        %v5932 = vpop.f32.mrb[0].mxu0
        %v5933 = vadd.f32 %v5820, %v5932
        %v5934 = vpop.f32.mrb[0].mxu0
        %v5935 = vadd.f32 %v5822, %v5934
        %5936 = vmatprep.mubr.bf16.mxu0 %v5055
        %5937 = vmatmul.mubr.bf16.gmra.mrb[0].mxu0 %v5054
        %v5938 = vpop.f32.mrb[0].mxu0
        %v5939 = vadd.f32 %v5826, %v5938
        %v5940 = vpop.f32.mrb[0].mxu0
        %v5941 = vadd.f32 %v5828, %v5940
        %v5942 = vpop.f32.mrb[0].mxu0
        %v5943 = vadd.f32 %v5830, %v5942
        %v5944 = vpop.f32.mrb[0].mxu0
        %v5945 = vadd.f32 %v5832, %v5944
        %5946 = vdwg.mxu0
        %5947 = vmatprep.subr.bf16.mxu0 %v5468
        %5948 = vmatpush1.bf16.msra.mxu0 %v5467
        %5949 = vmatprep.subr.bf16.mxu0 %v5472
        %5950 = vmatpush1.bf16.msra.mxu0 %v5471
        %5951 = vmatprep.subr.bf16.mxu0 %v5476
        %5952 = vmatpush1.bf16.msra.mxu0 %v5475
        %5953 = vmatprep.subr.bf16.mxu0 %v5480
        %5954 = vmatpush1.bf16.msra.mxu0 %v5479
        %5955 = vmatprep.subr.bf16.mxu0 %v5484
        %5956 = vmatpush1.bf16.msra.mxu0 %v5483
        %5957 = vmatprep.subr.bf16.mxu0 %v5488
        %5958 = vmatpush1.bf16.msra.mxu0 %v5487
        %5959 = vmatprep.subr.bf16.mxu0 %v5492
        %5960 = vmatpush1.bf16.msra.mxu0 %v5491
        %5961 = vmatprep.subr.bf16.mxu0 %v5496
        %5962 = vmatpush1.bf16.msra.mxu0 %v5495
        %5963 = vmatprep.subr.bf16.mxu0 %v5500
        %5964 = vmatpush1.bf16.msra.mxu0 %v5499
        %5965 = vmatprep.subr.bf16.mxu0 %v5504
        %5966 = vmatpush1.bf16.msra.mxu0 %v5503
        %5967 = vmatprep.subr.bf16.mxu0 %v5508
        %5968 = vmatpush1.bf16.msra.mxu0 %v5507
        %5969 = vmatprep.subr.bf16.mxu0 %v5512
        %5970 = vmatpush1.bf16.msra.mxu0 %v5511
        %5971 = vmatprep.subr.bf16.mxu0 %v5516
        %5972 = vmatpush1.bf16.msra.mxu0 %v5515
        %5973 = vmatprep.subr.bf16.mxu0 %v5520
        %5974 = vmatpush1.bf16.msra.mxu0 %v5519
        %5975 = vmatprep.subr.bf16.mxu0 %v5524
        %5976 = vmatpush1.bf16.msra.mxu0 %v5523
        %5977 = vmatprep.subr.bf16.mxu0 %v5528
        %5978 = vmatpush1.bf16.msra.mxu0 %v5527
        %5979 = vmatprep.mubr.bf16.mxu0 %v4997
        %5980 = vmatmul.mubr.bf16.gmra.mrb[0].mxu0 %v4996
        %v5981 = vpop.f32.mrb[0].mxu0
        %v5982 = vadd.f32 %v5072, %v5981
        %v5983 = vpop.f32.mrb[0].mxu0
        %v5984 = vadd.f32 %v5076, %v5983
        %v5985 = vpop.f32.mrb[0].mxu0
        %v5986 = vadd.f32 %v5072, %v5985
        %v5987 = vpop.f32.mrb[0].mxu0
        %v5988 = vadd.f32 %v5076, %v5987
        %5989 = vmatprep.mubr.bf16.mxu0 %v5005
        %5990 = vmatmul.mubr.bf16.gmra.mrb[0].mxu0 %v5004
        %v5991 = vpop.f32.mrb[0].mxu0
        %v5992 = vadd.f32 %v5072, %v5991
        %v5993 = vpop.f32.mrb[0].mxu0
        %v5994 = vadd.f32 %v5076, %v5993
        %v5995 = vpop.f32.mrb[0].mxu0
        %v5996 = vadd.f32 %v5072, %v5995
        %v5997 = vpop.f32.mrb[0].mxu0
        %v5998 = vadd.f32 %v5076, %v5997
        %5999 = vmatprep.mubr.bf16.mxu0 %v5013
        %6000 = vmatmul.mubr.bf16.gmra.mrb[0].mxu0 %v5012
        %v6001 = vpop.f32.mrb[0].mxu0
        %v6002 = vadd.f32 %v5072, %v6001
        %v6003 = vpop.f32.mrb[0].mxu0
        %v6004 = vadd.f32 %v5076, %v6003
        %v6005 = vpop.f32.mrb[0].mxu0
        %v6006 = vadd.f32 %v5072, %v6005
        %v6007 = vpop.f32.mrb[0].mxu0
        %v6008 = vadd.f32 %v5076, %v6007
        %6009 = vmatprep.mubr.bf16.mxu0 %v5021
        %6010 = vmatmul.mubr.bf16.gmra.mrb[0].mxu0 %v5020
        %v6011 = vpop.f32.mrb[0].mxu0
        %v6012 = vadd.f32 %v5072, %v6011
        %v6013 = vpop.f32.mrb[0].mxu0
        %v6014 = vadd.f32 %v5076, %v6013
        %v6015 = vpop.f32.mrb[0].mxu0
        %v6016 = vadd.f32 %v5072, %v6015
        %v6017 = vpop.f32.mrb[0].mxu0
        %v6018 = vadd.f32 %v5076, %v6017
        %6019 = vmatprep.mubr.bf16.mxu0 %v5029
        %6020 = vmatmul.mubr.bf16.gmra.mrb[0].mxu0 %v5028
        %v6021 = vpop.f32.mrb[0].mxu0
        %v6022 = vadd.f32 %v5072, %v6021
        %v6023 = vpop.f32.mrb[0].mxu0
        %v6024 = vadd.f32 %v5076, %v6023
        %v6025 = vpop.f32.mrb[0].mxu0
        %v6026 = vadd.f32 %v5072, %v6025
        %v6027 = vpop.f32.mrb[0].mxu0
        %v6028 = vadd.f32 %v5076, %v6027
        %6029 = vmatprep.mubr.bf16.mxu0 %v5037
        %6030 = vmatmul.mubr.bf16.gmra.mrb[0].mxu0 %v5036
        %v6031 = vpop.f32.mrb[0].mxu0
        %v6032 = vadd.f32 %v5072, %v6031
        %v6033 = vpop.f32.mrb[0].mxu0
        %v6034 = vadd.f32 %v5076, %v6033
        %v6035 = vpop.f32.mrb[0].mxu0
        %v6036 = vadd.f32 %v5072, %v6035
        %v6037 = vpop.f32.mrb[0].mxu0
        %v6038 = vadd.f32 %v5076, %v6037
        %6039 = vmatprep.mubr.bf16.mxu0 %v5045
        %6040 = vmatmul.mubr.bf16.gmra.mrb[0].mxu0 %v5044
        %v6041 = vpop.f32.mrb[0].mxu0
        %v6042 = vadd.f32 %v5072, %v6041
        %v6043 = vpop.f32.mrb[0].mxu0
        %v6044 = vadd.f32 %v5076, %v6043
        %v6045 = vpop.f32.mrb[0].mxu0
        %v6046 = vadd.f32 %v5072, %v6045
        %v6047 = vpop.f32.mrb[0].mxu0
        %v6048 = vadd.f32 %v5076, %v6047
        %6049 = vmatprep.mubr.bf16.mxu0 %v5053
        %6050 = vmatmul.mubr.bf16.gmra.mrb[0].mxu0 %v5052
        %v6051 = vpop.f32.mrb[0].mxu0
        %v6052 = vadd.f32 %v5072, %v6051
        %v6053 = vpop.f32.mrb[0].mxu0
        %v6054 = vadd.f32 %v5076, %v6053
        %v6055 = vpop.f32.mrb[0].mxu0
        %v6056 = vadd.f32 %v5072, %v6055
        %v6057 = vpop.f32.mrb[0].mxu0
        %v6058 = vadd.f32 %v5076, %v6057
        %6059 = vdwg.mxu0
        %6060 = vmatprep.subr.bf16.mxu0 %v5532
        %6061 = vmatpush1.bf16.msra.mxu0 %v5531
        %6062 = vmatprep.subr.bf16.mxu0 %v5536
        %6063 = vmatpush1.bf16.msra.mxu0 %v5535
        %6064 = vmatprep.subr.bf16.mxu0 %v5540
        %6065 = vmatpush1.bf16.msra.mxu0 %v5539
        %6066 = vmatprep.subr.bf16.mxu0 %v5544
        %6067 = vmatpush1.bf16.msra.mxu0 %v5543
        %6068 = vmatprep.subr.bf16.mxu0 %v5548
        %6069 = vmatpush1.bf16.msra.mxu0 %v5547
        %6070 = vmatprep.subr.bf16.mxu0 %v5552
        %6071 = vmatpush1.bf16.msra.mxu0 %v5551
        %6072 = vmatprep.subr.bf16.mxu0 %v5556
        %6073 = vmatpush1.bf16.msra.mxu0 %v5555
        %6074 = vmatprep.subr.bf16.mxu0 %v5560
        %6075 = vmatpush1.bf16.msra.mxu0 %v5559
        %6076 = vmatprep.subr.bf16.mxu0 %v5564
        %6077 = vmatpush1.bf16.msra.mxu0 %v5563
        %6078 = vmatprep.subr.bf16.mxu0 %v5568
        %6079 = vmatpush1.bf16.msra.mxu0 %v5567
        %6080 = vmatprep.subr.bf16.mxu0 %v5572
        %6081 = vmatpush1.bf16.msra.mxu0 %v5571
        %6082 = vmatprep.subr.bf16.mxu0 %v5576
        %6083 = vmatpush1.bf16.msra.mxu0 %v5575
        %6084 = vmatprep.subr.bf16.mxu0 %v5580
        %6085 = vmatpush1.bf16.msra.mxu0 %v5579
        %6086 = vmatprep.subr.bf16.mxu0 %v5584
        %6087 = vmatpush1.bf16.msra.mxu0 %v5583
        %6088 = vmatprep.subr.bf16.mxu0 %v5588
        %6089 = vmatpush1.bf16.msra.mxu0 %v5587
        %6090 = vmatprep.subr.bf16.mxu0 %v5592
        %6091 = vmatpush1.bf16.msra.mxu0 %v5591
        %6092 = vmatprep.mubr.bf16.mxu0 %v4999
        %6093 = vmatmul.mubr.bf16.gmra.mrb[0].mxu0 %v4998
        %v6094 = vpop.f32.mrb[0].mxu0
        %v6095 = vadd.f32 %v5982, %v6094
        %v6096 = vpop.f32.mrb[0].mxu0
        %v6097 = vadd.f32 %v5984, %v6096
        %v6098 = vpop.f32.mrb[0].mxu0
        %v6099 = vadd.f32 %v5986, %v6098
        %v6100 = vpop.f32.mrb[0].mxu0
        %v6101 = vadd.f32 %v5988, %v6100
        %6102 = vmatprep.mubr.bf16.mxu0 %v5007
        %6103 = vmatmul.mubr.bf16.gmra.mrb[0].mxu0 %v5006
        %v6104 = vpop.f32.mrb[0].mxu0
        %v6105 = vadd.f32 %v5992, %v6104
        %v6106 = vpop.f32.mrb[0].mxu0
        %v6107 = vadd.f32 %v5994, %v6106
        %v6108 = vpop.f32.mrb[0].mxu0
        %v6109 = vadd.f32 %v5996, %v6108
        %v6110 = vpop.f32.mrb[0].mxu0
        %v6111 = vadd.f32 %v5998, %v6110
        %6112 = vmatprep.mubr.bf16.mxu0 %v5015
        %6113 = vmatmul.mubr.bf16.gmra.mrb[0].mxu0 %v5014
        %v6114 = vpop.f32.mrb[0].mxu0
        %v6115 = vadd.f32 %v6002, %v6114
        %v6116 = vpop.f32.mrb[0].mxu0
        %v6117 = vadd.f32 %v6004, %v6116
        %v6118 = vpop.f32.mrb[0].mxu0
        %v6119 = vadd.f32 %v6006, %v6118
        %v6120 = vpop.f32.mrb[0].mxu0
        %v6121 = vadd.f32 %v6008, %v6120
        %6122 = vmatprep.mubr.bf16.mxu0 %v5023
        %6123 = vmatmul.mubr.bf16.gmra.mrb[0].mxu0 %v5022
        %v6124 = vpop.f32.mrb[0].mxu0
        %v6125 = vadd.f32 %v6012, %v6124
        %v6126 = vpop.f32.mrb[0].mxu0
        %v6127 = vadd.f32 %v6014, %v6126
        %v6128 = vpop.f32.mrb[0].mxu0
        %v6129 = vadd.f32 %v6016, %v6128
        %v6130 = vpop.f32.mrb[0].mxu0
        %v6131 = vadd.f32 %v6018, %v6130
        %6132 = vmatprep.mubr.bf16.mxu0 %v5031
        %6133 = vmatmul.mubr.bf16.gmra.mrb[0].mxu0 %v5030
        %v6134 = vpop.f32.mrb[0].mxu0
        %v6135 = vadd.f32 %v6022, %v6134
        %v6136 = vpop.f32.mrb[0].mxu0
        %v6137 = vadd.f32 %v6024, %v6136
        %v6138 = vpop.f32.mrb[0].mxu0
        %v6139 = vadd.f32 %v6026, %v6138
        %v6140 = vpop.f32.mrb[0].mxu0
        %v6141 = vadd.f32 %v6028, %v6140
        %6142 = vmatprep.mubr.bf16.mxu0 %v5039
        %6143 = vmatmul.mubr.bf16.gmra.mrb[0].mxu0 %v5038
        %v6144 = vpop.f32.mrb[0].mxu0
        %v6145 = vadd.f32 %v6032, %v6144
        %v6146 = vpop.f32.mrb[0].mxu0
        %v6147 = vadd.f32 %v6034, %v6146
        %v6148 = vpop.f32.mrb[0].mxu0
        %v6149 = vadd.f32 %v6036, %v6148
        %v6150 = vpop.f32.mrb[0].mxu0
        %v6151 = vadd.f32 %v6038, %v6150
        %6152 = vmatprep.mubr.bf16.mxu0 %v5047
        %6153 = vmatmul.mubr.bf16.gmra.mrb[0].mxu0 %v5046
        %v6154 = vpop.f32.mrb[0].mxu0
        %v6155 = vadd.f32 %v6042, %v6154
        %v6156 = vpop.f32.mrb[0].mxu0
        %v6157 = vadd.f32 %v6044, %v6156
        %v6158 = vpop.f32.mrb[0].mxu0
        %v6159 = vadd.f32 %v6046, %v6158
        %v6160 = vpop.f32.mrb[0].mxu0
        %v6161 = vadd.f32 %v6048, %v6160
        %6162 = vmatprep.mubr.bf16.mxu0 %v5055
        %6163 = vmatmul.mubr.bf16.gmra.mrb[0].mxu0 %v5054
        %v6164 = vpop.f32.mrb[0].mxu0
        %v6165 = vadd.f32 %v6052, %v6164
        %v6166 = vpop.f32.mrb[0].mxu0
        %v6167 = vadd.f32 %v6054, %v6166
        %v6168 = vpop.f32.mrb[0].mxu0
        %v6169 = vadd.f32 %v6056, %v6168
        %v6170 = vpop.f32.mrb[0].mxu0
        %v6171 = vadd.f32 %v6058, %v6170
        %6172 = vdwg.mxu0
        %v6174 = vlaneseq
        %v6175 = vshrl.u32 %v6174, 7
        %v6176 = vsub.s32 0, %v6175
        %v6177 = vrot.slane %v1179, %v6176
        %v6178 = vlaneseq
        %v6179 = vshrl.u32 %v6178, 7
        %v6180 = vsub.s32 1, %v6179
        %v6181 = vrot.slane %v1179, %v6180
        %v6182 = vlaneseq
        %v6183 = vshrl.u32 %v6182, 7
        %v6184 = vsub.s32 2, %v6183
        %v6185 = vrot.slane %v1179, %v6184
        %v6186 = vlaneseq
        %v6187 = vshrl.u32 %v6186, 7
        %v6188 = vsub.s32 3, %v6187
        %v6189 = vrot.slane %v1179, %v6188
        %v6322 = vunpack.c.l.b16 %v1051
        %v6323 = vunpack.c.h.b16 %v1051
        %v6324 = vunpack.c.l.b16 %v1052
        %v6325 = vunpack.c.h.b16 %v1052
        %v6326 = vunpack.c.l.b16 %v1053
        %v6327 = vunpack.c.h.b16 %v1053
        %v6328 = vunpack.c.l.b16 %v1054
        %v6329 = vunpack.c.h.b16 %v1054
        %v6330 = vunpack.c.l.b16 %v1055
        %v6331 = vunpack.c.h.b16 %v1055
        %v6332 = vunpack.c.l.b16 %v1056
        %v6333 = vunpack.c.h.b16 %v1056
        %v6334 = vunpack.c.l.b16 %v1057
        %v6335 = vunpack.c.h.b16 %v1057
        %v6336 = vunpack.c.l.b16 %v1058
        %v6337 = vunpack.c.h.b16 %v1058
        %v6338 = vunpack.c.l.b16 %v1059
        %v6339 = vunpack.c.h.b16 %v1059
        %v6340 = vunpack.c.l.b16 %v1060
        %v6341 = vunpack.c.h.b16 %v1060
        %v6342 = vunpack.c.l.b16 %v1061
        %v6343 = vunpack.c.h.b16 %v1061
        %v6344 = vunpack.c.l.b16 %v1062
        %v6345 = vunpack.c.h.b16 %v1062
        %v6346 = vunpack.c.l.b16 %v1063
        %v6347 = vunpack.c.h.b16 %v1063
        %v6348 = vunpack.c.l.b16 %v1064
        %v6349 = vunpack.c.h.b16 %v1064
        %v6350 = vunpack.c.l.b16 %v1065
        %v6351 = vunpack.c.h.b16 %v1065
        %v6352 = vunpack.c.l.b16 %v1066
        %v6353 = vunpack.c.h.b16 %v1066
        %v6354 = vunpack.c.l.b16 %v1067
        %v6355 = vunpack.c.h.b16 %v1067
        %v6356 = vunpack.c.l.b16 %v1068
        %v6357 = vunpack.c.h.b16 %v1068
        %v6358 = vunpack.c.l.b16 %v1069
        %v6359 = vunpack.c.h.b16 %v1069
        %v6360 = vunpack.c.l.b16 %v1070
        %v6361 = vunpack.c.h.b16 %v1070
        %v6362 = vunpack.c.l.b16 %v1071
        %v6363 = vunpack.c.h.b16 %v1071
        %v6364 = vunpack.c.l.b16 %v1072
        %v6365 = vunpack.c.h.b16 %v1072
        %v6366 = vunpack.c.l.b16 %v1073
        %v6367 = vunpack.c.h.b16 %v1073
        %v6368 = vunpack.c.l.b16 %v1074
        %v6369 = vunpack.c.h.b16 %v1074
        %v6370 = vunpack.c.l.b16 %v1075
        %v6371 = vunpack.c.h.b16 %v1075
        %v6372 = vunpack.c.l.b16 %v1076
        %v6373 = vunpack.c.h.b16 %v1076
        %v6374 = vunpack.c.l.b16 %v1077
        %v6375 = vunpack.c.h.b16 %v1077
        %v6376 = vunpack.c.l.b16 %v1078
        %v6377 = vunpack.c.h.b16 %v1078
        %v6378 = vunpack.c.l.b16 %v1079
        %v6379 = vunpack.c.h.b16 %v1079
        %v6380 = vunpack.c.l.b16 %v1080
        %v6381 = vunpack.c.h.b16 %v1080
        %v6382 = vunpack.c.l.b16 %v1081
        %v6383 = vunpack.c.h.b16 %v1081
        %v6384 = vunpack.c.l.b16 %v1082
        %v6385 = vunpack.c.h.b16 %v1082
        %v6386 = vunpack.c.l.b16 %v1083
        %v6387 = vunpack.c.h.b16 %v1083
        %v6388 = vunpack.c.l.b16 %v1084
        %v6389 = vunpack.c.h.b16 %v1084
        %v6390 = vunpack.c.l.b16 %v1085
        %v6391 = vunpack.c.h.b16 %v1085
        %v6392 = vunpack.c.l.b16 %v1086
        %v6393 = vunpack.c.h.b16 %v1086
        %v6394 = vunpack.c.l.b16 %v1087
        %v6395 = vunpack.c.h.b16 %v1087
        %v6396 = vunpack.c.l.b16 %v1088
        %v6397 = vunpack.c.h.b16 %v1088
        %v6398 = vunpack.c.l.b16 %v1089
        %v6399 = vunpack.c.h.b16 %v1089
        %v6400 = vunpack.c.l.b16 %v1090
        %v6401 = vunpack.c.h.b16 %v1090
        %v6402 = vunpack.c.l.b16 %v1091
        %v6403 = vunpack.c.h.b16 %v1091
        %v6404 = vunpack.c.l.b16 %v1092
        %v6405 = vunpack.c.h.b16 %v1092
        %v6406 = vunpack.c.l.b16 %v1093
        %v6407 = vunpack.c.h.b16 %v1093
        %v6408 = vunpack.c.l.b16 %v1094
        %v6409 = vunpack.c.h.b16 %v1094
        %v6410 = vunpack.c.l.b16 %v1095
        %v6411 = vunpack.c.h.b16 %v1095
        %v6412 = vunpack.c.l.b16 %v1096
        %v6413 = vunpack.c.h.b16 %v1096
        %v6414 = vunpack.c.l.b16 %v1097
        %v6415 = vunpack.c.h.b16 %v1097
        %v6416 = vunpack.c.l.b16 %v1098
        %v6417 = vunpack.c.h.b16 %v1098
        %v6418 = vunpack.c.l.b16 %v1099
        %v6419 = vunpack.c.h.b16 %v1099
        %v6420 = vunpack.c.l.b16 %v1100
        %v6421 = vunpack.c.h.b16 %v1100
        %v6422 = vunpack.c.l.b16 %v1101
        %v6423 = vunpack.c.h.b16 %v1101
        %v6424 = vunpack.c.l.b16 %v1102
        %v6425 = vunpack.c.h.b16 %v1102
        %v6426 = vunpack.c.l.b16 %v1103
        %v6427 = vunpack.c.h.b16 %v1103
        %v6428 = vunpack.c.l.b16 %v1104
        %v6429 = vunpack.c.h.b16 %v1104
        %v6430 = vunpack.c.l.b16 %v1105
        %v6431 = vunpack.c.h.b16 %v1105
        %v6432 = vunpack.c.l.b16 %v1106
        %v6433 = vunpack.c.h.b16 %v1106
        %v6434 = vunpack.c.l.b16 %v1107
        %v6435 = vunpack.c.h.b16 %v1107
        %v6436 = vunpack.c.l.b16 %v1108
        %v6437 = vunpack.c.h.b16 %v1108
        %v6438 = vunpack.c.l.b16 %v1109
        %v6439 = vunpack.c.h.b16 %v1109
        %v6440 = vunpack.c.l.b16 %v1110
        %v6441 = vunpack.c.h.b16 %v1110
        %v6442 = vunpack.c.l.b16 %v1111
        %v6443 = vunpack.c.h.b16 %v1111
        %v6444 = vunpack.c.l.b16 %v1112
        %v6445 = vunpack.c.h.b16 %v1112
        %v6446 = vunpack.c.l.b16 %v1113
        %v6447 = vunpack.c.h.b16 %v1113
        %v6448 = vunpack.c.l.b16 %v1114
        %v6449 = vunpack.c.h.b16 %v1114
        %v6450 = vunpack.c.l.b16 %v1115
        %v6451 = vunpack.c.h.b16 %v1115
        %v6452 = vunpack.c.l.b16 %v1116
        %v6453 = vunpack.c.h.b16 %v1116
        %v6454 = vunpack.c.l.b16 %v1117
        %v6455 = vunpack.c.h.b16 %v1117
        %v6456 = vunpack.c.l.b16 %v1118
        %v6457 = vunpack.c.h.b16 %v1118
        %v6458 = vunpack.c.l.b16 %v1119
        %v6459 = vunpack.c.h.b16 %v1119
        %v6460 = vunpack.c.l.b16 %v1120
        %v6461 = vunpack.c.h.b16 %v1120
        %v6462 = vunpack.c.l.b16 %v1121
        %v6463 = vunpack.c.h.b16 %v1121
        %v6464 = vunpack.c.l.b16 %v1122
        %v6465 = vunpack.c.h.b16 %v1122
        %v6466 = vunpack.c.l.b16 %v1123
        %v6467 = vunpack.c.h.b16 %v1123
        %v6468 = vunpack.c.l.b16 %v1124
        %v6469 = vunpack.c.h.b16 %v1124
        %v6470 = vunpack.c.l.b16 %v1125
        %v6471 = vunpack.c.h.b16 %v1125
        %v6472 = vunpack.c.l.b16 %v1126
        %v6473 = vunpack.c.h.b16 %v1126
        %v6474 = vunpack.c.l.b16 %v1127
        %v6475 = vunpack.c.h.b16 %v1127
        %v6476 = vunpack.c.l.b16 %v1128
        %v6477 = vunpack.c.h.b16 %v1128
        %v6478 = vunpack.c.l.b16 %v1129
        %v6479 = vunpack.c.h.b16 %v1129
        %v6480 = vunpack.c.l.b16 %v1130
        %v6481 = vunpack.c.h.b16 %v1130
        %v6482 = vunpack.c.l.b16 %v1131
        %v6483 = vunpack.c.h.b16 %v1131
        %v6484 = vunpack.c.l.b16 %v1132
        %v6485 = vunpack.c.h.b16 %v1132
        %v6486 = vunpack.c.l.b16 %v1133
        %v6487 = vunpack.c.h.b16 %v1133
        %v6488 = vunpack.c.l.b16 %v1134
        %v6489 = vunpack.c.h.b16 %v1134
        %v6490 = vunpack.c.l.b16 %v1135
        %v6491 = vunpack.c.h.b16 %v1135
        %v6492 = vunpack.c.l.b16 %v1136
        %v6493 = vunpack.c.h.b16 %v1136
        %v6494 = vunpack.c.l.b16 %v1137
        %v6495 = vunpack.c.h.b16 %v1137
        %v6496 = vunpack.c.l.b16 %v1138
        %v6497 = vunpack.c.h.b16 %v1138
        %v6498 = vunpack.c.l.b16 %v1139
        %v6499 = vunpack.c.h.b16 %v1139
        %v6500 = vunpack.c.l.b16 %v1140
        %v6501 = vunpack.c.h.b16 %v1140
        %v6502 = vunpack.c.l.b16 %v1141
        %v6503 = vunpack.c.h.b16 %v1141
        %v6504 = vunpack.c.l.b16 %v1142
        %v6505 = vunpack.c.h.b16 %v1142
        %v6506 = vunpack.c.l.b16 %v1143
        %v6507 = vunpack.c.h.b16 %v1143
        %v6508 = vunpack.c.l.b16 %v1144
        %v6509 = vunpack.c.h.b16 %v1144
        %v6510 = vunpack.c.l.b16 %v1145
        %v6511 = vunpack.c.h.b16 %v1145
        %v6512 = vunpack.c.l.b16 %v1146
        %v6513 = vunpack.c.h.b16 %v1146
        %v6514 = vunpack.c.l.b16 %v1147
        %v6515 = vunpack.c.h.b16 %v1147
        %v6516 = vunpack.c.l.b16 %v1148
        %v6517 = vunpack.c.h.b16 %v1148
        %v6518 = vunpack.c.l.b16 %v1149
        %v6519 = vunpack.c.h.b16 %v1149
        %v6520 = vunpack.c.l.b16 %v1150
        %v6521 = vunpack.c.h.b16 %v1150
        %v6522 = vunpack.c.l.b16 %v1151
        %v6523 = vunpack.c.h.b16 %v1151
        %v6524 = vunpack.c.l.b16 %v1152
        %v6525 = vunpack.c.h.b16 %v1152
        %v6526 = vunpack.c.l.b16 %v1153
        %v6527 = vunpack.c.h.b16 %v1153
        %v6528 = vunpack.c.l.b16 %v1154
        %v6529 = vunpack.c.h.b16 %v1154
        %v6530 = vunpack.c.l.b16 %v1155
        %v6531 = vunpack.c.h.b16 %v1155
        %v6532 = vunpack.c.l.b16 %v1156
        %v6533 = vunpack.c.h.b16 %v1156
        %v6534 = vunpack.c.l.b16 %v1157
        %v6535 = vunpack.c.h.b16 %v1157
        %v6536 = vunpack.c.l.b16 %v1158
        %v6537 = vunpack.c.h.b16 %v1158
        %v6538 = vunpack.c.l.b16 %v1159
        %v6539 = vunpack.c.h.b16 %v1159
        %v6540 = vunpack.c.l.b16 %v1160
        %v6541 = vunpack.c.h.b16 %v1160
        %v6542 = vunpack.c.l.b16 %v1161
        %v6543 = vunpack.c.h.b16 %v1161
        %v6544 = vunpack.c.l.b16 %v1162
        %v6545 = vunpack.c.h.b16 %v1162
        %v6546 = vunpack.c.l.b16 %v1163
        %v6547 = vunpack.c.h.b16 %v1163
        %v6548 = vunpack.c.l.b16 %v1164
        %v6549 = vunpack.c.h.b16 %v1164
        %v6550 = vunpack.c.l.b16 %v1165
        %v6551 = vunpack.c.h.b16 %v1165
        %v6552 = vunpack.c.l.b16 %v1166
        %v6553 = vunpack.c.h.b16 %v1166
        %v6554 = vunpack.c.l.b16 %v1167
        %v6555 = vunpack.c.h.b16 %v1167
        %v6556 = vunpack.c.l.b16 %v1168
        %v6557 = vunpack.c.h.b16 %v1168
        %v6558 = vunpack.c.l.b16 %v1169
        %v6559 = vunpack.c.h.b16 %v1169
        %v6560 = vunpack.c.l.b16 %v1170
        %v6561 = vunpack.c.h.b16 %v1170
        %v6562 = vunpack.c.l.b16 %v1171
        %v6563 = vunpack.c.h.b16 %v1171
        %v6564 = vunpack.c.l.b16 %v1172
        %v6565 = vunpack.c.h.b16 %v1172
        %v6566 = vunpack.c.l.b16 %v1173
        %v6567 = vunpack.c.h.b16 %v1173
        %v6568 = vunpack.c.l.b16 %v1174
        %v6569 = vunpack.c.h.b16 %v1174
        %v6570 = vunpack.c.l.b16 %v1175
        %v6571 = vunpack.c.h.b16 %v1175
        %v6572 = vunpack.c.l.b16 %v1176
        %v6573 = vunpack.c.h.b16 %v1176
        %v6574 = vunpack.c.l.b16 %v1177
        %v6575 = vunpack.c.h.b16 %v1177
        %v6576 = vunpack.c.l.b16 %v1178
        %v6577 = vunpack.c.h.b16 %v1178
        %v6578 = vpack.c.b16 %v6326, %v6322
        %v6579 = vpack.c.b16 %v6327, %v6323
        %v6580 = vpack.c.b16 %v6328, %v6324
        %v6581 = vpack.c.b16 %v6329, %v6325
        %v6582 = vpack.c.b16 %v6334, %v6330
        %v6583 = vpack.c.b16 %v6335, %v6331
        %v6584 = vpack.c.b16 %v6336, %v6332
        %v6585 = vpack.c.b16 %v6337, %v6333
        %v6586 = vpack.c.b16 %v6342, %v6338
        %v6587 = vpack.c.b16 %v6343, %v6339
        %v6588 = vpack.c.b16 %v6344, %v6340
        %v6589 = vpack.c.b16 %v6345, %v6341
        %v6590 = vpack.c.b16 %v6350, %v6346
        %v6591 = vpack.c.b16 %v6351, %v6347
        %v6592 = vpack.c.b16 %v6352, %v6348
        %v6593 = vpack.c.b16 %v6353, %v6349
        %v6594 = vpack.c.b16 %v6358, %v6354
        %v6595 = vpack.c.b16 %v6359, %v6355
        %v6596 = vpack.c.b16 %v6360, %v6356
        %v6597 = vpack.c.b16 %v6361, %v6357
        %v6598 = vpack.c.b16 %v6366, %v6362
        %v6599 = vpack.c.b16 %v6367, %v6363
        %v6600 = vpack.c.b16 %v6368, %v6364
        %v6601 = vpack.c.b16 %v6369, %v6365
        %v6602 = vpack.c.b16 %v6374, %v6370
        %v6603 = vpack.c.b16 %v6375, %v6371
        %v6604 = vpack.c.b16 %v6376, %v6372
        %v6605 = vpack.c.b16 %v6377, %v6373
        %v6606 = vpack.c.b16 %v6382, %v6378
        %v6607 = vpack.c.b16 %v6383, %v6379
        %v6608 = vpack.c.b16 %v6384, %v6380
        %v6609 = vpack.c.b16 %v6385, %v6381
        %v6610 = vpack.c.b16 %v6390, %v6386
        %v6611 = vpack.c.b16 %v6391, %v6387
        %v6612 = vpack.c.b16 %v6392, %v6388
        %v6613 = vpack.c.b16 %v6393, %v6389
        %v6614 = vpack.c.b16 %v6398, %v6394
        %v6615 = vpack.c.b16 %v6399, %v6395
        %v6616 = vpack.c.b16 %v6400, %v6396
        %v6617 = vpack.c.b16 %v6401, %v6397
        %v6618 = vpack.c.b16 %v6406, %v6402
        %v6619 = vpack.c.b16 %v6407, %v6403
        %v6620 = vpack.c.b16 %v6408, %v6404
        %v6621 = vpack.c.b16 %v6409, %v6405
        %v6622 = vpack.c.b16 %v6414, %v6410
        %v6623 = vpack.c.b16 %v6415, %v6411
        %v6624 = vpack.c.b16 %v6416, %v6412
        %v6625 = vpack.c.b16 %v6417, %v6413
        %v6626 = vpack.c.b16 %v6422, %v6418
        %v6627 = vpack.c.b16 %v6423, %v6419
        %v6628 = vpack.c.b16 %v6424, %v6420
        %v6629 = vpack.c.b16 %v6425, %v6421
        %v6630 = vpack.c.b16 %v6430, %v6426
        %v6631 = vpack.c.b16 %v6431, %v6427
        %v6632 = vpack.c.b16 %v6432, %v6428
        %v6633 = vpack.c.b16 %v6433, %v6429
        %v6634 = vpack.c.b16 %v6438, %v6434
        %v6635 = vpack.c.b16 %v6439, %v6435
        %v6636 = vpack.c.b16 %v6440, %v6436
        %v6637 = vpack.c.b16 %v6441, %v6437
        %v6638 = vpack.c.b16 %v6446, %v6442
        %v6639 = vpack.c.b16 %v6447, %v6443
        %v6640 = vpack.c.b16 %v6448, %v6444
        %v6641 = vpack.c.b16 %v6449, %v6445
        %v6642 = vpack.c.b16 %v6454, %v6450
        %v6643 = vpack.c.b16 %v6455, %v6451
        %v6644 = vpack.c.b16 %v6456, %v6452
        %v6645 = vpack.c.b16 %v6457, %v6453
        %v6646 = vpack.c.b16 %v6462, %v6458
        %v6647 = vpack.c.b16 %v6463, %v6459
        %v6648 = vpack.c.b16 %v6464, %v6460
        %v6649 = vpack.c.b16 %v6465, %v6461
        %v6650 = vpack.c.b16 %v6470, %v6466
        %v6651 = vpack.c.b16 %v6471, %v6467
        %v6652 = vpack.c.b16 %v6472, %v6468
        %v6653 = vpack.c.b16 %v6473, %v6469
        %v6654 = vpack.c.b16 %v6478, %v6474
        %v6655 = vpack.c.b16 %v6479, %v6475
        %v6656 = vpack.c.b16 %v6480, %v6476
        %v6657 = vpack.c.b16 %v6481, %v6477
        %v6658 = vpack.c.b16 %v6486, %v6482
        %v6659 = vpack.c.b16 %v6487, %v6483
        %v6660 = vpack.c.b16 %v6488, %v6484
        %v6661 = vpack.c.b16 %v6489, %v6485
        %v6662 = vpack.c.b16 %v6494, %v6490
        %v6663 = vpack.c.b16 %v6495, %v6491
        %v6664 = vpack.c.b16 %v6496, %v6492
        %v6665 = vpack.c.b16 %v6497, %v6493
        %v6666 = vpack.c.b16 %v6502, %v6498
        %v6667 = vpack.c.b16 %v6503, %v6499
        %v6668 = vpack.c.b16 %v6504, %v6500
        %v6669 = vpack.c.b16 %v6505, %v6501
        %v6670 = vpack.c.b16 %v6510, %v6506
        %v6671 = vpack.c.b16 %v6511, %v6507
        %v6672 = vpack.c.b16 %v6512, %v6508
        %v6673 = vpack.c.b16 %v6513, %v6509
        %v6674 = vpack.c.b16 %v6518, %v6514
        %v6675 = vpack.c.b16 %v6519, %v6515
        %v6676 = vpack.c.b16 %v6520, %v6516
        %v6677 = vpack.c.b16 %v6521, %v6517
        %v6678 = vpack.c.b16 %v6526, %v6522
        %v6679 = vpack.c.b16 %v6527, %v6523
        %v6680 = vpack.c.b16 %v6528, %v6524
        %v6681 = vpack.c.b16 %v6529, %v6525
        %v6682 = vpack.c.b16 %v6534, %v6530
        %v6683 = vpack.c.b16 %v6535, %v6531
        %v6684 = vpack.c.b16 %v6536, %v6532
        %v6685 = vpack.c.b16 %v6537, %v6533
        %v6686 = vpack.c.b16 %v6542, %v6538
        %v6687 = vpack.c.b16 %v6543, %v6539
        %v6688 = vpack.c.b16 %v6544, %v6540
        %v6689 = vpack.c.b16 %v6545, %v6541
        %v6690 = vpack.c.b16 %v6550, %v6546
        %v6691 = vpack.c.b16 %v6551, %v6547
        %v6692 = vpack.c.b16 %v6552, %v6548
        %v6693 = vpack.c.b16 %v6553, %v6549
        %v6694 = vpack.c.b16 %v6558, %v6554
        %v6695 = vpack.c.b16 %v6559, %v6555
        %v6696 = vpack.c.b16 %v6560, %v6556
        %v6697 = vpack.c.b16 %v6561, %v6557
        %v6698 = vpack.c.b16 %v6566, %v6562
        %v6699 = vpack.c.b16 %v6567, %v6563
        %v6700 = vpack.c.b16 %v6568, %v6564
        %v6701 = vpack.c.b16 %v6569, %v6565
        %v6702 = vpack.c.b16 %v6574, %v6570
        %v6703 = vpack.c.b16 %v6575, %v6571
        %v6704 = vpack.c.b16 %v6576, %v6572
        %v6705 = vpack.c.b16 %v6577, %v6573
        %6834 = vmatprep.subr.bf16.mxu0 %v6579
        %6835 = vmatpush1.bf16.msra.mxu0 %v6578
        %6836 = vmatprep.subr.bf16.mxu0 %v6583
        %6837 = vmatpush1.bf16.msra.mxu0 %v6582
        %6838 = vmatprep.subr.bf16.mxu0 %v6587
        %6839 = vmatpush1.bf16.msra.mxu0 %v6586
        %6840 = vmatprep.subr.bf16.mxu0 %v6591
        %6841 = vmatpush1.bf16.msra.mxu0 %v6590
        %6842 = vmatprep.subr.bf16.mxu0 %v6595
        %6843 = vmatpush1.bf16.msra.mxu0 %v6594
        %6844 = vmatprep.subr.bf16.mxu0 %v6599
        %6845 = vmatpush1.bf16.msra.mxu0 %v6598
        %6846 = vmatprep.subr.bf16.mxu0 %v6603
        %6847 = vmatpush1.bf16.msra.mxu0 %v6602
        %6848 = vmatprep.subr.bf16.mxu0 %v6607
        %6849 = vmatpush1.bf16.msra.mxu0 %v6606
        %6850 = vmatprep.subr.bf16.mxu0 %v6611
        %6851 = vmatpush1.bf16.msra.mxu0 %v6610
        %6852 = vmatprep.subr.bf16.mxu0 %v6615
        %6853 = vmatpush1.bf16.msra.mxu0 %v6614
        %6854 = vmatprep.subr.bf16.mxu0 %v6619
        %6855 = vmatpush1.bf16.msra.mxu0 %v6618
        %6856 = vmatprep.subr.bf16.mxu0 %v6623
        %6857 = vmatpush1.bf16.msra.mxu0 %v6622
        %6858 = vmatprep.subr.bf16.mxu0 %v6627
        %6859 = vmatpush1.bf16.msra.mxu0 %v6626
        %6860 = vmatprep.subr.bf16.mxu0 %v6631
        %6861 = vmatpush1.bf16.msra.mxu0 %v6630
        %6862 = vmatprep.subr.bf16.mxu0 %v6635
        %6863 = vmatpush1.bf16.msra.mxu0 %v6634
        %6864 = vmatprep.subr.bf16.mxu0 %v6639
        %6865 = vmatpush1.bf16.msra.mxu0 %v6638
        %6866 = vmatprep.mubr.bf16.mxu0 %v5001
        %6867 = vmatmul.mubr.bf16.gmra.mrb[0].mxu0 %v5000
        %v6868 = vpop.f32.mrb[0].mxu0
        %v6869 = vadd.f32 %v6177, %v6868
        %v6870 = vpop.f32.mrb[0].mxu0
        %v6871 = vadd.f32 %v6181, %v6870
        %v6872 = vpop.f32.mrb[0].mxu0
        %v6873 = vadd.f32 %v6177, %v6872
        %v6874 = vpop.f32.mrb[0].mxu0
        %v6875 = vadd.f32 %v6181, %v6874
        %6876 = vmatprep.mubr.bf16.mxu0 %v5009
        %6877 = vmatmul.mubr.bf16.gmra.mrb[0].mxu0 %v5008
        %v6878 = vpop.f32.mrb[0].mxu0
        %v6879 = vadd.f32 %v6177, %v6878
        %v6880 = vpop.f32.mrb[0].mxu0
        %v6881 = vadd.f32 %v6181, %v6880
        %v6882 = vpop.f32.mrb[0].mxu0
        %v6883 = vadd.f32 %v6177, %v6882
        %v6884 = vpop.f32.mrb[0].mxu0
        %v6885 = vadd.f32 %v6181, %v6884
        %6886 = vmatprep.mubr.bf16.mxu0 %v5017
        %6887 = vmatmul.mubr.bf16.gmra.mrb[0].mxu0 %v5016
        %v6888 = vpop.f32.mrb[0].mxu0
        %v6889 = vadd.f32 %v6177, %v6888
        %v6890 = vpop.f32.mrb[0].mxu0
        %v6891 = vadd.f32 %v6181, %v6890
        %v6892 = vpop.f32.mrb[0].mxu0
        %v6893 = vadd.f32 %v6177, %v6892
        %v6894 = vpop.f32.mrb[0].mxu0
        %v6895 = vadd.f32 %v6181, %v6894
        %6896 = vmatprep.mubr.bf16.mxu0 %v5025
        %6897 = vmatmul.mubr.bf16.gmra.mrb[0].mxu0 %v5024
        %v6898 = vpop.f32.mrb[0].mxu0
        %v6899 = vadd.f32 %v6177, %v6898
        %v6900 = vpop.f32.mrb[0].mxu0
        %v6901 = vadd.f32 %v6181, %v6900
        %v6902 = vpop.f32.mrb[0].mxu0
        %v6903 = vadd.f32 %v6177, %v6902
        %v6904 = vpop.f32.mrb[0].mxu0
        %v6905 = vadd.f32 %v6181, %v6904
        %6906 = vmatprep.mubr.bf16.mxu0 %v5033
        %6907 = vmatmul.mubr.bf16.gmra.mrb[0].mxu0 %v5032
        %v6908 = vpop.f32.mrb[0].mxu0
        %v6909 = vadd.f32 %v6177, %v6908
        %v6910 = vpop.f32.mrb[0].mxu0
        %v6911 = vadd.f32 %v6181, %v6910
        %v6912 = vpop.f32.mrb[0].mxu0
        %v6913 = vadd.f32 %v6177, %v6912
        %v6914 = vpop.f32.mrb[0].mxu0
        %v6915 = vadd.f32 %v6181, %v6914
        %6916 = vmatprep.mubr.bf16.mxu0 %v5041
        %6917 = vmatmul.mubr.bf16.gmra.mrb[0].mxu0 %v5040
        %v6918 = vpop.f32.mrb[0].mxu0
        %v6919 = vadd.f32 %v6177, %v6918
        %v6920 = vpop.f32.mrb[0].mxu0
        %v6921 = vadd.f32 %v6181, %v6920
        %v6922 = vpop.f32.mrb[0].mxu0
        %v6923 = vadd.f32 %v6177, %v6922
        %v6924 = vpop.f32.mrb[0].mxu0
        %v6925 = vadd.f32 %v6181, %v6924
        %6926 = vmatprep.mubr.bf16.mxu0 %v5049
        %6927 = vmatmul.mubr.bf16.gmra.mrb[0].mxu0 %v5048
        %v6928 = vpop.f32.mrb[0].mxu0
        %v6929 = vadd.f32 %v6177, %v6928
        %v6930 = vpop.f32.mrb[0].mxu0
        %v6931 = vadd.f32 %v6181, %v6930
        %v6932 = vpop.f32.mrb[0].mxu0
        %v6933 = vadd.f32 %v6177, %v6932
        %v6934 = vpop.f32.mrb[0].mxu0
        %v6935 = vadd.f32 %v6181, %v6934
        %6936 = vmatprep.mubr.bf16.mxu0 %v5057
        %6937 = vmatmul.mubr.bf16.gmra.mrb[0].mxu0 %v5056
        %v6938 = vpop.f32.mrb[0].mxu0
        %v6939 = vadd.f32 %v6177, %v6938
        %v6940 = vpop.f32.mrb[0].mxu0
        %v6941 = vadd.f32 %v6181, %v6940
        %v6942 = vpop.f32.mrb[0].mxu0
        %v6943 = vadd.f32 %v6177, %v6942
        %v6944 = vpop.f32.mrb[0].mxu0
        %v6945 = vadd.f32 %v6181, %v6944
        %6946 = vdwg.mxu0
        %6947 = vmatprep.subr.bf16.mxu0 %v6643
        %6948 = vmatpush1.bf16.msra.mxu0 %v6642
        %6949 = vmatprep.subr.bf16.mxu0 %v6647
        %6950 = vmatpush1.bf16.msra.mxu0 %v6646
        %6951 = vmatprep.subr.bf16.mxu0 %v6651
        %6952 = vmatpush1.bf16.msra.mxu0 %v6650
        %6953 = vmatprep.subr.bf16.mxu0 %v6655
        %6954 = vmatpush1.bf16.msra.mxu0 %v6654
        %6955 = vmatprep.subr.bf16.mxu0 %v6659
        %6956 = vmatpush1.bf16.msra.mxu0 %v6658
        %6957 = vmatprep.subr.bf16.mxu0 %v6663
        %6958 = vmatpush1.bf16.msra.mxu0 %v6662
        %6959 = vmatprep.subr.bf16.mxu0 %v6667
        %6960 = vmatpush1.bf16.msra.mxu0 %v6666
        %6961 = vmatprep.subr.bf16.mxu0 %v6671
        %6962 = vmatpush1.bf16.msra.mxu0 %v6670
        %6963 = vmatprep.subr.bf16.mxu0 %v6675
        %6964 = vmatpush1.bf16.msra.mxu0 %v6674
        %6965 = vmatprep.subr.bf16.mxu0 %v6679
        %6966 = vmatpush1.bf16.msra.mxu0 %v6678
        %6967 = vmatprep.subr.bf16.mxu0 %v6683
        %6968 = vmatpush1.bf16.msra.mxu0 %v6682
        %6969 = vmatprep.subr.bf16.mxu0 %v6687
        %6970 = vmatpush1.bf16.msra.mxu0 %v6686
        %6971 = vmatprep.subr.bf16.mxu0 %v6691
        %6972 = vmatpush1.bf16.msra.mxu0 %v6690
        %6973 = vmatprep.subr.bf16.mxu0 %v6695
        %6974 = vmatpush1.bf16.msra.mxu0 %v6694
        %6975 = vmatprep.subr.bf16.mxu0 %v6699
        %6976 = vmatpush1.bf16.msra.mxu0 %v6698
        %6977 = vmatprep.subr.bf16.mxu0 %v6703
        %6978 = vmatpush1.bf16.msra.mxu0 %v6702
        %6979 = vmatprep.mubr.bf16.mxu0 %v5003
        %6980 = vmatmul.mubr.bf16.gmra.mrb[0].mxu0 %v5002
        %v6981 = vpop.f32.mrb[0].mxu0
        %v6982 = vadd.f32 %v6869, %v6981
        %v6983 = vpop.f32.mrb[0].mxu0
        %v6984 = vadd.f32 %v6871, %v6983
        %v6985 = vpop.f32.mrb[0].mxu0
        %v6986 = vadd.f32 %v6873, %v6985
        %v6987 = vpop.f32.mrb[0].mxu0
        %v6988 = vadd.f32 %v6875, %v6987
        %6989 = vmatprep.mubr.bf16.mxu0 %v5011
        %6990 = vmatmul.mubr.bf16.gmra.mrb[0].mxu0 %v5010
        %v6991 = vpop.f32.mrb[0].mxu0
        %v6992 = vadd.f32 %v6879, %v6991
        %v6993 = vpop.f32.mrb[0].mxu0
        %v6994 = vadd.f32 %v6881, %v6993
        %v6995 = vpop.f32.mrb[0].mxu0
        %v6996 = vadd.f32 %v6883, %v6995
        %v6997 = vpop.f32.mrb[0].mxu0
        %v6998 = vadd.f32 %v6885, %v6997
        %6999 = vmatprep.mubr.bf16.mxu0 %v5019
        %7000 = vmatmul.mubr.bf16.gmra.mrb[0].mxu0 %v5018
        %v7001 = vpop.f32.mrb[0].mxu0
        %v7002 = vadd.f32 %v6889, %v7001
        %v7003 = vpop.f32.mrb[0].mxu0
        %v7004 = vadd.f32 %v6891, %v7003
        %v7005 = vpop.f32.mrb[0].mxu0
        %v7006 = vadd.f32 %v6893, %v7005
        %v7007 = vpop.f32.mrb[0].mxu0
        %v7008 = vadd.f32 %v6895, %v7007
        %7009 = vmatprep.mubr.bf16.mxu0 %v5027
        %7010 = vmatmul.mubr.bf16.gmra.mrb[0].mxu0 %v5026
        %v7011 = vpop.f32.mrb[0].mxu0
        %v7012 = vadd.f32 %v6899, %v7011
        %v7013 = vpop.f32.mrb[0].mxu0
        %v7014 = vadd.f32 %v6901, %v7013
        %v7015 = vpop.f32.mrb[0].mxu0
        %v7016 = vadd.f32 %v6903, %v7015
        %v7017 = vpop.f32.mrb[0].mxu0
        %v7018 = vadd.f32 %v6905, %v7017
        %7019 = vmatprep.mubr.bf16.mxu0 %v5035
        %7020 = vmatmul.mubr.bf16.gmra.mrb[0].mxu0 %v5034
        %v7021 = vpop.f32.mrb[0].mxu0
        %v7022 = vadd.f32 %v6909, %v7021
        %v7023 = vpop.f32.mrb[0].mxu0
        %v7024 = vadd.f32 %v6911, %v7023
        %v7025 = vpop.f32.mrb[0].mxu0
        %v7026 = vadd.f32 %v6913, %v7025
        %v7027 = vpop.f32.mrb[0].mxu0
        %v7028 = vadd.f32 %v6915, %v7027
        %7029 = vmatprep.mubr.bf16.mxu0 %v5043
        %7030 = vmatmul.mubr.bf16.gmra.mrb[0].mxu0 %v5042
        %v7031 = vpop.f32.mrb[0].mxu0
        %v7032 = vadd.f32 %v6919, %v7031
        %v7033 = vpop.f32.mrb[0].mxu0
        %v7034 = vadd.f32 %v6921, %v7033
        %v7035 = vpop.f32.mrb[0].mxu0
        %v7036 = vadd.f32 %v6923, %v7035
        %v7037 = vpop.f32.mrb[0].mxu0
        %v7038 = vadd.f32 %v6925, %v7037
        %7039 = vmatprep.mubr.bf16.mxu0 %v5051
        %7040 = vmatmul.mubr.bf16.gmra.mrb[0].mxu0 %v5050
        %v7041 = vpop.f32.mrb[0].mxu0
        %v7042 = vadd.f32 %v6929, %v7041
        %v7043 = vpop.f32.mrb[0].mxu0
        %v7044 = vadd.f32 %v6931, %v7043
        %v7045 = vpop.f32.mrb[0].mxu0
        %v7046 = vadd.f32 %v6933, %v7045
        %v7047 = vpop.f32.mrb[0].mxu0
        %v7048 = vadd.f32 %v6935, %v7047
        %7049 = vmatprep.mubr.bf16.mxu0 %v5059
        %7050 = vmatmul.mubr.bf16.gmra.mrb[0].mxu0 %v5058
        %v7051 = vpop.f32.mrb[0].mxu0
        %v7052 = vadd.f32 %v6939, %v7051
        %v7053 = vpop.f32.mrb[0].mxu0
        %v7054 = vadd.f32 %v6941, %v7053
        %v7055 = vpop.f32.mrb[0].mxu0
        %v7056 = vadd.f32 %v6943, %v7055
        %v7057 = vpop.f32.mrb[0].mxu0
        %v7058 = vadd.f32 %v6945, %v7057
        %7059 = vdwg.mxu0
        %7060 = vmatprep.subr.bf16.mxu0 %v6581
        %7061 = vmatpush1.bf16.msra.mxu0 %v6580
        %7062 = vmatprep.subr.bf16.mxu0 %v6585
        %7063 = vmatpush1.bf16.msra.mxu0 %v6584
        %7064 = vmatprep.subr.bf16.mxu0 %v6589
        %7065 = vmatpush1.bf16.msra.mxu0 %v6588
        %7066 = vmatprep.subr.bf16.mxu0 %v6593
        %7067 = vmatpush1.bf16.msra.mxu0 %v6592
        %7068 = vmatprep.subr.bf16.mxu0 %v6597
        %7069 = vmatpush1.bf16.msra.mxu0 %v6596
        %7070 = vmatprep.subr.bf16.mxu0 %v6601
        %7071 = vmatpush1.bf16.msra.mxu0 %v6600
        %7072 = vmatprep.subr.bf16.mxu0 %v6605
        %7073 = vmatpush1.bf16.msra.mxu0 %v6604
        %7074 = vmatprep.subr.bf16.mxu0 %v6609
        %7075 = vmatpush1.bf16.msra.mxu0 %v6608
        %7076 = vmatprep.subr.bf16.mxu0 %v6613
        %7077 = vmatpush1.bf16.msra.mxu0 %v6612
        %7078 = vmatprep.subr.bf16.mxu0 %v6617
        %7079 = vmatpush1.bf16.msra.mxu0 %v6616
        %7080 = vmatprep.subr.bf16.mxu0 %v6621
        %7081 = vmatpush1.bf16.msra.mxu0 %v6620
        %7082 = vmatprep.subr.bf16.mxu0 %v6625
        %7083 = vmatpush1.bf16.msra.mxu0 %v6624
        %7084 = vmatprep.subr.bf16.mxu0 %v6629
        %7085 = vmatpush1.bf16.msra.mxu0 %v6628
        %7086 = vmatprep.subr.bf16.mxu0 %v6633
        %7087 = vmatpush1.bf16.msra.mxu0 %v6632
        %7088 = vmatprep.subr.bf16.mxu0 %v6637
        %7089 = vmatpush1.bf16.msra.mxu0 %v6636
        %7090 = vmatprep.subr.bf16.mxu0 %v6641
        %7091 = vmatpush1.bf16.msra.mxu0 %v6640
        %7092 = vmatprep.mubr.bf16.mxu0 %v5001
        %7093 = vmatmul.mubr.bf16.gmra.mrb[0].mxu0 %v5000
        %v7094 = vpop.f32.mrb[0].mxu0
        %v7095 = vadd.f32 %v6185, %v7094
        %v7096 = vpop.f32.mrb[0].mxu0
        %v7097 = vadd.f32 %v6189, %v7096
        %v7098 = vpop.f32.mrb[0].mxu0
        %v7099 = vadd.f32 %v6185, %v7098
        %v7100 = vpop.f32.mrb[0].mxu0
        %v7101 = vadd.f32 %v6189, %v7100
        %7102 = vmatprep.mubr.bf16.mxu0 %v5009
        %7103 = vmatmul.mubr.bf16.gmra.mrb[0].mxu0 %v5008
        %v7104 = vpop.f32.mrb[0].mxu0
        %v7105 = vadd.f32 %v6185, %v7104
        %v7106 = vpop.f32.mrb[0].mxu0
        %v7107 = vadd.f32 %v6189, %v7106
        %v7108 = vpop.f32.mrb[0].mxu0
        %v7109 = vadd.f32 %v6185, %v7108
        %v7110 = vpop.f32.mrb[0].mxu0
        %v7111 = vadd.f32 %v6189, %v7110
        %7112 = vmatprep.mubr.bf16.mxu0 %v5017
        %7113 = vmatmul.mubr.bf16.gmra.mrb[0].mxu0 %v5016
        %v7114 = vpop.f32.mrb[0].mxu0
        %v7115 = vadd.f32 %v6185, %v7114
        %v7116 = vpop.f32.mrb[0].mxu0
        %v7117 = vadd.f32 %v6189, %v7116
        %v7118 = vpop.f32.mrb[0].mxu0
        %v7119 = vadd.f32 %v6185, %v7118
        %v7120 = vpop.f32.mrb[0].mxu0
        %v7121 = vadd.f32 %v6189, %v7120
        %7122 = vmatprep.mubr.bf16.mxu0 %v5025
        %7123 = vmatmul.mubr.bf16.gmra.mrb[0].mxu0 %v5024
        %v7124 = vpop.f32.mrb[0].mxu0
        %v7125 = vadd.f32 %v6185, %v7124
        %v7126 = vpop.f32.mrb[0].mxu0
        %v7127 = vadd.f32 %v6189, %v7126
        %v7128 = vpop.f32.mrb[0].mxu0
        %v7129 = vadd.f32 %v6185, %v7128
        %v7130 = vpop.f32.mrb[0].mxu0
        %v7131 = vadd.f32 %v6189, %v7130
        %7132 = vmatprep.mubr.bf16.mxu0 %v5033
        %7133 = vmatmul.mubr.bf16.gmra.mrb[0].mxu0 %v5032
        %v7134 = vpop.f32.mrb[0].mxu0
        %v7135 = vadd.f32 %v6185, %v7134
        %v7136 = vpop.f32.mrb[0].mxu0
        %v7137 = vadd.f32 %v6189, %v7136
        %v7138 = vpop.f32.mrb[0].mxu0
        %v7139 = vadd.f32 %v6185, %v7138
        %v7140 = vpop.f32.mrb[0].mxu0
        %v7141 = vadd.f32 %v6189, %v7140
        %7142 = vmatprep.mubr.bf16.mxu0 %v5041
        %7143 = vmatmul.mubr.bf16.gmra.mrb[0].mxu0 %v5040
        %v7144 = vpop.f32.mrb[0].mxu0
        %v7145 = vadd.f32 %v6185, %v7144
        %v7146 = vpop.f32.mrb[0].mxu0
        %v7147 = vadd.f32 %v6189, %v7146
        %v7148 = vpop.f32.mrb[0].mxu0
        %v7149 = vadd.f32 %v6185, %v7148
        %v7150 = vpop.f32.mrb[0].mxu0
        %v7151 = vadd.f32 %v6189, %v7150
        %7152 = vmatprep.mubr.bf16.mxu0 %v5049
        %7153 = vmatmul.mubr.bf16.gmra.mrb[0].mxu0 %v5048
        %v7154 = vpop.f32.mrb[0].mxu0
        %v7155 = vadd.f32 %v6185, %v7154
        %v7156 = vpop.f32.mrb[0].mxu0
        %v7157 = vadd.f32 %v6189, %v7156
        %v7158 = vpop.f32.mrb[0].mxu0
        %v7159 = vadd.f32 %v6185, %v7158
        %v7160 = vpop.f32.mrb[0].mxu0
        %v7161 = vadd.f32 %v6189, %v7160
        %7162 = vmatprep.mubr.bf16.mxu0 %v5057
        %7163 = vmatmul.mubr.bf16.gmra.mrb[0].mxu0 %v5056
        %v7164 = vpop.f32.mrb[0].mxu0
        %v7165 = vadd.f32 %v6185, %v7164
        %v7166 = vpop.f32.mrb[0].mxu0
        %v7167 = vadd.f32 %v6189, %v7166
        %v7168 = vpop.f32.mrb[0].mxu0
        %v7169 = vadd.f32 %v6185, %v7168
        %v7170 = vpop.f32.mrb[0].mxu0
        %v7171 = vadd.f32 %v6189, %v7170
        %7172 = vdwg.mxu0
        %7173 = vmatprep.subr.bf16.mxu0 %v6645
        %7174 = vmatpush1.bf16.msra.mxu0 %v6644
        %7175 = vmatprep.subr.bf16.mxu0 %v6649
        %7176 = vmatpush1.bf16.msra.mxu0 %v6648
        %7177 = vmatprep.subr.bf16.mxu0 %v6653
        %7178 = vmatpush1.bf16.msra.mxu0 %v6652
        %7179 = vmatprep.subr.bf16.mxu0 %v6657
        %7180 = vmatpush1.bf16.msra.mxu0 %v6656
        %7181 = vmatprep.subr.bf16.mxu0 %v6661
        %7182 = vmatpush1.bf16.msra.mxu0 %v6660
        %7183 = vmatprep.subr.bf16.mxu0 %v6665
        %7184 = vmatpush1.bf16.msra.mxu0 %v6664
        %7185 = vmatprep.subr.bf16.mxu0 %v6669
        %7186 = vmatpush1.bf16.msra.mxu0 %v6668
        %7187 = vmatprep.subr.bf16.mxu0 %v6673
        %7188 = vmatpush1.bf16.msra.mxu0 %v6672
        %7189 = vmatprep.subr.bf16.mxu0 %v6677
        %7190 = vmatpush1.bf16.msra.mxu0 %v6676
        %7191 = vmatprep.subr.bf16.mxu0 %v6681
        %7192 = vmatpush1.bf16.msra.mxu0 %v6680
        %7193 = vmatprep.subr.bf16.mxu0 %v6685
        %7194 = vmatpush1.bf16.msra.mxu0 %v6684
        %7195 = vmatprep.subr.bf16.mxu0 %v6689
        %7196 = vmatpush1.bf16.msra.mxu0 %v6688
        %7197 = vmatprep.subr.bf16.mxu0 %v6693
        %7198 = vmatpush1.bf16.msra.mxu0 %v6692
        %7199 = vmatprep.subr.bf16.mxu0 %v6697
        %7200 = vmatpush1.bf16.msra.mxu0 %v6696
        %7201 = vmatprep.subr.bf16.mxu0 %v6701
        %7202 = vmatpush1.bf16.msra.mxu0 %v6700
        %7203 = vmatprep.subr.bf16.mxu0 %v6705
        %7204 = vmatpush1.bf16.msra.mxu0 %v6704
        %7205 = vmatprep.mubr.bf16.mxu0 %v5003
        %7206 = vmatmul.mubr.bf16.gmra.mrb[0].mxu0 %v5002
        %v7207 = vpop.f32.mrb[0].mxu0
        %v7208 = vadd.f32 %v7095, %v7207
        %v7209 = vpop.f32.mrb[0].mxu0
        %v7210 = vadd.f32 %v7097, %v7209
        %v7211 = vpop.f32.mrb[0].mxu0
        %v7212 = vadd.f32 %v7099, %v7211
        %v7213 = vpop.f32.mrb[0].mxu0
        %v7214 = vadd.f32 %v7101, %v7213
        %7215 = vmatprep.mubr.bf16.mxu0 %v5011
        %7216 = vmatmul.mubr.bf16.gmra.mrb[0].mxu0 %v5010
        %v7217 = vpop.f32.mrb[0].mxu0
        %v7218 = vadd.f32 %v7105, %v7217
        %v7219 = vpop.f32.mrb[0].mxu0
        %v7220 = vadd.f32 %v7107, %v7219
        %v7221 = vpop.f32.mrb[0].mxu0
        %v7222 = vadd.f32 %v7109, %v7221
        %v7223 = vpop.f32.mrb[0].mxu0
        %v7224 = vadd.f32 %v7111, %v7223
        %7225 = vmatprep.mubr.bf16.mxu0 %v5019
        %7226 = vmatmul.mubr.bf16.gmra.mrb[0].mxu0 %v5018
        %v7227 = vpop.f32.mrb[0].mxu0
        %v7228 = vadd.f32 %v7115, %v7227
        %v7229 = vpop.f32.mrb[0].mxu0
        %v7230 = vadd.f32 %v7117, %v7229
        %v7231 = vpop.f32.mrb[0].mxu0
        %v7232 = vadd.f32 %v7119, %v7231
        %v7233 = vpop.f32.mrb[0].mxu0
        %v7234 = vadd.f32 %v7121, %v7233
        %7235 = vmatprep.mubr.bf16.mxu0 %v5027
        %7236 = vmatmul.mubr.bf16.gmra.mrb[0].mxu0 %v5026
        %v7237 = vpop.f32.mrb[0].mxu0
        %v7238 = vadd.f32 %v7125, %v7237
        %v7239 = vpop.f32.mrb[0].mxu0
        %v7240 = vadd.f32 %v7127, %v7239
        %v7241 = vpop.f32.mrb[0].mxu0
        %v7242 = vadd.f32 %v7129, %v7241
        %v7243 = vpop.f32.mrb[0].mxu0
        %v7244 = vadd.f32 %v7131, %v7243
        %7245 = vmatprep.mubr.bf16.mxu0 %v5035
        %7246 = vmatmul.mubr.bf16.gmra.mrb[0].mxu0 %v5034
        %v7247 = vpop.f32.mrb[0].mxu0
        %v7248 = vadd.f32 %v7135, %v7247
        %v7249 = vpop.f32.mrb[0].mxu0
        %v7250 = vadd.f32 %v7137, %v7249
        %v7251 = vpop.f32.mrb[0].mxu0
        %v7252 = vadd.f32 %v7139, %v7251
        %v7253 = vpop.f32.mrb[0].mxu0
        %v7254 = vadd.f32 %v7141, %v7253
        %7255 = vmatprep.mubr.bf16.mxu0 %v5043
        %7256 = vmatmul.mubr.bf16.gmra.mrb[0].mxu0 %v5042
        %v7257 = vpop.f32.mrb[0].mxu0
        %v7258 = vadd.f32 %v7145, %v7257
        %v7259 = vpop.f32.mrb[0].mxu0
        %v7260 = vadd.f32 %v7147, %v7259
        %v7261 = vpop.f32.mrb[0].mxu0
        %v7262 = vadd.f32 %v7149, %v7261
        %v7263 = vpop.f32.mrb[0].mxu0
        %v7264 = vadd.f32 %v7151, %v7263
        %7265 = vmatprep.mubr.bf16.mxu0 %v5051
        %7266 = vmatmul.mubr.bf16.gmra.mrb[0].mxu0 %v5050
        %v7267 = vpop.f32.mrb[0].mxu0
        %v7268 = vadd.f32 %v7155, %v7267
        %v7269 = vpop.f32.mrb[0].mxu0
        %v7270 = vadd.f32 %v7157, %v7269
        %v7271 = vpop.f32.mrb[0].mxu0
        %v7272 = vadd.f32 %v7159, %v7271
        %v7273 = vpop.f32.mrb[0].mxu0
        %v7274 = vadd.f32 %v7161, %v7273
        %7275 = vmatprep.mubr.bf16.mxu0 %v5059
        %7276 = vmatmul.mubr.bf16.gmra.mrb[0].mxu0 %v5058
        %v7277 = vpop.f32.mrb[0].mxu0
        %v7278 = vadd.f32 %v7165, %v7277
        %v7279 = vpop.f32.mrb[0].mxu0
        %v7280 = vadd.f32 %v7167, %v7279
        %v7281 = vpop.f32.mrb[0].mxu0
        %v7282 = vadd.f32 %v7169, %v7281
        %v7283 = vpop.f32.mrb[0].mxu0
        %v7284 = vadd.f32 %v7171, %v7283
        %7285 = vdwg.mxu0
        %v7286 = vpack.c.bf16 %v5873, %v5869
        %v7287 = vpack.c.bf16 %v5875, %v5871
        %v7288 = vpack.c.bf16 %v6099, %v6095
        %v7289 = vpack.c.bf16 %v6101, %v6097
        %v7290 = vpack.c.bf16 %v5883, %v5879
        %v7291 = vpack.c.bf16 %v5885, %v5881
        %v7292 = vpack.c.bf16 %v6109, %v6105
        %v7293 = vpack.c.bf16 %v6111, %v6107
        %v7294 = vpack.c.bf16 %v5893, %v5889
        %v7295 = vpack.c.bf16 %v5895, %v5891
        %v7296 = vpack.c.bf16 %v6119, %v6115
        %v7297 = vpack.c.bf16 %v6121, %v6117
        %v7298 = vpack.c.bf16 %v5903, %v5899
        %v7299 = vpack.c.bf16 %v5905, %v5901
        %v7300 = vpack.c.bf16 %v6129, %v6125
        %v7301 = vpack.c.bf16 %v6131, %v6127
        %v7302 = vpack.c.bf16 %v5913, %v5909
        %v7303 = vpack.c.bf16 %v5915, %v5911
        %v7304 = vpack.c.bf16 %v6139, %v6135
        %v7305 = vpack.c.bf16 %v6141, %v6137
        %v7306 = vpack.c.bf16 %v5923, %v5919
        %v7307 = vpack.c.bf16 %v5925, %v5921
        %v7308 = vpack.c.bf16 %v6149, %v6145
        %v7309 = vpack.c.bf16 %v6151, %v6147
        %v7310 = vpack.c.bf16 %v5933, %v5929
        %v7311 = vpack.c.bf16 %v5935, %v5931
        %v7312 = vpack.c.bf16 %v6159, %v6155
        %v7313 = vpack.c.bf16 %v6161, %v6157
        %v7314 = vpack.c.bf16 %v5943, %v5939
        %v7315 = vpack.c.bf16 %v5945, %v5941
        %v7316 = vpack.c.bf16 %v6169, %v6165
        %v7317 = vpack.c.bf16 %v6171, %v6167
        %v7318 = vpack.c.bf16 %v6986, %v6982
        %v7319 = vpack.c.bf16 %v6988, %v6984
        %v7320 = vpack.c.bf16 %v7212, %v7208
        %v7321 = vpack.c.bf16 %v7214, %v7210
        %v7322 = vpack.c.bf16 %v6996, %v6992
        %v7323 = vpack.c.bf16 %v6998, %v6994
        %v7324 = vpack.c.bf16 %v7222, %v7218
        %v7325 = vpack.c.bf16 %v7224, %v7220
        %v7326 = vpack.c.bf16 %v7006, %v7002
        %v7327 = vpack.c.bf16 %v7008, %v7004
        %v7328 = vpack.c.bf16 %v7232, %v7228
        %v7329 = vpack.c.bf16 %v7234, %v7230
        %v7330 = vpack.c.bf16 %v7016, %v7012
        %v7331 = vpack.c.bf16 %v7018, %v7014
        %v7332 = vpack.c.bf16 %v7242, %v7238
        %v7333 = vpack.c.bf16 %v7244, %v7240
        %v7334 = vpack.c.bf16 %v7026, %v7022
        %v7335 = vpack.c.bf16 %v7028, %v7024
        %v7336 = vpack.c.bf16 %v7252, %v7248
        %v7337 = vpack.c.bf16 %v7254, %v7250
        %v7338 = vpack.c.bf16 %v7036, %v7032
        %v7339 = vpack.c.bf16 %v7038, %v7034
        %v7340 = vpack.c.bf16 %v7262, %v7258
        %v7341 = vpack.c.bf16 %v7264, %v7260
        %v7342 = vpack.c.bf16 %v7046, %v7042
        %v7343 = vpack.c.bf16 %v7048, %v7044
        %v7344 = vpack.c.bf16 %v7272, %v7268
        %v7345 = vpack.c.bf16 %v7274, %v7270
        %v7346 = vpack.c.bf16 %v7056, %v7052
        %v7347 = vpack.c.bf16 %v7058, %v7054
        %v7348 = vpack.c.bf16 %v7282, %v7278
        %v7349 = vpack.c.bf16 %v7284, %v7280
        %v7351 = vlaneseq
        %v7352 = vshrl.u32 %v7351, 7
        %v7353 = vsub.s32 0, %v7352
        %v7354 = vrot.slane %v1308, %v7353
        %v7355 = vlaneseq
        %v7356 = vshrl.u32 %v7355, 7
        %v7357 = vsub.s32 1, %v7356
        %v7358 = vrot.slane %v1308, %v7357
        %v7359 = vlaneseq
        %v7360 = vshrl.u32 %v7359, 7
        %v7361 = vsub.s32 2, %v7360
        %v7362 = vrot.slane %v1308, %v7361
        %v7363 = vlaneseq
        %v7364 = vshrl.u32 %v7363, 7
        %v7365 = vsub.s32 3, %v7364
        %v7366 = vrot.slane %v1308, %v7365
        %v7499 = vunpack.c.l.b16 %v1180
        %v7500 = vunpack.c.h.b16 %v1180
        %v7501 = vunpack.c.l.b16 %v1181
        %v7502 = vunpack.c.h.b16 %v1181
        %v7503 = vunpack.c.l.b16 %v1182
        %v7504 = vunpack.c.h.b16 %v1182
        %v7505 = vunpack.c.l.b16 %v1183
        %v7506 = vunpack.c.h.b16 %v1183
        %v7507 = vunpack.c.l.b16 %v1184
        %v7508 = vunpack.c.h.b16 %v1184
        %v7509 = vunpack.c.l.b16 %v1185
        %v7510 = vunpack.c.h.b16 %v1185
        %v7511 = vunpack.c.l.b16 %v1186
        %v7512 = vunpack.c.h.b16 %v1186
        %v7513 = vunpack.c.l.b16 %v1187
        %v7514 = vunpack.c.h.b16 %v1187
        %v7515 = vunpack.c.l.b16 %v1188
        %v7516 = vunpack.c.h.b16 %v1188
        %v7517 = vunpack.c.l.b16 %v1189
        %v7518 = vunpack.c.h.b16 %v1189
        %v7519 = vunpack.c.l.b16 %v1190
        %v7520 = vunpack.c.h.b16 %v1190
        %v7521 = vunpack.c.l.b16 %v1191
        %v7522 = vunpack.c.h.b16 %v1191
        %v7523 = vunpack.c.l.b16 %v1192
        %v7524 = vunpack.c.h.b16 %v1192
        %v7525 = vunpack.c.l.b16 %v1193
        %v7526 = vunpack.c.h.b16 %v1193
        %v7527 = vunpack.c.l.b16 %v1194
        %v7528 = vunpack.c.h.b16 %v1194
        %v7529 = vunpack.c.l.b16 %v1195
        %v7530 = vunpack.c.h.b16 %v1195
        %v7531 = vunpack.c.l.b16 %v1196
        %v7532 = vunpack.c.h.b16 %v1196
        %v7533 = vunpack.c.l.b16 %v1197
        %v7534 = vunpack.c.h.b16 %v1197
        %v7535 = vunpack.c.l.b16 %v1198
        %v7536 = vunpack.c.h.b16 %v1198
        %v7537 = vunpack.c.l.b16 %v1199
        %v7538 = vunpack.c.h.b16 %v1199
        %v7539 = vunpack.c.l.b16 %v1200
        %v7540 = vunpack.c.h.b16 %v1200
        %v7541 = vunpack.c.l.b16 %v1201
        %v7542 = vunpack.c.h.b16 %v1201
        %v7543 = vunpack.c.l.b16 %v1202
        %v7544 = vunpack.c.h.b16 %v1202
        %v7545 = vunpack.c.l.b16 %v1203
        %v7546 = vunpack.c.h.b16 %v1203
        %v7547 = vunpack.c.l.b16 %v1204
        %v7548 = vunpack.c.h.b16 %v1204
        %v7549 = vunpack.c.l.b16 %v1205
        %v7550 = vunpack.c.h.b16 %v1205
        %v7551 = vunpack.c.l.b16 %v1206
        %v7552 = vunpack.c.h.b16 %v1206
        %v7553 = vunpack.c.l.b16 %v1207
        %v7554 = vunpack.c.h.b16 %v1207
        %v7555 = vunpack.c.l.b16 %v1208
        %v7556 = vunpack.c.h.b16 %v1208
        %v7557 = vunpack.c.l.b16 %v1209
        %v7558 = vunpack.c.h.b16 %v1209
        %v7559 = vunpack.c.l.b16 %v1210
        %v7560 = vunpack.c.h.b16 %v1210
        %v7561 = vunpack.c.l.b16 %v1211
        %v7562 = vunpack.c.h.b16 %v1211
        %v7563 = vunpack.c.l.b16 %v1212
        %v7564 = vunpack.c.h.b16 %v1212
        %v7565 = vunpack.c.l.b16 %v1213
        %v7566 = vunpack.c.h.b16 %v1213
        %v7567 = vunpack.c.l.b16 %v1214
        %v7568 = vunpack.c.h.b16 %v1214
        %v7569 = vunpack.c.l.b16 %v1215
        %v7570 = vunpack.c.h.b16 %v1215
        %v7571 = vunpack.c.l.b16 %v1216
        %v7572 = vunpack.c.h.b16 %v1216
        %v7573 = vunpack.c.l.b16 %v1217
        %v7574 = vunpack.c.h.b16 %v1217
        %v7575 = vunpack.c.l.b16 %v1218
        %v7576 = vunpack.c.h.b16 %v1218
        %v7577 = vunpack.c.l.b16 %v1219
        %v7578 = vunpack.c.h.b16 %v1219
        %v7579 = vunpack.c.l.b16 %v1220
        %v7580 = vunpack.c.h.b16 %v1220
        %v7581 = vunpack.c.l.b16 %v1221
        %v7582 = vunpack.c.h.b16 %v1221
        %v7583 = vunpack.c.l.b16 %v1222
        %v7584 = vunpack.c.h.b16 %v1222
        %v7585 = vunpack.c.l.b16 %v1223
        %v7586 = vunpack.c.h.b16 %v1223
        %v7587 = vunpack.c.l.b16 %v1224
        %v7588 = vunpack.c.h.b16 %v1224
        %v7589 = vunpack.c.l.b16 %v1225
        %v7590 = vunpack.c.h.b16 %v1225
        %v7591 = vunpack.c.l.b16 %v1226
        %v7592 = vunpack.c.h.b16 %v1226
        %v7593 = vunpack.c.l.b16 %v1227
        %v7594 = vunpack.c.h.b16 %v1227
        %v7595 = vunpack.c.l.b16 %v1228
        %v7596 = vunpack.c.h.b16 %v1228
        %v7597 = vunpack.c.l.b16 %v1229
        %v7598 = vunpack.c.h.b16 %v1229
        %v7599 = vunpack.c.l.b16 %v1230
        %v7600 = vunpack.c.h.b16 %v1230
        %v7601 = vunpack.c.l.b16 %v1231
        %v7602 = vunpack.c.h.b16 %v1231
        %v7603 = vunpack.c.l.b16 %v1232
        %v7604 = vunpack.c.h.b16 %v1232
        %v7605 = vunpack.c.l.b16 %v1233
        %v7606 = vunpack.c.h.b16 %v1233
        %v7607 = vunpack.c.l.b16 %v1234
        %v7608 = vunpack.c.h.b16 %v1234
        %v7609 = vunpack.c.l.b16 %v1235
        %v7610 = vunpack.c.h.b16 %v1235
        %v7611 = vunpack.c.l.b16 %v1236
        %v7612 = vunpack.c.h.b16 %v1236
        %v7613 = vunpack.c.l.b16 %v1237
        %v7614 = vunpack.c.h.b16 %v1237
        %v7615 = vunpack.c.l.b16 %v1238
        %v7616 = vunpack.c.h.b16 %v1238
        %v7617 = vunpack.c.l.b16 %v1239
        %v7618 = vunpack.c.h.b16 %v1239
        %v7619 = vunpack.c.l.b16 %v1240
        %v7620 = vunpack.c.h.b16 %v1240
        %v7621 = vunpack.c.l.b16 %v1241
        %v7622 = vunpack.c.h.b16 %v1241
        %v7623 = vunpack.c.l.b16 %v1242
        %v7624 = vunpack.c.h.b16 %v1242
        %v7625 = vunpack.c.l.b16 %v1243
        %v7626 = vunpack.c.h.b16 %v1243
        %v7627 = vunpack.c.l.b16 %v1244
        %v7628 = vunpack.c.h.b16 %v1244
        %v7629 = vunpack.c.l.b16 %v1245
        %v7630 = vunpack.c.h.b16 %v1245
        %v7631 = vunpack.c.l.b16 %v1246
        %v7632 = vunpack.c.h.b16 %v1246
        %v7633 = vunpack.c.l.b16 %v1247
        %v7634 = vunpack.c.h.b16 %v1247
        %v7635 = vunpack.c.l.b16 %v1248
        %v7636 = vunpack.c.h.b16 %v1248
        %v7637 = vunpack.c.l.b16 %v1249
        %v7638 = vunpack.c.h.b16 %v1249
        %v7639 = vunpack.c.l.b16 %v1250
        %v7640 = vunpack.c.h.b16 %v1250
        %v7641 = vunpack.c.l.b16 %v1251
        %v7642 = vunpack.c.h.b16 %v1251
        %v7643 = vunpack.c.l.b16 %v1252
        %v7644 = vunpack.c.h.b16 %v1252
        %v7645 = vunpack.c.l.b16 %v1253
        %v7646 = vunpack.c.h.b16 %v1253
        %v7647 = vunpack.c.l.b16 %v1254
        %v7648 = vunpack.c.h.b16 %v1254
        %v7649 = vunpack.c.l.b16 %v1255
        %v7650 = vunpack.c.h.b16 %v1255
        %v7651 = vunpack.c.l.b16 %v1256
        %v7652 = vunpack.c.h.b16 %v1256
        %v7653 = vunpack.c.l.b16 %v1257
        %v7654 = vunpack.c.h.b16 %v1257
        %v7655 = vunpack.c.l.b16 %v1258
        %v7656 = vunpack.c.h.b16 %v1258
        %v7657 = vunpack.c.l.b16 %v1259
        %v7658 = vunpack.c.h.b16 %v1259
        %v7659 = vunpack.c.l.b16 %v1260
        %v7660 = vunpack.c.h.b16 %v1260
        %v7661 = vunpack.c.l.b16 %v1261
        %v7662 = vunpack.c.h.b16 %v1261
        %v7663 = vunpack.c.l.b16 %v1262
        %v7664 = vunpack.c.h.b16 %v1262
        %v7665 = vunpack.c.l.b16 %v1263
        %v7666 = vunpack.c.h.b16 %v1263
        %v7667 = vunpack.c.l.b16 %v1264
        %v7668 = vunpack.c.h.b16 %v1264
        %v7669 = vunpack.c.l.b16 %v1265
        %v7670 = vunpack.c.h.b16 %v1265
        %v7671 = vunpack.c.l.b16 %v1266
        %v7672 = vunpack.c.h.b16 %v1266
        %v7673 = vunpack.c.l.b16 %v1267
        %v7674 = vunpack.c.h.b16 %v1267
        %v7675 = vunpack.c.l.b16 %v1268
        %v7676 = vunpack.c.h.b16 %v1268
        %v7677 = vunpack.c.l.b16 %v1269
        %v7678 = vunpack.c.h.b16 %v1269
        %v7679 = vunpack.c.l.b16 %v1270
        %v7680 = vunpack.c.h.b16 %v1270
        %v7681 = vunpack.c.l.b16 %v1271
        %v7682 = vunpack.c.h.b16 %v1271
        %v7683 = vunpack.c.l.b16 %v1272
        %v7684 = vunpack.c.h.b16 %v1272
        %v7685 = vunpack.c.l.b16 %v1273
        %v7686 = vunpack.c.h.b16 %v1273
        %v7687 = vunpack.c.l.b16 %v1274
        %v7688 = vunpack.c.h.b16 %v1274
        %v7689 = vunpack.c.l.b16 %v1275
        %v7690 = vunpack.c.h.b16 %v1275
        %v7691 = vunpack.c.l.b16 %v1276
        %v7692 = vunpack.c.h.b16 %v1276
        %v7693 = vunpack.c.l.b16 %v1277
        %v7694 = vunpack.c.h.b16 %v1277
        %v7695 = vunpack.c.l.b16 %v1278
        %v7696 = vunpack.c.h.b16 %v1278
        %v7697 = vunpack.c.l.b16 %v1279
        %v7698 = vunpack.c.h.b16 %v1279
        %v7699 = vunpack.c.l.b16 %v1280
        %v7700 = vunpack.c.h.b16 %v1280
        %v7701 = vunpack.c.l.b16 %v1281
        %v7702 = vunpack.c.h.b16 %v1281
        %v7703 = vunpack.c.l.b16 %v1282
        %v7704 = vunpack.c.h.b16 %v1282
        %v7705 = vunpack.c.l.b16 %v1283
        %v7706 = vunpack.c.h.b16 %v1283
        %v7707 = vunpack.c.l.b16 %v1284
        %v7708 = vunpack.c.h.b16 %v1284
        %v7709 = vunpack.c.l.b16 %v1285
        %v7710 = vunpack.c.h.b16 %v1285
        %v7711 = vunpack.c.l.b16 %v1286
        %v7712 = vunpack.c.h.b16 %v1286
        %v7713 = vunpack.c.l.b16 %v1287
        %v7714 = vunpack.c.h.b16 %v1287
        %v7715 = vunpack.c.l.b16 %v1288
        %v7716 = vunpack.c.h.b16 %v1288
        %v7717 = vunpack.c.l.b16 %v1289
        %v7718 = vunpack.c.h.b16 %v1289
        %v7719 = vunpack.c.l.b16 %v1290
        %v7720 = vunpack.c.h.b16 %v1290
        %v7721 = vunpack.c.l.b16 %v1291
        %v7722 = vunpack.c.h.b16 %v1291
        %v7723 = vunpack.c.l.b16 %v1292
        %v7724 = vunpack.c.h.b16 %v1292
        %v7725 = vunpack.c.l.b16 %v1293
        %v7726 = vunpack.c.h.b16 %v1293
        %v7727 = vunpack.c.l.b16 %v1294
        %v7728 = vunpack.c.h.b16 %v1294
        %v7729 = vunpack.c.l.b16 %v1295
        %v7730 = vunpack.c.h.b16 %v1295
        %v7731 = vunpack.c.l.b16 %v1296
        %v7732 = vunpack.c.h.b16 %v1296
        %v7733 = vunpack.c.l.b16 %v1297
        %v7734 = vunpack.c.h.b16 %v1297
        %v7735 = vunpack.c.l.b16 %v1298
        %v7736 = vunpack.c.h.b16 %v1298
        %v7737 = vunpack.c.l.b16 %v1299
        %v7738 = vunpack.c.h.b16 %v1299
        %v7739 = vunpack.c.l.b16 %v1300
        %v7740 = vunpack.c.h.b16 %v1300
        %v7741 = vunpack.c.l.b16 %v1301
        %v7742 = vunpack.c.h.b16 %v1301
        %v7743 = vunpack.c.l.b16 %v1302
        %v7744 = vunpack.c.h.b16 %v1302
        %v7745 = vunpack.c.l.b16 %v1303
        %v7746 = vunpack.c.h.b16 %v1303
        %v7747 = vunpack.c.l.b16 %v1304
        %v7748 = vunpack.c.h.b16 %v1304
        %v7749 = vunpack.c.l.b16 %v1305
        %v7750 = vunpack.c.h.b16 %v1305
        %v7751 = vunpack.c.l.b16 %v1306
        %v7752 = vunpack.c.h.b16 %v1306
        %v7753 = vunpack.c.l.b16 %v1307
        %v7754 = vunpack.c.h.b16 %v1307
        %v7755 = vpack.c.b16 %v7503, %v7499
        %v7756 = vpack.c.b16 %v7504, %v7500
        %v7757 = vpack.c.b16 %v7505, %v7501
        %v7758 = vpack.c.b16 %v7506, %v7502
        %v7759 = vpack.c.b16 %v7511, %v7507
        %v7760 = vpack.c.b16 %v7512, %v7508
        %v7761 = vpack.c.b16 %v7513, %v7509
        %v7762 = vpack.c.b16 %v7514, %v7510
        %v7763 = vpack.c.b16 %v7519, %v7515
        %v7764 = vpack.c.b16 %v7520, %v7516
        %v7765 = vpack.c.b16 %v7521, %v7517
        %v7766 = vpack.c.b16 %v7522, %v7518
        %v7767 = vpack.c.b16 %v7527, %v7523
        %v7768 = vpack.c.b16 %v7528, %v7524
        %v7769 = vpack.c.b16 %v7529, %v7525
        %v7770 = vpack.c.b16 %v7530, %v7526
        %v7771 = vpack.c.b16 %v7535, %v7531
        %v7772 = vpack.c.b16 %v7536, %v7532
        %v7773 = vpack.c.b16 %v7537, %v7533
        %v7774 = vpack.c.b16 %v7538, %v7534
        %v7775 = vpack.c.b16 %v7543, %v7539
        %v7776 = vpack.c.b16 %v7544, %v7540
        %v7777 = vpack.c.b16 %v7545, %v7541
        %v7778 = vpack.c.b16 %v7546, %v7542
        %v7779 = vpack.c.b16 %v7551, %v7547
        %v7780 = vpack.c.b16 %v7552, %v7548
        %v7781 = vpack.c.b16 %v7553, %v7549
        %v7782 = vpack.c.b16 %v7554, %v7550
        %v7783 = vpack.c.b16 %v7559, %v7555
        %v7784 = vpack.c.b16 %v7560, %v7556
        %v7785 = vpack.c.b16 %v7561, %v7557
        %v7786 = vpack.c.b16 %v7562, %v7558
        %v7787 = vpack.c.b16 %v7567, %v7563
        %v7788 = vpack.c.b16 %v7568, %v7564
        %v7789 = vpack.c.b16 %v7569, %v7565
        %v7790 = vpack.c.b16 %v7570, %v7566
        %v7791 = vpack.c.b16 %v7575, %v7571
        %v7792 = vpack.c.b16 %v7576, %v7572
        %v7793 = vpack.c.b16 %v7577, %v7573
        %v7794 = vpack.c.b16 %v7578, %v7574
        %v7795 = vpack.c.b16 %v7583, %v7579
        %v7796 = vpack.c.b16 %v7584, %v7580
        %v7797 = vpack.c.b16 %v7585, %v7581
        %v7798 = vpack.c.b16 %v7586, %v7582
        %v7799 = vpack.c.b16 %v7591, %v7587
        %v7800 = vpack.c.b16 %v7592, %v7588
        %v7801 = vpack.c.b16 %v7593, %v7589
        %v7802 = vpack.c.b16 %v7594, %v7590
        %v7803 = vpack.c.b16 %v7599, %v7595
        %v7804 = vpack.c.b16 %v7600, %v7596
        %v7805 = vpack.c.b16 %v7601, %v7597
        %v7806 = vpack.c.b16 %v7602, %v7598
        %v7807 = vpack.c.b16 %v7607, %v7603
        %v7808 = vpack.c.b16 %v7608, %v7604
        %v7809 = vpack.c.b16 %v7609, %v7605
        %v7810 = vpack.c.b16 %v7610, %v7606
        %v7811 = vpack.c.b16 %v7615, %v7611
        %v7812 = vpack.c.b16 %v7616, %v7612
        %v7813 = vpack.c.b16 %v7617, %v7613
        %v7814 = vpack.c.b16 %v7618, %v7614
        %v7815 = vpack.c.b16 %v7623, %v7619
        %v7816 = vpack.c.b16 %v7624, %v7620
        %v7817 = vpack.c.b16 %v7625, %v7621
        %v7818 = vpack.c.b16 %v7626, %v7622
        %v7819 = vpack.c.b16 %v7631, %v7627
        %v7820 = vpack.c.b16 %v7632, %v7628
        %v7821 = vpack.c.b16 %v7633, %v7629
        %v7822 = vpack.c.b16 %v7634, %v7630
        %v7823 = vpack.c.b16 %v7639, %v7635
        %v7824 = vpack.c.b16 %v7640, %v7636
        %v7825 = vpack.c.b16 %v7641, %v7637
        %v7826 = vpack.c.b16 %v7642, %v7638
        %v7827 = vpack.c.b16 %v7647, %v7643
        %v7828 = vpack.c.b16 %v7648, %v7644
        %v7829 = vpack.c.b16 %v7649, %v7645
        %v7830 = vpack.c.b16 %v7650, %v7646
        %v7831 = vpack.c.b16 %v7655, %v7651
        %v7832 = vpack.c.b16 %v7656, %v7652
        %v7833 = vpack.c.b16 %v7657, %v7653
        %v7834 = vpack.c.b16 %v7658, %v7654
        %v7835 = vpack.c.b16 %v7663, %v7659
        %v7836 = vpack.c.b16 %v7664, %v7660
        %v7837 = vpack.c.b16 %v7665, %v7661
        %v7838 = vpack.c.b16 %v7666, %v7662
        %v7839 = vpack.c.b16 %v7671, %v7667
        %v7840 = vpack.c.b16 %v7672, %v7668
        %v7841 = vpack.c.b16 %v7673, %v7669
        %v7842 = vpack.c.b16 %v7674, %v7670
        %v7843 = vpack.c.b16 %v7679, %v7675
        %v7844 = vpack.c.b16 %v7680, %v7676
        %v7845 = vpack.c.b16 %v7681, %v7677
        %v7846 = vpack.c.b16 %v7682, %v7678
        %v7847 = vpack.c.b16 %v7687, %v7683
        %v7848 = vpack.c.b16 %v7688, %v7684
        %v7849 = vpack.c.b16 %v7689, %v7685
        %v7850 = vpack.c.b16 %v7690, %v7686
        %v7851 = vpack.c.b16 %v7695, %v7691
        %v7852 = vpack.c.b16 %v7696, %v7692
        %v7853 = vpack.c.b16 %v7697, %v7693
        %v7854 = vpack.c.b16 %v7698, %v7694
        %v7855 = vpack.c.b16 %v7703, %v7699
        %v7856 = vpack.c.b16 %v7704, %v7700
        %v7857 = vpack.c.b16 %v7705, %v7701
        %v7858 = vpack.c.b16 %v7706, %v7702
        %v7859 = vpack.c.b16 %v7711, %v7707
        %v7860 = vpack.c.b16 %v7712, %v7708
        %v7861 = vpack.c.b16 %v7713, %v7709
        %v7862 = vpack.c.b16 %v7714, %v7710
        %v7863 = vpack.c.b16 %v7719, %v7715
        %v7864 = vpack.c.b16 %v7720, %v7716
        %v7865 = vpack.c.b16 %v7721, %v7717
        %v7866 = vpack.c.b16 %v7722, %v7718
        %v7867 = vpack.c.b16 %v7727, %v7723
        %v7868 = vpack.c.b16 %v7728, %v7724
        %v7869 = vpack.c.b16 %v7729, %v7725
        %v7870 = vpack.c.b16 %v7730, %v7726
        %v7871 = vpack.c.b16 %v7735, %v7731
        %v7872 = vpack.c.b16 %v7736, %v7732
        %v7873 = vpack.c.b16 %v7737, %v7733
        %v7874 = vpack.c.b16 %v7738, %v7734
        %v7875 = vpack.c.b16 %v7743, %v7739
        %v7876 = vpack.c.b16 %v7744, %v7740
        %v7877 = vpack.c.b16 %v7745, %v7741
        %v7878 = vpack.c.b16 %v7746, %v7742
        %v7879 = vpack.c.b16 %v7751, %v7747
        %v7880 = vpack.c.b16 %v7752, %v7748
        %v7881 = vpack.c.b16 %v7753, %v7749
        %v7882 = vpack.c.b16 %v7754, %v7750
        %8011 = vmatprep.subr.bf16.mxu0 %v7756
        %8012 = vmatpush1.bf16.msra.mxu0 %v7755
        %8013 = vmatprep.subr.bf16.mxu0 %v7760
        %8014 = vmatpush1.bf16.msra.mxu0 %v7759
        %8015 = vmatprep.subr.bf16.mxu0 %v7764
        %8016 = vmatpush1.bf16.msra.mxu0 %v7763
        %8017 = vmatprep.subr.bf16.mxu0 %v7768
        %8018 = vmatpush1.bf16.msra.mxu0 %v7767
        %8019 = vmatprep.subr.bf16.mxu0 %v7772
        %8020 = vmatpush1.bf16.msra.mxu0 %v7771
        %8021 = vmatprep.subr.bf16.mxu0 %v7776
        %8022 = vmatpush1.bf16.msra.mxu0 %v7775
        %8023 = vmatprep.subr.bf16.mxu0 %v7780
        %8024 = vmatpush1.bf16.msra.mxu0 %v7779
        %8025 = vmatprep.subr.bf16.mxu0 %v7784
        %8026 = vmatpush1.bf16.msra.mxu0 %v7783
        %8027 = vmatprep.subr.bf16.mxu0 %v7788
        %8028 = vmatpush1.bf16.msra.mxu0 %v7787
        %8029 = vmatprep.subr.bf16.mxu0 %v7792
        %8030 = vmatpush1.bf16.msra.mxu0 %v7791
        %8031 = vmatprep.subr.bf16.mxu0 %v7796
        %8032 = vmatpush1.bf16.msra.mxu0 %v7795
        %8033 = vmatprep.subr.bf16.mxu0 %v7800
        %8034 = vmatpush1.bf16.msra.mxu0 %v7799
        %8035 = vmatprep.subr.bf16.mxu0 %v7804
        %8036 = vmatpush1.bf16.msra.mxu0 %v7803
        %8037 = vmatprep.subr.bf16.mxu0 %v7808
        %8038 = vmatpush1.bf16.msra.mxu0 %v7807
        %8039 = vmatprep.subr.bf16.mxu0 %v7812
        %8040 = vmatpush1.bf16.msra.mxu0 %v7811
        %8041 = vmatprep.subr.bf16.mxu0 %v7816
        %8042 = vmatpush1.bf16.msra.mxu0 %v7815
        %8043 = vmatprep.mubr.bf16.mxu0 %v7287
        %8044 = vmatmul.mubr.bf16.gmra.mrb[0].mxu0 %v7286
        %v8045 = vpop.f32.mrb[0].mxu0
        %v8046 = vadd.f32 %v7354, %v8045
        %v8047 = vpop.f32.mrb[0].mxu0
        %v8048 = vadd.f32 %v7358, %v8047
        %v8049 = vpop.f32.mrb[0].mxu0
        %v8050 = vadd.f32 %v7354, %v8049
        %v8051 = vpop.f32.mrb[0].mxu0
        %v8052 = vadd.f32 %v7358, %v8051
        %8053 = vmatprep.mubr.bf16.mxu0 %v7291
        %8054 = vmatmul.mubr.bf16.gmra.mrb[0].mxu0 %v7290
        %v8055 = vpop.f32.mrb[0].mxu0
        %v8056 = vadd.f32 %v7354, %v8055
        %v8057 = vpop.f32.mrb[0].mxu0
        %v8058 = vadd.f32 %v7358, %v8057
        %v8059 = vpop.f32.mrb[0].mxu0
        %v8060 = vadd.f32 %v7354, %v8059
        %v8061 = vpop.f32.mrb[0].mxu0
        %v8062 = vadd.f32 %v7358, %v8061
        %8063 = vmatprep.mubr.bf16.mxu0 %v7295
        %8064 = vmatmul.mubr.bf16.gmra.mrb[0].mxu0 %v7294
        %v8065 = vpop.f32.mrb[0].mxu0
        %v8066 = vadd.f32 %v7354, %v8065
        %v8067 = vpop.f32.mrb[0].mxu0
        %v8068 = vadd.f32 %v7358, %v8067
        %v8069 = vpop.f32.mrb[0].mxu0
        %v8070 = vadd.f32 %v7354, %v8069
        %v8071 = vpop.f32.mrb[0].mxu0
        %v8072 = vadd.f32 %v7358, %v8071
        %8073 = vmatprep.mubr.bf16.mxu0 %v7299
        %8074 = vmatmul.mubr.bf16.gmra.mrb[0].mxu0 %v7298
        %v8075 = vpop.f32.mrb[0].mxu0
        %v8076 = vadd.f32 %v7354, %v8075
        %v8077 = vpop.f32.mrb[0].mxu0
        %v8078 = vadd.f32 %v7358, %v8077
        %v8079 = vpop.f32.mrb[0].mxu0
        %v8080 = vadd.f32 %v7354, %v8079
        %v8081 = vpop.f32.mrb[0].mxu0
        %v8082 = vadd.f32 %v7358, %v8081
        %8083 = vmatprep.mubr.bf16.mxu0 %v7303
        %8084 = vmatmul.mubr.bf16.gmra.mrb[0].mxu0 %v7302
        %v8085 = vpop.f32.mrb[0].mxu0
        %v8086 = vadd.f32 %v7354, %v8085
        %v8087 = vpop.f32.mrb[0].mxu0
        %v8088 = vadd.f32 %v7358, %v8087
        %v8089 = vpop.f32.mrb[0].mxu0
        %v8090 = vadd.f32 %v7354, %v8089
        %v8091 = vpop.f32.mrb[0].mxu0
        %v8092 = vadd.f32 %v7358, %v8091
        %8093 = vmatprep.mubr.bf16.mxu0 %v7307
        %8094 = vmatmul.mubr.bf16.gmra.mrb[0].mxu0 %v7306
        %v8095 = vpop.f32.mrb[0].mxu0
        %v8096 = vadd.f32 %v7354, %v8095
        %v8097 = vpop.f32.mrb[0].mxu0
        %v8098 = vadd.f32 %v7358, %v8097
        %v8099 = vpop.f32.mrb[0].mxu0
        %v8100 = vadd.f32 %v7354, %v8099
        %v8101 = vpop.f32.mrb[0].mxu0
        %v8102 = vadd.f32 %v7358, %v8101
        %8103 = vmatprep.mubr.bf16.mxu0 %v7311
        %8104 = vmatmul.mubr.bf16.gmra.mrb[0].mxu0 %v7310
        %v8105 = vpop.f32.mrb[0].mxu0
        %v8106 = vadd.f32 %v7354, %v8105
        %v8107 = vpop.f32.mrb[0].mxu0
        %v8108 = vadd.f32 %v7358, %v8107
        %v8109 = vpop.f32.mrb[0].mxu0
        %v8110 = vadd.f32 %v7354, %v8109
        %v8111 = vpop.f32.mrb[0].mxu0
        %v8112 = vadd.f32 %v7358, %v8111
        %8113 = vmatprep.mubr.bf16.mxu0 %v7315
        %8114 = vmatmul.mubr.bf16.gmra.mrb[0].mxu0 %v7314
        %v8115 = vpop.f32.mrb[0].mxu0
        %v8116 = vadd.f32 %v7354, %v8115
        %v8117 = vpop.f32.mrb[0].mxu0
        %v8118 = vadd.f32 %v7358, %v8117
        %v8119 = vpop.f32.mrb[0].mxu0
        %v8120 = vadd.f32 %v7354, %v8119
        %v8121 = vpop.f32.mrb[0].mxu0
        %v8122 = vadd.f32 %v7358, %v8121
        %8123 = vdwg.mxu0
        %8124 = vmatprep.subr.bf16.mxu0 %v7820
        %8125 = vmatpush1.bf16.msra.mxu0 %v7819
        %8126 = vmatprep.subr.bf16.mxu0 %v7824
        %8127 = vmatpush1.bf16.msra.mxu0 %v7823
        %8128 = vmatprep.subr.bf16.mxu0 %v7828
        %8129 = vmatpush1.bf16.msra.mxu0 %v7827
        %8130 = vmatprep.subr.bf16.mxu0 %v7832
        %8131 = vmatpush1.bf16.msra.mxu0 %v7831
        %8132 = vmatprep.subr.bf16.mxu0 %v7836
        %8133 = vmatpush1.bf16.msra.mxu0 %v7835
        %8134 = vmatprep.subr.bf16.mxu0 %v7840
        %8135 = vmatpush1.bf16.msra.mxu0 %v7839
        %8136 = vmatprep.subr.bf16.mxu0 %v7844
        %8137 = vmatpush1.bf16.msra.mxu0 %v7843
        %8138 = vmatprep.subr.bf16.mxu0 %v7848
        %8139 = vmatpush1.bf16.msra.mxu0 %v7847
        %8140 = vmatprep.subr.bf16.mxu0 %v7852
        %8141 = vmatpush1.bf16.msra.mxu0 %v7851
        %8142 = vmatprep.subr.bf16.mxu0 %v7856
        %8143 = vmatpush1.bf16.msra.mxu0 %v7855
        %8144 = vmatprep.subr.bf16.mxu0 %v7860
        %8145 = vmatpush1.bf16.msra.mxu0 %v7859
        %8146 = vmatprep.subr.bf16.mxu0 %v7864
        %8147 = vmatpush1.bf16.msra.mxu0 %v7863
        %8148 = vmatprep.subr.bf16.mxu0 %v7868
        %8149 = vmatpush1.bf16.msra.mxu0 %v7867
        %8150 = vmatprep.subr.bf16.mxu0 %v7872
        %8151 = vmatpush1.bf16.msra.mxu0 %v7871
        %8152 = vmatprep.subr.bf16.mxu0 %v7876
        %8153 = vmatpush1.bf16.msra.mxu0 %v7875
        %8154 = vmatprep.subr.bf16.mxu0 %v7880
        %8155 = vmatpush1.bf16.msra.mxu0 %v7879
        %8156 = vmatprep.mubr.bf16.mxu0 %v7289
        %8157 = vmatmul.mubr.bf16.gmra.mrb[0].mxu0 %v7288
        %v8158 = vpop.f32.mrb[0].mxu0
        %v8159 = vadd.f32 %v8046, %v8158
        %v8160 = vpop.f32.mrb[0].mxu0
        %v8161 = vadd.f32 %v8048, %v8160
        %v8162 = vpop.f32.mrb[0].mxu0
        %v8163 = vadd.f32 %v8050, %v8162
        %v8164 = vpop.f32.mrb[0].mxu0
        %v8165 = vadd.f32 %v8052, %v8164
        %8166 = vmatprep.mubr.bf16.mxu0 %v7293
        %8167 = vmatmul.mubr.bf16.gmra.mrb[0].mxu0 %v7292
        %v8168 = vpop.f32.mrb[0].mxu0
        %v8169 = vadd.f32 %v8056, %v8168
        %v8170 = vpop.f32.mrb[0].mxu0
        %v8171 = vadd.f32 %v8058, %v8170
        %v8172 = vpop.f32.mrb[0].mxu0
        %v8173 = vadd.f32 %v8060, %v8172
        %v8174 = vpop.f32.mrb[0].mxu0
        %v8175 = vadd.f32 %v8062, %v8174
        %8176 = vmatprep.mubr.bf16.mxu0 %v7297
        %8177 = vmatmul.mubr.bf16.gmra.mrb[0].mxu0 %v7296
        %v8178 = vpop.f32.mrb[0].mxu0
        %v8179 = vadd.f32 %v8066, %v8178
        %v8180 = vpop.f32.mrb[0].mxu0
        %v8181 = vadd.f32 %v8068, %v8180
        %v8182 = vpop.f32.mrb[0].mxu0
        %v8183 = vadd.f32 %v8070, %v8182
        %v8184 = vpop.f32.mrb[0].mxu0
        %v8185 = vadd.f32 %v8072, %v8184
        %8186 = vmatprep.mubr.bf16.mxu0 %v7301
        %8187 = vmatmul.mubr.bf16.gmra.mrb[0].mxu0 %v7300
        %v8188 = vpop.f32.mrb[0].mxu0
        %v8189 = vadd.f32 %v8076, %v8188
        %v8190 = vpop.f32.mrb[0].mxu0
        %v8191 = vadd.f32 %v8078, %v8190
        %v8192 = vpop.f32.mrb[0].mxu0
        %v8193 = vadd.f32 %v8080, %v8192
        %v8194 = vpop.f32.mrb[0].mxu0
        %v8195 = vadd.f32 %v8082, %v8194
        %8196 = vmatprep.mubr.bf16.mxu0 %v7305
        %8197 = vmatmul.mubr.bf16.gmra.mrb[0].mxu0 %v7304
        %v8198 = vpop.f32.mrb[0].mxu0
        %v8199 = vadd.f32 %v8086, %v8198
        %v8200 = vpop.f32.mrb[0].mxu0
        %v8201 = vadd.f32 %v8088, %v8200
        %v8202 = vpop.f32.mrb[0].mxu0
        %v8203 = vadd.f32 %v8090, %v8202
        %v8204 = vpop.f32.mrb[0].mxu0
        %v8205 = vadd.f32 %v8092, %v8204
        %8206 = vmatprep.mubr.bf16.mxu0 %v7309
        %8207 = vmatmul.mubr.bf16.gmra.mrb[0].mxu0 %v7308
        %v8208 = vpop.f32.mrb[0].mxu0
        %v8209 = vadd.f32 %v8096, %v8208
        %v8210 = vpop.f32.mrb[0].mxu0
        %v8211 = vadd.f32 %v8098, %v8210
        %v8212 = vpop.f32.mrb[0].mxu0
        %v8213 = vadd.f32 %v8100, %v8212
        %v8214 = vpop.f32.mrb[0].mxu0
        %v8215 = vadd.f32 %v8102, %v8214
        %8216 = vmatprep.mubr.bf16.mxu0 %v7313
        %8217 = vmatmul.mubr.bf16.gmra.mrb[0].mxu0 %v7312
        %v8218 = vpop.f32.mrb[0].mxu0
        %v8219 = vadd.f32 %v8106, %v8218
        %v8220 = vpop.f32.mrb[0].mxu0
        %v8221 = vadd.f32 %v8108, %v8220
        %v8222 = vpop.f32.mrb[0].mxu0
        %v8223 = vadd.f32 %v8110, %v8222
        %v8224 = vpop.f32.mrb[0].mxu0
        %v8225 = vadd.f32 %v8112, %v8224
        %8226 = vmatprep.mubr.bf16.mxu0 %v7317
        %8227 = vmatmul.mubr.bf16.gmra.mrb[0].mxu0 %v7316
        %v8228 = vpop.f32.mrb[0].mxu0
        %v8229 = vadd.f32 %v8116, %v8228
        %v8230 = vpop.f32.mrb[0].mxu0
        %v8231 = vadd.f32 %v8118, %v8230
        %v8232 = vpop.f32.mrb[0].mxu0
        %v8233 = vadd.f32 %v8120, %v8232
        %v8234 = vpop.f32.mrb[0].mxu0
        %v8235 = vadd.f32 %v8122, %v8234
        %8236 = vdwg.mxu0
        %8237 = vmatprep.subr.bf16.mxu0 %v7758
        %8238 = vmatpush1.bf16.msra.mxu0 %v7757
        %8239 = vmatprep.subr.bf16.mxu0 %v7762
        %8240 = vmatpush1.bf16.msra.mxu0 %v7761
        %8241 = vmatprep.subr.bf16.mxu0 %v7766
        %8242 = vmatpush1.bf16.msra.mxu0 %v7765
        %8243 = vmatprep.subr.bf16.mxu0 %v7770
        %8244 = vmatpush1.bf16.msra.mxu0 %v7769
        %8245 = vmatprep.subr.bf16.mxu0 %v7774
        %8246 = vmatpush1.bf16.msra.mxu0 %v7773
        %8247 = vmatprep.subr.bf16.mxu0 %v7778
        %8248 = vmatpush1.bf16.msra.mxu0 %v7777
        %8249 = vmatprep.subr.bf16.mxu0 %v7782
        %8250 = vmatpush1.bf16.msra.mxu0 %v7781
        %8251 = vmatprep.subr.bf16.mxu0 %v7786
        %8252 = vmatpush1.bf16.msra.mxu0 %v7785
        %8253 = vmatprep.subr.bf16.mxu0 %v7790
        %8254 = vmatpush1.bf16.msra.mxu0 %v7789
        %8255 = vmatprep.subr.bf16.mxu0 %v7794
        %8256 = vmatpush1.bf16.msra.mxu0 %v7793
        %8257 = vmatprep.subr.bf16.mxu0 %v7798
        %8258 = vmatpush1.bf16.msra.mxu0 %v7797
        %8259 = vmatprep.subr.bf16.mxu0 %v7802
        %8260 = vmatpush1.bf16.msra.mxu0 %v7801
        %8261 = vmatprep.subr.bf16.mxu0 %v7806
        %8262 = vmatpush1.bf16.msra.mxu0 %v7805
        %8263 = vmatprep.subr.bf16.mxu0 %v7810
        %8264 = vmatpush1.bf16.msra.mxu0 %v7809
        %8265 = vmatprep.subr.bf16.mxu0 %v7814
        %8266 = vmatpush1.bf16.msra.mxu0 %v7813
        %8267 = vmatprep.subr.bf16.mxu0 %v7818
        %8268 = vmatpush1.bf16.msra.mxu0 %v7817
        %8269 = vmatprep.mubr.bf16.mxu0 %v7287
        %8270 = vmatmul.mubr.bf16.gmra.mrb[0].mxu0 %v7286
        %v8271 = vpop.f32.mrb[0].mxu0
        %v8272 = vadd.f32 %v7362, %v8271
        %v8273 = vpop.f32.mrb[0].mxu0
        %v8274 = vadd.f32 %v7366, %v8273
        %v8275 = vpop.f32.mrb[0].mxu0
        %v8276 = vadd.f32 %v7362, %v8275
        %v8277 = vpop.f32.mrb[0].mxu0
        %v8278 = vadd.f32 %v7366, %v8277
        %8279 = vmatprep.mubr.bf16.mxu0 %v7291
        %8280 = vmatmul.mubr.bf16.gmra.mrb[0].mxu0 %v7290
        %v8281 = vpop.f32.mrb[0].mxu0
        %v8282 = vadd.f32 %v7362, %v8281
        %v8283 = vpop.f32.mrb[0].mxu0
        %v8284 = vadd.f32 %v7366, %v8283
        %v8285 = vpop.f32.mrb[0].mxu0
        %v8286 = vadd.f32 %v7362, %v8285
        %v8287 = vpop.f32.mrb[0].mxu0
        %v8288 = vadd.f32 %v7366, %v8287
        %8289 = vmatprep.mubr.bf16.mxu0 %v7295
        %8290 = vmatmul.mubr.bf16.gmra.mrb[0].mxu0 %v7294
        %v8291 = vpop.f32.mrb[0].mxu0
        %v8292 = vadd.f32 %v7362, %v8291
        %v8293 = vpop.f32.mrb[0].mxu0
        %v8294 = vadd.f32 %v7366, %v8293
        %v8295 = vpop.f32.mrb[0].mxu0
        %v8296 = vadd.f32 %v7362, %v8295
        %v8297 = vpop.f32.mrb[0].mxu0
        %v8298 = vadd.f32 %v7366, %v8297
        %8299 = vmatprep.mubr.bf16.mxu0 %v7299
        %8300 = vmatmul.mubr.bf16.gmra.mrb[0].mxu0 %v7298
        %v8301 = vpop.f32.mrb[0].mxu0
        %v8302 = vadd.f32 %v7362, %v8301
        %v8303 = vpop.f32.mrb[0].mxu0
        %v8304 = vadd.f32 %v7366, %v8303
        %v8305 = vpop.f32.mrb[0].mxu0
        %v8306 = vadd.f32 %v7362, %v8305
        %v8307 = vpop.f32.mrb[0].mxu0
        %v8308 = vadd.f32 %v7366, %v8307
        %8309 = vmatprep.mubr.bf16.mxu0 %v7303
        %8310 = vmatmul.mubr.bf16.gmra.mrb[0].mxu0 %v7302
        %v8311 = vpop.f32.mrb[0].mxu0
        %v8312 = vadd.f32 %v7362, %v8311
        %v8313 = vpop.f32.mrb[0].mxu0
        %v8314 = vadd.f32 %v7366, %v8313
        %v8315 = vpop.f32.mrb[0].mxu0
        %v8316 = vadd.f32 %v7362, %v8315
        %v8317 = vpop.f32.mrb[0].mxu0
        %v8318 = vadd.f32 %v7366, %v8317
        %8319 = vmatprep.mubr.bf16.mxu0 %v7307
        %8320 = vmatmul.mubr.bf16.gmra.mrb[0].mxu0 %v7306
        %v8321 = vpop.f32.mrb[0].mxu0
        %v8322 = vadd.f32 %v7362, %v8321
        %v8323 = vpop.f32.mrb[0].mxu0
        %v8324 = vadd.f32 %v7366, %v8323
        %v8325 = vpop.f32.mrb[0].mxu0
        %v8326 = vadd.f32 %v7362, %v8325
        %v8327 = vpop.f32.mrb[0].mxu0
        %v8328 = vadd.f32 %v7366, %v8327
        %8329 = vmatprep.mubr.bf16.mxu0 %v7311
        %8330 = vmatmul.mubr.bf16.gmra.mrb[0].mxu0 %v7310
        %v8331 = vpop.f32.mrb[0].mxu0
        %v8332 = vadd.f32 %v7362, %v8331
        %v8333 = vpop.f32.mrb[0].mxu0
        %v8334 = vadd.f32 %v7366, %v8333
        %v8335 = vpop.f32.mrb[0].mxu0
        %v8336 = vadd.f32 %v7362, %v8335
        %v8337 = vpop.f32.mrb[0].mxu0
        %v8338 = vadd.f32 %v7366, %v8337
        %8339 = vmatprep.mubr.bf16.mxu0 %v7315
        %8340 = vmatmul.mubr.bf16.gmra.mrb[0].mxu0 %v7314
        %v8341 = vpop.f32.mrb[0].mxu0
        %v8342 = vadd.f32 %v7362, %v8341
        %v8343 = vpop.f32.mrb[0].mxu0
        %v8344 = vadd.f32 %v7366, %v8343
        %v8345 = vpop.f32.mrb[0].mxu0
        %v8346 = vadd.f32 %v7362, %v8345
        %v8347 = vpop.f32.mrb[0].mxu0
        %v8348 = vadd.f32 %v7366, %v8347
        %8349 = vdwg.mxu0
        %8350 = vmatprep.subr.bf16.mxu0 %v7822
        %8351 = vmatpush1.bf16.msra.mxu0 %v7821
        %8352 = vmatprep.subr.bf16.mxu0 %v7826
        %8353 = vmatpush1.bf16.msra.mxu0 %v7825
        %8354 = vmatprep.subr.bf16.mxu0 %v7830
        %8355 = vmatpush1.bf16.msra.mxu0 %v7829
        %8356 = vmatprep.subr.bf16.mxu0 %v7834
        %8357 = vmatpush1.bf16.msra.mxu0 %v7833
        %8358 = vmatprep.subr.bf16.mxu0 %v7838
        %8359 = vmatpush1.bf16.msra.mxu0 %v7837
        %8360 = vmatprep.subr.bf16.mxu0 %v7842
        %8361 = vmatpush1.bf16.msra.mxu0 %v7841
        %8362 = vmatprep.subr.bf16.mxu0 %v7846
        %8363 = vmatpush1.bf16.msra.mxu0 %v7845
        %8364 = vmatprep.subr.bf16.mxu0 %v7850
        %8365 = vmatpush1.bf16.msra.mxu0 %v7849
        %8366 = vmatprep.subr.bf16.mxu0 %v7854
        %8367 = vmatpush1.bf16.msra.mxu0 %v7853
        %8368 = vmatprep.subr.bf16.mxu0 %v7858
        %8369 = vmatpush1.bf16.msra.mxu0 %v7857
        %8370 = vmatprep.subr.bf16.mxu0 %v7862
        %8371 = vmatpush1.bf16.msra.mxu0 %v7861
        %8372 = vmatprep.subr.bf16.mxu0 %v7866
        %8373 = vmatpush1.bf16.msra.mxu0 %v7865
        %8374 = vmatprep.subr.bf16.mxu0 %v7870
        %8375 = vmatpush1.bf16.msra.mxu0 %v7869
        %8376 = vmatprep.subr.bf16.mxu0 %v7874
        %8377 = vmatpush1.bf16.msra.mxu0 %v7873
        %8378 = vmatprep.subr.bf16.mxu0 %v7878
        %8379 = vmatpush1.bf16.msra.mxu0 %v7877
        %8380 = vmatprep.subr.bf16.mxu0 %v7882
        %8381 = vmatpush1.bf16.msra.mxu0 %v7881
        %8382 = vmatprep.mubr.bf16.mxu0 %v7289
        %8383 = vmatmul.mubr.bf16.gmra.mrb[0].mxu0 %v7288
        %v8384 = vpop.f32.mrb[0].mxu0
        %v8385 = vadd.f32 %v8272, %v8384
        %v8386 = vpop.f32.mrb[0].mxu0
        %v8387 = vadd.f32 %v8274, %v8386
        %v8388 = vpop.f32.mrb[0].mxu0
        %v8389 = vadd.f32 %v8276, %v8388
        %v8390 = vpop.f32.mrb[0].mxu0
        %v8391 = vadd.f32 %v8278, %v8390
        %8392 = vmatprep.mubr.bf16.mxu0 %v7293
        %8393 = vmatmul.mubr.bf16.gmra.mrb[0].mxu0 %v7292
        %v8394 = vpop.f32.mrb[0].mxu0
        %v8395 = vadd.f32 %v8282, %v8394
        %v8396 = vpop.f32.mrb[0].mxu0
        %v8397 = vadd.f32 %v8284, %v8396
        %v8398 = vpop.f32.mrb[0].mxu0
        %v8399 = vadd.f32 %v8286, %v8398
        %v8400 = vpop.f32.mrb[0].mxu0
        %v8401 = vadd.f32 %v8288, %v8400
        %8402 = vmatprep.mubr.bf16.mxu0 %v7297
        %8403 = vmatmul.mubr.bf16.gmra.mrb[0].mxu0 %v7296
        %v8404 = vpop.f32.mrb[0].mxu0
        %v8405 = vadd.f32 %v8292, %v8404
        %v8406 = vpop.f32.mrb[0].mxu0
        %v8407 = vadd.f32 %v8294, %v8406
        %v8408 = vpop.f32.mrb[0].mxu0
        %v8409 = vadd.f32 %v8296, %v8408
        %v8410 = vpop.f32.mrb[0].mxu0
        %v8411 = vadd.f32 %v8298, %v8410
        %8412 = vmatprep.mubr.bf16.mxu0 %v7301
        %8413 = vmatmul.mubr.bf16.gmra.mrb[0].mxu0 %v7300
        %v8414 = vpop.f32.mrb[0].mxu0
        %v8415 = vadd.f32 %v8302, %v8414
        %v8416 = vpop.f32.mrb[0].mxu0
        %v8417 = vadd.f32 %v8304, %v8416
        %v8418 = vpop.f32.mrb[0].mxu0
        %v8419 = vadd.f32 %v8306, %v8418
        %v8420 = vpop.f32.mrb[0].mxu0
        %v8421 = vadd.f32 %v8308, %v8420
        %8422 = vmatprep.mubr.bf16.mxu0 %v7305
        %8423 = vmatmul.mubr.bf16.gmra.mrb[0].mxu0 %v7304
        %v8424 = vpop.f32.mrb[0].mxu0
        %v8425 = vadd.f32 %v8312, %v8424
        %v8426 = vpop.f32.mrb[0].mxu0
        %v8427 = vadd.f32 %v8314, %v8426
        %v8428 = vpop.f32.mrb[0].mxu0
        %v8429 = vadd.f32 %v8316, %v8428
        %v8430 = vpop.f32.mrb[0].mxu0
        %v8431 = vadd.f32 %v8318, %v8430
        %8432 = vmatprep.mubr.bf16.mxu0 %v7309
        %8433 = vmatmul.mubr.bf16.gmra.mrb[0].mxu0 %v7308
        %v8434 = vpop.f32.mrb[0].mxu0
        %v8435 = vadd.f32 %v8322, %v8434
        %v8436 = vpop.f32.mrb[0].mxu0
        %v8437 = vadd.f32 %v8324, %v8436
        %v8438 = vpop.f32.mrb[0].mxu0
        %v8439 = vadd.f32 %v8326, %v8438
        %v8440 = vpop.f32.mrb[0].mxu0
        %v8441 = vadd.f32 %v8328, %v8440
        %8442 = vmatprep.mubr.bf16.mxu0 %v7313
        %8443 = vmatmul.mubr.bf16.gmra.mrb[0].mxu0 %v7312
        %v8444 = vpop.f32.mrb[0].mxu0
        %v8445 = vadd.f32 %v8332, %v8444
        %v8446 = vpop.f32.mrb[0].mxu0
        %v8447 = vadd.f32 %v8334, %v8446
        %v8448 = vpop.f32.mrb[0].mxu0
        %v8449 = vadd.f32 %v8336, %v8448
        %v8450 = vpop.f32.mrb[0].mxu0
        %v8451 = vadd.f32 %v8338, %v8450
        %8452 = vmatprep.mubr.bf16.mxu0 %v7317
        %8453 = vmatmul.mubr.bf16.gmra.mrb[0].mxu0 %v7316
        %v8454 = vpop.f32.mrb[0].mxu0
        %v8455 = vadd.f32 %v8342, %v8454
        %v8456 = vpop.f32.mrb[0].mxu0
        %v8457 = vadd.f32 %v8344, %v8456
        %v8458 = vpop.f32.mrb[0].mxu0
        %v8459 = vadd.f32 %v8346, %v8458
        %v8460 = vpop.f32.mrb[0].mxu0
        %v8461 = vadd.f32 %v8348, %v8460
        %8462 = vdwg.mxu0
        %v8463 = vpack.c.bf16 %v8163, %v8159
        %v8464 = vpack.c.bf16 %v8165, %v8161
        %v8465 = vpack.c.bf16 %v8389, %v8385
        %v8466 = vpack.c.bf16 %v8391, %v8387
        %v8467 = vpack.c.bf16 %v8173, %v8169
        %v8468 = vpack.c.bf16 %v8175, %v8171
        %v8469 = vpack.c.bf16 %v8399, %v8395
        %v8470 = vpack.c.bf16 %v8401, %v8397
        %v8471 = vpack.c.bf16 %v8183, %v8179
        %v8472 = vpack.c.bf16 %v8185, %v8181
        %v8473 = vpack.c.bf16 %v8409, %v8405
        %v8474 = vpack.c.bf16 %v8411, %v8407
        %v8475 = vpack.c.bf16 %v8193, %v8189
        %v8476 = vpack.c.bf16 %v8195, %v8191
        %v8477 = vpack.c.bf16 %v8419, %v8415
        %v8478 = vpack.c.bf16 %v8421, %v8417
        %v8479 = vpack.c.bf16 %v8203, %v8199
        %v8480 = vpack.c.bf16 %v8205, %v8201
        %v8481 = vpack.c.bf16 %v8429, %v8425
        %v8482 = vpack.c.bf16 %v8431, %v8427
        %v8483 = vpack.c.bf16 %v8213, %v8209
        %v8484 = vpack.c.bf16 %v8215, %v8211
        %v8485 = vpack.c.bf16 %v8439, %v8435
        %v8486 = vpack.c.bf16 %v8441, %v8437
        %v8487 = vpack.c.bf16 %v8223, %v8219
        %v8488 = vpack.c.bf16 %v8225, %v8221
        %v8489 = vpack.c.bf16 %v8449, %v8445
        %v8490 = vpack.c.bf16 %v8451, %v8447
        %v8491 = vpack.c.bf16 %v8233, %v8229
        %v8492 = vpack.c.bf16 %v8235, %v8231
        %v8493 = vpack.c.bf16 %v8459, %v8455
        %v8494 = vpack.c.bf16 %v8461, %v8457
        %v8495 = vmul.f32 %v5869, %v7354
        %v8496 = vmul.f32 %v5871, %v7358
        %v8497 = vmul.f32 %v6095, %v7362
        %v8498 = vmul.f32 %v6097, %v7366
        %v8499 = vmul.f32 %v5873, %v7354
        %v8500 = vmul.f32 %v5875, %v7358
        %v8501 = vmul.f32 %v6099, %v7362
        %v8502 = vmul.f32 %v6101, %v7366
        %v8503 = vmul.f32 %v5879, %v7354
        %v8504 = vmul.f32 %v5881, %v7358
        %v8505 = vmul.f32 %v6105, %v7362
        %v8506 = vmul.f32 %v6107, %v7366
        %v8507 = vmul.f32 %v5883, %v7354
        %v8508 = vmul.f32 %v5885, %v7358
        %v8509 = vmul.f32 %v6109, %v7362
        %v8510 = vmul.f32 %v6111, %v7366
        %v8511 = vmul.f32 %v5889, %v7354
        %v8512 = vmul.f32 %v5891, %v7358
        %v8513 = vmul.f32 %v6115, %v7362
        %v8514 = vmul.f32 %v6117, %v7366
        %v8515 = vmul.f32 %v5893, %v7354
        %v8516 = vmul.f32 %v5895, %v7358
        %v8517 = vmul.f32 %v6119, %v7362
        %v8518 = vmul.f32 %v6121, %v7366
        %v8519 = vmul.f32 %v5899, %v7354
        %v8520 = vmul.f32 %v5901, %v7358
        %v8521 = vmul.f32 %v6125, %v7362
        %v8522 = vmul.f32 %v6127, %v7366
        %v8523 = vmul.f32 %v5903, %v7354
        %v8524 = vmul.f32 %v5905, %v7358
        %v8525 = vmul.f32 %v6129, %v7362
        %v8526 = vmul.f32 %v6131, %v7366
        %v8527 = vmul.f32 %v5909, %v7354
        %v8528 = vmul.f32 %v5911, %v7358
        %v8529 = vmul.f32 %v6135, %v7362
        %v8530 = vmul.f32 %v6137, %v7366
        %v8531 = vmul.f32 %v5913, %v7354
        %v8532 = vmul.f32 %v5915, %v7358
        %v8533 = vmul.f32 %v6139, %v7362
        %v8534 = vmul.f32 %v6141, %v7366
        %v8535 = vmul.f32 %v5919, %v7354
        %v8536 = vmul.f32 %v5921, %v7358
        %v8537 = vmul.f32 %v6145, %v7362
        %v8538 = vmul.f32 %v6147, %v7366
        %v8539 = vmul.f32 %v5923, %v7354
        %v8540 = vmul.f32 %v5925, %v7358
        %v8541 = vmul.f32 %v6149, %v7362
        %v8542 = vmul.f32 %v6151, %v7366
        %v8543 = vmul.f32 %v5929, %v7354
        %v8544 = vmul.f32 %v5931, %v7358
        %v8545 = vmul.f32 %v6155, %v7362
        %v8546 = vmul.f32 %v6157, %v7366
        %v8547 = vmul.f32 %v5933, %v7354
        %v8548 = vmul.f32 %v5935, %v7358
        %v8549 = vmul.f32 %v6159, %v7362
        %v8550 = vmul.f32 %v6161, %v7366
        %v8551 = vmul.f32 %v5939, %v7354
        %v8552 = vmul.f32 %v5941, %v7358
        %v8553 = vmul.f32 %v6165, %v7362
        %v8554 = vmul.f32 %v6167, %v7366
        %v8555 = vmul.f32 %v5943, %v7354
        %v8556 = vmul.f32 %v5945, %v7358
        %v8557 = vmul.f32 %v6169, %v7362
        %v8558 = vmul.f32 %v6171, %v7366
        %v8559 = vadd.f32 %v8495, %v8496
        %v8560 = vadd.f32 %v8559, %v8497
        %v8561 = vadd.f32 %v8560, %v8498
        %8562 = vadd.xlane.f32.xlu0 %v8561
        %v8563 = vpop.xlane.xlu0 %8562
        %v8564 = vadd.f32 %v8499, %v8500
        %v8565 = vadd.f32 %v8564, %v8501
        %v8566 = vadd.f32 %v8565, %v8502
        %8567 = vadd.xlane.f32.xlu0 %v8566
        %v8568 = vpop.xlane.xlu0 %8567
        %v8569 = vadd.f32 %v8503, %v8504
        %v8570 = vadd.f32 %v8569, %v8505
        %v8571 = vadd.f32 %v8570, %v8506
        %8572 = vadd.xlane.f32.xlu0 %v8571
        %v8573 = vpop.xlane.xlu0 %8572
        %v8574 = vadd.f32 %v8507, %v8508
        %v8575 = vadd.f32 %v8574, %v8509
        %v8576 = vadd.f32 %v8575, %v8510
        %8577 = vadd.xlane.f32.xlu0 %v8576
        %v8578 = vpop.xlane.xlu0 %8577
        %v8579 = vadd.f32 %v8511, %v8512
        %v8580 = vadd.f32 %v8579, %v8513
        %v8581 = vadd.f32 %v8580, %v8514
        %8582 = vadd.xlane.f32.xlu0 %v8581
        %v8583 = vpop.xlane.xlu0 %8582
        %v8584 = vadd.f32 %v8515, %v8516
        %v8585 = vadd.f32 %v8584, %v8517
        %v8586 = vadd.f32 %v8585, %v8518
        %8587 = vadd.xlane.f32.xlu0 %v8586
        %v8588 = vpop.xlane.xlu0 %8587
        %v8589 = vadd.f32 %v8519, %v8520
        %v8590 = vadd.f32 %v8589, %v8521
        %v8591 = vadd.f32 %v8590, %v8522
        %8592 = vadd.xlane.f32.xlu0 %v8591
        %v8593 = vpop.xlane.xlu0 %8592
        %v8594 = vadd.f32 %v8523, %v8524
        %v8595 = vadd.f32 %v8594, %v8525
        %v8596 = vadd.f32 %v8595, %v8526
        %8597 = vadd.xlane.f32.xlu0 %v8596
        %v8598 = vpop.xlane.xlu0 %8597
        %v8599 = vadd.f32 %v8527, %v8528
        %v8600 = vadd.f32 %v8599, %v8529
        %v8601 = vadd.f32 %v8600, %v8530
        %8602 = vadd.xlane.f32.xlu0 %v8601
        %v8603 = vpop.xlane.xlu0 %8602
        %v8604 = vadd.f32 %v8531, %v8532
        %v8605 = vadd.f32 %v8604, %v8533
        %v8606 = vadd.f32 %v8605, %v8534
        %8607 = vadd.xlane.f32.xlu0 %v8606
        %v8608 = vpop.xlane.xlu0 %8607
        %v8609 = vadd.f32 %v8535, %v8536
        %v8610 = vadd.f32 %v8609, %v8537
        %v8611 = vadd.f32 %v8610, %v8538
        %8612 = vadd.xlane.f32.xlu0 %v8611
        %v8613 = vpop.xlane.xlu0 %8612
        %v8614 = vadd.f32 %v8539, %v8540
        %v8615 = vadd.f32 %v8614, %v8541
        %v8616 = vadd.f32 %v8615, %v8542
        %8617 = vadd.xlane.f32.xlu0 %v8616
        %v8618 = vpop.xlane.xlu0 %8617
        %v8619 = vadd.f32 %v8543, %v8544
        %v8620 = vadd.f32 %v8619, %v8545
        %v8621 = vadd.f32 %v8620, %v8546
        %8622 = vadd.xlane.f32.xlu0 %v8621
        %v8623 = vpop.xlane.xlu0 %8622
        %v8624 = vadd.f32 %v8547, %v8548
        %v8625 = vadd.f32 %v8624, %v8549
        %v8626 = vadd.f32 %v8625, %v8550
        %8627 = vadd.xlane.f32.xlu0 %v8626
        %v8628 = vpop.xlane.xlu0 %8627
        %v8629 = vadd.f32 %v8551, %v8552
        %v8630 = vadd.f32 %v8629, %v8553
        %v8631 = vadd.f32 %v8630, %v8554
        %8632 = vadd.xlane.f32.xlu0 %v8631
        %v8633 = vpop.xlane.xlu0 %8632
        %v8634 = vadd.f32 %v8555, %v8556
        %v8635 = vadd.f32 %v8634, %v8557
        %v8636 = vadd.f32 %v8635, %v8558
        %8637 = vadd.xlane.f32.xlu0 %v8636
        %v8638 = vpop.xlane.xlu0 %8637
        %8639 = vmatprep.subr.bf16.mxu0 %v7319
        %8640 = vmatpush1.bf16.xpose.msra.mxu0 %v7318
        %8641 = vmatprep.subr.bf16.mxu0 %v7323
        %8642 = vmatpush1.bf16.xpose.msra.mxu0 %v7322
        %8643 = vmatprep.subr.bf16.mxu0 %v7327
        %8644 = vmatpush1.bf16.xpose.msra.mxu0 %v7326
        %8645 = vmatprep.subr.bf16.mxu0 %v7331
        %8646 = vmatpush1.bf16.xpose.msra.mxu0 %v7330
        %8647 = vmatprep.subr.bf16.mxu0 %v7335
        %8648 = vmatpush1.bf16.xpose.msra.mxu0 %v7334
        %8649 = vmatprep.subr.bf16.mxu0 %v7339
        %8650 = vmatpush1.bf16.xpose.msra.mxu0 %v7338
        %8651 = vmatprep.subr.bf16.mxu0 %v7343
        %8652 = vmatpush1.bf16.xpose.msra.mxu0 %v7342
        %8653 = vmatprep.subr.bf16.mxu0 %v7347
        %8654 = vmatpush1.bf16.xpose.msra.mxu0 %v7346
        %8655 = vmatprep.subr.bf16.mxu0 0
        %8656 = vmatpush1.bf16.xpose.msra.mxu0 0
        %8657 = vmatprep.subr.bf16.mxu0 0
        %8658 = vmatpush1.bf16.xpose.msra.mxu0 0
        %8659 = vmatprep.subr.bf16.mxu0 0
        %8660 = vmatpush1.bf16.xpose.msra.mxu0 0
        %8661 = vmatprep.subr.bf16.mxu0 0
        %8662 = vmatpush1.bf16.xpose.msra.mxu0 0
        %8663 = vmatprep.subr.bf16.mxu0 0
        %8664 = vmatpush1.bf16.xpose.msra.mxu0 0
        %8665 = vmatprep.subr.bf16.mxu0 0
        %8666 = vmatpush1.bf16.xpose.msra.mxu0 0
        %8667 = vmatprep.subr.bf16.mxu0 0
        %8668 = vmatpush1.bf16.xpose.msra.mxu0 0
        %8669 = vmatprep.subr.bf16.mxu0 0
        %8670 = vmatpush1.bf16.xpose.msra.mxu0 0
        %8671 = vmatprep.mubr.bf16.mxu0 %v8464
        %8672 = vmatmul.mubr.bf16.gmra.mrb[0].mxu0 %v8463
        %v8673 = vpop.f32.mrb[0].mxu0
        %v8674 = vadd.f32 %v8563, %v8673
        %v8675 = vpop.f32.mrb[0].mxu0
        %v8676 = vpop.f32.mrb[0].mxu0
        %v8677 = vadd.f32 %v8568, %v8676
        %v8678 = vpop.f32.mrb[0].mxu0
        %8679 = vmatprep.mubr.bf16.mxu0 %v8468
        %8680 = vmatmul.mubr.bf16.gmra.mrb[0].mxu0 %v8467
        %v8681 = vpop.f32.mrb[0].mxu0
        %v8682 = vadd.f32 %v8573, %v8681
        %v8683 = vpop.f32.mrb[0].mxu0
        %v8684 = vpop.f32.mrb[0].mxu0
        %v8685 = vadd.f32 %v8578, %v8684
        %v8686 = vpop.f32.mrb[0].mxu0
        %8687 = vmatprep.mubr.bf16.mxu0 %v8472
        %8688 = vmatmul.mubr.bf16.gmra.mrb[0].mxu0 %v8471
        %v8689 = vpop.f32.mrb[0].mxu0
        %v8690 = vadd.f32 %v8583, %v8689
        %v8691 = vpop.f32.mrb[0].mxu0
        %v8692 = vpop.f32.mrb[0].mxu0
        %v8693 = vadd.f32 %v8588, %v8692
        %v8694 = vpop.f32.mrb[0].mxu0
        %8695 = vmatprep.mubr.bf16.mxu0 %v8476
        %8696 = vmatmul.mubr.bf16.gmra.mrb[0].mxu0 %v8475
        %v8697 = vpop.f32.mrb[0].mxu0
        %v8698 = vadd.f32 %v8593, %v8697
        %v8699 = vpop.f32.mrb[0].mxu0
        %v8700 = vpop.f32.mrb[0].mxu0
        %v8701 = vadd.f32 %v8598, %v8700
        %v8702 = vpop.f32.mrb[0].mxu0
        %8703 = vmatprep.mubr.bf16.mxu0 %v8480
        %8704 = vmatmul.mubr.bf16.gmra.mrb[0].mxu0 %v8479
        %v8705 = vpop.f32.mrb[0].mxu0
        %v8706 = vadd.f32 %v8603, %v8705
        %v8707 = vpop.f32.mrb[0].mxu0
        %v8708 = vpop.f32.mrb[0].mxu0
        %v8709 = vadd.f32 %v8608, %v8708
        %v8710 = vpop.f32.mrb[0].mxu0
        %8711 = vmatprep.mubr.bf16.mxu0 %v8484
        %8712 = vmatmul.mubr.bf16.gmra.mrb[0].mxu0 %v8483
        %v8713 = vpop.f32.mrb[0].mxu0
        %v8714 = vadd.f32 %v8613, %v8713
        %v8715 = vpop.f32.mrb[0].mxu0
        %v8716 = vpop.f32.mrb[0].mxu0
        %v8717 = vadd.f32 %v8618, %v8716
        %v8718 = vpop.f32.mrb[0].mxu0
        %8719 = vmatprep.mubr.bf16.mxu0 %v8488
        %8720 = vmatmul.mubr.bf16.gmra.mrb[0].mxu0 %v8487
        %v8721 = vpop.f32.mrb[0].mxu0
        %v8722 = vadd.f32 %v8623, %v8721
        %v8723 = vpop.f32.mrb[0].mxu0
        %v8724 = vpop.f32.mrb[0].mxu0
        %v8725 = vadd.f32 %v8628, %v8724
        %v8726 = vpop.f32.mrb[0].mxu0
        %8727 = vmatprep.mubr.bf16.mxu0 %v8492
        %8728 = vmatmul.mubr.bf16.gmra.mrb[0].mxu0 %v8491
        %v8729 = vpop.f32.mrb[0].mxu0
        %v8730 = vadd.f32 %v8633, %v8729
        %v8731 = vpop.f32.mrb[0].mxu0
        %v8732 = vpop.f32.mrb[0].mxu0
        %v8733 = vadd.f32 %v8638, %v8732
        %v8734 = vpop.f32.mrb[0].mxu0
        %8735 = vdwg.mxu0
        %8736 = vmatprep.subr.bf16.mxu0 %v7321
        %8737 = vmatpush1.bf16.xpose.msra.mxu0 %v7320
        %8738 = vmatprep.subr.bf16.mxu0 %v7325
        %8739 = vmatpush1.bf16.xpose.msra.mxu0 %v7324
        %8740 = vmatprep.subr.bf16.mxu0 %v7329
        %8741 = vmatpush1.bf16.xpose.msra.mxu0 %v7328
        %8742 = vmatprep.subr.bf16.mxu0 %v7333
        %8743 = vmatpush1.bf16.xpose.msra.mxu0 %v7332
        %8744 = vmatprep.subr.bf16.mxu0 %v7337
        %8745 = vmatpush1.bf16.xpose.msra.mxu0 %v7336
        %8746 = vmatprep.subr.bf16.mxu0 %v7341
        %8747 = vmatpush1.bf16.xpose.msra.mxu0 %v7340
        %8748 = vmatprep.subr.bf16.mxu0 %v7345
        %8749 = vmatpush1.bf16.xpose.msra.mxu0 %v7344
        %8750 = vmatprep.subr.bf16.mxu0 %v7349
        %8751 = vmatpush1.bf16.xpose.msra.mxu0 %v7348
        %8752 = vmatprep.subr.bf16.mxu0 0
        %8753 = vmatpush1.bf16.xpose.msra.mxu0 0
        %8754 = vmatprep.subr.bf16.mxu0 0
        %8755 = vmatpush1.bf16.xpose.msra.mxu0 0
        %8756 = vmatprep.subr.bf16.mxu0 0
        %8757 = vmatpush1.bf16.xpose.msra.mxu0 0
        %8758 = vmatprep.subr.bf16.mxu0 0
        %8759 = vmatpush1.bf16.xpose.msra.mxu0 0
        %8760 = vmatprep.subr.bf16.mxu0 0
        %8761 = vmatpush1.bf16.xpose.msra.mxu0 0
        %8762 = vmatprep.subr.bf16.mxu0 0
        %8763 = vmatpush1.bf16.xpose.msra.mxu0 0
        %8764 = vmatprep.subr.bf16.mxu0 0
        %8765 = vmatpush1.bf16.xpose.msra.mxu0 0
        %8766 = vmatprep.subr.bf16.mxu0 0
        %8767 = vmatpush1.bf16.xpose.msra.mxu0 0
        %8768 = vmatprep.mubr.bf16.mxu0 %v8466
        %8769 = vmatmul.mubr.bf16.gmra.mrb[0].mxu0 %v8465
        %v8770 = vpop.f32.mrb[0].mxu0
        %v8771 = vadd.f32 %v8674, %v8770
        %v8772 = vpop.f32.mrb[0].mxu0
        %v8773 = vpop.f32.mrb[0].mxu0
        %v8774 = vadd.f32 %v8677, %v8773
        %v8775 = vpop.f32.mrb[0].mxu0
        %8776 = vmatprep.mubr.bf16.mxu0 %v8470
        %8777 = vmatmul.mubr.bf16.gmra.mrb[0].mxu0 %v8469
        %v8778 = vpop.f32.mrb[0].mxu0
        %v8779 = vadd.f32 %v8682, %v8778
        %v8780 = vpop.f32.mrb[0].mxu0
        %v8781 = vpop.f32.mrb[0].mxu0
        %v8782 = vadd.f32 %v8685, %v8781
        %v8783 = vpop.f32.mrb[0].mxu0
        %8784 = vmatprep.mubr.bf16.mxu0 %v8474
        %8785 = vmatmul.mubr.bf16.gmra.mrb[0].mxu0 %v8473
        %v8786 = vpop.f32.mrb[0].mxu0
        %v8787 = vadd.f32 %v8690, %v8786
        %v8788 = vpop.f32.mrb[0].mxu0
        %v8789 = vpop.f32.mrb[0].mxu0
        %v8790 = vadd.f32 %v8693, %v8789
        %v8791 = vpop.f32.mrb[0].mxu0
        %8792 = vmatprep.mubr.bf16.mxu0 %v8478
        %8793 = vmatmul.mubr.bf16.gmra.mrb[0].mxu0 %v8477
        %v8794 = vpop.f32.mrb[0].mxu0
        %v8795 = vadd.f32 %v8698, %v8794
        %v8796 = vpop.f32.mrb[0].mxu0
        %v8797 = vpop.f32.mrb[0].mxu0
        %v8798 = vadd.f32 %v8701, %v8797
        %v8799 = vpop.f32.mrb[0].mxu0
        %8800 = vmatprep.mubr.bf16.mxu0 %v8482
        %8801 = vmatmul.mubr.bf16.gmra.mrb[0].mxu0 %v8481
        %v8802 = vpop.f32.mrb[0].mxu0
        %v8803 = vadd.f32 %v8706, %v8802
        %v8804 = vpop.f32.mrb[0].mxu0
        %v8805 = vpop.f32.mrb[0].mxu0
        %v8806 = vadd.f32 %v8709, %v8805
        %v8807 = vpop.f32.mrb[0].mxu0
        %8808 = vmatprep.mubr.bf16.mxu0 %v8486
        %8809 = vmatmul.mubr.bf16.gmra.mrb[0].mxu0 %v8485
        %v8810 = vpop.f32.mrb[0].mxu0
        %v8811 = vadd.f32 %v8714, %v8810
        %v8812 = vpop.f32.mrb[0].mxu0
        %v8813 = vpop.f32.mrb[0].mxu0
        %v8814 = vadd.f32 %v8717, %v8813
        %v8815 = vpop.f32.mrb[0].mxu0
        %8816 = vmatprep.mubr.bf16.mxu0 %v8490
        %8817 = vmatmul.mubr.bf16.gmra.mrb[0].mxu0 %v8489
        %v8818 = vpop.f32.mrb[0].mxu0
        %v8819 = vadd.f32 %v8722, %v8818
        %v8820 = vpop.f32.mrb[0].mxu0
        %v8821 = vpop.f32.mrb[0].mxu0
        %v8822 = vadd.f32 %v8725, %v8821
        %v8823 = vpop.f32.mrb[0].mxu0
        %8824 = vmatprep.mubr.bf16.mxu0 %v8494
        %8825 = vmatmul.mubr.bf16.gmra.mrb[0].mxu0 %v8493
        %v8826 = vpop.f32.mrb[0].mxu0
        %v8827 = vadd.f32 %v8730, %v8826
        %v8828 = vpop.f32.mrb[0].mxu0
        %v8829 = vpop.f32.mrb[0].mxu0
        %v8830 = vadd.f32 %v8733, %v8829
        %v8831 = vpop.f32.mrb[0].mxu0
        %8832 = vdwg.mxu0
        %v8833 = vstv %s1310
        %v8834 = vadd.f32 %v8771, %v8833
        %v8835 = vadd.f32 %v8774, %v8833
        %v8836 = vadd.f32 %v8779, %v8833
        %v8837 = vadd.f32 %v8782, %v8833
        %v8838 = vadd.f32 %v8787, %v8833
        %v8839 = vadd.f32 %v8790, %v8833
        %v8840 = vadd.f32 %v8795, %v8833
        %v8841 = vadd.f32 %v8798, %v8833
        %v8842 = vadd.f32 %v8803, %v8833
        %v8843 = vadd.f32 %v8806, %v8833
        %v8844 = vadd.f32 %v8811, %v8833
        %v8845 = vadd.f32 %v8814, %v8833
        %v8846 = vadd.f32 %v8819, %v8833
        %v8847 = vadd.f32 %v8822, %v8833
        %v8848 = vadd.f32 %v8827, %v8833
        %v8849 = vadd.f32 %v8830, %v8833
        %8850 = vst [vmem:[%s487] sm:$0xff] %v8834
        %8851 = vst [vmem:[%s487 + $0x8] sm:$0xff] %v8835
        %8852 = vst [vmem:[%s487 + $0x10] sm:$0xff] %v8836
        %8853 = vst [vmem:[%s487 + $0x18] sm:$0xff] %v8837
        %8854 = vst [vmem:[%s487 + $0x20] sm:$0xff] %v8838
        %8855 = vst [vmem:[%s487 + $0x28] sm:$0xff] %v8839
        %8856 = vst [vmem:[%s487 + $0x30] sm:$0xff] %v8840
        %8857 = vst [vmem:[%s487 + $0x38] sm:$0xff] %v8841
        %8858 = vst [vmem:[%s487 + $0x40] sm:$0xff] %v8842
        %8859 = vst [vmem:[%s487 + $0x48] sm:$0xff] %v8843
        %8860 = vst [vmem:[%s487 + $0x50] sm:$0xff] %v8844
        %8861 = vst [vmem:[%s487 + $0x58] sm:$0xff] %v8845
        %8862 = vst [vmem:[%s487 + $0x60] sm:$0xff] %v8846
        %8863 = vst [vmem:[%s487 + $0x68] sm:$0xff] %v8847
        %8864 = vst [vmem:[%s487 + $0x70] sm:$0xff] %v8848
        %8865 = vst [vmem:[%s487 + $0x78] sm:$0xff] %v8849
        %s8866 = sand.u32 %s256, 1
        %s8867 = scalar_lea.sflag [#allocation5], %s8866
        %s8868 = sand.u32 %s256, 1
        %s8869 = smul.addr %s8868, 128
        %s8870 = scalar_lea.vmem [#allocation18], %s8869
        // Predicated region
        $region97: #{tpu_custom_call.1} parent=59 // pred_check
          %p8871 = pneg %p266
        $region98: #{tpu_custom_call.1} parent=59 // pred_check_branch
          %8873 = sbr.rel (%p8871) target = $region100
        $region99: #{tpu_custom_call.1} parent=59 // pred_region
          %s8875 = ssub.s32 2048, 2048
          %8876 = vsyncadd %s8867, %s8875
          %s8877 = smul.addr %s33, 16
          %s8878 = smul.addr %s8877, 128
          %s8879 = scalar_lea.hbm %s10, %s8878
          %s8880 = sshll.u32 %s8870, 4
          %s8881 = int_to_ptr.vmem [resolvable:$true] %s8880
          %8886 = dma.vmem_to_hbm [thread:$0]  %s8881, 2048, %s8879, %s8867, 128, 128, 8
        $region100: #{tpu_custom_call.1} parent=59 // pred_fallthru
          _
      $region60: #{tpu_custom_call.1} parent=5 // pred_fallthru
        _
      %p8887 = scmp.le.s32.totalorder 2, %s28
      // Predicated region
      $region101: #{tpu_custom_call.1} parent=5 // pred_check
        %p8888 = pneg %p8887
      $region102: #{tpu_custom_call.1} parent=5 // pred_check_branch
        %8890 = sbr.rel (%p8888) target = $region104
      $region103: #{tpu_custom_call.1} parent=5 // pred_region
        %s8891 = ssub.s32 %s28, 2
        // Predicated region
        $region105: #{tpu_custom_call.1} parent=103 // pred_check
          %p8892 = pneg %p272
        $region106: #{tpu_custom_call.1} parent=103 // pred_check_branch
          %8894 = sbr.rel (%p8892) target = $region108
        $region107: #{tpu_custom_call.1} parent=103 // pred_region
          %s8895 = sand.u32 %s257, 1
          %s8896 = scalar_lea.sflag [#allocation5], %s8895
          %s8897 = sand.u32 %s257, 1
          %s8898 = smul.addr %s8897, 128
          %s8899 = scalar_lea.vmem [#allocation18], %s8898
          %8900 = dma.done %s8896, 2048
        $region108: #{tpu_custom_call.1} parent=103 // pred_fallthru
          _
      $region104: #{tpu_custom_call.1} parent=5 // pred_fallthru
        _
    $region6: #{tpu_custom_call.1} parent=1 // loop_footer
      %s32 = sadd.s32 1, %s28
    $region7: #{tpu_custom_call.1} parent=1 // loop_footer_branch
      %27 = sbr.rel target = $region3
    $region8: #{tpu_custom_call.1} parent=1 // loop_exit
      _
    %8901 = vsyncpa [#allocation4], 1
    %s8902 = scalar_lea.sflag [#allocation4], 1
    %8903 = vsyncpa %s8902, 1
    %8904 = vsyncpa [#allocation7], 1
    %8905 = vsyncpa [#allocation10], 1
    %8906 = vsyncpa [#allocation13], 1
    %8907 = vsyncpa [#allocation16], 1
    %8908 = vsyncpa [#allocation5], 1
    %s8909 = scalar_lea.sflag [#allocation5], 1
    %8910 = vsyncpa %s8909, 1

</llo_original>
